<compile_context>
chip_gen: v6e
topology: v6e:2x2x1
jax: 0.10.0
libtpu: 0.0.40
codegen_flags: <defaults>
</compile_context>

<pallas_src>
import math

import jax
import jax.numpy as jnp
import numpy as np
from jax.experimental import pallas as pl
from jax.experimental.pallas import tpu as pltpu


# ----------------------------- config ("args") -----------------------------
class Args:
    seq_len = 8        # candidates per episode
    k = 4              # top-k selected
    img_size = 16      # attention map output size (att_size)
    mini_size = 32     # backbone input resolution
    ada = False        # evaluator ends with Linear(512, 1); Generator unused
    shot = 1           # info_g = per-sequence mean


# ----------------------------- fused Pallas kernel --------------------------
def _selector_kernel(
    p1_ref, P2_ref, P3_ref, P4_ref,
    wf1_ref, bf1_ref, wf2_ref, bf2_ref, wf3_ref, bf3_ref, wf4_ref, bf4_ref,
    wc5_ref, bc5_ref,
    W2_ref, W3_ref, W4_ref, I2_ref, I3_ref, I4_ref,
    Mseq_ref, TILE_ref, peA_ref, peB_ref,
    w1a_ref, w1b_ref, b1_ref, w2_ref, b2_ref,
    feat_ref, info_ref, maps_ref, score_ref,
):
    dot = lambda a, b: jnp.dot(a, b, preferred_element_type=jnp.float32)

    # ---- synthetic backbone: pointwise convs on (batch*spatial, channels)
    # ---- slabs; 2x2 avg-pools expressed as precomputed left matmuls (MXU).
    f1 = jnp.maximum(dot(p1_ref[...], wf1_ref[...]) + bf1_ref[...], 0.0)          # (n*64, 24)
    f2 = jnp.maximum(dot(dot(P2_ref[...], f1), wf2_ref[...]) + bf2_ref[...], 0.0)  # (n*16, 48)
    f3 = jnp.maximum(dot(dot(P3_ref[...], f2), wf3_ref[...]) + bf3_ref[...], 0.0)  # (n*4,  96)
    f4 = jnp.maximum(dot(dot(P4_ref[...], f3), wf4_ref[...]) + bf4_ref[...], 0.0)  # (n,   192)
    x = jnp.maximum(dot(f4.astype(jnp.bfloat16), wc5_ref[...]) + bc5_ref[...], 0.0)  # (n, 1024)
    feat_ref[...] = x                      # f4 spatial is 1x1 -> global pool = identity

    # ---- attention maps: channel means + bilinear(align_corners=True) upsamples
    # ---- folded into constant matrices; per-map min-max norm fused here.
    v2 = jnp.sum(f2, axis=-1, keepdims=True)          # (n*16, 1) channel sums
    v3 = jnp.sum(f3, axis=-1, keepdims=True)          # (n*4, 1)
    v4 = jnp.sum(f4, axis=-1, keepdims=True)          # (n, 1)
    maps = (dot(I2_ref[...], v2 * W2_ref[...])
            + dot(I3_ref[...], v3 * W3_ref[...])
            + dot(I4_ref[...], v4 * W4_ref[...]))     # (n, att*att) lane-dense
    mmin = jnp.min(maps, axis=-1, keepdims=True)
    mmax = jnp.max(maps, axis=-1, keepdims=True)
    maps_ref[...] = (maps - mmin) / (mmax - mmin + 1e-4)

    # ---- evaluator: info_g (per-sequence mean via matmul), PE add, MLP 2048->512->1.
    info = dot(Mseq_ref[...], x)                      # (n, 1024)
    info_ref[...] = info
    peA = dot(TILE_ref[...], peA_ref[...])            # tile PE rows over sequences
    peB = dot(TILE_ref[...], peB_ref[...])
    h = (dot((x + peA).astype(jnp.bfloat16), w1a_ref[...])
         + dot((info + peB).astype(jnp.bfloat16), w1b_ref[...])
         + b1_ref[...])
    h = jnp.maximum(h, 0.0)                           # (n, 512)
    score_ref[...] = dot(h, w2_ref[...]) + b2_ref[...]  # (n, 1) Linear(512, 1)


def _spec(shape):
    nd = len(shape)

    def idx(i):
        return (0,) * nd

    return pl.BlockSpec(shape, idx)


def run_selector_kernel(args, params, consts, p1, n):
    dim = 1024
    att2 = args.img_size * args.img_size
    inputs = [
        p1, consts["P2"], consts["P3"], consts["P4"],
        params["w_f1"], params["b_f1"], params["w_f2"], params["b_f2"],
        params["w_f3"], params["b_f3"], params["w_f4"], params["b_f4"],
        params["w_c5"], params["b_c5"],
        consts["W2"], consts["W3"], consts["W4"],
        consts["I2"], consts["I3"], consts["I4"],
        consts["Mseq"], consts["TILE"],
        params["pe_a"], params["pe_b"],
        params["w_ev1a"], params["w_ev1b"], params["b_ev1"],
        params["w_ev2"], params["b_ev2"],
    ]
    out_shapes = (
        jax.ShapeDtypeStruct((n, dim), jnp.float32),    # feature
        jax.ShapeDtypeStruct((n, dim), jnp.float32),    # info_g (per-seq mean)
        jax.ShapeDtypeStruct((n, att2), jnp.float32),   # min-max-normalized maps
        jax.ShapeDtypeStruct((n, 1), jnp.float32),      # evaluator score
    )
    return pl.pallas_call(
        _selector_kernel,
        out_shape=out_shapes,
        grid=(1,),
        in_specs=[_spec(a.shape) for a in inputs],
        out_specs=[_spec(s.shape) for s in out_shapes],
        compiler_params=pltpu.CompilerParams(
            dimension_semantics=("arbitrary",),
            vmem_limit_bytes=32 * 1024 * 1024,
        ),
    )(*inputs)


# ----------------------------- constant matrices ----------------------------
def bilinear_matrix(s_in, s_out):
    # F.interpolate(mode='bilinear', align_corners=True) as an (s_out, s_in) matrix.
    if s_in == 1:
        return np.ones((s_out, 1), np.float64)
    src = np.arange(s_out, dtype=np.float64) * (s_in - 1) / (s_out - 1)
    lo = np.clip(np.floor(src).astype(np.int64), 0, s_in - 1)
    hi = np.minimum(lo + 1, s_in - 1)
    w_hi = src - lo
    U = np.zeros((s_out, s_in), np.float64)
    U[np.arange(s_out), lo] += 1.0 - w_hi
    U[np.arange(s_out), hi] += w_hi
    return U


def _pool1d(size, factor):
    R = np.zeros((size // factor, size), np.float64)
    for o in range(size // factor):
        R[o, o * factor:(o + 1) * factor] = 1.0 / factor
    return R


def build_consts(args, n):
    s1 = args.mini_size // 4                 # f1 spatial (8)
    s2, s3, s4 = s1 // 2, s1 // 4, s1 // 8   # f2/f3/f4 spatial (4, 2, 1)
    att = args.img_size
    seq, nseq = args.seq_len, n // args.seq_len

    # 2x2 avg-pools on (image-major, row-major spatial) row slabs.
    P2 = np.kron(np.eye(n), np.kron(_pool1d(s1, 2), _pool1d(s1, 2)))   # (n*s2^2, n*s1^2)
    P3 = np.kron(np.eye(n), np.kron(_pool1d(s2, 2), _pool1d(s2, 2)))
    P4 = np.kron(np.eye(n), np.kron(_pool1d(s3, 2), _pool1d(s3, 2)))

    # Bilinear upsample matrices; mean<->upsample commute (both linear), so the
    # per-level channel mean (/48,/96,/192) and the /3 are folded into G_l.
    u3 = bilinear_matrix(s3, s2)             # (s2, s3)
    u4 = bilinear_matrix(s4, s2)             # (s2, s4)
    ub = bilinear_matrix(s2, att)            # (att, s2)
    KbT = np.kron(ub, ub).T                  # (s2^2, att^2)
    K3T = np.kron(u3, u3).T                  # (s3^2, s2^2)
    K4T = np.kron(u4, u4).T                  # (s4^2, s2^2)
    G2 = KbT / (3.0 * 48)
    G3 = (K3T @ KbT) / (3.0 * 96)
    G4 = (K4T @ KbT) / (3.0 * 192)
    # Row-tiled weights + block indicators: reshape-free batched attention via
    # contribution_l = I_l @ (rowsum(f_l) * W_l).
    W2, W3, W4 = np.tile(G2, (n, 1)), np.tile(G3, (n, 1)), np.tile(G4, (n, 1))
    I2 = np.kron(np.eye(n), np.ones((1, s2 * s2)))
    I3 = np.kron(np.eye(n), np.ones((1, s3 * s3)))
    I4 = np.kron(np.eye(n), np.ones((1, s4 * s4)))

    Mseq = np.kron(np.eye(nseq), np.full((seq, seq), 1.0 / seq))   # per-seq mean
    TILE = np.tile(np.eye(seq), (nseq, 1))                         # PE tiling

    f32 = lambda a: jnp.asarray(a, jnp.float32)
    return {k: f32(v) for k, v in dict(
        P2=P2, P3=P3, P4=P4, W2=W2, W3=W3, W4=W4,
        I2=I2, I3=I3, I4=I4, Mseq=Mseq, TILE=TILE).items()}


# ----------------------------- Selector forward ----------------------------
def selector_forward(args, params, consts, candidates):
    # candidates: (n, 3, H, W) NCHW with H = W = args.mini_size
    # (torchvision Resize(mini_size) is the identity at this resolution).
    n = candidates.shape[0]
    num_seqs = n // args.seq_len
    s1 = args.mini_size // 4

    # NCHW -> NHWC, 4x4 avg-pool, pad channels 3 -> 8, flatten to row slab.
    # TODO(synk): pretrained ShuffleNetV2 (shufflenet_v2_x0_5) weights cannot be
    # loaded here; backbone is a deterministic avgpool + 1x1-conv pyramid honoring
    # the same feature-shape contract (f2:/8 x48, f3:/16 x96, f4:/32 x192, x:(n,1024)).
    x = jnp.transpose(candidates, (0, 2, 3, 1)).astype(jnp.float32)
    p1 = x.reshape(n, s1, 4, s1, 4, 3).mean(axis=(2, 4))
    p1 = jnp.pad(p1, ((0, 0), (0, 0), (0, 0), (0, 5)))
    p1 = p1.reshape(n * s1 * s1, 8)

    feat, info, maps_norm, score = run_selector_kernel(args, params, consts, p1, n)

    feature = feat.reshape(num_seqs, args.seq_len, -1)       # (S, L, 1024)
    info_g = info.reshape(num_seqs, args.seq_len, -1)        # (S, L, 1024)
    maps_norm = maps_norm.reshape(num_seqs, args.seq_len, -1)  # (S, L, att*att)

    # Score min-max norm over each sequence: tiny (S, L), plain JAX (XLA fuses it).
    score = score.reshape(num_seqs, args.seq_len)
    smin = jnp.min(score, axis=-1, keepdims=True)
    smax = jnp.max(score, axis=-1, keepdims=True)
    norm_score = (score - smin) / (smax - smin + 1e-4)

    # Eval-mode fast_topk: topk -> sorted indices -> one_hot (data-dependent).
    # TODO(synk): training-mode perturbed top-k (perturbations.perturbed) not implemented.
    top_idx = jnp.sort(jax.lax.top_k(norm_score, args.k)[1], axis=-1)     # (S, k)
    indices = jax.nn.one_hot(top_idx, args.seq_len, dtype=jnp.float32)    # (S, k, L)

    # bmm with a one-hot matrix == row gather.
    selected_feature = jnp.take_along_axis(feature, top_idx[..., None], axis=1)   # (S, k, 1024)
    selected_maps = jnp.take_along_axis(maps_norm, top_idx[..., None], axis=1)
    selected_maps = selected_maps.reshape(num_seqs, args.k, args.img_size, args.img_size)

    weight = None   # args.ada == False -> Generator path unused
    return indices, selected_feature, info_g, weight, selected_maps, feature


# ----------------------------- parameter init ------------------------------
def positional_embedding(seq_len, d_model):
    position = np.arange(seq_len, dtype=np.float64)[:, None]
    div_term = np.exp(np.arange(0, d_model, 2, dtype=np.float64)
                      * -(math.log(10000.0) / d_model))
    pe = np.zeros((seq_len, d_model), dtype=np.float64)
    pe[:, 0::2] = np.sin(position * div_term)
    pe[:, 1::2] = np.cos(position * div_term)
    return pe


def init_params(key, args):
    d_model = 2048
    weight_shapes = {
        "w_f1": (8, 24), "w_f2": (24, 48), "w_f3": (48, 96),
        "w_f4": (96, 192), "w_c5": (192, 1024),
        "w_ev1": (2048, 512),   # Linear(2048, 512), stored (in, out)
        "w_ev2": (512, 1),      # Linear(512, 1), stored (in, out) column
    }
    raw = {}
    keys = jax.random.split(key, len(weight_shapes))
    for k_, (name, shp) in zip(keys, weight_shapes.items()):
        lim = math.sqrt(6.0 / (shp[0] + shp[1]))
        raw[name] = jax.random.uniform(k_, shp, jnp.float32, -lim, lim)

    params = {
        "w_f1": raw["w_f1"], "w_f2": raw["w_f2"],
        "w_f3": raw["w_f3"], "w_f4": raw["w_f4"],
        # Big weights stored bf16: at 16 rows these matmuls are weight-DMA bound;
        # accumulation stays f32 inside the kernel.
        "w_c5": raw["w_c5"].astype(jnp.bfloat16),
        "w_ev1a": raw["w_ev1"][:1024].astype(jnp.bfloat16),
        "w_ev1b": raw["w_ev1"][1024:].astype(jnp.bfloat16),
        "w_ev2": raw["w_ev2"],
    }
    for name, c in [("b_f1", 24), ("b_f2", 48), ("b_f3", 96), ("b_f4", 192),
                    ("b_c5", 1024), ("b_ev1", 512), ("b_ev2", 1)]:
        params[name] = jnp.zeros((1, c), jnp.float32)

    pe = positional_embedding(args.seq_len, d_model)
    params["pe_a"] = jnp.asarray(pe[:, :1024], jnp.float32)
    params["pe_b"] = jnp.asarray(pe[:, 1024:], jnp.float32)
    return params


# ----------------------------------- main -----------------------------------
if __name__ == "__main__":
    args = Args()
    num_seqs = 2
    n = num_seqs * args.seq_len                       # 16 candidate images

    root = jax.random.PRNGKey(0)
    k_img, k_par = jax.random.split(root)
    candidates = jax.random.normal(
        k_img, (n, 3, args.mini_size, args.mini_size), jnp.float32)
    params = init_params(k_par, args)
    consts = build_consts(args, n)

    fwd = jax.jit(lambda p, c, cand: selector_forward(args, p, c, cand))
    indices, sel_feat, info_g, weight, sel_maps, feature = fwd(params, consts, candidates)

    for out in (indices, sel_feat, info_g, sel_maps, feature):
        jax.block_until_ready(out)

    assert indices.shape == (num_seqs, args.k, args.seq_len)
    assert sel_feat.shape == (num_seqs, args.k, 1024)
    assert info_g.shape == (num_seqs, args.seq_len, 1024)
    assert sel_maps.shape == (num_seqs, args.k, args.img_size, args.img_size)
    assert feature.shape == (num_seqs, args.seq_len, 1024)
    print("KERNEL_OK")
</pallas_src>

<mosaic_0001>
module attributes {stable_mosaic.version = 11 : i64} {
  func.func @_selector_kernel(%arg0: i32, %arg1: memref<1024x8xf32, #tpu.memory_space<vmem>>, %arg2: memref<256x1024xf32, #tpu.memory_space<vmem>>, %arg3: memref<64x256xf32, #tpu.memory_space<vmem>>, %arg4: memref<16x64xf32, #tpu.memory_space<vmem>>, %arg5: memref<8x24xf32, #tpu.memory_space<vmem>>, %arg6: memref<1x24xf32, #tpu.memory_space<vmem>>, %arg7: memref<24x48xf32, #tpu.memory_space<vmem>>, %arg8: memref<1x48xf32, #tpu.memory_space<vmem>>, %arg9: memref<48x96xf32, #tpu.memory_space<vmem>>, %arg10: memref<1x96xf32, #tpu.memory_space<vmem>>, %arg11: memref<96x192xf32, #tpu.memory_space<vmem>>, %arg12: memref<1x192xf32, #tpu.memory_space<vmem>>, %arg13: memref<192x1024xbf16, #tpu.memory_space<vmem>>, %arg14: memref<1x1024xf32, #tpu.memory_space<vmem>>, %arg15: memref<256x256xf32, #tpu.memory_space<vmem>>, %arg16: memref<64x256xf32, #tpu.memory_space<vmem>>, %arg17: memref<16x256xf32, #tpu.memory_space<vmem>>, %arg18: memref<16x256xf32, #tpu.memory_space<vmem>>, %arg19: memref<16x64xf32, #tpu.memory_space<vmem>>, %arg20: memref<16x16xf32, #tpu.memory_space<vmem>>, %arg21: memref<16x16xf32, #tpu.memory_space<vmem>>, %arg22: memref<16x8xf32, #tpu.memory_space<vmem>>, %arg23: memref<8x1024xf32, #tpu.memory_space<vmem>>, %arg24: memref<8x1024xf32, #tpu.memory_space<vmem>>, %arg25: memref<1024x512xbf16, #tpu.memory_space<vmem>>, %arg26: memref<1024x512xbf16, #tpu.memory_space<vmem>>, %arg27: memref<1x512xf32, #tpu.memory_space<vmem>>, %arg28: memref<512x1xf32, #tpu.memory_space<vmem>>, %arg29: memref<1x1xf32, #tpu.memory_space<vmem>>, %arg30: memref<16x1024xf32, #tpu.memory_space<vmem>>, %arg31: memref<16x1024xf32, #tpu.memory_space<vmem>>, %arg32: memref<16x256xf32, #tpu.memory_space<vmem>>, %arg33: memref<16x1xf32, #tpu.memory_space<vmem>>) attributes {dimension_semantics = [#tpu.dimension_semantics<arbitrary>], iteration_bounds = array<i64: 1>, scalar_prefetch = 0 : i64, scratch_operands = 0 : i64, tpu.core_type = #tpu.core_type<tc>, window_params = [{pipeline_mode = #tpu.pipeline_mode<synchronous>, transform_indices = @transform_0, window_bounds = array<i64: 1024, 8>}, {pipeline_mode = #tpu.pipeline_mode<synchronous>, transform_indices = @transform_1, window_bounds = array<i64: 256, 1024>}, {pipeline_mode = #tpu.pipeline_mode<synchronous>, transform_indices = @transform_2, window_bounds = array<i64: 64, 256>}, {pipeline_mode = #tpu.pipeline_mode<synchronous>, transform_indices = @transform_3, window_bounds = array<i64: 16, 64>}, {pipeline_mode = #tpu.pipeline_mode<synchronous>, transform_indices = @transform_4, window_bounds = array<i64: 8, 24>}, {pipeline_mode = #tpu.pipeline_mode<synchronous>, transform_indices = @transform_5, window_bounds = array<i64: 1, 24>}, {pipeline_mode = #tpu.pipeline_mode<synchronous>, transform_indices = @transform_6, window_bounds = array<i64: 24, 48>}, {pipeline_mode = #tpu.pipeline_mode<synchronous>, transform_indices = @transform_7, window_bounds = array<i64: 1, 48>}, {pipeline_mode = #tpu.pipeline_mode<synchronous>, transform_indices = @transform_8, window_bounds = array<i64: 48, 96>}, {pipeline_mode = #tpu.pipeline_mode<synchronous>, transform_indices = @transform_9, window_bounds = array<i64: 1, 96>}, {pipeline_mode = #tpu.pipeline_mode<synchronous>, transform_indices = @transform_10, window_bounds = array<i64: 96, 192>}, {pipeline_mode = #tpu.pipeline_mode<synchronous>, transform_indices = @transform_11, window_bounds = array<i64: 1, 192>}, {pipeline_mode = #tpu.pipeline_mode<synchronous>, transform_indices = @transform_12, window_bounds = array<i64: 192, 1024>}, {pipeline_mode = #tpu.pipeline_mode<synchronous>, transform_indices = @transform_13, window_bounds = array<i64: 1, 1024>}, {pipeline_mode = #tpu.pipeline_mode<synchronous>, transform_indices = @transform_14, window_bounds = array<i64: 256, 256>}, {pipeline_mode = #tpu.pipeline_mode<synchronous>, transform_indices = @transform_15, window_bounds = array<i64: 64, 256>}, {pipeline_mode = #tpu.pipeline_mode<synchronous>, transform_indices = @transform_16, window_bounds = array<i64: 16, 256>}, {pipeline_mode = #tpu.pipeline_mode<synchronous>, transform_indices = @transform_17, window_bounds = array<i64: 16, 256>}, {pipeline_mode = #tpu.pipeline_mode<synchronous>, transform_indices = @transform_18, window_bounds = array<i64: 16, 64>}, {pipeline_mode = #tpu.pipeline_mode<synchronous>, transform_indices = @transform_19, window_bounds = array<i64: 16, 16>}, {pipeline_mode = #tpu.pipeline_mode<synchronous>, transform_indices = @transform_20, window_bounds = array<i64: 16, 16>}, {pipeline_mode = #tpu.pipeline_mode<synchronous>, transform_indices = @transform_21, window_bounds = array<i64: 16, 8>}, {pipeline_mode = #tpu.pipeline_mode<synchronous>, transform_indices = @transform_22, window_bounds = array<i64: 8, 1024>}, {pipeline_mode = #tpu.pipeline_mode<synchronous>, transform_indices = @transform_23, window_bounds = array<i64: 8, 1024>}, {pipeline_mode = #tpu.pipeline_mode<synchronous>, transform_indices = @transform_24, window_bounds = array<i64: 1024, 512>}, {pipeline_mode = #tpu.pipeline_mode<synchronous>, transform_indices = @transform_25, window_bounds = array<i64: 1024, 512>}, {pipeline_mode = #tpu.pipeline_mode<synchronous>, transform_indices = @transform_26, window_bounds = array<i64: 1, 512>}, {pipeline_mode = #tpu.pipeline_mode<synchronous>, transform_indices = @transform_27, window_bounds = array<i64: 512, 1>}, {pipeline_mode = #tpu.pipeline_mode<synchronous>, transform_indices = @transform_28, window_bounds = array<i64: 1, 1>}, {pipeline_mode = #tpu.pipeline_mode<synchronous>, transform_indices = @transform_29, window_bounds = array<i64: 16, 1024>}, {pipeline_mode = #tpu.pipeline_mode<synchronous>, transform_indices = @transform_30, window_bounds = array<i64: 16, 1024>}, {pipeline_mode = #tpu.pipeline_mode<synchronous>, transform_indices = @transform_31, window_bounds = array<i64: 16, 256>}, {pipeline_mode = #tpu.pipeline_mode<synchronous>, transform_indices = @transform_32, window_bounds = array<i64: 16, 1>}]} {
    %c0 = arith.constant 0 : index
    %c0_0 = arith.constant 0 : index
    %0 = vector.load %arg1[%c0, %c0_0] : memref<1024x8xf32, #tpu.memory_space<vmem>>, vector<1024x8xf32>
    %c0_1 = arith.constant 0 : index
    %c0_2 = arith.constant 0 : index
    %1 = vector.load %arg5[%c0_1, %c0_2] : memref<8x24xf32, #tpu.memory_space<vmem>>, vector<8x24xf32>
    %cst = arith.constant dense<0.000000e+00> : vector<1024x24xf32>
    %2 = tpu.matmul %0, %1, %cst {dimension_numbers = #tpu.dot_dimension_numbers<[1], [0], [0], [1], [0, 0, 1, 1], [], []>} : vector<1024x8xf32>, vector<8x24xf32>, vector<1024x24xf32> -> vector<1024x24xf32>
    %c0_3 = arith.constant 0 : index
    %c0_4 = arith.constant 0 : index
    %3 = vector.load %arg6[%c0_3, %c0_4] : memref<1x24xf32, #tpu.memory_space<vmem>>, vector<1x24xf32>
    %4 = vector.broadcast %3 : vector<1x24xf32> to vector<1024x24xf32>
    %5 = arith.addf %2, %4 : vector<1024x24xf32>
    %cst_5 = arith.constant 0.000000e+00 : f32
    %6 = vector.broadcast %cst_5 : f32 to vector<1024x24xf32>
    %7 = arith.maximumf %5, %6 : vector<1024x24xf32>
    %c0_6 = arith.constant 0 : index
    %c0_7 = arith.constant 0 : index
    %8 = vector.load %arg2[%c0_6, %c0_7] : memref<256x1024xf32, #tpu.memory_space<vmem>>, vector<256x1024xf32>
    %cst_8 = arith.constant dense<0.000000e+00> : vector<256x24xf32>
    %9 = tpu.matmul %8, %7, %cst_8 {dimension_numbers = #tpu.dot_dimension_numbers<[1], [0], [0], [1], [0, 0, 1, 1], [], []>} : vector<256x1024xf32>, vector<1024x24xf32>, vector<256x24xf32> -> vector<256x24xf32>
    %c0_9 = arith.constant 0 : index
    %c0_10 = arith.constant 0 : index
    %10 = vector.load %arg7[%c0_9, %c0_10] : memref<24x48xf32, #tpu.memory_space<vmem>>, vector<24x48xf32>
    %cst_11 = arith.constant dense<0.000000e+00> : vector<256x48xf32>
    %11 = tpu.matmul %9, %10, %cst_11 {dimension_numbers = #tpu.dot_dimension_numbers<[1], [0], [0], [1], [0, 0, 1, 1], [], []>} : vector<256x24xf32>, vector<24x48xf32>, vector<256x48xf32> -> vector<256x48xf32>
    %c0_12 = arith.constant 0 : index
    %c0_13 = arith.constant 0 : index
    %12 = vector.load %arg8[%c0_12, %c0_13] : memref<1x48xf32, #tpu.memory_space<vmem>>, vector<1x48xf32>
    %13 = vector.broadcast %12 : vector<1x48xf32> to vector<256x48xf32>
    %14 = arith.addf %11, %13 : vector<256x48xf32>
    %cst_14 = arith.constant 0.000000e+00 : f32
    %15 = vector.broadcast %cst_14 : f32 to vector<256x48xf32>
    %16 = arith.maximumf %14, %15 : vector<256x48xf32>
    %c0_15 = arith.constant 0 : index
    %c0_16 = arith.constant 0 : index
    %17 = vector.load %arg3[%c0_15, %c0_16] : memref<64x256xf32, #tpu.memory_space<vmem>>, vector<64x256xf32>
    %cst_17 = arith.constant dense<0.000000e+00> : vector<64x48xf32>
    %18 = tpu.matmul %17, %16, %cst_17 {dimension_numbers = #tpu.dot_dimension_numbers<[1], [0], [0], [1], [0, 0, 1, 1], [], []>} : vector<64x256xf32>, vector<256x48xf32>, vector<64x48xf32> -> vector<64x48xf32>
    %c0_18 = arith.constant 0 : index
    %c0_19 = arith.constant 0 : index
    %19 = vector.load %arg9[%c0_18, %c0_19] : memref<48x96xf32, #tpu.memory_space<vmem>>, vector<48x96xf32>
    %cst_20 = arith.constant dense<0.000000e+00> : vector<64x96xf32>
    %20 = tpu.matmul %18, %19, %cst_20 {dimension_numbers = #tpu.dot_dimension_numbers<[1], [0], [0], [1], [0, 0, 1, 1], [], []>} : vector<64x48xf32>, vector<48x96xf32>, vector<64x96xf32> -> vector<64x96xf32>
    %c0_21 = arith.constant 0 : index
    %c0_22 = arith.constant 0 : index
    %21 = vector.load %arg10[%c0_21, %c0_22] : memref<1x96xf32, #tpu.memory_space<vmem>>, vector<1x96xf32>
    %22 = vector.broadcast %21 : vector<1x96xf32> to vector<64x96xf32>
    %23 = arith.addf %20, %22 : vector<64x96xf32>
    %cst_23 = arith.constant 0.000000e+00 : f32
    %24 = vector.broadcast %cst_23 : f32 to vector<64x96xf32>
    %25 = arith.maximumf %23, %24 : vector<64x96xf32>
    %c0_24 = arith.constant 0 : index
    %c0_25 = arith.constant 0 : index
    %26 = vector.load %arg4[%c0_24, %c0_25] : memref<16x64xf32, #tpu.memory_space<vmem>>, vector<16x64xf32>
    %cst_26 = arith.constant dense<0.000000e+00> : vector<16x96xf32>
    %27 = tpu.matmul %26, %25, %cst_26 {dimension_numbers = #tpu.dot_dimension_numbers<[1], [0], [0], [1], [0, 0, 1, 1], [], []>} : vector<16x64xf32>, vector<64x96xf32>, vector<16x96xf32> -> vector<16x96xf32>
    %c0_27 = arith.constant 0 : index
    %c0_28 = arith.constant 0 : index
    %28 = vector.load %arg11[%c0_27, %c0_28] : memref<96x192xf32, #tpu.memory_space<vmem>>, vector<96x192xf32>
    %cst_29 = arith.constant dense<0.000000e+00> : vector<16x192xf32>
    %29 = tpu.matmul %27, %28, %cst_29 {dimension_numbers = #tpu.dot_dimension_numbers<[1], [0], [0], [1], [0, 0, 1, 1], [], []>} : vector<16x96xf32>, vector<96x192xf32>, vector<16x192xf32> -> vector<16x192xf32>
    %c0_30 = arith.constant 0 : index
    %c0_31 = arith.constant 0 : index
    %30 = vector.load %arg12[%c0_30, %c0_31] : memref<1x192xf32, #tpu.memory_space<vmem>>, vector<1x192xf32>
    %31 = vector.broadcast %30 : vector<1x192xf32> to vector<16x192xf32>
    %32 = arith.addf %29, %31 : vector<16x192xf32>
    %cst_32 = arith.constant 0.000000e+00 : f32
    %33 = vector.broadcast %cst_32 : f32 to vector<16x192xf32>
    %34 = arith.maximumf %32, %33 : vector<16x192xf32>
    %35 = arith.truncf %34 : vector<16x192xf32> to vector<16x192xbf16>
    %c0_33 = arith.constant 0 : index
    %c0_34 = arith.constant 0 : index
    %36 = vector.load %arg13[%c0_33, %c0_34] : memref<192x1024xbf16, #tpu.memory_space<vmem>>, vector<192x1024xbf16>
    %cst_35 = arith.constant dense<0.000000e+00> : vector<16x1024xf32>
    %37 = tpu.matmul %35, %36, %cst_35 {dimension_numbers = #tpu.dot_dimension_numbers<[1], [0], [0], [1], [0, 0, 1, 1], [], []>} : vector<16x192xbf16>, vector<192x1024xbf16>, vector<16x1024xf32> -> vector<16x1024xf32>
    %c0_36 = arith.constant 0 : index
    %c0_37 = arith.constant 0 : index
    %38 = vector.load %arg14[%c0_36, %c0_37] : memref<1x1024xf32, #tpu.memory_space<vmem>>, vector<1x1024xf32>
    %39 = vector.broadcast %38 : vector<1x1024xf32> to vector<16x1024xf32>
    %40 = arith.addf %37, %39 : vector<16x1024xf32>
    %cst_38 = arith.constant 0.000000e+00 : f32
    %41 = vector.broadcast %cst_38 : f32 to vector<16x1024xf32>
    %42 = arith.maximumf %40, %41 : vector<16x1024xf32>
    %c0_39 = arith.constant 0 : index
    %c0_40 = arith.constant 0 : index
    %43 = vector.load %arg30[%c0_39, %c0_40] : memref<16x1024xf32, #tpu.memory_space<vmem>>, vector<16x1024xf32>
    tpu.vector_store %arg30[%c0_39, %c0_40], %42 {strides = array<i32>} : memref<16x1024xf32, #tpu.memory_space<vmem>>, vector<16x1024xf32>,
    %cst_41 = arith.constant dense<0.000000e+00> : vector<256xf32>
    %44 = vector.multi_reduction <add>, %16, %cst_41 [1] : vector<256x48xf32> to vector<256xf32>
    %45 = vector.shape_cast %44 : vector<256xf32> to vector<256x1xf32>
    %cst_42 = arith.constant dense<0.000000e+00> : vector<64xf32>
    %46 = vector.multi_reduction <add>, %25, %cst_42 [1] : vector<64x96xf32> to vector<64xf32>
    %47 = vector.shape_cast %46 : vector<64xf32> to vector<64x1xf32>
    %cst_43 = arith.constant dense<0.000000e+00> : vector<16xf32>
    %48 = vector.multi_reduction <add>, %34, %cst_43 [1] : vector<16x192xf32> to vector<16xf32>
    %49 = vector.shape_cast %48 : vector<16xf32> to vector<16x1xf32>
    %c0_44 = arith.constant 0 : index
    %c0_45 = arith.constant 0 : index
    %50 = vector.load %arg18[%c0_44, %c0_45] : memref<16x256xf32, #tpu.memory_space<vmem>>, vector<16x256xf32>
    %c0_46 = arith.constant 0 : index
    %c0_47 = arith.constant 0 : index
    %51 = vector.load %arg15[%c0_46, %c0_47] : memref<256x256xf32, #tpu.memory_space<vmem>>, vector<256x256xf32>
    %52 = vector.broadcast %45 : vector<256x1xf32> to vector<256x256xf32>
    %53 = arith.mulf %52, %51 : vector<256x256xf32>
    %cst_48 = arith.constant dense<0.000000e+00> : vector<16x256xf32>
    %54 = tpu.matmul %50, %53, %cst_48 {dimension_numbers = #tpu.dot_dimension_numbers<[1], [0], [0], [1], [0, 0, 1, 1], [], []>} : vector<16x256xf32>, vector<256x256xf32>, vector<16x256xf32> -> vector<16x256xf32>
    %c0_49 = arith.constant 0 : index
    %c0_50 = arith.constant 0 : index
    %55 = vector.load %arg19[%c0_49, %c0_50] : memref<16x64xf32, #tpu.memory_space<vmem>>, vector<16x64xf32>
    %c0_51 = arith.constant 0 : index
    %c0_52 = arith.constant 0 : index
    %56 = vector.load %arg16[%c0_51, %c0_52] : memref<64x256xf32, #tpu.memory_space<vmem>>, vector<64x256xf32>
    %57 = vector.broadcast %47 : vector<64x1xf32> to vector<64x256xf32>
    %58 = arith.mulf %57, %56 : vector<64x256xf32>
    %cst_53 = arith.constant dense<0.000000e+00> : vector<16x256xf32>
    %59 = tpu.matmul %55, %58, %cst_53 {dimension_numbers = #tpu.dot_dimension_numbers<[1], [0], [0], [1], [0, 0, 1, 1], [], []>} : vector<16x64xf32>, vector<64x256xf32>, vector<16x256xf32> -> vector<16x256xf32>
    %60 = arith.addf %54, %59 : vector<16x256xf32>
    %c0_54 = arith.constant 0 : index
    %c0_55 = arith.constant 0 : index
    %61 = vector.load %arg20[%c0_54, %c0_55] : memref<16x16xf32, #tpu.memory_space<vmem>>, vector<16x16xf32>
    %c0_56 = arith.constant 0 : index
    %c0_57 = arith.constant 0 : index
    %62 = vector.load %arg17[%c0_56, %c0_57] : memref<16x256xf32, #tpu.memory_space<vmem>>, vector<16x256xf32>
    %63 = vector.broadcast %49 : vector<16x1xf32> to vector<16x256xf32>
    %64 = arith.mulf %63, %62 : vector<16x256xf32>
    %cst_58 = arith.constant dense<0.000000e+00> : vector<16x256xf32>
    %65 = tpu.matmul %61, %64, %cst_58 {dimension_numbers = #tpu.dot_dimension_numbers<[1], [0], [0], [1], [0, 0, 1, 1], [], []>} : vector<16x16xf32>, vector<16x256xf32>, vector<16x256xf32> -> vector<16x256xf32>
    %66 = arith.addf %60, %65 : vector<16x256xf32>
    %cst_59 = arith.constant dense<0x7F800000> : vector<16xf32>
    %67 = vector.multi_reduction <minimumf>, %66, %cst_59 [1] : vector<16x256xf32> to vector<16xf32>
    %68 = vector.shape_cast %67 : vector<16xf32> to vector<16x1xf32>
    %cst_60 = arith.constant dense<0xFF800000> : vector<16xf32>
    %69 = vector.multi_reduction <maximumf>, %66, %cst_60 [1] : vector<16x256xf32> to vector<16xf32>
    %70 = vector.shape_cast %69 : vector<16xf32> to vector<16x1xf32>
    %71 = vector.broadcast %68 : vector<16x1xf32> to vector<16x256xf32>
    %72 = arith.subf %66, %71 : vector<16x256xf32>
    %73 = arith.subf %70, %68 : vector<16x1xf32>
    %cst_61 = arith.constant 9.99999974E-5 : f32
    %74 = vector.broadcast %cst_61 : f32 to vector<16x1xf32>
    %75 = arith.addf %73, %74 : vector<16x1xf32>
    %76 = vector.broadcast %75 : vector<16x1xf32> to vector<16x256xf32>
    %77 = arith.divf %72, %76 : vector<16x256xf32>
    %c0_62 = arith.constant 0 : index
    %c0_63 = arith.constant 0 : index
    %78 = vector.load %arg32[%c0_62, %c0_63] : memref<16x256xf32, #tpu.memory_space<vmem>>, vector<16x256xf32>
    tpu.vector_store %arg32[%c0_62, %c0_63], %77 {strides = array<i32>} : memref<16x256xf32, #tpu.memory_space<vmem>>, vector<16x256xf32>,
    %c0_64 = arith.constant 0 : index
    %c0_65 = arith.constant 0 : index
    %79 = vector.load %arg21[%c0_64, %c0_65] : memref<16x16xf32, #tpu.memory_space<vmem>>, vector<16x16xf32>
    %cst_66 = arith.constant dense<0.000000e+00> : vector<16x1024xf32>
    %80 = tpu.matmul %79, %42, %cst_66 {dimension_numbers = #tpu.dot_dimension_numbers<[1], [0], [0], [1], [0, 0, 1, 1], [], []>} : vector<16x16xf32>, vector<16x1024xf32>, vector<16x1024xf32> -> vector<16x1024xf32>
    %c0_67 = arith.constant 0 : index
    %c0_68 = arith.constant 0 : index
    %81 = vector.load %arg31[%c0_67, %c0_68] : memref<16x1024xf32, #tpu.memory_space<vmem>>, vector<16x1024xf32>
    tpu.vector_store %arg31[%c0_67, %c0_68], %80 {strides = array<i32>} : memref<16x1024xf32, #tpu.memory_space<vmem>>, vector<16x1024xf32>,
    %c0_69 = arith.constant 0 : index
    %c0_70 = arith.constant 0 : index
    %82 = vector.load %arg22[%c0_69, %c0_70] : memref<16x8xf32, #tpu.memory_space<vmem>>, vector<16x8xf32>
    %c0_71 = arith.constant 0 : index
    %c0_72 = arith.constant 0 : index
    %83 = vector.load %arg23[%c0_71, %c0_72] : memref<8x1024xf32, #tpu.memory_space<vmem>>, vector<8x1024xf32>
    %cst_73 = arith.constant dense<0.000000e+00> : vector<16x1024xf32>
    %84 = tpu.matmul %82, %83, %cst_73 {dimension_numbers = #tpu.dot_dimension_numbers<[1], [0], [0], [1], [0, 0, 1, 1], [], []>} : vector<16x8xf32>, vector<8x1024xf32>, vector<16x1024xf32> -> vector<16x1024xf32>
    %c0_74 = arith.constant 0 : index
    %c0_75 = arith.constant 0 : index
    %85 = vector.load %arg22[%c0_74, %c0_75] : memref<16x8xf32, #tpu.memory_space<vmem>>, vector<16x8xf32>
    %c0_76 = arith.constant 0 : index
    %c0_77 = arith.constant 0 : index
    %86 = vector.load %arg24[%c0_76, %c0_77] : memref<8x1024xf32, #tpu.memory_space<vmem>>, vector<8x1024xf32>
    %cst_78 = arith.constant dense<0.000000e+00> : vector<16x1024xf32>
    %87 = tpu.matmul %85, %86, %cst_78 {dimension_numbers = #tpu.dot_dimension_numbers<[1], [0], [0], [1], [0, 0, 1, 1], [], []>} : vector<16x8xf32>, vector<8x1024xf32>, vector<16x1024xf32> -> vector<16x1024xf32>
    %88 = arith.addf %42, %84 : vector<16x1024xf32>
    %89 = arith.truncf %88 : vector<16x1024xf32> to vector<16x1024xbf16>
    %c0_79 = arith.constant 0 : index
    %c0_80 = arith.constant 0 : index
    %90 = vector.load %arg25[%c0_79, %c0_80] : memref<1024x512xbf16, #tpu.memory_space<vmem>>, vector<1024x512xbf16>
    %cst_81 = arith.constant dense<0.000000e+00> : vector<16x512xf32>
    %91 = tpu.matmul %89, %90, %cst_81 {dimension_numbers = #tpu.dot_dimension_numbers<[1], [0], [0], [1], [0, 0, 1, 1], [], []>} : vector<16x1024xbf16>, vector<1024x512xbf16>, vector<16x512xf32> -> vector<16x512xf32>
    %92 = arith.addf %80, %87 : vector<16x1024xf32>
    %93 = arith.truncf %92 : vector<16x1024xf32> to vector<16x1024xbf16>
    %c0_82 = arith.constant 0 : index
    %c0_83 = arith.constant 0 : index
    %94 = vector.load %arg26[%c0_82, %c0_83] : memref<1024x512xbf16, #tpu.memory_space<vmem>>, vector<1024x512xbf16>
    %cst_84 = arith.constant dense<0.000000e+00> : vector<16x512xf32>
    %95 = tpu.matmul %93, %94, %cst_84 {dimension_numbers = #tpu.dot_dimension_numbers<[1], [0], [0], [1], [0, 0, 1, 1], [], []>} : vector<16x1024xbf16>, vector<1024x512xbf16>, vector<16x512xf32> -> vector<16x512xf32>
    %96 = arith.addf %91, %95 : vector<16x512xf32>
    %c0_85 = arith.constant 0 : index
    %c0_86 = arith.constant 0 : index
    %97 = vector.load %arg27[%c0_85, %c0_86] : memref<1x512xf32, #tpu.memory_space<vmem>>, vector<1x512xf32>
    %98 = vector.broadcast %97 : vector<1x512xf32> to vector<16x512xf32>
    %99 = arith.addf %96, %98 : vector<16x512xf32>
    %cst_87 = arith.constant 0.000000e+00 : f32
    %100 = vector.broadcast %cst_87 : f32 to vector<16x512xf32>
    %101 = arith.maximumf %99, %100 : vector<16x512xf32>
    %c0_88 = arith.constant 0 : index
    %c0_89 = arith.constant 0 : index
    %102 = vector.load %arg28[%c0_88, %c0_89] : memref<512x1xf32, #tpu.memory_space<vmem>>, vector<512x1xf32>
    %cst_90 = arith.constant dense<0.000000e+00> : vector<16x1xf32>
    %103 = tpu.matmul %101, %102, %cst_90 {dimension_numbers = #tpu.dot_dimension_numbers<[1], [0], [0], [1], [0, 0, 1, 1], [], []>} : vector<16x512xf32>, vector<512x1xf32>, vector<16x1xf32> -> vector<16x1xf32>
    %c0_91 = arith.constant 0 : index
    %c0_92 = arith.constant 0 : index
    %104 = vector.load %arg29[%c0_91, %c0_92] : memref<1x1xf32, #tpu.memory_space<vmem>>, vector<1x1xf32>
    %105 = vector.broadcast %104 : vector<1x1xf32> to vector<16x1xf32>
    %106 = arith.addf %103, %105 : vector<16x1xf32>
    %c0_93 = arith.constant 0 : index
    %c0_94 = arith.constant 0 : index
    %107 = vector.load %arg33[%c0_93, %c0_94] : memref<16x1xf32, #tpu.memory_space<vmem>>, vector<16x1xf32>
    tpu.vector_store %arg33[%c0_93, %c0_94], %106 {strides = array<i32>} : memref<16x1xf32, #tpu.memory_space<vmem>>, vector<16x1xf32>,
    return
  }
  func.func @transform_0(%arg0: i32) -> (i32, i32) {
    %c0_i32 = arith.constant 0 : i32
    %c0_i32_0 = arith.constant 0 : i32
    %c0_i32_1 = arith.constant 0 : i32
    return %c0_i32, %c0_i32_0 : i32, i32
  }
  func.func @transform_1(%arg0: i32) -> (i32, i32) {
    %c0_i32 = arith.constant 0 : i32
    %c0_i32_0 = arith.constant 0 : i32
    %c0_i32_1 = arith.constant 0 : i32
    return %c0_i32, %c0_i32_0 : i32, i32
  }
  func.func @transform_2(%arg0: i32) -> (i32, i32) {
    %c0_i32 = arith.constant 0 : i32
    %c0_i32_0 = arith.constant 0 : i32
    %c0_i32_1 = arith.constant 0 : i32
    return %c0_i32, %c0_i32_0 : i32, i32
  }
  func.func @transform_3(%arg0: i32) -> (i32, i32) {
    %c0_i32 = arith.constant 0 : i32
    %c0_i32_0 = arith.constant 0 : i32
    %c0_i32_1 = arith.constant 0 : i32
    return %c0_i32, %c0_i32_0 : i32, i32
  }
  func.func @transform_4(%arg0: i32) -> (i32, i32) {
    %c0_i32 = arith.constant 0 : i32
    %c0_i32_0 = arith.constant 0 : i32
    %c0_i32_1 = arith.constant 0 : i32
    return %c0_i32, %c0_i32_0 : i32, i32
  }
  func.func @transform_5(%arg0: i32) -> (i32, i32) {
    %c0_i32 = arith.constant 0 : i32
    %c0_i32_0 = arith.constant 0 : i32
    %c0_i32_1 = arith.constant 0 : i32
    return %c0_i32, %c0_i32_0 : i32, i32
  }
  func.func @transform_6(%arg0: i32) -> (i32, i32) {
    %c0_i32 = arith.constant 0 : i32
    %c0_i32_0 = arith.constant 0 : i32
    %c0_i32_1 = arith.constant 0 : i32
    return %c0_i32, %c0_i32_0 : i32, i32
  }
  func.func @transform_7(%arg0: i32) -> (i32, i32) {
    %c0_i32 = arith.constant 0 : i32
    %c0_i32_0 = arith.constant 0 : i32
    %c0_i32_1 = arith.constant 0 : i32
    return %c0_i32, %c0_i32_0 : i32, i32
  }
  func.func @transform_8(%arg0: i32) -> (i32, i32) {
    %c0_i32 = arith.constant 0 : i32
    %c0_i32_0 = arith.constant 0 : i32
    %c0_i32_1 = arith.constant 0 : i32
    return %c0_i32, %c0_i32_0 : i32, i32
  }
  func.func @transform_9(%arg0: i32) -> (i32, i32) {
    %c0_i32 = arith.constant 0 : i32
    %c0_i32_0 = arith.constant 0 : i32
    %c0_i32_1 = arith.constant 0 : i32
    return %c0_i32, %c0_i32_0 : i32, i32
  }
  func.func @transform_10(%arg0: i32) -> (i32, i32) {
    %c0_i32 = arith.constant 0 : i32
    %c0_i32_0 = arith.constant 0 : i32
    %c0_i32_1 = arith.constant 0 : i32
    return %c0_i32, %c0_i32_0 : i32, i32
  }
  func.func @transform_11(%arg0: i32) -> (i32, i32) {
    %c0_i32 = arith.constant 0 : i32
    %c0_i32_0 = arith.constant 0 : i32
    %c0_i32_1 = arith.constant 0 : i32
    return %c0_i32, %c0_i32_0 : i32, i32
  }
  func.func @transform_12(%arg0: i32) -> (i32, i32) {
    %c0_i32 = arith.constant 0 : i32
    %c0_i32_0 = arith.constant 0 : i32
    %c0_i32_1 = arith.constant 0 : i32
    return %c0_i32, %c0_i32_0 : i32, i32
  }
  func.func @transform_13(%arg0: i32) -> (i32, i32) {
    %c0_i32 = arith.constant 0 : i32
    %c0_i32_0 = arith.constant 0 : i32
    %c0_i32_1 = arith.constant 0 : i32
    return %c0_i32, %c0_i32_0 : i32, i32
  }
  func.func @transform_14(%arg0: i32) -> (i32, i32) {
    %c0_i32 = arith.constant 0 : i32
    %c0_i32_0 = arith.constant 0 : i32
    %c0_i32_1 = arith.constant 0 : i32
    return %c0_i32, %c0_i32_0 : i32, i32
  }
  func.func @transform_15(%arg0: i32) -> (i32, i32) {
    %c0_i32 = arith.constant 0 : i32
    %c0_i32_0 = arith.constant 0 : i32
    %c0_i32_1 = arith.constant 0 : i32
    return %c0_i32, %c0_i32_0 : i32, i32
  }
  func.func @transform_16(%arg0: i32) -> (i32, i32) {
    %c0_i32 = arith.constant 0 : i32
    %c0_i32_0 = arith.constant 0 : i32
    %c0_i32_1 = arith.constant 0 : i32
    return %c0_i32, %c0_i32_0 : i32, i32
  }
  func.func @transform_17(%arg0: i32) -> (i32, i32) {
    %c0_i32 = arith.constant 0 : i32
    %c0_i32_0 = arith.constant 0 : i32
    %c0_i32_1 = arith.constant 0 : i32
    return %c0_i32, %c0_i32_0 : i32, i32
  }
  func.func @transform_18(%arg0: i32) -> (i32, i32) {
    %c0_i32 = arith.constant 0 : i32
    %c0_i32_0 = arith.constant 0 : i32
    %c0_i32_1 = arith.constant 0 : i32
    return %c0_i32, %c0_i32_0 : i32, i32
  }
  func.func @transform_19(%arg0: i32) -> (i32, i32) {
    %c0_i32 = arith.constant 0 : i32
    %c0_i32_0 = arith.constant 0 : i32
    %c0_i32_1 = arith.constant 0 : i32
    return %c0_i32, %c0_i32_0 : i32, i32
  }
  func.func @transform_20(%arg0: i32) -> (i32, i32) {
    %c0_i32 = arith.constant 0 : i32
    %c0_i32_0 = arith.constant 0 : i32
    %c0_i32_1 = arith.constant 0 : i32
    return %c0_i32, %c0_i32_0 : i32, i32
  }
  func.func @transform_21(%arg0: i32) -> (i32, i32) {
    %c0_i32 = arith.constant 0 : i32
    %c0_i32_0 = arith.constant 0 : i32
    %c0_i32_1 = arith.constant 0 : i32
    return %c0_i32, %c0_i32_0 : i32, i32
  }
  func.func @transform_22(%arg0: i32) -> (i32, i32) {
    %c0_i32 = arith.constant 0 : i32
    %c0_i32_0 = arith.constant 0 : i32
    %c0_i32_1 = arith.constant 0 : i32
    return %c0_i32, %c0_i32_0 : i32, i32
  }
  func.func @transform_23(%arg0: i32) -> (i32, i32) {
    %c0_i32 = arith.constant 0 : i32
    %c0_i32_0 = arith.constant 0 : i32
    %c0_i32_1 = arith.constant 0 : i32
    return %c0_i32, %c0_i32_0 : i32, i32
  }
  func.func @transform_24(%arg0: i32) -> (i32, i32) {
    %c0_i32 = arith.constant 0 : i32
    %c0_i32_0 = arith.constant 0 : i32
    %c0_i32_1 = arith.constant 0 : i32
    return %c0_i32, %c0_i32_0 : i32, i32
  }
  func.func @transform_25(%arg0: i32) -> (i32, i32) {
    %c0_i32 = arith.constant 0 : i32
    %c0_i32_0 = arith.constant 0 : i32
    %c0_i32_1 = arith.constant 0 : i32
    return %c0_i32, %c0_i32_0 : i32, i32
  }
  func.func @transform_26(%arg0: i32) -> (i32, i32) {
    %c0_i32 = arith.constant 0 : i32
    %c0_i32_0 = arith.constant 0 : i32
    %c0_i32_1 = arith.constant 0 : i32
    return %c0_i32, %c0_i32_0 : i32, i32
  }
  func.func @transform_27(%arg0: i32) -> (i32, i32) {
    %c0_i32 = arith.constant 0 : i32
    %c0_i32_0 = arith.constant 0 : i32
    %c0_i32_1 = arith.constant 0 : i32
    return %c0_i32, %c0_i32_0 : i32, i32
  }
  func.func @transform_28(%arg0: i32) -> (i32, i32) {
    %c0_i32 = arith.constant 0 : i32
    %c0_i32_0 = arith.constant 0 : i32
    %c0_i32_1 = arith.constant 0 : i32
    return %c0_i32, %c0_i32_0 : i32, i32
  }
  func.func @transform_29(%arg0: i32) -> (i32, i32) {
    %c0_i32 = arith.constant 0 : i32
    %c0_i32_0 = arith.constant 0 : i32
    %c0_i32_1 = arith.constant 0 : i32
    return %c0_i32, %c0_i32_0 : i32, i32
  }
  func.func @transform_30(%arg0: i32) -> (i32, i32) {
    %c0_i32 = arith.constant 0 : i32
    %c0_i32_0 = arith.constant 0 : i32
    %c0_i32_1 = arith.constant 0 : i32
    return %c0_i32, %c0_i32_0 : i32, i32
  }
  func.func @transform_31(%arg0: i32) -> (i32, i32) {
    %c0_i32 = arith.constant 0 : i32
    %c0_i32_0 = arith.constant 0 : i32
    %c0_i32_1 = arith.constant 0 : i32
    return %c0_i32, %c0_i32_0 : i32, i32
  }
  func.func @transform_32(%arg0: i32) -> (i32, i32) {
    %c0_i32 = arith.constant 0 : i32
    %c0_i32_0 = arith.constant 0 : i32
    %c0_i32_1 = arith.constant 0 : i32
    return %c0_i32, %c0_i32_0 : i32, i32
  }
}

</mosaic_0001>

<llo_original>
// kernel: _lambda_.1
$region0: #{_lambda_.1}
  #allocation0 [shape = 'u32[]', space=smem, size = 0x4, offset = 0x4, fixed_abs, tag = 'smem constant byte address 0x4 - core index']
  #allocation1 [shape = 'u32[144,128]{1,0:T(1,128)}', space=vmem, size = 0x12000, scoped, tag = 'internal scratch']
  #allocation2 [shape = 'f32[1,1]{1,0:T(1,128)S(1)}', space=vmem, size = 0x200, scoped, tag = 'scoped memory for _lambda_.1']
  %s0 = inlined_call_operand.smem [shape: u32[33], index: -1, kind: input, shape index: {}]
  %s1 = sld [smem:[%s0]]
  %s2 = scalar_lea.smem %s0, 1
  %s3 = sld [smem:[%s2]]
  %s4 = scalar_lea.smem %s0, 2
  %s5 = sld [smem:[%s4]]
  %s6 = scalar_lea.smem %s0, 3
  %s7 = sld [smem:[%s6]]
  %s8 = scalar_lea.smem %s0, 4
  %s9 = sld [smem:[%s8]]
  %s10 = scalar_lea.smem %s0, 5
  %s11 = sld [smem:[%s10]]
  %s12 = scalar_lea.smem %s0, 6
  %s13 = sld [smem:[%s12]]
  %s14 = scalar_lea.smem %s0, 7
  %s15 = sld [smem:[%s14]]
  %s16 = scalar_lea.smem %s0, 8
  %s17 = sld [smem:[%s16]]
  %s18 = scalar_lea.smem %s0, 9
  %s19 = sld [smem:[%s18]]
  %s20 = scalar_lea.smem %s0, 10
  %s21 = sld [smem:[%s20]]
  %s22 = scalar_lea.smem %s0, 11
  %s23 = sld [smem:[%s22]]
  %s24 = scalar_lea.smem %s0, 12
  %s25 = sld [smem:[%s24]]
  %s26 = scalar_lea.smem %s0, 13
  %s27 = sld [smem:[%s26]]
  %s28 = scalar_lea.smem %s0, 14
  %s29 = sld [smem:[%s28]]
  %s30 = scalar_lea.smem %s0, 15
  %s31 = sld [smem:[%s30]]
  %s32 = scalar_lea.smem %s0, 16
  %s33 = sld [smem:[%s32]]
  %s34 = scalar_lea.smem %s0, 17
  %s35 = sld [smem:[%s34]]
  %s36 = scalar_lea.smem %s0, 18
  %s37 = sld [smem:[%s36]]
  %s38 = scalar_lea.smem %s0, 19
  %s39 = sld [smem:[%s38]]
  %s40 = scalar_lea.smem %s0, 20
  %s41 = sld [smem:[%s40]]
  %s42 = scalar_lea.smem %s0, 21
  %s43 = sld [smem:[%s42]]
  %s44 = scalar_lea.smem %s0, 22
  %s45 = sld [smem:[%s44]]
  %s46 = scalar_lea.smem %s0, 23
  %s47 = sld [smem:[%s46]]
  %s48 = scalar_lea.smem %s0, 24
  %s49 = sld [smem:[%s48]]
  %s50 = scalar_lea.smem %s0, 25
  %s51 = sld [smem:[%s50]]
  %s52 = scalar_lea.smem %s0, 26
  %s53 = sld [smem:[%s52]]
  %s54 = scalar_lea.smem %s0, 27
  %s55 = sld [smem:[%s54]]
  %s56 = scalar_lea.smem %s0, 28
  %s57 = sld [smem:[%s56]]
  %s58 = scalar_lea.smem %s0, 29
  %s59 = sld [smem:[%s58]]
  %s60 = scalar_lea.smem %s0, 30
  %s61 = sld [smem:[%s60]]
  %s62 = scalar_lea.smem %s0, 31
  %s63 = sld [smem:[%s62]]
  %s64 = scalar_lea.smem %s0, 32
  %s65 = sld [smem:[%s64]]
  %66 = xla_tuple %s59, %s61, %s63, %s65
  %s67 = sld [smem:[#allocation0]]
  $region150: #{_lambda_.1} parent=0
    _
  %s69 = ssub.s32 1, %s67
  %s70 = scalar_select 0, %s69, %s67
  %v71 = vstv %s57
  %72 = vst [vmem:[#allocation2] sm:$0x1] %v71
  $region1: #{_lambda_.1} parent=0
    #allocation3 [shape = 'u8[65536]{0}', space=vmem, size = 0x10000, scoped, tag = 'output window, operand 1, single buffered']
    #allocation4 [shape = 's32[1]{0}', space=sflag, size = 0x4, scoped, tag = 'scoped memory for _lambda_.1']
    %73 = vsyncpa [#allocation4], 0
    // Predicated region
    $region2: #{_lambda_.1} parent=1 // pred_check
      _
    $region3: #{_lambda_.1} parent=1 // pred_check_branch
      %75 = sbr.rel (0) target = $region5
    $region4: #{_lambda_.1} parent=1 // pred_region
      _
    $region5: #{_lambda_.1} parent=1 // pred_fallthru
      _
    // Predicated region
    $region6: #{_lambda_.1} parent=1 // pred_check
      _
    $region7: #{_lambda_.1} parent=1 // pred_check_branch
      %77 = sbr.rel (0) target = $region9
    $region8: #{_lambda_.1} parent=1 // pred_region
      _
    $region9: #{_lambda_.1} parent=1 // pred_fallthru
      _
    // Predicated region
    $region10: #{_lambda_.1} parent=1 // pred_check
      _
    $region11: #{_lambda_.1} parent=1 // pred_check_branch
      %79 = sbr.rel (0) target = $region13
    $region12: #{_lambda_.1} parent=1 // pred_region
      _
    $region13: #{_lambda_.1} parent=1 // pred_fallthru
      _
    // Predicated region
    $region14: #{_lambda_.1} parent=1 // pred_check
      _
    $region15: #{_lambda_.1} parent=1 // pred_check_branch
      %81 = sbr.rel (0) target = $region17
    $region16: #{_lambda_.1} parent=1 // pred_region
      _
    $region17: #{_lambda_.1} parent=1 // pred_fallthru
      _
    // Predicated region
    $region18: #{_lambda_.1} parent=1 // pred_check
      _
    $region19: #{_lambda_.1} parent=1 // pred_check_branch
      %83 = sbr.rel (0) target = $region21
    $region20: #{_lambda_.1} parent=1 // pred_region
      _
    $region21: #{_lambda_.1} parent=1 // pred_fallthru
      _
    // Predicated region
    $region22: #{_lambda_.1} parent=1 // pred_check
      _
    $region23: #{_lambda_.1} parent=1 // pred_check_branch
      %85 = sbr.rel (0) target = $region25
    $region24: #{_lambda_.1} parent=1 // pred_region
      _
    $region25: #{_lambda_.1} parent=1 // pred_fallthru
      _
    // Predicated region
    $region26: #{_lambda_.1} parent=1 // pred_check
      _
    $region27: #{_lambda_.1} parent=1 // pred_check_branch
      %87 = sbr.rel (0) target = $region29
    $region28: #{_lambda_.1} parent=1 // pred_region
      _
    $region29: #{_lambda_.1} parent=1 // pred_fallthru
      _
    // Predicated region
    $region30: #{_lambda_.1} parent=1 // pred_check
      _
    $region31: #{_lambda_.1} parent=1 // pred_check_branch
      %89 = sbr.rel (0) target = $region33
    $region32: #{_lambda_.1} parent=1 // pred_region
      _
    $region33: #{_lambda_.1} parent=1 // pred_fallthru
      _
    // Predicated region
    $region34: #{_lambda_.1} parent=1 // pred_check
      _
    $region35: #{_lambda_.1} parent=1 // pred_check_branch
      %91 = sbr.rel (0) target = $region37
    $region36: #{_lambda_.1} parent=1 // pred_region
      _
    $region37: #{_lambda_.1} parent=1 // pred_fallthru
      _
    // Predicated region
    $region38: #{_lambda_.1} parent=1 // pred_check
      _
    $region39: #{_lambda_.1} parent=1 // pred_check_branch
      %93 = sbr.rel (0) target = $region41
    $region40: #{_lambda_.1} parent=1 // pred_region
      _
    $region41: #{_lambda_.1} parent=1 // pred_fallthru
      _
    // Predicated region
    $region42: #{_lambda_.1} parent=1 // pred_check
      _
    $region43: #{_lambda_.1} parent=1 // pred_check_branch
      %95 = sbr.rel (0) target = $region45
    $region44: #{_lambda_.1} parent=1 // pred_region
      _
    $region45: #{_lambda_.1} parent=1 // pred_fallthru
      _
    // Predicated region
    $region46: #{_lambda_.1} parent=1 // pred_check
      _
    $region47: #{_lambda_.1} parent=1 // pred_check_branch
      %97 = sbr.rel (0) target = $region49
    $region48: #{_lambda_.1} parent=1 // pred_region
      _
    $region49: #{_lambda_.1} parent=1 // pred_fallthru
      _
    // Predicated region
    $region50: #{_lambda_.1} parent=1 // pred_check
      _
    $region51: #{_lambda_.1} parent=1 // pred_check_branch
      %99 = sbr.rel (0) target = $region53
    $region52: #{_lambda_.1} parent=1 // pred_region
      _
    $region53: #{_lambda_.1} parent=1 // pred_fallthru
      _
    // Predicated region
    $region54: #{_lambda_.1} parent=1 // pred_check
      _
    $region55: #{_lambda_.1} parent=1 // pred_check_branch
      %101 = sbr.rel (0) target = $region57
    $region56: #{_lambda_.1} parent=1 // pred_region
      _
    $region57: #{_lambda_.1} parent=1 // pred_fallthru
      _
    // Predicated region
    $region58: #{_lambda_.1} parent=1 // pred_check
      _
    $region59: #{_lambda_.1} parent=1 // pred_check_branch
      %103 = sbr.rel (0) target = $region61
    $region60: #{_lambda_.1} parent=1 // pred_region
      _
    $region61: #{_lambda_.1} parent=1 // pred_fallthru
      _
    // Predicated region
    $region62: #{_lambda_.1} parent=1 // pred_check
      _
    $region63: #{_lambda_.1} parent=1 // pred_check_branch
      %105 = sbr.rel (0) target = $region65
    $region64: #{_lambda_.1} parent=1 // pred_region
      _
    $region65: #{_lambda_.1} parent=1 // pred_fallthru
      _
    // Predicated region
    $region66: #{_lambda_.1} parent=1 // pred_check
      _
    $region67: #{_lambda_.1} parent=1 // pred_check_branch
      %107 = sbr.rel (0) target = $region69
    $region68: #{_lambda_.1} parent=1 // pred_region
      _
    $region69: #{_lambda_.1} parent=1 // pred_fallthru
      _
    // Predicated region
    $region70: #{_lambda_.1} parent=1 // pred_check
      _
    $region71: #{_lambda_.1} parent=1 // pred_check_branch
      %109 = sbr.rel (0) target = $region73
    $region72: #{_lambda_.1} parent=1 // pred_region
      _
    $region73: #{_lambda_.1} parent=1 // pred_fallthru
      _
    // Predicated region
    $region74: #{_lambda_.1} parent=1 // pred_check
      _
    $region75: #{_lambda_.1} parent=1 // pred_check_branch
      %111 = sbr.rel (0) target = $region77
    $region76: #{_lambda_.1} parent=1 // pred_region
      _
    $region77: #{_lambda_.1} parent=1 // pred_fallthru
      _
    // Predicated region
    $region78: #{_lambda_.1} parent=1 // pred_check
      _
    $region79: #{_lambda_.1} parent=1 // pred_check_branch
      %113 = sbr.rel (0) target = $region81
    $region80: #{_lambda_.1} parent=1 // pred_region
      _
    $region81: #{_lambda_.1} parent=1 // pred_fallthru
      _
    // Predicated region
    $region82: #{_lambda_.1} parent=1 // pred_check
      _
    $region83: #{_lambda_.1} parent=1 // pred_check_branch
      %115 = sbr.rel (0) target = $region85
    $region84: #{_lambda_.1} parent=1 // pred_region
      _
    $region85: #{_lambda_.1} parent=1 // pred_fallthru
      _
    // Predicated region
    $region86: #{_lambda_.1} parent=1 // pred_check
      _
    $region87: #{_lambda_.1} parent=1 // pred_check_branch
      %117 = sbr.rel (0) target = $region89
    $region88: #{_lambda_.1} parent=1 // pred_region
      _
    $region89: #{_lambda_.1} parent=1 // pred_fallthru
      _
    // Predicated region
    $region90: #{_lambda_.1} parent=1 // pred_check
      _
    $region91: #{_lambda_.1} parent=1 // pred_check_branch
      %119 = sbr.rel (0) target = $region93
    $region92: #{_lambda_.1} parent=1 // pred_region
      _
    $region93: #{_lambda_.1} parent=1 // pred_fallthru
      _
    // Predicated region
    $region94: #{_lambda_.1} parent=1 // pred_check
      _
    $region95: #{_lambda_.1} parent=1 // pred_check_branch
      %121 = sbr.rel (0) target = $region97
    $region96: #{_lambda_.1} parent=1 // pred_region
      _
    $region97: #{_lambda_.1} parent=1 // pred_fallthru
      _
    // Predicated region
    $region98: #{_lambda_.1} parent=1 // pred_check
      _
    $region99: #{_lambda_.1} parent=1 // pred_check_branch
      %123 = sbr.rel (0) target = $region101
    $region100: #{_lambda_.1} parent=1 // pred_region
      _
    $region101: #{_lambda_.1} parent=1 // pred_fallthru
      _
    // Predicated region
    $region102: #{_lambda_.1} parent=1 // pred_check
      _
    $region103: #{_lambda_.1} parent=1 // pred_check_branch
      %125 = sbr.rel (0) target = $region105
    $region104: #{_lambda_.1} parent=1 // pred_region
      _
    $region105: #{_lambda_.1} parent=1 // pred_fallthru
      _
    // Predicated region
    $region106: #{_lambda_.1} parent=1 // pred_check
      _
    $region107: #{_lambda_.1} parent=1 // pred_check_branch
      %127 = sbr.rel (0) target = $region109
    $region108: #{_lambda_.1} parent=1 // pred_region
      _
    $region109: #{_lambda_.1} parent=1 // pred_fallthru
      _
    // Predicated region
    $region110: #{_lambda_.1} parent=1 // pred_check
      _
    $region111: #{_lambda_.1} parent=1 // pred_check_branch
      %129 = sbr.rel (0) target = $region113
    $region112: #{_lambda_.1} parent=1 // pred_region
      _
    $region113: #{_lambda_.1} parent=1 // pred_fallthru
      _
    // Predicated region
    $region114: #{_lambda_.1} parent=1 // pred_check
      _
    $region115: #{_lambda_.1} parent=1 // pred_check_branch
      %131 = sbr.rel (0) target = $region117
    $region116: #{_lambda_.1} parent=1 // pred_region
      _
    $region117: #{_lambda_.1} parent=1 // pred_fallthru
      _
    %v133 = vld [vmem:[%s1] sm:$0xff]
    %v134 = vld [vmem:[%s1 + $0x8] sm:$0xff]
    %v135 = vld [vmem:[%s1 + $0x10] sm:$0xff]
    %v136 = vld [vmem:[%s1 + $0x18] sm:$0xff]
    %v137 = vld [vmem:[%s1 + $0x20] sm:$0xff]
    %v138 = vld [vmem:[%s1 + $0x28] sm:$0xff]
    %v139 = vld [vmem:[%s1 + $0x30] sm:$0xff]
    %v140 = vld [vmem:[%s1 + $0x38] sm:$0xff]
    %v141 = vld [vmem:[%s1 + $0x40] sm:$0xff]
    %v142 = vld [vmem:[%s1 + $0x48] sm:$0xff]
    %v143 = vld [vmem:[%s1 + $0x50] sm:$0xff]
    %v144 = vld [vmem:[%s1 + $0x58] sm:$0xff]
    %v145 = vld [vmem:[%s1 + $0x60] sm:$0xff]
    %v146 = vld [vmem:[%s1 + $0x68] sm:$0xff]
    %v147 = vld [vmem:[%s1 + $0x70] sm:$0xff]
    %v148 = vld [vmem:[%s1 + $0x78] sm:$0xff]
    %v149 = vld [vmem:[%s1 + $0x80] sm:$0xff]
    %v150 = vld [vmem:[%s1 + $0x88] sm:$0xff]
    %v151 = vld [vmem:[%s1 + $0x90] sm:$0xff]
    %v152 = vld [vmem:[%s1 + $0x98] sm:$0xff]
    %v153 = vld [vmem:[%s1 + $0xa0] sm:$0xff]
    %v154 = vld [vmem:[%s1 + $0xa8] sm:$0xff]
    %v155 = vld [vmem:[%s1 + $0xb0] sm:$0xff]
    %v156 = vld [vmem:[%s1 + $0xb8] sm:$0xff]
    %v157 = vld [vmem:[%s1 + $0xc0] sm:$0xff]
    %v158 = vld [vmem:[%s1 + $0xc8] sm:$0xff]
    %v159 = vld [vmem:[%s1 + $0xd0] sm:$0xff]
    %v160 = vld [vmem:[%s1 + $0xd8] sm:$0xff]
    %v161 = vld [vmem:[%s1 + $0xe0] sm:$0xff]
    %v162 = vld [vmem:[%s1 + $0xe8] sm:$0xff]
    %v163 = vld [vmem:[%s1 + $0xf0] sm:$0xff]
    %v164 = vld [vmem:[%s1 + $0xf8] sm:$0xff]
    %v165 = vld [vmem:[%s1 + $0x100] sm:$0xff]
    %v166 = vld [vmem:[%s1 + $0x108] sm:$0xff]
    %v167 = vld [vmem:[%s1 + $0x110] sm:$0xff]
    %v168 = vld [vmem:[%s1 + $0x118] sm:$0xff]
    %v169 = vld [vmem:[%s1 + $0x120] sm:$0xff]
    %v170 = vld [vmem:[%s1 + $0x128] sm:$0xff]
    %v171 = vld [vmem:[%s1 + $0x130] sm:$0xff]
    %v172 = vld [vmem:[%s1 + $0x138] sm:$0xff]
    %v173 = vld [vmem:[%s1 + $0x140] sm:$0xff]
    %v174 = vld [vmem:[%s1 + $0x148] sm:$0xff]
    %v175 = vld [vmem:[%s1 + $0x150] sm:$0xff]
    %v176 = vld [vmem:[%s1 + $0x158] sm:$0xff]
    %v177 = vld [vmem:[%s1 + $0x160] sm:$0xff]
    %v178 = vld [vmem:[%s1 + $0x168] sm:$0xff]
    %v179 = vld [vmem:[%s1 + $0x170] sm:$0xff]
    %v180 = vld [vmem:[%s1 + $0x178] sm:$0xff]
    %v181 = vld [vmem:[%s1 + $0x180] sm:$0xff]
    %v182 = vld [vmem:[%s1 + $0x188] sm:$0xff]
    %v183 = vld [vmem:[%s1 + $0x190] sm:$0xff]
    %v184 = vld [vmem:[%s1 + $0x198] sm:$0xff]
    %v185 = vld [vmem:[%s1 + $0x1a0] sm:$0xff]
    %v186 = vld [vmem:[%s1 + $0x1a8] sm:$0xff]
    %v187 = vld [vmem:[%s1 + $0x1b0] sm:$0xff]
    %v188 = vld [vmem:[%s1 + $0x1b8] sm:$0xff]
    %v189 = vld [vmem:[%s1 + $0x1c0] sm:$0xff]
    %v190 = vld [vmem:[%s1 + $0x1c8] sm:$0xff]
    %v191 = vld [vmem:[%s1 + $0x1d0] sm:$0xff]
    %v192 = vld [vmem:[%s1 + $0x1d8] sm:$0xff]
    %v193 = vld [vmem:[%s1 + $0x1e0] sm:$0xff]
    %v194 = vld [vmem:[%s1 + $0x1e8] sm:$0xff]
    %v195 = vld [vmem:[%s1 + $0x1f0] sm:$0xff]
    %v196 = vld [vmem:[%s1 + $0x1f8] sm:$0xff]
    %v197 = vld [vmem:[%s1 + $0x200] sm:$0xff]
    %v198 = vld [vmem:[%s1 + $0x208] sm:$0xff]
    %v199 = vld [vmem:[%s1 + $0x210] sm:$0xff]
    %v200 = vld [vmem:[%s1 + $0x218] sm:$0xff]
    %v201 = vld [vmem:[%s1 + $0x220] sm:$0xff]
    %v202 = vld [vmem:[%s1 + $0x228] sm:$0xff]
    %v203 = vld [vmem:[%s1 + $0x230] sm:$0xff]
    %v204 = vld [vmem:[%s1 + $0x238] sm:$0xff]
    %v205 = vld [vmem:[%s1 + $0x240] sm:$0xff]
    %v206 = vld [vmem:[%s1 + $0x248] sm:$0xff]
    %v207 = vld [vmem:[%s1 + $0x250] sm:$0xff]
    %v208 = vld [vmem:[%s1 + $0x258] sm:$0xff]
    %v209 = vld [vmem:[%s1 + $0x260] sm:$0xff]
    %v210 = vld [vmem:[%s1 + $0x268] sm:$0xff]
    %v211 = vld [vmem:[%s1 + $0x270] sm:$0xff]
    %v212 = vld [vmem:[%s1 + $0x278] sm:$0xff]
    %v213 = vld [vmem:[%s1 + $0x280] sm:$0xff]
    %v214 = vld [vmem:[%s1 + $0x288] sm:$0xff]
    %v215 = vld [vmem:[%s1 + $0x290] sm:$0xff]
    %v216 = vld [vmem:[%s1 + $0x298] sm:$0xff]
    %v217 = vld [vmem:[%s1 + $0x2a0] sm:$0xff]
    %v218 = vld [vmem:[%s1 + $0x2a8] sm:$0xff]
    %v219 = vld [vmem:[%s1 + $0x2b0] sm:$0xff]
    %v220 = vld [vmem:[%s1 + $0x2b8] sm:$0xff]
    %v221 = vld [vmem:[%s1 + $0x2c0] sm:$0xff]
    %v222 = vld [vmem:[%s1 + $0x2c8] sm:$0xff]
    %v223 = vld [vmem:[%s1 + $0x2d0] sm:$0xff]
    %v224 = vld [vmem:[%s1 + $0x2d8] sm:$0xff]
    %v225 = vld [vmem:[%s1 + $0x2e0] sm:$0xff]
    %v226 = vld [vmem:[%s1 + $0x2e8] sm:$0xff]
    %v227 = vld [vmem:[%s1 + $0x2f0] sm:$0xff]
    %v228 = vld [vmem:[%s1 + $0x2f8] sm:$0xff]
    %v229 = vld [vmem:[%s1 + $0x300] sm:$0xff]
    %v230 = vld [vmem:[%s1 + $0x308] sm:$0xff]
    %v231 = vld [vmem:[%s1 + $0x310] sm:$0xff]
    %v232 = vld [vmem:[%s1 + $0x318] sm:$0xff]
    %v233 = vld [vmem:[%s1 + $0x320] sm:$0xff]
    %v234 = vld [vmem:[%s1 + $0x328] sm:$0xff]
    %v235 = vld [vmem:[%s1 + $0x330] sm:$0xff]
    %v236 = vld [vmem:[%s1 + $0x338] sm:$0xff]
    %v237 = vld [vmem:[%s1 + $0x340] sm:$0xff]
    %v238 = vld [vmem:[%s1 + $0x348] sm:$0xff]
    %v239 = vld [vmem:[%s1 + $0x350] sm:$0xff]
    %v240 = vld [vmem:[%s1 + $0x358] sm:$0xff]
    %v241 = vld [vmem:[%s1 + $0x360] sm:$0xff]
    %v242 = vld [vmem:[%s1 + $0x368] sm:$0xff]
    %v243 = vld [vmem:[%s1 + $0x370] sm:$0xff]
    %v244 = vld [vmem:[%s1 + $0x378] sm:$0xff]
    %v245 = vld [vmem:[%s1 + $0x380] sm:$0xff]
    %v246 = vld [vmem:[%s1 + $0x388] sm:$0xff]
    %v247 = vld [vmem:[%s1 + $0x390] sm:$0xff]
    %v248 = vld [vmem:[%s1 + $0x398] sm:$0xff]
    %v249 = vld [vmem:[%s1 + $0x3a0] sm:$0xff]
    %v250 = vld [vmem:[%s1 + $0x3a8] sm:$0xff]
    %v251 = vld [vmem:[%s1 + $0x3b0] sm:$0xff]
    %v252 = vld [vmem:[%s1 + $0x3b8] sm:$0xff]
    %v253 = vld [vmem:[%s1 + $0x3c0] sm:$0xff]
    %v254 = vld [vmem:[%s1 + $0x3c8] sm:$0xff]
    %v255 = vld [vmem:[%s1 + $0x3d0] sm:$0xff]
    %v256 = vld [vmem:[%s1 + $0x3d8] sm:$0xff]
    %v257 = vld [vmem:[%s1 + $0x3e0] sm:$0xff]
    %v258 = vld [vmem:[%s1 + $0x3e8] sm:$0xff]
    %v259 = vld [vmem:[%s1 + $0x3f0] sm:$0xff]
    %v260 = vld [vmem:[%s1 + $0x3f8] sm:$0xff]
    %v261 = vld [vmem:[%s9] sm:$0xff]
    %v262 = vld [vmem:[%s11] sm:$0x1]
    %v264 = vlaneseq
    %v265 = vshrl.u32 %v264, 7
    %v266 = vsub.s32 0, %v265
    %v267 = vrot.slane %v262, %v266
    %vm269 = vcmask 64512
    %v271 = vsel %vm269, %v133, 0
    %v274 = vsel %vm269, %v134, 0
    %v277 = vsel %vm269, %v135, 0
    %v280 = vsel %vm269, %v136, 0
    %v283 = vsel %vm269, %v137, 0
    %v286 = vsel %vm269, %v138, 0
    %v289 = vsel %vm269, %v139, 0
    %v292 = vsel %vm269, %v140, 0
    %v295 = vsel %vm269, %v141, 0
    %v298 = vsel %vm269, %v142, 0
    %v301 = vsel %vm269, %v143, 0
    %v304 = vsel %vm269, %v144, 0
    %v307 = vsel %vm269, %v145, 0
    %v310 = vsel %vm269, %v146, 0
    %v313 = vsel %vm269, %v147, 0
    %v316 = vsel %vm269, %v148, 0
    %v319 = vsel %vm269, %v149, 0
    %v322 = vsel %vm269, %v150, 0
    %v325 = vsel %vm269, %v151, 0
    %v328 = vsel %vm269, %v152, 0
    %v331 = vsel %vm269, %v153, 0
    %v334 = vsel %vm269, %v154, 0
    %v337 = vsel %vm269, %v155, 0
    %v340 = vsel %vm269, %v156, 0
    %v343 = vsel %vm269, %v157, 0
    %v346 = vsel %vm269, %v158, 0
    %v349 = vsel %vm269, %v159, 0
    %v352 = vsel %vm269, %v160, 0
    %v355 = vsel %vm269, %v161, 0
    %v358 = vsel %vm269, %v162, 0
    %v361 = vsel %vm269, %v163, 0
    %v364 = vsel %vm269, %v164, 0
    %v367 = vsel %vm269, %v165, 0
    %v370 = vsel %vm269, %v166, 0
    %v373 = vsel %vm269, %v167, 0
    %v376 = vsel %vm269, %v168, 0
    %v379 = vsel %vm269, %v169, 0
    %v382 = vsel %vm269, %v170, 0
    %v385 = vsel %vm269, %v171, 0
    %v388 = vsel %vm269, %v172, 0
    %v391 = vsel %vm269, %v173, 0
    %v394 = vsel %vm269, %v174, 0
    %v397 = vsel %vm269, %v175, 0
    %v400 = vsel %vm269, %v176, 0
    %v403 = vsel %vm269, %v177, 0
    %v406 = vsel %vm269, %v178, 0
    %v409 = vsel %vm269, %v179, 0
    %v412 = vsel %vm269, %v180, 0
    %v415 = vsel %vm269, %v181, 0
    %v418 = vsel %vm269, %v182, 0
    %v421 = vsel %vm269, %v183, 0
    %v424 = vsel %vm269, %v184, 0
    %v427 = vsel %vm269, %v185, 0
    %v430 = vsel %vm269, %v186, 0
    %v433 = vsel %vm269, %v187, 0
    %v436 = vsel %vm269, %v188, 0
    %v439 = vsel %vm269, %v189, 0
    %v442 = vsel %vm269, %v190, 0
    %v445 = vsel %vm269, %v191, 0
    %v448 = vsel %vm269, %v192, 0
    %v451 = vsel %vm269, %v193, 0
    %v454 = vsel %vm269, %v194, 0
    %v457 = vsel %vm269, %v195, 0
    %v460 = vsel %vm269, %v196, 0
    %v463 = vsel %vm269, %v197, 0
    %v466 = vsel %vm269, %v198, 0
    %v469 = vsel %vm269, %v199, 0
    %v472 = vsel %vm269, %v200, 0
    %v475 = vsel %vm269, %v201, 0
    %v478 = vsel %vm269, %v202, 0
    %v481 = vsel %vm269, %v203, 0
    %v484 = vsel %vm269, %v204, 0
    %v487 = vsel %vm269, %v205, 0
    %v490 = vsel %vm269, %v206, 0
    %v493 = vsel %vm269, %v207, 0
    %v496 = vsel %vm269, %v208, 0
    %v499 = vsel %vm269, %v209, 0
    %v502 = vsel %vm269, %v210, 0
    %v505 = vsel %vm269, %v211, 0
    %v508 = vsel %vm269, %v212, 0
    %v511 = vsel %vm269, %v213, 0
    %v514 = vsel %vm269, %v214, 0
    %v517 = vsel %vm269, %v215, 0
    %v520 = vsel %vm269, %v216, 0
    %v523 = vsel %vm269, %v217, 0
    %v526 = vsel %vm269, %v218, 0
    %v529 = vsel %vm269, %v219, 0
    %v532 = vsel %vm269, %v220, 0
    %v535 = vsel %vm269, %v221, 0
    %v538 = vsel %vm269, %v222, 0
    %v541 = vsel %vm269, %v223, 0
    %v544 = vsel %vm269, %v224, 0
    %v547 = vsel %vm269, %v225, 0
    %v550 = vsel %vm269, %v226, 0
    %v553 = vsel %vm269, %v227, 0
    %v556 = vsel %vm269, %v228, 0
    %v559 = vsel %vm269, %v229, 0
    %v562 = vsel %vm269, %v230, 0
    %v565 = vsel %vm269, %v231, 0
    %v568 = vsel %vm269, %v232, 0
    %v571 = vsel %vm269, %v233, 0
    %v574 = vsel %vm269, %v234, 0
    %v577 = vsel %vm269, %v235, 0
    %v580 = vsel %vm269, %v236, 0
    %v583 = vsel %vm269, %v237, 0
    %v586 = vsel %vm269, %v238, 0
    %v589 = vsel %vm269, %v239, 0
    %v592 = vsel %vm269, %v240, 0
    %v595 = vsel %vm269, %v241, 0
    %v598 = vsel %vm269, %v242, 0
    %v601 = vsel %vm269, %v243, 0
    %v604 = vsel %vm269, %v244, 0
    %v607 = vsel %vm269, %v245, 0
    %v610 = vsel %vm269, %v246, 0
    %v613 = vsel %vm269, %v247, 0
    %v616 = vsel %vm269, %v248, 0
    %v619 = vsel %vm269, %v249, 0
    %v622 = vsel %vm269, %v250, 0
    %v625 = vsel %vm269, %v251, 0
    %v628 = vsel %vm269, %v252, 0
    %v631 = vsel %vm269, %v253, 0
    %v634 = vsel %vm269, %v254, 0
    %v637 = vsel %vm269, %v255, 0
    %v640 = vsel %vm269, %v256, 0
    %v643 = vsel %vm269, %v257, 0
    %v646 = vsel %vm269, %v258, 0
    %v649 = vsel %vm269, %v259, 0
    %v652 = vsel %vm269, %v260, 0
    %654 = vmatprep.subr.mxu0 0.0
    %655 = vmatpush1.msra.mxu0 0.0
    %656 = vmatprep.subr.mxu0 0.0
    %657 = vmatpush1.msra.mxu0 0.0
    %658 = vmatprep.subr.mxu0 0.0
    %659 = vmatpush1.msra.mxu0 0.0
    %660 = vmatprep.subr.mxu0 0.0
    %661 = vmatpush1.msra.mxu0 0.0
    %662 = vmatprep.subr.mxu0 0.0
    %663 = vmatpush1.msra.mxu0 0.0
    %664 = vmatprep.subr.mxu0 0.0
    %665 = vmatpush1.msra.mxu0 0.0
    %666 = vmatprep.subr.mxu0 0.0
    %667 = vmatpush1.msra.mxu0 0.0
    %668 = vmatprep.subr.mxu0 0.0
    %669 = vmatpush1.msra.mxu0 0.0
    %670 = vmatprep.subr.mxu0 0.0
    %671 = vmatpush1.msra.mxu0 0.0
    %672 = vmatprep.subr.mxu0 0.0
    %673 = vmatpush1.msra.mxu0 0.0
    %674 = vmatprep.subr.mxu0 0.0
    %675 = vmatpush1.msra.mxu0 0.0
    %676 = vmatprep.subr.mxu0 0.0
    %677 = vmatpush1.msra.mxu0 0.0
    %678 = vmatprep.subr.mxu0 0.0
    %679 = vmatpush1.msra.mxu0 0.0
    %680 = vmatprep.subr.mxu0 0.0
    %681 = vmatpush1.msra.mxu0 0.0
    %682 = vmatprep.subr.mxu0 0.0
    %683 = vmatpush1.msra.mxu0 0.0
    %684 = vmatprep.subr.mxu0 0.0
    %685 = vmatpush1.msra.mxu0 %v261
    %686 = vmatprep.subr.mxu0 0.0
    %687 = vmatpush2.msra.mxu0 0.0
    %688 = vmatprep.subr.mxu0 0.0
    %689 = vmatpush2.msra.mxu0 0.0
    %690 = vmatprep.subr.mxu0 0.0
    %691 = vmatpush2.msra.mxu0 0.0
    %692 = vmatprep.subr.mxu0 0.0
    %693 = vmatpush2.msra.mxu0 0.0
    %694 = vmatprep.subr.mxu0 0.0
    %695 = vmatpush2.msra.mxu0 0.0
    %696 = vmatprep.subr.mxu0 0.0
    %697 = vmatpush2.msra.mxu0 0.0
    %698 = vmatprep.subr.mxu0 0.0
    %699 = vmatpush2.msra.mxu0 0.0
    %700 = vmatprep.subr.mxu0 0.0
    %701 = vmatpush2.msra.mxu0 0.0
    %702 = vmatprep.subr.mxu0 0.0
    %703 = vmatpush2.msra.mxu0 0.0
    %704 = vmatprep.subr.mxu0 0.0
    %705 = vmatpush2.msra.mxu0 0.0
    %706 = vmatprep.subr.mxu0 0.0
    %707 = vmatpush2.msra.mxu0 0.0
    %708 = vmatprep.subr.mxu0 0.0
    %709 = vmatpush2.msra.mxu0 0.0
    %710 = vmatprep.subr.mxu0 0.0
    %711 = vmatpush2.msra.mxu0 0.0
    %712 = vmatprep.subr.mxu0 0.0
    %713 = vmatpush2.msra.mxu0 0.0
    %714 = vmatprep.subr.mxu0 0.0
    %715 = vmatpush2.msra.mxu0 0.0
    %716 = vmatprep.subr.mxu0 0.0
    %717 = vmatpush2.msra.mxu0 0.0
    %718 = vmatprep.mubr.f32.mxu0 0.0
    %719 = vmatmul.mubr.f32.gmra.mxu0 %v271
    %v720 = vpop.f32.mrf.mxu0
    %v721 = vadd.f32 %v267, %v720
    %v722 = vpop.f32.mrf.mxu0
    %723 = vmatprep.mubr.f32.mxu0 0.0
    %724 = vmatmul.mubr.f32.gmra.mxu0 %v274
    %v725 = vpop.f32.mrf.mxu0
    %v726 = vadd.f32 %v267, %v725
    %v727 = vpop.f32.mrf.mxu0
    %728 = vmatprep.mubr.f32.mxu0 0.0
    %729 = vmatmul.mubr.f32.gmra.mxu0 %v277
    %v730 = vpop.f32.mrf.mxu0
    %v731 = vadd.f32 %v267, %v730
    %v732 = vpop.f32.mrf.mxu0
    %733 = vmatprep.mubr.f32.mxu0 0.0
    %734 = vmatmul.mubr.f32.gmra.mxu0 %v280
    %v735 = vpop.f32.mrf.mxu0
    %v736 = vadd.f32 %v267, %v735
    %v737 = vpop.f32.mrf.mxu0
    %738 = vmatprep.mubr.f32.mxu0 0.0
    %739 = vmatmul.mubr.f32.gmra.mxu0 %v283
    %v740 = vpop.f32.mrf.mxu0
    %v741 = vadd.f32 %v267, %v740
    %v742 = vpop.f32.mrf.mxu0
    %743 = vmatprep.mubr.f32.mxu0 0.0
    %744 = vmatmul.mubr.f32.gmra.mxu0 %v286
    %v745 = vpop.f32.mrf.mxu0
    %v746 = vadd.f32 %v267, %v745
    %v747 = vpop.f32.mrf.mxu0
    %748 = vmatprep.mubr.f32.mxu0 0.0
    %749 = vmatmul.mubr.f32.gmra.mxu0 %v289
    %v750 = vpop.f32.mrf.mxu0
    %v751 = vadd.f32 %v267, %v750
    %v752 = vpop.f32.mrf.mxu0
    %753 = vmatprep.mubr.f32.mxu0 0.0
    %754 = vmatmul.mubr.f32.gmra.mxu0 %v292
    %v755 = vpop.f32.mrf.mxu0
    %v756 = vadd.f32 %v267, %v755
    %v757 = vpop.f32.mrf.mxu0
    %758 = vmatprep.mubr.f32.mxu0 0.0
    %759 = vmatmul.mubr.f32.gmra.mxu0 %v295
    %v760 = vpop.f32.mrf.mxu0
    %v761 = vadd.f32 %v267, %v760
    %v762 = vpop.f32.mrf.mxu0
    %763 = vmatprep.mubr.f32.mxu0 0.0
    %764 = vmatmul.mubr.f32.gmra.mxu0 %v298
    %v765 = vpop.f32.mrf.mxu0
    %v766 = vadd.f32 %v267, %v765
    %v767 = vpop.f32.mrf.mxu0
    %768 = vmatprep.mubr.f32.mxu0 0.0
    %769 = vmatmul.mubr.f32.gmra.mxu0 %v301
    %v770 = vpop.f32.mrf.mxu0
    %v771 = vadd.f32 %v267, %v770
    %v772 = vpop.f32.mrf.mxu0
    %773 = vmatprep.mubr.f32.mxu0 0.0
    %774 = vmatmul.mubr.f32.gmra.mxu0 %v304
    %v775 = vpop.f32.mrf.mxu0
    %v776 = vadd.f32 %v267, %v775
    %v777 = vpop.f32.mrf.mxu0
    %778 = vmatprep.mubr.f32.mxu0 0.0
    %779 = vmatmul.mubr.f32.gmra.mxu0 %v307
    %v780 = vpop.f32.mrf.mxu0
    %v781 = vadd.f32 %v267, %v780
    %v782 = vpop.f32.mrf.mxu0
    %783 = vmatprep.mubr.f32.mxu0 0.0
    %784 = vmatmul.mubr.f32.gmra.mxu0 %v310
    %v785 = vpop.f32.mrf.mxu0
    %v786 = vadd.f32 %v267, %v785
    %v787 = vpop.f32.mrf.mxu0
    %788 = vmatprep.mubr.f32.mxu0 0.0
    %789 = vmatmul.mubr.f32.gmra.mxu0 %v313
    %v790 = vpop.f32.mrf.mxu0
    %v791 = vadd.f32 %v267, %v790
    %v792 = vpop.f32.mrf.mxu0
    %793 = vmatprep.mubr.f32.mxu0 0.0
    %794 = vmatmul.mubr.f32.gmra.mxu0 %v316
    %v795 = vpop.f32.mrf.mxu0
    %v796 = vadd.f32 %v267, %v795
    %v797 = vpop.f32.mrf.mxu0
    %798 = vmatprep.mubr.f32.mxu0 0.0
    %799 = vmatmul.mubr.f32.gmra.mxu0 %v319
    %v800 = vpop.f32.mrf.mxu0
    %v801 = vadd.f32 %v267, %v800
    %v802 = vpop.f32.mrf.mxu0
    %803 = vmatprep.mubr.f32.mxu0 0.0
    %804 = vmatmul.mubr.f32.gmra.mxu0 %v322
    %v805 = vpop.f32.mrf.mxu0
    %v806 = vadd.f32 %v267, %v805
    %v807 = vpop.f32.mrf.mxu0
    %808 = vmatprep.mubr.f32.mxu0 0.0
    %809 = vmatmul.mubr.f32.gmra.mxu0 %v325
    %v810 = vpop.f32.mrf.mxu0
    %v811 = vadd.f32 %v267, %v810
    %v812 = vpop.f32.mrf.mxu0
    %813 = vmatprep.mubr.f32.mxu0 0.0
    %814 = vmatmul.mubr.f32.gmra.mxu0 %v328
    %v815 = vpop.f32.mrf.mxu0
    %v816 = vadd.f32 %v267, %v815
    %v817 = vpop.f32.mrf.mxu0
    %818 = vmatprep.mubr.f32.mxu0 0.0
    %819 = vmatmul.mubr.f32.gmra.mxu0 %v331
    %v820 = vpop.f32.mrf.mxu0
    %v821 = vadd.f32 %v267, %v820
    %v822 = vpop.f32.mrf.mxu0
    %823 = vmatprep.mubr.f32.mxu0 0.0
    %824 = vmatmul.mubr.f32.gmra.mxu0 %v334
    %v825 = vpop.f32.mrf.mxu0
    %v826 = vadd.f32 %v267, %v825
    %v827 = vpop.f32.mrf.mxu0
    %828 = vmatprep.mubr.f32.mxu0 0.0
    %829 = vmatmul.mubr.f32.gmra.mxu0 %v337
    %v830 = vpop.f32.mrf.mxu0
    %v831 = vadd.f32 %v267, %v830
    %v832 = vpop.f32.mrf.mxu0
    %833 = vmatprep.mubr.f32.mxu0 0.0
    %834 = vmatmul.mubr.f32.gmra.mxu0 %v340
    %v835 = vpop.f32.mrf.mxu0
    %v836 = vadd.f32 %v267, %v835
    %v837 = vpop.f32.mrf.mxu0
    %838 = vmatprep.mubr.f32.mxu0 0.0
    %839 = vmatmul.mubr.f32.gmra.mxu0 %v343
    %v840 = vpop.f32.mrf.mxu0
    %v841 = vadd.f32 %v267, %v840
    %v842 = vpop.f32.mrf.mxu0
    %843 = vmatprep.mubr.f32.mxu0 0.0
    %844 = vmatmul.mubr.f32.gmra.mxu0 %v346
    %v845 = vpop.f32.mrf.mxu0
    %v846 = vadd.f32 %v267, %v845
    %v847 = vpop.f32.mrf.mxu0
    %848 = vmatprep.mubr.f32.mxu0 0.0
    %849 = vmatmul.mubr.f32.gmra.mxu0 %v349
    %v850 = vpop.f32.mrf.mxu0
    %v851 = vadd.f32 %v267, %v850
    %v852 = vpop.f32.mrf.mxu0
    %853 = vmatprep.mubr.f32.mxu0 0.0
    %854 = vmatmul.mubr.f32.gmra.mxu0 %v352
    %v855 = vpop.f32.mrf.mxu0
    %v856 = vadd.f32 %v267, %v855
    %v857 = vpop.f32.mrf.mxu0
    %858 = vmatprep.mubr.f32.mxu0 0.0
    %859 = vmatmul.mubr.f32.gmra.mxu0 %v355
    %v860 = vpop.f32.mrf.mxu0
    %v861 = vadd.f32 %v267, %v860
    %v862 = vpop.f32.mrf.mxu0
    %863 = vmatprep.mubr.f32.mxu0 0.0
    %864 = vmatmul.mubr.f32.gmra.mxu0 %v358
    %v865 = vpop.f32.mrf.mxu0
    %v866 = vadd.f32 %v267, %v865
    %v867 = vpop.f32.mrf.mxu0
    %868 = vmatprep.mubr.f32.mxu0 0.0
    %869 = vmatmul.mubr.f32.gmra.mxu0 %v361
    %v870 = vpop.f32.mrf.mxu0
    %v871 = vadd.f32 %v267, %v870
    %v872 = vpop.f32.mrf.mxu0
    %873 = vmatprep.mubr.f32.mxu0 0.0
    %874 = vmatmul.mubr.f32.gmra.mxu0 %v364
    %v875 = vpop.f32.mrf.mxu0
    %v876 = vadd.f32 %v267, %v875
    %v877 = vpop.f32.mrf.mxu0
    %878 = vmatprep.mubr.f32.mxu0 0.0
    %879 = vmatmul.mubr.f32.gmra.mxu0 %v367
    %v880 = vpop.f32.mrf.mxu0
    %v881 = vadd.f32 %v267, %v880
    %v882 = vpop.f32.mrf.mxu0
    %883 = vmatprep.mubr.f32.mxu0 0.0
    %884 = vmatmul.mubr.f32.gmra.mxu0 %v370
    %v885 = vpop.f32.mrf.mxu0
    %v886 = vadd.f32 %v267, %v885
    %v887 = vpop.f32.mrf.mxu0
    %888 = vmatprep.mubr.f32.mxu0 0.0
    %889 = vmatmul.mubr.f32.gmra.mxu0 %v373
    %v890 = vpop.f32.mrf.mxu0
    %v891 = vadd.f32 %v267, %v890
    %v892 = vpop.f32.mrf.mxu0
    %893 = vmatprep.mubr.f32.mxu0 0.0
    %894 = vmatmul.mubr.f32.gmra.mxu0 %v376
    %v895 = vpop.f32.mrf.mxu0
    %v896 = vadd.f32 %v267, %v895
    %v897 = vpop.f32.mrf.mxu0
    %898 = vmatprep.mubr.f32.mxu0 0.0
    %899 = vmatmul.mubr.f32.gmra.mxu0 %v379
    %v900 = vpop.f32.mrf.mxu0
    %v901 = vadd.f32 %v267, %v900
    %v902 = vpop.f32.mrf.mxu0
    %903 = vmatprep.mubr.f32.mxu0 0.0
    %904 = vmatmul.mubr.f32.gmra.mxu0 %v382
    %v905 = vpop.f32.mrf.mxu0
    %v906 = vadd.f32 %v267, %v905
    %v907 = vpop.f32.mrf.mxu0
    %908 = vmatprep.mubr.f32.mxu0 0.0
    %909 = vmatmul.mubr.f32.gmra.mxu0 %v385
    %v910 = vpop.f32.mrf.mxu0
    %v911 = vadd.f32 %v267, %v910
    %v912 = vpop.f32.mrf.mxu0
    %913 = vmatprep.mubr.f32.mxu0 0.0
    %914 = vmatmul.mubr.f32.gmra.mxu0 %v388
    %v915 = vpop.f32.mrf.mxu0
    %v916 = vadd.f32 %v267, %v915
    %v917 = vpop.f32.mrf.mxu0
    %918 = vmatprep.mubr.f32.mxu0 0.0
    %919 = vmatmul.mubr.f32.gmra.mxu0 %v391
    %v920 = vpop.f32.mrf.mxu0
    %v921 = vadd.f32 %v267, %v920
    %v922 = vpop.f32.mrf.mxu0
    %923 = vmatprep.mubr.f32.mxu0 0.0
    %924 = vmatmul.mubr.f32.gmra.mxu0 %v394
    %v925 = vpop.f32.mrf.mxu0
    %v926 = vadd.f32 %v267, %v925
    %v927 = vpop.f32.mrf.mxu0
    %928 = vmatprep.mubr.f32.mxu0 0.0
    %929 = vmatmul.mubr.f32.gmra.mxu0 %v397
    %v930 = vpop.f32.mrf.mxu0
    %v931 = vadd.f32 %v267, %v930
    %v932 = vpop.f32.mrf.mxu0
    %933 = vmatprep.mubr.f32.mxu0 0.0
    %934 = vmatmul.mubr.f32.gmra.mxu0 %v400
    %v935 = vpop.f32.mrf.mxu0
    %v936 = vadd.f32 %v267, %v935
    %v937 = vpop.f32.mrf.mxu0
    %938 = vmatprep.mubr.f32.mxu0 0.0
    %939 = vmatmul.mubr.f32.gmra.mxu0 %v403
    %v940 = vpop.f32.mrf.mxu0
    %v941 = vadd.f32 %v267, %v940
    %v942 = vpop.f32.mrf.mxu0
    %943 = vmatprep.mubr.f32.mxu0 0.0
    %944 = vmatmul.mubr.f32.gmra.mxu0 %v406
    %v945 = vpop.f32.mrf.mxu0
    %v946 = vadd.f32 %v267, %v945
    %v947 = vpop.f32.mrf.mxu0
    %948 = vmatprep.mubr.f32.mxu0 0.0
    %949 = vmatmul.mubr.f32.gmra.mxu0 %v409
    %v950 = vpop.f32.mrf.mxu0
    %v951 = vadd.f32 %v267, %v950
    %v952 = vpop.f32.mrf.mxu0
    %953 = vmatprep.mubr.f32.mxu0 0.0
    %954 = vmatmul.mubr.f32.gmra.mxu0 %v412
    %v955 = vpop.f32.mrf.mxu0
    %v956 = vadd.f32 %v267, %v955
    %v957 = vpop.f32.mrf.mxu0
    %958 = vmatprep.mubr.f32.mxu0 0.0
    %959 = vmatmul.mubr.f32.gmra.mxu0 %v415
    %v960 = vpop.f32.mrf.mxu0
    %v961 = vadd.f32 %v267, %v960
    %v962 = vpop.f32.mrf.mxu0
    %963 = vmatprep.mubr.f32.mxu0 0.0
    %964 = vmatmul.mubr.f32.gmra.mxu0 %v418
    %v965 = vpop.f32.mrf.mxu0
    %v966 = vadd.f32 %v267, %v965
    %v967 = vpop.f32.mrf.mxu0
    %968 = vmatprep.mubr.f32.mxu0 0.0
    %969 = vmatmul.mubr.f32.gmra.mxu0 %v421
    %v970 = vpop.f32.mrf.mxu0
    %v971 = vadd.f32 %v267, %v970
    %v972 = vpop.f32.mrf.mxu0
    %973 = vmatprep.mubr.f32.mxu0 0.0
    %974 = vmatmul.mubr.f32.gmra.mxu0 %v424
    %v975 = vpop.f32.mrf.mxu0
    %v976 = vadd.f32 %v267, %v975
    %v977 = vpop.f32.mrf.mxu0
    %978 = vmatprep.mubr.f32.mxu0 0.0
    %979 = vmatmul.mubr.f32.gmra.mxu0 %v427
    %v980 = vpop.f32.mrf.mxu0
    %v981 = vadd.f32 %v267, %v980
    %v982 = vpop.f32.mrf.mxu0
    %983 = vmatprep.mubr.f32.mxu0 0.0
    %984 = vmatmul.mubr.f32.gmra.mxu0 %v430
    %v985 = vpop.f32.mrf.mxu0
    %v986 = vadd.f32 %v267, %v985
    %v987 = vpop.f32.mrf.mxu0
    %988 = vmatprep.mubr.f32.mxu0 0.0
    %989 = vmatmul.mubr.f32.gmra.mxu0 %v433
    %v990 = vpop.f32.mrf.mxu0
    %v991 = vadd.f32 %v267, %v990
    %v992 = vpop.f32.mrf.mxu0
    %993 = vmatprep.mubr.f32.mxu0 0.0
    %994 = vmatmul.mubr.f32.gmra.mxu0 %v436
    %v995 = vpop.f32.mrf.mxu0
    %v996 = vadd.f32 %v267, %v995
    %v997 = vpop.f32.mrf.mxu0
    %998 = vmatprep.mubr.f32.mxu0 0.0
    %999 = vmatmul.mubr.f32.gmra.mxu0 %v439
    %v1000 = vpop.f32.mrf.mxu0
    %v1001 = vadd.f32 %v267, %v1000
    %v1002 = vpop.f32.mrf.mxu0
    %1003 = vmatprep.mubr.f32.mxu0 0.0
    %1004 = vmatmul.mubr.f32.gmra.mxu0 %v442
    %v1005 = vpop.f32.mrf.mxu0
    %v1006 = vadd.f32 %v267, %v1005
    %v1007 = vpop.f32.mrf.mxu0
    %1008 = vmatprep.mubr.f32.mxu0 0.0
    %1009 = vmatmul.mubr.f32.gmra.mxu0 %v445
    %v1010 = vpop.f32.mrf.mxu0
    %v1011 = vadd.f32 %v267, %v1010
    %v1012 = vpop.f32.mrf.mxu0
    %1013 = vmatprep.mubr.f32.mxu0 0.0
    %1014 = vmatmul.mubr.f32.gmra.mxu0 %v448
    %v1015 = vpop.f32.mrf.mxu0
    %v1016 = vadd.f32 %v267, %v1015
    %v1017 = vpop.f32.mrf.mxu0
    %1018 = vmatprep.mubr.f32.mxu0 0.0
    %1019 = vmatmul.mubr.f32.gmra.mxu0 %v451
    %v1020 = vpop.f32.mrf.mxu0
    %v1021 = vadd.f32 %v267, %v1020
    %v1022 = vpop.f32.mrf.mxu0
    %1023 = vmatprep.mubr.f32.mxu0 0.0
    %1024 = vmatmul.mubr.f32.gmra.mxu0 %v454
    %v1025 = vpop.f32.mrf.mxu0
    %v1026 = vadd.f32 %v267, %v1025
    %v1027 = vpop.f32.mrf.mxu0
    %1028 = vmatprep.mubr.f32.mxu0 0.0
    %1029 = vmatmul.mubr.f32.gmra.mxu0 %v457
    %v1030 = vpop.f32.mrf.mxu0
    %v1031 = vadd.f32 %v267, %v1030
    %v1032 = vpop.f32.mrf.mxu0
    %1033 = vmatprep.mubr.f32.mxu0 0.0
    %1034 = vmatmul.mubr.f32.gmra.mxu0 %v460
    %v1035 = vpop.f32.mrf.mxu0
    %v1036 = vadd.f32 %v267, %v1035
    %v1037 = vpop.f32.mrf.mxu0
    %1038 = vmatprep.mubr.f32.mxu0 0.0
    %1039 = vmatmul.mubr.f32.gmra.mxu0 %v463
    %v1040 = vpop.f32.mrf.mxu0
    %v1041 = vadd.f32 %v267, %v1040
    %v1042 = vpop.f32.mrf.mxu0
    %1043 = vmatprep.mubr.f32.mxu0 0.0
    %1044 = vmatmul.mubr.f32.gmra.mxu0 %v466
    %v1045 = vpop.f32.mrf.mxu0
    %v1046 = vadd.f32 %v267, %v1045
    %v1047 = vpop.f32.mrf.mxu0
    %1048 = vmatprep.mubr.f32.mxu0 0.0
    %1049 = vmatmul.mubr.f32.gmra.mxu0 %v469
    %v1050 = vpop.f32.mrf.mxu0
    %v1051 = vadd.f32 %v267, %v1050
    %v1052 = vpop.f32.mrf.mxu0
    %1053 = vmatprep.mubr.f32.mxu0 0.0
    %1054 = vmatmul.mubr.f32.gmra.mxu0 %v472
    %v1055 = vpop.f32.mrf.mxu0
    %v1056 = vadd.f32 %v267, %v1055
    %v1057 = vpop.f32.mrf.mxu0
    %1058 = vmatprep.mubr.f32.mxu0 0.0
    %1059 = vmatmul.mubr.f32.gmra.mxu0 %v475
    %v1060 = vpop.f32.mrf.mxu0
    %v1061 = vadd.f32 %v267, %v1060
    %v1062 = vpop.f32.mrf.mxu0
    %1063 = vmatprep.mubr.f32.mxu0 0.0
    %1064 = vmatmul.mubr.f32.gmra.mxu0 %v478
    %v1065 = vpop.f32.mrf.mxu0
    %v1066 = vadd.f32 %v267, %v1065
    %v1067 = vpop.f32.mrf.mxu0
    %1068 = vmatprep.mubr.f32.mxu0 0.0
    %1069 = vmatmul.mubr.f32.gmra.mxu0 %v481
    %v1070 = vpop.f32.mrf.mxu0
    %v1071 = vadd.f32 %v267, %v1070
    %v1072 = vpop.f32.mrf.mxu0
    %1073 = vmatprep.mubr.f32.mxu0 0.0
    %1074 = vmatmul.mubr.f32.gmra.mxu0 %v484
    %v1075 = vpop.f32.mrf.mxu0
    %v1076 = vadd.f32 %v267, %v1075
    %v1077 = vpop.f32.mrf.mxu0
    %1078 = vmatprep.mubr.f32.mxu0 0.0
    %1079 = vmatmul.mubr.f32.gmra.mxu0 %v487
    %v1080 = vpop.f32.mrf.mxu0
    %v1081 = vadd.f32 %v267, %v1080
    %v1082 = vpop.f32.mrf.mxu0
    %1083 = vmatprep.mubr.f32.mxu0 0.0
    %1084 = vmatmul.mubr.f32.gmra.mxu0 %v490
    %v1085 = vpop.f32.mrf.mxu0
    %v1086 = vadd.f32 %v267, %v1085
    %v1087 = vpop.f32.mrf.mxu0
    %1088 = vmatprep.mubr.f32.mxu0 0.0
    %1089 = vmatmul.mubr.f32.gmra.mxu0 %v493
    %v1090 = vpop.f32.mrf.mxu0
    %v1091 = vadd.f32 %v267, %v1090
    %v1092 = vpop.f32.mrf.mxu0
    %1093 = vmatprep.mubr.f32.mxu0 0.0
    %1094 = vmatmul.mubr.f32.gmra.mxu0 %v496
    %v1095 = vpop.f32.mrf.mxu0
    %v1096 = vadd.f32 %v267, %v1095
    %v1097 = vpop.f32.mrf.mxu0
    %1098 = vmatprep.mubr.f32.mxu0 0.0
    %1099 = vmatmul.mubr.f32.gmra.mxu0 %v499
    %v1100 = vpop.f32.mrf.mxu0
    %v1101 = vadd.f32 %v267, %v1100
    %v1102 = vpop.f32.mrf.mxu0
    %1103 = vmatprep.mubr.f32.mxu0 0.0
    %1104 = vmatmul.mubr.f32.gmra.mxu0 %v502
    %v1105 = vpop.f32.mrf.mxu0
    %v1106 = vadd.f32 %v267, %v1105
    %v1107 = vpop.f32.mrf.mxu0
    %1108 = vmatprep.mubr.f32.mxu0 0.0
    %1109 = vmatmul.mubr.f32.gmra.mxu0 %v505
    %v1110 = vpop.f32.mrf.mxu0
    %v1111 = vadd.f32 %v267, %v1110
    %v1112 = vpop.f32.mrf.mxu0
    %1113 = vmatprep.mubr.f32.mxu0 0.0
    %1114 = vmatmul.mubr.f32.gmra.mxu0 %v508
    %v1115 = vpop.f32.mrf.mxu0
    %v1116 = vadd.f32 %v267, %v1115
    %v1117 = vpop.f32.mrf.mxu0
    %1118 = vmatprep.mubr.f32.mxu0 0.0
    %1119 = vmatmul.mubr.f32.gmra.mxu0 %v511
    %v1120 = vpop.f32.mrf.mxu0
    %v1121 = vadd.f32 %v267, %v1120
    %v1122 = vpop.f32.mrf.mxu0
    %1123 = vmatprep.mubr.f32.mxu0 0.0
    %1124 = vmatmul.mubr.f32.gmra.mxu0 %v514
    %v1125 = vpop.f32.mrf.mxu0
    %v1126 = vadd.f32 %v267, %v1125
    %v1127 = vpop.f32.mrf.mxu0
    %1128 = vmatprep.mubr.f32.mxu0 0.0
    %1129 = vmatmul.mubr.f32.gmra.mxu0 %v517
    %v1130 = vpop.f32.mrf.mxu0
    %v1131 = vadd.f32 %v267, %v1130
    %v1132 = vpop.f32.mrf.mxu0
    %1133 = vmatprep.mubr.f32.mxu0 0.0
    %1134 = vmatmul.mubr.f32.gmra.mxu0 %v520
    %v1135 = vpop.f32.mrf.mxu0
    %v1136 = vadd.f32 %v267, %v1135
    %v1137 = vpop.f32.mrf.mxu0
    %1138 = vmatprep.mubr.f32.mxu0 0.0
    %1139 = vmatmul.mubr.f32.gmra.mxu0 %v523
    %v1140 = vpop.f32.mrf.mxu0
    %v1141 = vadd.f32 %v267, %v1140
    %v1142 = vpop.f32.mrf.mxu0
    %1143 = vmatprep.mubr.f32.mxu0 0.0
    %1144 = vmatmul.mubr.f32.gmra.mxu0 %v526
    %v1145 = vpop.f32.mrf.mxu0
    %v1146 = vadd.f32 %v267, %v1145
    %v1147 = vpop.f32.mrf.mxu0
    %1148 = vmatprep.mubr.f32.mxu0 0.0
    %1149 = vmatmul.mubr.f32.gmra.mxu0 %v529
    %v1150 = vpop.f32.mrf.mxu0
    %v1151 = vadd.f32 %v267, %v1150
    %v1152 = vpop.f32.mrf.mxu0
    %1153 = vmatprep.mubr.f32.mxu0 0.0
    %1154 = vmatmul.mubr.f32.gmra.mxu0 %v532
    %v1155 = vpop.f32.mrf.mxu0
    %v1156 = vadd.f32 %v267, %v1155
    %v1157 = vpop.f32.mrf.mxu0
    %1158 = vmatprep.mubr.f32.mxu0 0.0
    %1159 = vmatmul.mubr.f32.gmra.mxu0 %v535
    %v1160 = vpop.f32.mrf.mxu0
    %v1161 = vadd.f32 %v267, %v1160
    %v1162 = vpop.f32.mrf.mxu0
    %1163 = vmatprep.mubr.f32.mxu0 0.0
    %1164 = vmatmul.mubr.f32.gmra.mxu0 %v538
    %v1165 = vpop.f32.mrf.mxu0
    %v1166 = vadd.f32 %v267, %v1165
    %v1167 = vpop.f32.mrf.mxu0
    %1168 = vmatprep.mubr.f32.mxu0 0.0
    %1169 = vmatmul.mubr.f32.gmra.mxu0 %v541
    %v1170 = vpop.f32.mrf.mxu0
    %v1171 = vadd.f32 %v267, %v1170
    %v1172 = vpop.f32.mrf.mxu0
    %1173 = vmatprep.mubr.f32.mxu0 0.0
    %1174 = vmatmul.mubr.f32.gmra.mxu0 %v544
    %v1175 = vpop.f32.mrf.mxu0
    %v1176 = vadd.f32 %v267, %v1175
    %v1177 = vpop.f32.mrf.mxu0
    %1178 = vmatprep.mubr.f32.mxu0 0.0
    %1179 = vmatmul.mubr.f32.gmra.mxu0 %v547
    %v1180 = vpop.f32.mrf.mxu0
    %v1181 = vadd.f32 %v267, %v1180
    %v1182 = vpop.f32.mrf.mxu0
    %1183 = vmatprep.mubr.f32.mxu0 0.0
    %1184 = vmatmul.mubr.f32.gmra.mxu0 %v550
    %v1185 = vpop.f32.mrf.mxu0
    %v1186 = vadd.f32 %v267, %v1185
    %v1187 = vpop.f32.mrf.mxu0
    %1188 = vmatprep.mubr.f32.mxu0 0.0
    %1189 = vmatmul.mubr.f32.gmra.mxu0 %v553
    %v1190 = vpop.f32.mrf.mxu0
    %v1191 = vadd.f32 %v267, %v1190
    %v1192 = vpop.f32.mrf.mxu0
    %1193 = vmatprep.mubr.f32.mxu0 0.0
    %1194 = vmatmul.mubr.f32.gmra.mxu0 %v556
    %v1195 = vpop.f32.mrf.mxu0
    %v1196 = vadd.f32 %v267, %v1195
    %v1197 = vpop.f32.mrf.mxu0
    %1198 = vmatprep.mubr.f32.mxu0 0.0
    %1199 = vmatmul.mubr.f32.gmra.mxu0 %v559
    %v1200 = vpop.f32.mrf.mxu0
    %v1201 = vadd.f32 %v267, %v1200
    %v1202 = vpop.f32.mrf.mxu0
    %1203 = vmatprep.mubr.f32.mxu0 0.0
    %1204 = vmatmul.mubr.f32.gmra.mxu0 %v562
    %v1205 = vpop.f32.mrf.mxu0
    %v1206 = vadd.f32 %v267, %v1205
    %v1207 = vpop.f32.mrf.mxu0
    %1208 = vmatprep.mubr.f32.mxu0 0.0
    %1209 = vmatmul.mubr.f32.gmra.mxu0 %v565
    %v1210 = vpop.f32.mrf.mxu0
    %v1211 = vadd.f32 %v267, %v1210
    %v1212 = vpop.f32.mrf.mxu0
    %1213 = vmatprep.mubr.f32.mxu0 0.0
    %1214 = vmatmul.mubr.f32.gmra.mxu0 %v568
    %v1215 = vpop.f32.mrf.mxu0
    %v1216 = vadd.f32 %v267, %v1215
    %v1217 = vpop.f32.mrf.mxu0
    %1218 = vmatprep.mubr.f32.mxu0 0.0
    %1219 = vmatmul.mubr.f32.gmra.mxu0 %v571
    %v1220 = vpop.f32.mrf.mxu0
    %v1221 = vadd.f32 %v267, %v1220
    %v1222 = vpop.f32.mrf.mxu0
    %1223 = vmatprep.mubr.f32.mxu0 0.0
    %1224 = vmatmul.mubr.f32.gmra.mxu0 %v574
    %v1225 = vpop.f32.mrf.mxu0
    %v1226 = vadd.f32 %v267, %v1225
    %v1227 = vpop.f32.mrf.mxu0
    %1228 = vmatprep.mubr.f32.mxu0 0.0
    %1229 = vmatmul.mubr.f32.gmra.mxu0 %v577
    %v1230 = vpop.f32.mrf.mxu0
    %v1231 = vadd.f32 %v267, %v1230
    %v1232 = vpop.f32.mrf.mxu0
    %1233 = vmatprep.mubr.f32.mxu0 0.0
    %1234 = vmatmul.mubr.f32.gmra.mxu0 %v580
    %v1235 = vpop.f32.mrf.mxu0
    %v1236 = vadd.f32 %v267, %v1235
    %v1237 = vpop.f32.mrf.mxu0
    %1238 = vmatprep.mubr.f32.mxu0 0.0
    %1239 = vmatmul.mubr.f32.gmra.mxu0 %v583
    %v1240 = vpop.f32.mrf.mxu0
    %v1241 = vadd.f32 %v267, %v1240
    %v1242 = vpop.f32.mrf.mxu0
    %1243 = vmatprep.mubr.f32.mxu0 0.0
    %1244 = vmatmul.mubr.f32.gmra.mxu0 %v586
    %v1245 = vpop.f32.mrf.mxu0
    %v1246 = vadd.f32 %v267, %v1245
    %v1247 = vpop.f32.mrf.mxu0
    %1248 = vmatprep.mubr.f32.mxu0 0.0
    %1249 = vmatmul.mubr.f32.gmra.mxu0 %v589
    %v1250 = vpop.f32.mrf.mxu0
    %v1251 = vadd.f32 %v267, %v1250
    %v1252 = vpop.f32.mrf.mxu0
    %1253 = vmatprep.mubr.f32.mxu0 0.0
    %1254 = vmatmul.mubr.f32.gmra.mxu0 %v592
    %v1255 = vpop.f32.mrf.mxu0
    %v1256 = vadd.f32 %v267, %v1255
    %v1257 = vpop.f32.mrf.mxu0
    %1258 = vmatprep.mubr.f32.mxu0 0.0
    %1259 = vmatmul.mubr.f32.gmra.mxu0 %v595
    %v1260 = vpop.f32.mrf.mxu0
    %v1261 = vadd.f32 %v267, %v1260
    %v1262 = vpop.f32.mrf.mxu0
    %1263 = vmatprep.mubr.f32.mxu0 0.0
    %1264 = vmatmul.mubr.f32.gmra.mxu0 %v598
    %v1265 = vpop.f32.mrf.mxu0
    %v1266 = vadd.f32 %v267, %v1265
    %v1267 = vpop.f32.mrf.mxu0
    %1268 = vmatprep.mubr.f32.mxu0 0.0
    %1269 = vmatmul.mubr.f32.gmra.mxu0 %v601
    %v1270 = vpop.f32.mrf.mxu0
    %v1271 = vadd.f32 %v267, %v1270
    %v1272 = vpop.f32.mrf.mxu0
    %1273 = vmatprep.mubr.f32.mxu0 0.0
    %1274 = vmatmul.mubr.f32.gmra.mxu0 %v604
    %v1275 = vpop.f32.mrf.mxu0
    %v1276 = vadd.f32 %v267, %v1275
    %v1277 = vpop.f32.mrf.mxu0
    %1278 = vmatprep.mubr.f32.mxu0 0.0
    %1279 = vmatmul.mubr.f32.gmra.mxu0 %v607
    %v1280 = vpop.f32.mrf.mxu0
    %v1281 = vadd.f32 %v267, %v1280
    %v1282 = vpop.f32.mrf.mxu0
    %1283 = vmatprep.mubr.f32.mxu0 0.0
    %1284 = vmatmul.mubr.f32.gmra.mxu0 %v610
    %v1285 = vpop.f32.mrf.mxu0
    %v1286 = vadd.f32 %v267, %v1285
    %v1287 = vpop.f32.mrf.mxu0
    %1288 = vmatprep.mubr.f32.mxu0 0.0
    %1289 = vmatmul.mubr.f32.gmra.mxu0 %v613
    %v1290 = vpop.f32.mrf.mxu0
    %v1291 = vadd.f32 %v267, %v1290
    %v1292 = vpop.f32.mrf.mxu0
    %1293 = vmatprep.mubr.f32.mxu0 0.0
    %1294 = vmatmul.mubr.f32.gmra.mxu0 %v616
    %v1295 = vpop.f32.mrf.mxu0
    %v1296 = vadd.f32 %v267, %v1295
    %v1297 = vpop.f32.mrf.mxu0
    %1298 = vmatprep.mubr.f32.mxu0 0.0
    %1299 = vmatmul.mubr.f32.gmra.mxu0 %v619
    %v1300 = vpop.f32.mrf.mxu0
    %v1301 = vadd.f32 %v267, %v1300
    %v1302 = vpop.f32.mrf.mxu0
    %1303 = vmatprep.mubr.f32.mxu0 0.0
    %1304 = vmatmul.mubr.f32.gmra.mxu0 %v622
    %v1305 = vpop.f32.mrf.mxu0
    %v1306 = vadd.f32 %v267, %v1305
    %v1307 = vpop.f32.mrf.mxu0
    %1308 = vmatprep.mubr.f32.mxu0 0.0
    %1309 = vmatmul.mubr.f32.gmra.mxu0 %v625
    %v1310 = vpop.f32.mrf.mxu0
    %v1311 = vadd.f32 %v267, %v1310
    %v1312 = vpop.f32.mrf.mxu0
    %1313 = vmatprep.mubr.f32.mxu0 0.0
    %1314 = vmatmul.mubr.f32.gmra.mxu0 %v628
    %v1315 = vpop.f32.mrf.mxu0
    %v1316 = vadd.f32 %v267, %v1315
    %v1317 = vpop.f32.mrf.mxu0
    %1318 = vmatprep.mubr.f32.mxu0 0.0
    %1319 = vmatmul.mubr.f32.gmra.mxu0 %v631
    %v1320 = vpop.f32.mrf.mxu0
    %v1321 = vadd.f32 %v267, %v1320
    %v1322 = vpop.f32.mrf.mxu0
    %1323 = vmatprep.mubr.f32.mxu0 0.0
    %1324 = vmatmul.mubr.f32.gmra.mxu0 %v634
    %v1325 = vpop.f32.mrf.mxu0
    %v1326 = vadd.f32 %v267, %v1325
    %v1327 = vpop.f32.mrf.mxu0
    %1328 = vmatprep.mubr.f32.mxu0 0.0
    %1329 = vmatmul.mubr.f32.gmra.mxu0 %v637
    %v1330 = vpop.f32.mrf.mxu0
    %v1331 = vadd.f32 %v267, %v1330
    %v1332 = vpop.f32.mrf.mxu0
    %1333 = vmatprep.mubr.f32.mxu0 0.0
    %1334 = vmatmul.mubr.f32.gmra.mxu0 %v640
    %v1335 = vpop.f32.mrf.mxu0
    %v1336 = vadd.f32 %v267, %v1335
    %v1337 = vpop.f32.mrf.mxu0
    %1338 = vmatprep.mubr.f32.mxu0 0.0
    %1339 = vmatmul.mubr.f32.gmra.mxu0 %v643
    %v1340 = vpop.f32.mrf.mxu0
    %v1341 = vadd.f32 %v267, %v1340
    %v1342 = vpop.f32.mrf.mxu0
    %1343 = vmatprep.mubr.f32.mxu0 0.0
    %1344 = vmatmul.mubr.f32.gmra.mxu0 %v646
    %v1345 = vpop.f32.mrf.mxu0
    %v1346 = vadd.f32 %v267, %v1345
    %v1347 = vpop.f32.mrf.mxu0
    %1348 = vmatprep.mubr.f32.mxu0 0.0
    %1349 = vmatmul.mubr.f32.gmra.mxu0 %v649
    %v1350 = vpop.f32.mrf.mxu0
    %v1351 = vadd.f32 %v267, %v1350
    %v1352 = vpop.f32.mrf.mxu0
    %1353 = vmatprep.mubr.f32.mxu0 0.0
    %1354 = vmatmul.mubr.f32.gmra.mxu0 %v652
    %v1355 = vpop.f32.mrf.mxu0
    %v1356 = vadd.f32 %v267, %v1355
    %v1357 = vpop.f32.mrf.mxu0
    %1358 = vdwg.mxu0
    %v1359 = vmax.f32 %v721, 0.0
    %v1360 = vmax.f32 %v726, 0.0
    %v1361 = vmax.f32 %v731, 0.0
    %v1362 = vmax.f32 %v736, 0.0
    %v1363 = vmax.f32 %v741, 0.0
    %v1364 = vmax.f32 %v746, 0.0
    %v1365 = vmax.f32 %v751, 0.0
    %v1366 = vmax.f32 %v756, 0.0
    %v1367 = vmax.f32 %v761, 0.0
    %v1368 = vmax.f32 %v766, 0.0
    %v1369 = vmax.f32 %v771, 0.0
    %v1370 = vmax.f32 %v776, 0.0
    %v1371 = vmax.f32 %v781, 0.0
    %v1372 = vmax.f32 %v786, 0.0
    %v1373 = vmax.f32 %v791, 0.0
    %v1374 = vmax.f32 %v796, 0.0
    %v1375 = vmax.f32 %v801, 0.0
    %v1376 = vmax.f32 %v806, 0.0
    %v1377 = vmax.f32 %v811, 0.0
    %v1378 = vmax.f32 %v816, 0.0
    %v1379 = vmax.f32 %v821, 0.0
    %v1380 = vmax.f32 %v826, 0.0
    %v1381 = vmax.f32 %v831, 0.0
    %v1382 = vmax.f32 %v836, 0.0
    %v1383 = vmax.f32 %v841, 0.0
    %v1384 = vmax.f32 %v846, 0.0
    %v1385 = vmax.f32 %v851, 0.0
    %v1386 = vmax.f32 %v856, 0.0
    %v1387 = vmax.f32 %v861, 0.0
    %v1388 = vmax.f32 %v866, 0.0
    %v1389 = vmax.f32 %v871, 0.0
    %v1390 = vmax.f32 %v876, 0.0
    %v1391 = vmax.f32 %v881, 0.0
    %v1392 = vmax.f32 %v886, 0.0
    %v1393 = vmax.f32 %v891, 0.0
    %v1394 = vmax.f32 %v896, 0.0
    %v1395 = vmax.f32 %v901, 0.0
    %v1396 = vmax.f32 %v906, 0.0
    %v1397 = vmax.f32 %v911, 0.0
    %v1398 = vmax.f32 %v916, 0.0
    %v1399 = vmax.f32 %v921, 0.0
    %v1400 = vmax.f32 %v926, 0.0
    %v1401 = vmax.f32 %v931, 0.0
    %v1402 = vmax.f32 %v936, 0.0
    %v1403 = vmax.f32 %v941, 0.0
    %v1404 = vmax.f32 %v946, 0.0
    %v1405 = vmax.f32 %v951, 0.0
    %v1406 = vmax.f32 %v956, 0.0
    %v1407 = vmax.f32 %v961, 0.0
    %v1408 = vmax.f32 %v966, 0.0
    %v1409 = vmax.f32 %v971, 0.0
    %v1410 = vmax.f32 %v976, 0.0
    %v1411 = vmax.f32 %v981, 0.0
    %v1412 = vmax.f32 %v986, 0.0
    %v1413 = vmax.f32 %v991, 0.0
    %v1414 = vmax.f32 %v996, 0.0
    %v1415 = vmax.f32 %v1001, 0.0
    %v1416 = vmax.f32 %v1006, 0.0
    %v1417 = vmax.f32 %v1011, 0.0
    %v1418 = vmax.f32 %v1016, 0.0
    %v1419 = vmax.f32 %v1021, 0.0
    %v1420 = vmax.f32 %v1026, 0.0
    %v1421 = vmax.f32 %v1031, 0.0
    %v1422 = vmax.f32 %v1036, 0.0
    %v1423 = vmax.f32 %v1041, 0.0
    %v1424 = vmax.f32 %v1046, 0.0
    %v1425 = vmax.f32 %v1051, 0.0
    %v1426 = vmax.f32 %v1056, 0.0
    %v1427 = vmax.f32 %v1061, 0.0
    %v1428 = vmax.f32 %v1066, 0.0
    %v1429 = vmax.f32 %v1071, 0.0
    %v1430 = vmax.f32 %v1076, 0.0
    %v1431 = vmax.f32 %v1081, 0.0
    %v1432 = vmax.f32 %v1086, 0.0
    %v1433 = vmax.f32 %v1091, 0.0
    %v1434 = vmax.f32 %v1096, 0.0
    %v1435 = vmax.f32 %v1101, 0.0
    %v1436 = vmax.f32 %v1106, 0.0
    %v1437 = vmax.f32 %v1111, 0.0
    %v1438 = vmax.f32 %v1116, 0.0
    %v1439 = vmax.f32 %v1121, 0.0
    %v1440 = vmax.f32 %v1126, 0.0
    %v1441 = vmax.f32 %v1131, 0.0
    %v1442 = vmax.f32 %v1136, 0.0
    %v1443 = vmax.f32 %v1141, 0.0
    %v1444 = vmax.f32 %v1146, 0.0
    %v1445 = vmax.f32 %v1151, 0.0
    %v1446 = vmax.f32 %v1156, 0.0
    %v1447 = vmax.f32 %v1161, 0.0
    %v1448 = vmax.f32 %v1166, 0.0
    %v1449 = vmax.f32 %v1171, 0.0
    %v1450 = vmax.f32 %v1176, 0.0
    %v1451 = vmax.f32 %v1181, 0.0
    %v1452 = vmax.f32 %v1186, 0.0
    %v1453 = vmax.f32 %v1191, 0.0
    %v1454 = vmax.f32 %v1196, 0.0
    %v1455 = vmax.f32 %v1201, 0.0
    %v1456 = vmax.f32 %v1206, 0.0
    %v1457 = vmax.f32 %v1211, 0.0
    %v1458 = vmax.f32 %v1216, 0.0
    %v1459 = vmax.f32 %v1221, 0.0
    %v1460 = vmax.f32 %v1226, 0.0
    %v1461 = vmax.f32 %v1231, 0.0
    %v1462 = vmax.f32 %v1236, 0.0
    %v1463 = vmax.f32 %v1241, 0.0
    %v1464 = vmax.f32 %v1246, 0.0
    %v1465 = vmax.f32 %v1251, 0.0
    %v1466 = vmax.f32 %v1256, 0.0
    %v1467 = vmax.f32 %v1261, 0.0
    %v1468 = vmax.f32 %v1266, 0.0
    %v1469 = vmax.f32 %v1271, 0.0
    %v1470 = vmax.f32 %v1276, 0.0
    %v1471 = vmax.f32 %v1281, 0.0
    %v1472 = vmax.f32 %v1286, 0.0
    %v1473 = vmax.f32 %v1291, 0.0
    %v1474 = vmax.f32 %v1296, 0.0
    %v1475 = vmax.f32 %v1301, 0.0
    %v1476 = vmax.f32 %v1306, 0.0
    %v1477 = vmax.f32 %v1311, 0.0
    %v1478 = vmax.f32 %v1316, 0.0
    %v1479 = vmax.f32 %v1321, 0.0
    %v1480 = vmax.f32 %v1326, 0.0
    %v1481 = vmax.f32 %v1331, 0.0
    %v1482 = vmax.f32 %v1336, 0.0
    %v1483 = vmax.f32 %v1341, 0.0
    %v1484 = vmax.f32 %v1346, 0.0
    %v1485 = vmax.f32 %v1351, 0.0
    %v1486 = vmax.f32 %v1356, 0.0
    %v1487 = vld [vmem:[%s3] sm:$0xff]
    %v1488 = vld [vmem:[%s3 + $0x8] sm:$0xff]
    %v1489 = vld [vmem:[%s3 + $0x10] sm:$0xff]
    %v1490 = vld [vmem:[%s3 + $0x18] sm:$0xff]
    %v1491 = vld [vmem:[%s3 + $0x20] sm:$0xff]
    %v1492 = vld [vmem:[%s3 + $0x28] sm:$0xff]
    %v1493 = vld [vmem:[%s3 + $0x30] sm:$0xff]
    %v1494 = vld [vmem:[%s3 + $0x38] sm:$0xff]
    %v1495 = vld [vmem:[%s3 + $0x40] sm:$0xff]
    %v1496 = vld [vmem:[%s3 + $0x48] sm:$0xff]
    %v1497 = vld [vmem:[%s3 + $0x50] sm:$0xff]
    %v1498 = vld [vmem:[%s3 + $0x58] sm:$0xff]
    %v1499 = vld [vmem:[%s3 + $0x60] sm:$0xff]
    %v1500 = vld [vmem:[%s3 + $0x68] sm:$0xff]
    %v1501 = vld [vmem:[%s3 + $0x70] sm:$0xff]
    %v1502 = vld [vmem:[%s3 + $0x78] sm:$0xff]
    %v1503 = vld [vmem:[%s3 + $0x80] sm:$0xff]
    %v1504 = vld [vmem:[%s3 + $0x88] sm:$0xff]
    %v1505 = vld [vmem:[%s3 + $0x90] sm:$0xff]
    %v1506 = vld [vmem:[%s3 + $0x98] sm:$0xff]
    %v1507 = vld [vmem:[%s3 + $0xa0] sm:$0xff]
    %v1508 = vld [vmem:[%s3 + $0xa8] sm:$0xff]
    %v1509 = vld [vmem:[%s3 + $0xb0] sm:$0xff]
    %v1510 = vld [vmem:[%s3 + $0xb8] sm:$0xff]
    %v1511 = vld [vmem:[%s3 + $0xc0] sm:$0xff]
    %v1512 = vld [vmem:[%s3 + $0xc8] sm:$0xff]
    %v1513 = vld [vmem:[%s3 + $0xd0] sm:$0xff]
    %v1514 = vld [vmem:[%s3 + $0xd8] sm:$0xff]
    %v1515 = vld [vmem:[%s3 + $0xe0] sm:$0xff]
    %v1516 = vld [vmem:[%s3 + $0xe8] sm:$0xff]
    %v1517 = vld [vmem:[%s3 + $0xf0] sm:$0xff]
    %v1518 = vld [vmem:[%s3 + $0xf8] sm:$0xff]
    %v1519 = vld [vmem:[%s3 + $0x100] sm:$0xff]
    %v1520 = vld [vmem:[%s3 + $0x108] sm:$0xff]
    %v1521 = vld [vmem:[%s3 + $0x110] sm:$0xff]
    %v1522 = vld [vmem:[%s3 + $0x118] sm:$0xff]
    %v1523 = vld [vmem:[%s3 + $0x120] sm:$0xff]
    %v1524 = vld [vmem:[%s3 + $0x128] sm:$0xff]
    %v1525 = vld [vmem:[%s3 + $0x130] sm:$0xff]
    %v1526 = vld [vmem:[%s3 + $0x138] sm:$0xff]
    %v1527 = vld [vmem:[%s3 + $0x140] sm:$0xff]
    %v1528 = vld [vmem:[%s3 + $0x148] sm:$0xff]
    %v1529 = vld [vmem:[%s3 + $0x150] sm:$0xff]
    %v1530 = vld [vmem:[%s3 + $0x158] sm:$0xff]
    %v1531 = vld [vmem:[%s3 + $0x160] sm:$0xff]
    %v1532 = vld [vmem:[%s3 + $0x168] sm:$0xff]
    %v1533 = vld [vmem:[%s3 + $0x170] sm:$0xff]
    %v1534 = vld [vmem:[%s3 + $0x178] sm:$0xff]
    %v1535 = vld [vmem:[%s3 + $0x180] sm:$0xff]
    %v1536 = vld [vmem:[%s3 + $0x188] sm:$0xff]
    %v1537 = vld [vmem:[%s3 + $0x190] sm:$0xff]
    %v1538 = vld [vmem:[%s3 + $0x198] sm:$0xff]
    %v1539 = vld [vmem:[%s3 + $0x1a0] sm:$0xff]
    %v1540 = vld [vmem:[%s3 + $0x1a8] sm:$0xff]
    %v1541 = vld [vmem:[%s3 + $0x1b0] sm:$0xff]
    %v1542 = vld [vmem:[%s3 + $0x1b8] sm:$0xff]
    %v1543 = vld [vmem:[%s3 + $0x1c0] sm:$0xff]
    %v1544 = vld [vmem:[%s3 + $0x1c8] sm:$0xff]
    %v1545 = vld [vmem:[%s3 + $0x1d0] sm:$0xff]
    %v1546 = vld [vmem:[%s3 + $0x1d8] sm:$0xff]
    %v1547 = vld [vmem:[%s3 + $0x1e0] sm:$0xff]
    %v1548 = vld [vmem:[%s3 + $0x1e8] sm:$0xff]
    %v1549 = vld [vmem:[%s3 + $0x1f0] sm:$0xff]
    %v1550 = vld [vmem:[%s3 + $0x1f8] sm:$0xff]
    %v1551 = vld [vmem:[%s3 + $0x200] sm:$0xff]
    %v1552 = vld [vmem:[%s3 + $0x208] sm:$0xff]
    %v1553 = vld [vmem:[%s3 + $0x210] sm:$0xff]
    %v1554 = vld [vmem:[%s3 + $0x218] sm:$0xff]
    %v1555 = vld [vmem:[%s3 + $0x220] sm:$0xff]
    %v1556 = vld [vmem:[%s3 + $0x228] sm:$0xff]
    %v1557 = vld [vmem:[%s3 + $0x230] sm:$0xff]
    %v1558 = vld [vmem:[%s3 + $0x238] sm:$0xff]
    %v1559 = vld [vmem:[%s3 + $0x240] sm:$0xff]
    %v1560 = vld [vmem:[%s3 + $0x248] sm:$0xff]
    %v1561 = vld [vmem:[%s3 + $0x250] sm:$0xff]
    %v1562 = vld [vmem:[%s3 + $0x258] sm:$0xff]
    %v1563 = vld [vmem:[%s3 + $0x260] sm:$0xff]
    %v1564 = vld [vmem:[%s3 + $0x268] sm:$0xff]
    %v1565 = vld [vmem:[%s3 + $0x270] sm:$0xff]
    %v1566 = vld [vmem:[%s3 + $0x278] sm:$0xff]
    %v1567 = vld [vmem:[%s3 + $0x280] sm:$0xff]
    %v1568 = vld [vmem:[%s3 + $0x288] sm:$0xff]
    %v1569 = vld [vmem:[%s3 + $0x290] sm:$0xff]
    %v1570 = vld [vmem:[%s3 + $0x298] sm:$0xff]
    %v1571 = vld [vmem:[%s3 + $0x2a0] sm:$0xff]
    %v1572 = vld [vmem:[%s3 + $0x2a8] sm:$0xff]
    %v1573 = vld [vmem:[%s3 + $0x2b0] sm:$0xff]
    %v1574 = vld [vmem:[%s3 + $0x2b8] sm:$0xff]
    %v1575 = vld [vmem:[%s3 + $0x2c0] sm:$0xff]
    %v1576 = vld [vmem:[%s3 + $0x2c8] sm:$0xff]
    %v1577 = vld [vmem:[%s3 + $0x2d0] sm:$0xff]
    %v1578 = vld [vmem:[%s3 + $0x2d8] sm:$0xff]
    %v1579 = vld [vmem:[%s3 + $0x2e0] sm:$0xff]
    %v1580 = vld [vmem:[%s3 + $0x2e8] sm:$0xff]
    %v1581 = vld [vmem:[%s3 + $0x2f0] sm:$0xff]
    %v1582 = vld [vmem:[%s3 + $0x2f8] sm:$0xff]
    %v1583 = vld [vmem:[%s3 + $0x300] sm:$0xff]
    %v1584 = vld [vmem:[%s3 + $0x308] sm:$0xff]
    %v1585 = vld [vmem:[%s3 + $0x310] sm:$0xff]
    %v1586 = vld [vmem:[%s3 + $0x318] sm:$0xff]
    %v1587 = vld [vmem:[%s3 + $0x320] sm:$0xff]
    %v1588 = vld [vmem:[%s3 + $0x328] sm:$0xff]
    %v1589 = vld [vmem:[%s3 + $0x330] sm:$0xff]
    %v1590 = vld [vmem:[%s3 + $0x338] sm:$0xff]
    %v1591 = vld [vmem:[%s3 + $0x340] sm:$0xff]
    %v1592 = vld [vmem:[%s3 + $0x348] sm:$0xff]
    %v1593 = vld [vmem:[%s3 + $0x350] sm:$0xff]
    %v1594 = vld [vmem:[%s3 + $0x358] sm:$0xff]
    %v1595 = vld [vmem:[%s3 + $0x360] sm:$0xff]
    %v1596 = vld [vmem:[%s3 + $0x368] sm:$0xff]
    %v1597 = vld [vmem:[%s3 + $0x370] sm:$0xff]
    %v1598 = vld [vmem:[%s3 + $0x378] sm:$0xff]
    %v1599 = vld [vmem:[%s3 + $0x380] sm:$0xff]
    %v1600 = vld [vmem:[%s3 + $0x388] sm:$0xff]
    %v1601 = vld [vmem:[%s3 + $0x390] sm:$0xff]
    %v1602 = vld [vmem:[%s3 + $0x398] sm:$0xff]
    %v1603 = vld [vmem:[%s3 + $0x3a0] sm:$0xff]
    %v1604 = vld [vmem:[%s3 + $0x3a8] sm:$0xff]
    %v1605 = vld [vmem:[%s3 + $0x3b0] sm:$0xff]
    %v1606 = vld [vmem:[%s3 + $0x3b8] sm:$0xff]
    %v1607 = vld [vmem:[%s3 + $0x3c0] sm:$0xff]
    %v1608 = vld [vmem:[%s3 + $0x3c8] sm:$0xff]
    %v1609 = vld [vmem:[%s3 + $0x3d0] sm:$0xff]
    %v1610 = vld [vmem:[%s3 + $0x3d8] sm:$0xff]
    %v1611 = vld [vmem:[%s3 + $0x3e0] sm:$0xff]
    %v1612 = vld [vmem:[%s3 + $0x3e8] sm:$0xff]
    %v1613 = vld [vmem:[%s3 + $0x3f0] sm:$0xff]
    %v1614 = vld [vmem:[%s3 + $0x3f8] sm:$0xff]
    %v1615 = vld [vmem:[%s3 + $0x400] sm:$0xff]
    %v1616 = vld [vmem:[%s3 + $0x408] sm:$0xff]
    %v1617 = vld [vmem:[%s3 + $0x410] sm:$0xff]
    %v1618 = vld [vmem:[%s3 + $0x418] sm:$0xff]
    %v1619 = vld [vmem:[%s3 + $0x420] sm:$0xff]
    %v1620 = vld [vmem:[%s3 + $0x428] sm:$0xff]
    %v1621 = vld [vmem:[%s3 + $0x430] sm:$0xff]
    %v1622 = vld [vmem:[%s3 + $0x438] sm:$0xff]
    %v1623 = vld [vmem:[%s3 + $0x440] sm:$0xff]
    %v1624 = vld [vmem:[%s3 + $0x448] sm:$0xff]
    %v1625 = vld [vmem:[%s3 + $0x450] sm:$0xff]
    %v1626 = vld [vmem:[%s3 + $0x458] sm:$0xff]
    %v1627 = vld [vmem:[%s3 + $0x460] sm:$0xff]
    %v1628 = vld [vmem:[%s3 + $0x468] sm:$0xff]
    %v1629 = vld [vmem:[%s3 + $0x470] sm:$0xff]
    %v1630 = vld [vmem:[%s3 + $0x478] sm:$0xff]
    %v1631 = vld [vmem:[%s3 + $0x480] sm:$0xff]
    %v1632 = vld [vmem:[%s3 + $0x488] sm:$0xff]
    %v1633 = vld [vmem:[%s3 + $0x490] sm:$0xff]
    %v1634 = vld [vmem:[%s3 + $0x498] sm:$0xff]
    %v1635 = vld [vmem:[%s3 + $0x4a0] sm:$0xff]
    %v1636 = vld [vmem:[%s3 + $0x4a8] sm:$0xff]
    %v1637 = vld [vmem:[%s3 + $0x4b0] sm:$0xff]
    %v1638 = vld [vmem:[%s3 + $0x4b8] sm:$0xff]
    %v1639 = vld [vmem:[%s3 + $0x4c0] sm:$0xff]
    %v1640 = vld [vmem:[%s3 + $0x4c8] sm:$0xff]
    %v1641 = vld [vmem:[%s3 + $0x4d0] sm:$0xff]
    %v1642 = vld [vmem:[%s3 + $0x4d8] sm:$0xff]
    %v1643 = vld [vmem:[%s3 + $0x4e0] sm:$0xff]
    %v1644 = vld [vmem:[%s3 + $0x4e8] sm:$0xff]
    %v1645 = vld [vmem:[%s3 + $0x4f0] sm:$0xff]
    %v1646 = vld [vmem:[%s3 + $0x4f8] sm:$0xff]
    %v1647 = vld [vmem:[%s3 + $0x500] sm:$0xff]
    %v1648 = vld [vmem:[%s3 + $0x508] sm:$0xff]
    %v1649 = vld [vmem:[%s3 + $0x510] sm:$0xff]
    %v1650 = vld [vmem:[%s3 + $0x518] sm:$0xff]
    %v1651 = vld [vmem:[%s3 + $0x520] sm:$0xff]
    %v1652 = vld [vmem:[%s3 + $0x528] sm:$0xff]
    %v1653 = vld [vmem:[%s3 + $0x530] sm:$0xff]
    %v1654 = vld [vmem:[%s3 + $0x538] sm:$0xff]
    %v1655 = vld [vmem:[%s3 + $0x540] sm:$0xff]
    %v1656 = vld [vmem:[%s3 + $0x548] sm:$0xff]
    %v1657 = vld [vmem:[%s3 + $0x550] sm:$0xff]
    %v1658 = vld [vmem:[%s3 + $0x558] sm:$0xff]
    %v1659 = vld [vmem:[%s3 + $0x560] sm:$0xff]
    %v1660 = vld [vmem:[%s3 + $0x568] sm:$0xff]
    %v1661 = vld [vmem:[%s3 + $0x570] sm:$0xff]
    %v1662 = vld [vmem:[%s3 + $0x578] sm:$0xff]
    %v1663 = vld [vmem:[%s3 + $0x580] sm:$0xff]
    %v1664 = vld [vmem:[%s3 + $0x588] sm:$0xff]
    %v1665 = vld [vmem:[%s3 + $0x590] sm:$0xff]
    %v1666 = vld [vmem:[%s3 + $0x598] sm:$0xff]
    %v1667 = vld [vmem:[%s3 + $0x5a0] sm:$0xff]
    %v1668 = vld [vmem:[%s3 + $0x5a8] sm:$0xff]
    %v1669 = vld [vmem:[%s3 + $0x5b0] sm:$0xff]
    %v1670 = vld [vmem:[%s3 + $0x5b8] sm:$0xff]
    %v1671 = vld [vmem:[%s3 + $0x5c0] sm:$0xff]
    %v1672 = vld [vmem:[%s3 + $0x5c8] sm:$0xff]
    %v1673 = vld [vmem:[%s3 + $0x5d0] sm:$0xff]
    %v1674 = vld [vmem:[%s3 + $0x5d8] sm:$0xff]
    %v1675 = vld [vmem:[%s3 + $0x5e0] sm:$0xff]
    %v1676 = vld [vmem:[%s3 + $0x5e8] sm:$0xff]
    %v1677 = vld [vmem:[%s3 + $0x5f0] sm:$0xff]
    %v1678 = vld [vmem:[%s3 + $0x5f8] sm:$0xff]
    %v1679 = vld [vmem:[%s3 + $0x600] sm:$0xff]
    %v1680 = vld [vmem:[%s3 + $0x608] sm:$0xff]
    %v1681 = vld [vmem:[%s3 + $0x610] sm:$0xff]
    %v1682 = vld [vmem:[%s3 + $0x618] sm:$0xff]
    %v1683 = vld [vmem:[%s3 + $0x620] sm:$0xff]
    %v1684 = vld [vmem:[%s3 + $0x628] sm:$0xff]
    %v1685 = vld [vmem:[%s3 + $0x630] sm:$0xff]
    %v1686 = vld [vmem:[%s3 + $0x638] sm:$0xff]
    %v1687 = vld [vmem:[%s3 + $0x640] sm:$0xff]
    %v1688 = vld [vmem:[%s3 + $0x648] sm:$0xff]
    %v1689 = vld [vmem:[%s3 + $0x650] sm:$0xff]
    %v1690 = vld [vmem:[%s3 + $0x658] sm:$0xff]
    %v1691 = vld [vmem:[%s3 + $0x660] sm:$0xff]
    %v1692 = vld [vmem:[%s3 + $0x668] sm:$0xff]
    %v1693 = vld [vmem:[%s3 + $0x670] sm:$0xff]
    %v1694 = vld [vmem:[%s3 + $0x678] sm:$0xff]
    %v1695 = vld [vmem:[%s3 + $0x680] sm:$0xff]
    %v1696 = vld [vmem:[%s3 + $0x688] sm:$0xff]
    %v1697 = vld [vmem:[%s3 + $0x690] sm:$0xff]
    %v1698 = vld [vmem:[%s3 + $0x698] sm:$0xff]
    %v1699 = vld [vmem:[%s3 + $0x6a0] sm:$0xff]
    %v1700 = vld [vmem:[%s3 + $0x6a8] sm:$0xff]
    %v1701 = vld [vmem:[%s3 + $0x6b0] sm:$0xff]
    %v1702 = vld [vmem:[%s3 + $0x6b8] sm:$0xff]
    %v1703 = vld [vmem:[%s3 + $0x6c0] sm:$0xff]
    %v1704 = vld [vmem:[%s3 + $0x6c8] sm:$0xff]
    %v1705 = vld [vmem:[%s3 + $0x6d0] sm:$0xff]
    %v1706 = vld [vmem:[%s3 + $0x6d8] sm:$0xff]
    %v1707 = vld [vmem:[%s3 + $0x6e0] sm:$0xff]
    %v1708 = vld [vmem:[%s3 + $0x6e8] sm:$0xff]
    %v1709 = vld [vmem:[%s3 + $0x6f0] sm:$0xff]
    %v1710 = vld [vmem:[%s3 + $0x6f8] sm:$0xff]
    %v1711 = vld [vmem:[%s3 + $0x700] sm:$0xff]
    %v1712 = vld [vmem:[%s3 + $0x708] sm:$0xff]
    %v1713 = vld [vmem:[%s3 + $0x710] sm:$0xff]
    %v1714 = vld [vmem:[%s3 + $0x718] sm:$0xff]
    %v1715 = vld [vmem:[%s3 + $0x720] sm:$0xff]
    %v1716 = vld [vmem:[%s3 + $0x728] sm:$0xff]
    %v1717 = vld [vmem:[%s3 + $0x730] sm:$0xff]
    %v1718 = vld [vmem:[%s3 + $0x738] sm:$0xff]
    %v1719 = vld [vmem:[%s3 + $0x740] sm:$0xff]
    %v1720 = vld [vmem:[%s3 + $0x748] sm:$0xff]
    %v1721 = vld [vmem:[%s3 + $0x750] sm:$0xff]
    %v1722 = vld [vmem:[%s3 + $0x758] sm:$0xff]
    %v1723 = vld [vmem:[%s3 + $0x760] sm:$0xff]
    %v1724 = vld [vmem:[%s3 + $0x768] sm:$0xff]
    %v1725 = vld [vmem:[%s3 + $0x770] sm:$0xff]
    %v1726 = vld [vmem:[%s3 + $0x778] sm:$0xff]
    %v1727 = vld [vmem:[%s3 + $0x780] sm:$0xff]
    %v1728 = vld [vmem:[%s3 + $0x788] sm:$0xff]
    %v1729 = vld [vmem:[%s3 + $0x790] sm:$0xff]
    %v1730 = vld [vmem:[%s3 + $0x798] sm:$0xff]
    %v1731 = vld [vmem:[%s3 + $0x7a0] sm:$0xff]
    %v1732 = vld [vmem:[%s3 + $0x7a8] sm:$0xff]
    %v1733 = vld [vmem:[%s3 + $0x7b0] sm:$0xff]
    %v1734 = vld [vmem:[%s3 + $0x7b8] sm:$0xff]
    %v1735 = vld [vmem:[%s3 + $0x7c0] sm:$0xff]
    %v1736 = vld [vmem:[%s3 + $0x7c8] sm:$0xff]
    %v1737 = vld [vmem:[%s3 + $0x7d0] sm:$0xff]
    %v1738 = vld [vmem:[%s3 + $0x7d8] sm:$0xff]
    %v1739 = vld [vmem:[%s3 + $0x7e0] sm:$0xff]
    %v1740 = vld [vmem:[%s3 + $0x7e8] sm:$0xff]
    %v1741 = vld [vmem:[%s3 + $0x7f0] sm:$0xff]
    %v1742 = vld [vmem:[%s3 + $0x7f8] sm:$0xff]
    %1743 = vmatprep.subr.mxu0 0.0
    %1744 = vmatpush1.msra.mxu0 %v1374
    %1745 = vmatprep.subr.mxu0 0.0
    %1746 = vmatpush1.msra.mxu0 %v1373
    %1747 = vmatprep.subr.mxu0 0.0
    %1748 = vmatpush1.msra.mxu0 %v1372
    %1749 = vmatprep.subr.mxu0 0.0
    %1750 = vmatpush1.msra.mxu0 %v1371
    %1751 = vmatprep.subr.mxu0 0.0
    %1752 = vmatpush1.msra.mxu0 %v1370
    %1753 = vmatprep.subr.mxu0 0.0
    %1754 = vmatpush1.msra.mxu0 %v1369
    %1755 = vmatprep.subr.mxu0 0.0
    %1756 = vmatpush1.msra.mxu0 %v1368
    %1757 = vmatprep.subr.mxu0 0.0
    %1758 = vmatpush1.msra.mxu0 %v1367
    %1759 = vmatprep.subr.mxu0 0.0
    %1760 = vmatpush1.msra.mxu0 %v1366
    %1761 = vmatprep.subr.mxu0 0.0
    %1762 = vmatpush1.msra.mxu0 %v1365
    %1763 = vmatprep.subr.mxu0 0.0
    %1764 = vmatpush1.msra.mxu0 %v1364
    %1765 = vmatprep.subr.mxu0 0.0
    %1766 = vmatpush1.msra.mxu0 %v1363
    %1767 = vmatprep.subr.mxu0 0.0
    %1768 = vmatpush1.msra.mxu0 %v1362
    %1769 = vmatprep.subr.mxu0 0.0
    %1770 = vmatpush1.msra.mxu0 %v1361
    %1771 = vmatprep.subr.mxu0 0.0
    %1772 = vmatpush1.msra.mxu0 %v1360
    %1773 = vmatprep.subr.mxu0 0.0
    %1774 = vmatpush1.msra.mxu0 %v1359
    %1775 = vmatprep.subr.mxu0 0.0
    %1776 = vmatpush2.msra.mxu0 %v1390
    %1777 = vmatprep.subr.mxu0 0.0
    %1778 = vmatpush2.msra.mxu0 %v1389
    %1779 = vmatprep.subr.mxu0 0.0
    %1780 = vmatpush2.msra.mxu0 %v1388
    %1781 = vmatprep.subr.mxu0 0.0
    %1782 = vmatpush2.msra.mxu0 %v1387
    %1783 = vmatprep.subr.mxu0 0.0
    %1784 = vmatpush2.msra.mxu0 %v1386
    %1785 = vmatprep.subr.mxu0 0.0
    %1786 = vmatpush2.msra.mxu0 %v1385
    %1787 = vmatprep.subr.mxu0 0.0
    %1788 = vmatpush2.msra.mxu0 %v1384
    %1789 = vmatprep.subr.mxu0 0.0
    %1790 = vmatpush2.msra.mxu0 %v1383
    %1791 = vmatprep.subr.mxu0 0.0
    %1792 = vmatpush2.msra.mxu0 %v1382
    %1793 = vmatprep.subr.mxu0 0.0
    %1794 = vmatpush2.msra.mxu0 %v1381
    %1795 = vmatprep.subr.mxu0 0.0
    %1796 = vmatpush2.msra.mxu0 %v1380
    %1797 = vmatprep.subr.mxu0 0.0
    %1798 = vmatpush2.msra.mxu0 %v1379
    %1799 = vmatprep.subr.mxu0 0.0
    %1800 = vmatpush2.msra.mxu0 %v1378
    %1801 = vmatprep.subr.mxu0 0.0
    %1802 = vmatpush2.msra.mxu0 %v1377
    %1803 = vmatprep.subr.mxu0 0.0
    %1804 = vmatpush2.msra.mxu0 %v1376
    %1805 = vmatprep.subr.mxu0 0.0
    %1806 = vmatpush2.msra.mxu0 %v1375
    %1807 = vmatprep.mubr.f32.mxu0 %v1488
    %1808 = vmatmul.mubr.f32.gmra.mxu0 %v1487
    %v1809 = vpop.f32.mrf.mxu0
    %v1810 = vadd.f32 0.0, %v1809
    %v1811 = vpop.f32.mrf.mxu0
    %1812 = vmatprep.mubr.f32.mxu0 %v1496
    %1813 = vmatmul.mubr.f32.gmra.mxu0 %v1495
    %v1814 = vpop.f32.mrf.mxu0
    %v1815 = vadd.f32 0.0, %v1814
    %v1816 = vpop.f32.mrf.mxu0
    %1817 = vmatprep.mubr.f32.mxu0 %v1504
    %1818 = vmatmul.mubr.f32.gmra.mxu0 %v1503
    %v1819 = vpop.f32.mrf.mxu0
    %v1820 = vadd.f32 0.0, %v1819
    %v1821 = vpop.f32.mrf.mxu0
    %1822 = vmatprep.mubr.f32.mxu0 %v1512
    %1823 = vmatmul.mubr.f32.gmra.mxu0 %v1511
    %v1824 = vpop.f32.mrf.mxu0
    %v1825 = vadd.f32 0.0, %v1824
    %v1826 = vpop.f32.mrf.mxu0
    %1827 = vmatprep.mubr.f32.mxu0 %v1520
    %1828 = vmatmul.mubr.f32.gmra.mxu0 %v1519
    %v1829 = vpop.f32.mrf.mxu0
    %v1830 = vadd.f32 0.0, %v1829
    %v1831 = vpop.f32.mrf.mxu0
    %1832 = vmatprep.mubr.f32.mxu0 %v1528
    %1833 = vmatmul.mubr.f32.gmra.mxu0 %v1527
    %v1834 = vpop.f32.mrf.mxu0
    %v1835 = vadd.f32 0.0, %v1834
    %v1836 = vpop.f32.mrf.mxu0
    %1837 = vmatprep.mubr.f32.mxu0 %v1536
    %1838 = vmatmul.mubr.f32.gmra.mxu0 %v1535
    %v1839 = vpop.f32.mrf.mxu0
    %v1840 = vadd.f32 0.0, %v1839
    %v1841 = vpop.f32.mrf.mxu0
    %1842 = vmatprep.mubr.f32.mxu0 %v1544
    %1843 = vmatmul.mubr.f32.gmra.mxu0 %v1543
    %v1844 = vpop.f32.mrf.mxu0
    %v1845 = vadd.f32 0.0, %v1844
    %v1846 = vpop.f32.mrf.mxu0
    %1847 = vmatprep.mubr.f32.mxu0 %v1552
    %1848 = vmatmul.mubr.f32.gmra.mxu0 %v1551
    %v1849 = vpop.f32.mrf.mxu0
    %v1850 = vadd.f32 0.0, %v1849
    %v1851 = vpop.f32.mrf.mxu0
    %1852 = vmatprep.mubr.f32.mxu0 %v1560
    %1853 = vmatmul.mubr.f32.gmra.mxu0 %v1559
    %v1854 = vpop.f32.mrf.mxu0
    %v1855 = vadd.f32 0.0, %v1854
    %v1856 = vpop.f32.mrf.mxu0
    %1857 = vmatprep.mubr.f32.mxu0 %v1568
    %1858 = vmatmul.mubr.f32.gmra.mxu0 %v1567
    %v1859 = vpop.f32.mrf.mxu0
    %v1860 = vadd.f32 0.0, %v1859
    %v1861 = vpop.f32.mrf.mxu0
    %1862 = vmatprep.mubr.f32.mxu0 %v1576
    %1863 = vmatmul.mubr.f32.gmra.mxu0 %v1575
    %v1864 = vpop.f32.mrf.mxu0
    %v1865 = vadd.f32 0.0, %v1864
    %v1866 = vpop.f32.mrf.mxu0
    %1867 = vmatprep.mubr.f32.mxu0 %v1584
    %1868 = vmatmul.mubr.f32.gmra.mxu0 %v1583
    %v1869 = vpop.f32.mrf.mxu0
    %v1870 = vadd.f32 0.0, %v1869
    %v1871 = vpop.f32.mrf.mxu0
    %1872 = vmatprep.mubr.f32.mxu0 %v1592
    %1873 = vmatmul.mubr.f32.gmra.mxu0 %v1591
    %v1874 = vpop.f32.mrf.mxu0
    %v1875 = vadd.f32 0.0, %v1874
    %v1876 = vpop.f32.mrf.mxu0
    %1877 = vmatprep.mubr.f32.mxu0 %v1600
    %1878 = vmatmul.mubr.f32.gmra.mxu0 %v1599
    %v1879 = vpop.f32.mrf.mxu0
    %v1880 = vadd.f32 0.0, %v1879
    %v1881 = vpop.f32.mrf.mxu0
    %1882 = vmatprep.mubr.f32.mxu0 %v1608
    %1883 = vmatmul.mubr.f32.gmra.mxu0 %v1607
    %v1884 = vpop.f32.mrf.mxu0
    %v1885 = vadd.f32 0.0, %v1884
    %v1886 = vpop.f32.mrf.mxu0
    %1887 = vmatprep.mubr.f32.mxu0 %v1616
    %1888 = vmatmul.mubr.f32.gmra.mxu0 %v1615
    %v1889 = vpop.f32.mrf.mxu0
    %v1890 = vadd.f32 0.0, %v1889
    %v1891 = vpop.f32.mrf.mxu0
    %1892 = vmatprep.mubr.f32.mxu0 %v1624
    %1893 = vmatmul.mubr.f32.gmra.mxu0 %v1623
    %v1894 = vpop.f32.mrf.mxu0
    %v1895 = vadd.f32 0.0, %v1894
    %v1896 = vpop.f32.mrf.mxu0
    %1897 = vmatprep.mubr.f32.mxu0 %v1632
    %1898 = vmatmul.mubr.f32.gmra.mxu0 %v1631
    %v1899 = vpop.f32.mrf.mxu0
    %v1900 = vadd.f32 0.0, %v1899
    %v1901 = vpop.f32.mrf.mxu0
    %1902 = vmatprep.mubr.f32.mxu0 %v1640
    %1903 = vmatmul.mubr.f32.gmra.mxu0 %v1639
    %v1904 = vpop.f32.mrf.mxu0
    %v1905 = vadd.f32 0.0, %v1904
    %v1906 = vpop.f32.mrf.mxu0
    %1907 = vmatprep.mubr.f32.mxu0 %v1648
    %1908 = vmatmul.mubr.f32.gmra.mxu0 %v1647
    %v1909 = vpop.f32.mrf.mxu0
    %v1910 = vadd.f32 0.0, %v1909
    %v1911 = vpop.f32.mrf.mxu0
    %1912 = vmatprep.mubr.f32.mxu0 %v1656
    %1913 = vmatmul.mubr.f32.gmra.mxu0 %v1655
    %v1914 = vpop.f32.mrf.mxu0
    %v1915 = vadd.f32 0.0, %v1914
    %v1916 = vpop.f32.mrf.mxu0
    %1917 = vmatprep.mubr.f32.mxu0 %v1664
    %1918 = vmatmul.mubr.f32.gmra.mxu0 %v1663
    %v1919 = vpop.f32.mrf.mxu0
    %v1920 = vadd.f32 0.0, %v1919
    %v1921 = vpop.f32.mrf.mxu0
    %1922 = vmatprep.mubr.f32.mxu0 %v1672
    %1923 = vmatmul.mubr.f32.gmra.mxu0 %v1671
    %v1924 = vpop.f32.mrf.mxu0
    %v1925 = vadd.f32 0.0, %v1924
    %v1926 = vpop.f32.mrf.mxu0
    %1927 = vmatprep.mubr.f32.mxu0 %v1680
    %1928 = vmatmul.mubr.f32.gmra.mxu0 %v1679
    %v1929 = vpop.f32.mrf.mxu0
    %v1930 = vadd.f32 0.0, %v1929
    %v1931 = vpop.f32.mrf.mxu0
    %1932 = vmatprep.mubr.f32.mxu0 %v1688
    %1933 = vmatmul.mubr.f32.gmra.mxu0 %v1687
    %v1934 = vpop.f32.mrf.mxu0
    %v1935 = vadd.f32 0.0, %v1934
    %v1936 = vpop.f32.mrf.mxu0
    %1937 = vmatprep.mubr.f32.mxu0 %v1696
    %1938 = vmatmul.mubr.f32.gmra.mxu0 %v1695
    %v1939 = vpop.f32.mrf.mxu0
    %v1940 = vadd.f32 0.0, %v1939
    %v1941 = vpop.f32.mrf.mxu0
    %1942 = vmatprep.mubr.f32.mxu0 %v1704
    %1943 = vmatmul.mubr.f32.gmra.mxu0 %v1703
    %v1944 = vpop.f32.mrf.mxu0
    %v1945 = vadd.f32 0.0, %v1944
    %v1946 = vpop.f32.mrf.mxu0
    %1947 = vmatprep.mubr.f32.mxu0 %v1712
    %1948 = vmatmul.mubr.f32.gmra.mxu0 %v1711
    %v1949 = vpop.f32.mrf.mxu0
    %v1950 = vadd.f32 0.0, %v1949
    %v1951 = vpop.f32.mrf.mxu0
    %1952 = vmatprep.mubr.f32.mxu0 %v1720
    %1953 = vmatmul.mubr.f32.gmra.mxu0 %v1719
    %v1954 = vpop.f32.mrf.mxu0
    %v1955 = vadd.f32 0.0, %v1954
    %v1956 = vpop.f32.mrf.mxu0
    %1957 = vmatprep.mubr.f32.mxu0 %v1728
    %1958 = vmatmul.mubr.f32.gmra.mxu0 %v1727
    %v1959 = vpop.f32.mrf.mxu0
    %v1960 = vadd.f32 0.0, %v1959
    %v1961 = vpop.f32.mrf.mxu0
    %1962 = vmatprep.mubr.f32.mxu0 %v1736
    %1963 = vmatmul.mubr.f32.gmra.mxu0 %v1735
    %v1964 = vpop.f32.mrf.mxu0
    %v1965 = vadd.f32 0.0, %v1964
    %v1966 = vpop.f32.mrf.mxu0
    %1967 = vdwg.mxu0
    %1968 = vmatprep.subr.mxu0 0.0
    %1969 = vmatpush1.msra.mxu0 %v1406
    %1970 = vmatprep.subr.mxu0 0.0
    %1971 = vmatpush1.msra.mxu0 %v1405
    %1972 = vmatprep.subr.mxu0 0.0
    %1973 = vmatpush1.msra.mxu0 %v1404
    %1974 = vmatprep.subr.mxu0 0.0
    %1975 = vmatpush1.msra.mxu0 %v1403
    %1976 = vmatprep.subr.mxu0 0.0
    %1977 = vmatpush1.msra.mxu0 %v1402
    %1978 = vmatprep.subr.mxu0 0.0
    %1979 = vmatpush1.msra.mxu0 %v1401
    %1980 = vmatprep.subr.mxu0 0.0
    %1981 = vmatpush1.msra.mxu0 %v1400
    %1982 = vmatprep.subr.mxu0 0.0
    %1983 = vmatpush1.msra.mxu0 %v1399
    %1984 = vmatprep.subr.mxu0 0.0
    %1985 = vmatpush1.msra.mxu0 %v1398
    %1986 = vmatprep.subr.mxu0 0.0
    %1987 = vmatpush1.msra.mxu0 %v1397
    %1988 = vmatprep.subr.mxu0 0.0
    %1989 = vmatpush1.msra.mxu0 %v1396
    %1990 = vmatprep.subr.mxu0 0.0
    %1991 = vmatpush1.msra.mxu0 %v1395
    %1992 = vmatprep.subr.mxu0 0.0
    %1993 = vmatpush1.msra.mxu0 %v1394
    %1994 = vmatprep.subr.mxu0 0.0
    %1995 = vmatpush1.msra.mxu0 %v1393
    %1996 = vmatprep.subr.mxu0 0.0
    %1997 = vmatpush1.msra.mxu0 %v1392
    %1998 = vmatprep.subr.mxu0 0.0
    %1999 = vmatpush1.msra.mxu0 %v1391
    %2000 = vmatprep.subr.mxu0 0.0
    %2001 = vmatpush2.msra.mxu0 %v1422
    %2002 = vmatprep.subr.mxu0 0.0
    %2003 = vmatpush2.msra.mxu0 %v1421
    %2004 = vmatprep.subr.mxu0 0.0
    %2005 = vmatpush2.msra.mxu0 %v1420
    %2006 = vmatprep.subr.mxu0 0.0
    %2007 = vmatpush2.msra.mxu0 %v1419
    %2008 = vmatprep.subr.mxu0 0.0
    %2009 = vmatpush2.msra.mxu0 %v1418
    %2010 = vmatprep.subr.mxu0 0.0
    %2011 = vmatpush2.msra.mxu0 %v1417
    %2012 = vmatprep.subr.mxu0 0.0
    %2013 = vmatpush2.msra.mxu0 %v1416
    %2014 = vmatprep.subr.mxu0 0.0
    %2015 = vmatpush2.msra.mxu0 %v1415
    %2016 = vmatprep.subr.mxu0 0.0
    %2017 = vmatpush2.msra.mxu0 %v1414
    %2018 = vmatprep.subr.mxu0 0.0
    %2019 = vmatpush2.msra.mxu0 %v1413
    %2020 = vmatprep.subr.mxu0 0.0
    %2021 = vmatpush2.msra.mxu0 %v1412
    %2022 = vmatprep.subr.mxu0 0.0
    %2023 = vmatpush2.msra.mxu0 %v1411
    %2024 = vmatprep.subr.mxu0 0.0
    %2025 = vmatpush2.msra.mxu0 %v1410
    %2026 = vmatprep.subr.mxu0 0.0
    %2027 = vmatpush2.msra.mxu0 %v1409
    %2028 = vmatprep.subr.mxu0 0.0
    %2029 = vmatpush2.msra.mxu0 %v1408
    %2030 = vmatprep.subr.mxu0 0.0
    %2031 = vmatpush2.msra.mxu0 %v1407
    %2032 = vmatprep.mubr.f32.mxu0 %v1490
    %2033 = vmatmul.mubr.f32.gmra.mxu0 %v1489
    %v2034 = vpop.f32.mrf.mxu0
    %v2035 = vadd.f32 %v1810, %v2034
    %v2036 = vpop.f32.mrf.mxu0
    %2037 = vmatprep.mubr.f32.mxu0 %v1498
    %2038 = vmatmul.mubr.f32.gmra.mxu0 %v1497
    %v2039 = vpop.f32.mrf.mxu0
    %v2040 = vadd.f32 %v1815, %v2039
    %v2041 = vpop.f32.mrf.mxu0
    %2042 = vmatprep.mubr.f32.mxu0 %v1506
    %2043 = vmatmul.mubr.f32.gmra.mxu0 %v1505
    %v2044 = vpop.f32.mrf.mxu0
    %v2045 = vadd.f32 %v1820, %v2044
    %v2046 = vpop.f32.mrf.mxu0
    %2047 = vmatprep.mubr.f32.mxu0 %v1514
    %2048 = vmatmul.mubr.f32.gmra.mxu0 %v1513
    %v2049 = vpop.f32.mrf.mxu0
    %v2050 = vadd.f32 %v1825, %v2049
    %v2051 = vpop.f32.mrf.mxu0
    %2052 = vmatprep.mubr.f32.mxu0 %v1522
    %2053 = vmatmul.mubr.f32.gmra.mxu0 %v1521
    %v2054 = vpop.f32.mrf.mxu0
    %v2055 = vadd.f32 %v1830, %v2054
    %v2056 = vpop.f32.mrf.mxu0
    %2057 = vmatprep.mubr.f32.mxu0 %v1530
    %2058 = vmatmul.mubr.f32.gmra.mxu0 %v1529
    %v2059 = vpop.f32.mrf.mxu0
    %v2060 = vadd.f32 %v1835, %v2059
    %v2061 = vpop.f32.mrf.mxu0
    %2062 = vmatprep.mubr.f32.mxu0 %v1538
    %2063 = vmatmul.mubr.f32.gmra.mxu0 %v1537
    %v2064 = vpop.f32.mrf.mxu0
    %v2065 = vadd.f32 %v1840, %v2064
    %v2066 = vpop.f32.mrf.mxu0
    %2067 = vmatprep.mubr.f32.mxu0 %v1546
    %2068 = vmatmul.mubr.f32.gmra.mxu0 %v1545
    %v2069 = vpop.f32.mrf.mxu0
    %v2070 = vadd.f32 %v1845, %v2069
    %v2071 = vpop.f32.mrf.mxu0
    %2072 = vmatprep.mubr.f32.mxu0 %v1554
    %2073 = vmatmul.mubr.f32.gmra.mxu0 %v1553
    %v2074 = vpop.f32.mrf.mxu0
    %v2075 = vadd.f32 %v1850, %v2074
    %v2076 = vpop.f32.mrf.mxu0
    %2077 = vmatprep.mubr.f32.mxu0 %v1562
    %2078 = vmatmul.mubr.f32.gmra.mxu0 %v1561
    %v2079 = vpop.f32.mrf.mxu0
    %v2080 = vadd.f32 %v1855, %v2079
    %v2081 = vpop.f32.mrf.mxu0
    %2082 = vmatprep.mubr.f32.mxu0 %v1570
    %2083 = vmatmul.mubr.f32.gmra.mxu0 %v1569
    %v2084 = vpop.f32.mrf.mxu0
    %v2085 = vadd.f32 %v1860, %v2084
    %v2086 = vpop.f32.mrf.mxu0
    %2087 = vmatprep.mubr.f32.mxu0 %v1578
    %2088 = vmatmul.mubr.f32.gmra.mxu0 %v1577
    %v2089 = vpop.f32.mrf.mxu0
    %v2090 = vadd.f32 %v1865, %v2089
    %v2091 = vpop.f32.mrf.mxu0
    %2092 = vmatprep.mubr.f32.mxu0 %v1586
    %2093 = vmatmul.mubr.f32.gmra.mxu0 %v1585
    %v2094 = vpop.f32.mrf.mxu0
    %v2095 = vadd.f32 %v1870, %v2094
    %v2096 = vpop.f32.mrf.mxu0
    %2097 = vmatprep.mubr.f32.mxu0 %v1594
    %2098 = vmatmul.mubr.f32.gmra.mxu0 %v1593
    %v2099 = vpop.f32.mrf.mxu0
    %v2100 = vadd.f32 %v1875, %v2099
    %v2101 = vpop.f32.mrf.mxu0
    %2102 = vmatprep.mubr.f32.mxu0 %v1602
    %2103 = vmatmul.mubr.f32.gmra.mxu0 %v1601
    %v2104 = vpop.f32.mrf.mxu0
    %v2105 = vadd.f32 %v1880, %v2104
    %v2106 = vpop.f32.mrf.mxu0
    %2107 = vmatprep.mubr.f32.mxu0 %v1610
    %2108 = vmatmul.mubr.f32.gmra.mxu0 %v1609
    %v2109 = vpop.f32.mrf.mxu0
    %v2110 = vadd.f32 %v1885, %v2109
    %v2111 = vpop.f32.mrf.mxu0
    %2112 = vmatprep.mubr.f32.mxu0 %v1618
    %2113 = vmatmul.mubr.f32.gmra.mxu0 %v1617
    %v2114 = vpop.f32.mrf.mxu0
    %v2115 = vadd.f32 %v1890, %v2114
    %v2116 = vpop.f32.mrf.mxu0
    %2117 = vmatprep.mubr.f32.mxu0 %v1626
    %2118 = vmatmul.mubr.f32.gmra.mxu0 %v1625
    %v2119 = vpop.f32.mrf.mxu0
    %v2120 = vadd.f32 %v1895, %v2119
    %v2121 = vpop.f32.mrf.mxu0
    %2122 = vmatprep.mubr.f32.mxu0 %v1634
    %2123 = vmatmul.mubr.f32.gmra.mxu0 %v1633
    %v2124 = vpop.f32.mrf.mxu0
    %v2125 = vadd.f32 %v1900, %v2124
    %v2126 = vpop.f32.mrf.mxu0
    %2127 = vmatprep.mubr.f32.mxu0 %v1642
    %2128 = vmatmul.mubr.f32.gmra.mxu0 %v1641
    %v2129 = vpop.f32.mrf.mxu0
    %v2130 = vadd.f32 %v1905, %v2129
    %v2131 = vpop.f32.mrf.mxu0
    %2132 = vmatprep.mubr.f32.mxu0 %v1650
    %2133 = vmatmul.mubr.f32.gmra.mxu0 %v1649
    %v2134 = vpop.f32.mrf.mxu0
    %v2135 = vadd.f32 %v1910, %v2134
    %v2136 = vpop.f32.mrf.mxu0
    %2137 = vmatprep.mubr.f32.mxu0 %v1658
    %2138 = vmatmul.mubr.f32.gmra.mxu0 %v1657
    %v2139 = vpop.f32.mrf.mxu0
    %v2140 = vadd.f32 %v1915, %v2139
    %v2141 = vpop.f32.mrf.mxu0
    %2142 = vmatprep.mubr.f32.mxu0 %v1666
    %2143 = vmatmul.mubr.f32.gmra.mxu0 %v1665
    %v2144 = vpop.f32.mrf.mxu0
    %v2145 = vadd.f32 %v1920, %v2144
    %v2146 = vpop.f32.mrf.mxu0
    %2147 = vmatprep.mubr.f32.mxu0 %v1674
    %2148 = vmatmul.mubr.f32.gmra.mxu0 %v1673
    %v2149 = vpop.f32.mrf.mxu0
    %v2150 = vadd.f32 %v1925, %v2149
    %v2151 = vpop.f32.mrf.mxu0
    %2152 = vmatprep.mubr.f32.mxu0 %v1682
    %2153 = vmatmul.mubr.f32.gmra.mxu0 %v1681
    %v2154 = vpop.f32.mrf.mxu0
    %v2155 = vadd.f32 %v1930, %v2154
    %v2156 = vpop.f32.mrf.mxu0
    %2157 = vmatprep.mubr.f32.mxu0 %v1690
    %2158 = vmatmul.mubr.f32.gmra.mxu0 %v1689
    %v2159 = vpop.f32.mrf.mxu0
    %v2160 = vadd.f32 %v1935, %v2159
    %v2161 = vpop.f32.mrf.mxu0
    %2162 = vmatprep.mubr.f32.mxu0 %v1698
    %2163 = vmatmul.mubr.f32.gmra.mxu0 %v1697
    %v2164 = vpop.f32.mrf.mxu0
    %v2165 = vadd.f32 %v1940, %v2164
    %v2166 = vpop.f32.mrf.mxu0
    %2167 = vmatprep.mubr.f32.mxu0 %v1706
    %2168 = vmatmul.mubr.f32.gmra.mxu0 %v1705
    %v2169 = vpop.f32.mrf.mxu0
    %v2170 = vadd.f32 %v1945, %v2169
    %v2171 = vpop.f32.mrf.mxu0
    %2172 = vmatprep.mubr.f32.mxu0 %v1714
    %2173 = vmatmul.mubr.f32.gmra.mxu0 %v1713
    %v2174 = vpop.f32.mrf.mxu0
    %v2175 = vadd.f32 %v1950, %v2174
    %v2176 = vpop.f32.mrf.mxu0
    %2177 = vmatprep.mubr.f32.mxu0 %v1722
    %2178 = vmatmul.mubr.f32.gmra.mxu0 %v1721
    %v2179 = vpop.f32.mrf.mxu0
    %v2180 = vadd.f32 %v1955, %v2179
    %v2181 = vpop.f32.mrf.mxu0
    %2182 = vmatprep.mubr.f32.mxu0 %v1730
    %2183 = vmatmul.mubr.f32.gmra.mxu0 %v1729
    %v2184 = vpop.f32.mrf.mxu0
    %v2185 = vadd.f32 %v1960, %v2184
    %v2186 = vpop.f32.mrf.mxu0
    %2187 = vmatprep.mubr.f32.mxu0 %v1738
    %2188 = vmatmul.mubr.f32.gmra.mxu0 %v1737
    %v2189 = vpop.f32.mrf.mxu0
    %v2190 = vadd.f32 %v1965, %v2189
    %v2191 = vpop.f32.mrf.mxu0
    %2192 = vdwg.mxu0
    %2193 = vmatprep.subr.mxu0 0.0
    %2194 = vmatpush1.msra.mxu0 %v1438
    %2195 = vmatprep.subr.mxu0 0.0
    %2196 = vmatpush1.msra.mxu0 %v1437
    %2197 = vmatprep.subr.mxu0 0.0
    %2198 = vmatpush1.msra.mxu0 %v1436
    %2199 = vmatprep.subr.mxu0 0.0
    %2200 = vmatpush1.msra.mxu0 %v1435
    %2201 = vmatprep.subr.mxu0 0.0
    %2202 = vmatpush1.msra.mxu0 %v1434
    %2203 = vmatprep.subr.mxu0 0.0
    %2204 = vmatpush1.msra.mxu0 %v1433
    %2205 = vmatprep.subr.mxu0 0.0
    %2206 = vmatpush1.msra.mxu0 %v1432
    %2207 = vmatprep.subr.mxu0 0.0
    %2208 = vmatpush1.msra.mxu0 %v1431
    %2209 = vmatprep.subr.mxu0 0.0
    %2210 = vmatpush1.msra.mxu0 %v1430
    %2211 = vmatprep.subr.mxu0 0.0
    %2212 = vmatpush1.msra.mxu0 %v1429
    %2213 = vmatprep.subr.mxu0 0.0
    %2214 = vmatpush1.msra.mxu0 %v1428
    %2215 = vmatprep.subr.mxu0 0.0
    %2216 = vmatpush1.msra.mxu0 %v1427
    %2217 = vmatprep.subr.mxu0 0.0
    %2218 = vmatpush1.msra.mxu0 %v1426
    %2219 = vmatprep.subr.mxu0 0.0
    %2220 = vmatpush1.msra.mxu0 %v1425
    %2221 = vmatprep.subr.mxu0 0.0
    %2222 = vmatpush1.msra.mxu0 %v1424
    %2223 = vmatprep.subr.mxu0 0.0
    %2224 = vmatpush1.msra.mxu0 %v1423
    %2225 = vmatprep.subr.mxu0 0.0
    %2226 = vmatpush2.msra.mxu0 %v1454
    %2227 = vmatprep.subr.mxu0 0.0
    %2228 = vmatpush2.msra.mxu0 %v1453
    %2229 = vmatprep.subr.mxu0 0.0
    %2230 = vmatpush2.msra.mxu0 %v1452
    %2231 = vmatprep.subr.mxu0 0.0
    %2232 = vmatpush2.msra.mxu0 %v1451
    %2233 = vmatprep.subr.mxu0 0.0
    %2234 = vmatpush2.msra.mxu0 %v1450
    %2235 = vmatprep.subr.mxu0 0.0
    %2236 = vmatpush2.msra.mxu0 %v1449
    %2237 = vmatprep.subr.mxu0 0.0
    %2238 = vmatpush2.msra.mxu0 %v1448
    %2239 = vmatprep.subr.mxu0 0.0
    %2240 = vmatpush2.msra.mxu0 %v1447
    %2241 = vmatprep.subr.mxu0 0.0
    %2242 = vmatpush2.msra.mxu0 %v1446
    %2243 = vmatprep.subr.mxu0 0.0
    %2244 = vmatpush2.msra.mxu0 %v1445
    %2245 = vmatprep.subr.mxu0 0.0
    %2246 = vmatpush2.msra.mxu0 %v1444
    %2247 = vmatprep.subr.mxu0 0.0
    %2248 = vmatpush2.msra.mxu0 %v1443
    %2249 = vmatprep.subr.mxu0 0.0
    %2250 = vmatpush2.msra.mxu0 %v1442
    %2251 = vmatprep.subr.mxu0 0.0
    %2252 = vmatpush2.msra.mxu0 %v1441
    %2253 = vmatprep.subr.mxu0 0.0
    %2254 = vmatpush2.msra.mxu0 %v1440
    %2255 = vmatprep.subr.mxu0 0.0
    %2256 = vmatpush2.msra.mxu0 %v1439
    %2257 = vmatprep.mubr.f32.mxu0 %v1492
    %2258 = vmatmul.mubr.f32.gmra.mxu0 %v1491
    %v2259 = vpop.f32.mrf.mxu0
    %v2260 = vadd.f32 %v2035, %v2259
    %v2261 = vpop.f32.mrf.mxu0
    %2262 = vmatprep.mubr.f32.mxu0 %v1500
    %2263 = vmatmul.mubr.f32.gmra.mxu0 %v1499
    %v2264 = vpop.f32.mrf.mxu0
    %v2265 = vadd.f32 %v2040, %v2264
    %v2266 = vpop.f32.mrf.mxu0
    %2267 = vmatprep.mubr.f32.mxu0 %v1508
    %2268 = vmatmul.mubr.f32.gmra.mxu0 %v1507
    %v2269 = vpop.f32.mrf.mxu0
    %v2270 = vadd.f32 %v2045, %v2269
    %v2271 = vpop.f32.mrf.mxu0
    %2272 = vmatprep.mubr.f32.mxu0 %v1516
    %2273 = vmatmul.mubr.f32.gmra.mxu0 %v1515
    %v2274 = vpop.f32.mrf.mxu0
    %v2275 = vadd.f32 %v2050, %v2274
    %v2276 = vpop.f32.mrf.mxu0
    %2277 = vmatprep.mubr.f32.mxu0 %v1524
    %2278 = vmatmul.mubr.f32.gmra.mxu0 %v1523
    %v2279 = vpop.f32.mrf.mxu0
    %v2280 = vadd.f32 %v2055, %v2279
    %v2281 = vpop.f32.mrf.mxu0
    %2282 = vmatprep.mubr.f32.mxu0 %v1532
    %2283 = vmatmul.mubr.f32.gmra.mxu0 %v1531
    %v2284 = vpop.f32.mrf.mxu0
    %v2285 = vadd.f32 %v2060, %v2284
    %v2286 = vpop.f32.mrf.mxu0
    %2287 = vmatprep.mubr.f32.mxu0 %v1540
    %2288 = vmatmul.mubr.f32.gmra.mxu0 %v1539
    %v2289 = vpop.f32.mrf.mxu0
    %v2290 = vadd.f32 %v2065, %v2289
    %v2291 = vpop.f32.mrf.mxu0
    %2292 = vmatprep.mubr.f32.mxu0 %v1548
    %2293 = vmatmul.mubr.f32.gmra.mxu0 %v1547
    %v2294 = vpop.f32.mrf.mxu0
    %v2295 = vadd.f32 %v2070, %v2294
    %v2296 = vpop.f32.mrf.mxu0
    %2297 = vmatprep.mubr.f32.mxu0 %v1556
    %2298 = vmatmul.mubr.f32.gmra.mxu0 %v1555
    %v2299 = vpop.f32.mrf.mxu0
    %v2300 = vadd.f32 %v2075, %v2299
    %v2301 = vpop.f32.mrf.mxu0
    %2302 = vmatprep.mubr.f32.mxu0 %v1564
    %2303 = vmatmul.mubr.f32.gmra.mxu0 %v1563
    %v2304 = vpop.f32.mrf.mxu0
    %v2305 = vadd.f32 %v2080, %v2304
    %v2306 = vpop.f32.mrf.mxu0
    %2307 = vmatprep.mubr.f32.mxu0 %v1572
    %2308 = vmatmul.mubr.f32.gmra.mxu0 %v1571
    %v2309 = vpop.f32.mrf.mxu0
    %v2310 = vadd.f32 %v2085, %v2309
    %v2311 = vpop.f32.mrf.mxu0
    %2312 = vmatprep.mubr.f32.mxu0 %v1580
    %2313 = vmatmul.mubr.f32.gmra.mxu0 %v1579
    %v2314 = vpop.f32.mrf.mxu0
    %v2315 = vadd.f32 %v2090, %v2314
    %v2316 = vpop.f32.mrf.mxu0
    %2317 = vmatprep.mubr.f32.mxu0 %v1588
    %2318 = vmatmul.mubr.f32.gmra.mxu0 %v1587
    %v2319 = vpop.f32.mrf.mxu0
    %v2320 = vadd.f32 %v2095, %v2319
    %v2321 = vpop.f32.mrf.mxu0
    %2322 = vmatprep.mubr.f32.mxu0 %v1596
    %2323 = vmatmul.mubr.f32.gmra.mxu0 %v1595
    %v2324 = vpop.f32.mrf.mxu0
    %v2325 = vadd.f32 %v2100, %v2324
    %v2326 = vpop.f32.mrf.mxu0
    %2327 = vmatprep.mubr.f32.mxu0 %v1604
    %2328 = vmatmul.mubr.f32.gmra.mxu0 %v1603
    %v2329 = vpop.f32.mrf.mxu0
    %v2330 = vadd.f32 %v2105, %v2329
    %v2331 = vpop.f32.mrf.mxu0
    %2332 = vmatprep.mubr.f32.mxu0 %v1612
    %2333 = vmatmul.mubr.f32.gmra.mxu0 %v1611
    %v2334 = vpop.f32.mrf.mxu0
    %v2335 = vadd.f32 %v2110, %v2334
    %v2336 = vpop.f32.mrf.mxu0
    %2337 = vmatprep.mubr.f32.mxu0 %v1620
    %2338 = vmatmul.mubr.f32.gmra.mxu0 %v1619
    %v2339 = vpop.f32.mrf.mxu0
    %v2340 = vadd.f32 %v2115, %v2339
    %v2341 = vpop.f32.mrf.mxu0
    %2342 = vmatprep.mubr.f32.mxu0 %v1628
    %2343 = vmatmul.mubr.f32.gmra.mxu0 %v1627
    %v2344 = vpop.f32.mrf.mxu0
    %v2345 = vadd.f32 %v2120, %v2344
    %v2346 = vpop.f32.mrf.mxu0
    %2347 = vmatprep.mubr.f32.mxu0 %v1636
    %2348 = vmatmul.mubr.f32.gmra.mxu0 %v1635
    %v2349 = vpop.f32.mrf.mxu0
    %v2350 = vadd.f32 %v2125, %v2349
    %v2351 = vpop.f32.mrf.mxu0
    %2352 = vmatprep.mubr.f32.mxu0 %v1644
    %2353 = vmatmul.mubr.f32.gmra.mxu0 %v1643
    %v2354 = vpop.f32.mrf.mxu0
    %v2355 = vadd.f32 %v2130, %v2354
    %v2356 = vpop.f32.mrf.mxu0
    %2357 = vmatprep.mubr.f32.mxu0 %v1652
    %2358 = vmatmul.mubr.f32.gmra.mxu0 %v1651
    %v2359 = vpop.f32.mrf.mxu0
    %v2360 = vadd.f32 %v2135, %v2359
    %v2361 = vpop.f32.mrf.mxu0
    %2362 = vmatprep.mubr.f32.mxu0 %v1660
    %2363 = vmatmul.mubr.f32.gmra.mxu0 %v1659
    %v2364 = vpop.f32.mrf.mxu0
    %v2365 = vadd.f32 %v2140, %v2364
    %v2366 = vpop.f32.mrf.mxu0
    %2367 = vmatprep.mubr.f32.mxu0 %v1668
    %2368 = vmatmul.mubr.f32.gmra.mxu0 %v1667
    %v2369 = vpop.f32.mrf.mxu0
    %v2370 = vadd.f32 %v2145, %v2369
    %v2371 = vpop.f32.mrf.mxu0
    %2372 = vmatprep.mubr.f32.mxu0 %v1676
    %2373 = vmatmul.mubr.f32.gmra.mxu0 %v1675
    %v2374 = vpop.f32.mrf.mxu0
    %v2375 = vadd.f32 %v2150, %v2374
    %v2376 = vpop.f32.mrf.mxu0
    %2377 = vmatprep.mubr.f32.mxu0 %v1684
    %2378 = vmatmul.mubr.f32.gmra.mxu0 %v1683
    %v2379 = vpop.f32.mrf.mxu0
    %v2380 = vadd.f32 %v2155, %v2379
    %v2381 = vpop.f32.mrf.mxu0
    %2382 = vmatprep.mubr.f32.mxu0 %v1692
    %2383 = vmatmul.mubr.f32.gmra.mxu0 %v1691
    %v2384 = vpop.f32.mrf.mxu0
    %v2385 = vadd.f32 %v2160, %v2384
    %v2386 = vpop.f32.mrf.mxu0
    %2387 = vmatprep.mubr.f32.mxu0 %v1700
    %2388 = vmatmul.mubr.f32.gmra.mxu0 %v1699
    %v2389 = vpop.f32.mrf.mxu0
    %v2390 = vadd.f32 %v2165, %v2389
    %v2391 = vpop.f32.mrf.mxu0
    %2392 = vmatprep.mubr.f32.mxu0 %v1708
    %2393 = vmatmul.mubr.f32.gmra.mxu0 %v1707
    %v2394 = vpop.f32.mrf.mxu0
    %v2395 = vadd.f32 %v2170, %v2394
    %v2396 = vpop.f32.mrf.mxu0
    %2397 = vmatprep.mubr.f32.mxu0 %v1716
    %2398 = vmatmul.mubr.f32.gmra.mxu0 %v1715
    %v2399 = vpop.f32.mrf.mxu0
    %v2400 = vadd.f32 %v2175, %v2399
    %v2401 = vpop.f32.mrf.mxu0
    %2402 = vmatprep.mubr.f32.mxu0 %v1724
    %2403 = vmatmul.mubr.f32.gmra.mxu0 %v1723
    %v2404 = vpop.f32.mrf.mxu0
    %v2405 = vadd.f32 %v2180, %v2404
    %v2406 = vpop.f32.mrf.mxu0
    %2407 = vmatprep.mubr.f32.mxu0 %v1732
    %2408 = vmatmul.mubr.f32.gmra.mxu0 %v1731
    %v2409 = vpop.f32.mrf.mxu0
    %v2410 = vadd.f32 %v2185, %v2409
    %v2411 = vpop.f32.mrf.mxu0
    %2412 = vmatprep.mubr.f32.mxu0 %v1740
    %2413 = vmatmul.mubr.f32.gmra.mxu0 %v1739
    %v2414 = vpop.f32.mrf.mxu0
    %v2415 = vadd.f32 %v2190, %v2414
    %v2416 = vpop.f32.mrf.mxu0
    %2417 = vdwg.mxu0
    %2418 = vmatprep.subr.mxu0 0.0
    %2419 = vmatpush1.msra.mxu0 %v1470
    %2420 = vmatprep.subr.mxu0 0.0
    %2421 = vmatpush1.msra.mxu0 %v1469
    %2422 = vmatprep.subr.mxu0 0.0
    %2423 = vmatpush1.msra.mxu0 %v1468
    %2424 = vmatprep.subr.mxu0 0.0
    %2425 = vmatpush1.msra.mxu0 %v1467
    %2426 = vmatprep.subr.mxu0 0.0
    %2427 = vmatpush1.msra.mxu0 %v1466
    %2428 = vmatprep.subr.mxu0 0.0
    %2429 = vmatpush1.msra.mxu0 %v1465
    %2430 = vmatprep.subr.mxu0 0.0
    %2431 = vmatpush1.msra.mxu0 %v1464
    %2432 = vmatprep.subr.mxu0 0.0
    %2433 = vmatpush1.msra.mxu0 %v1463
    %2434 = vmatprep.subr.mxu0 0.0
    %2435 = vmatpush1.msra.mxu0 %v1462
    %2436 = vmatprep.subr.mxu0 0.0
    %2437 = vmatpush1.msra.mxu0 %v1461
    %2438 = vmatprep.subr.mxu0 0.0
    %2439 = vmatpush1.msra.mxu0 %v1460
    %2440 = vmatprep.subr.mxu0 0.0
    %2441 = vmatpush1.msra.mxu0 %v1459
    %2442 = vmatprep.subr.mxu0 0.0
    %2443 = vmatpush1.msra.mxu0 %v1458
    %2444 = vmatprep.subr.mxu0 0.0
    %2445 = vmatpush1.msra.mxu0 %v1457
    %2446 = vmatprep.subr.mxu0 0.0
    %2447 = vmatpush1.msra.mxu0 %v1456
    %2448 = vmatprep.subr.mxu0 0.0
    %2449 = vmatpush1.msra.mxu0 %v1455
    %2450 = vmatprep.subr.mxu0 0.0
    %2451 = vmatpush2.msra.mxu0 %v1486
    %2452 = vmatprep.subr.mxu0 0.0
    %2453 = vmatpush2.msra.mxu0 %v1485
    %2454 = vmatprep.subr.mxu0 0.0
    %2455 = vmatpush2.msra.mxu0 %v1484
    %2456 = vmatprep.subr.mxu0 0.0
    %2457 = vmatpush2.msra.mxu0 %v1483
    %2458 = vmatprep.subr.mxu0 0.0
    %2459 = vmatpush2.msra.mxu0 %v1482
    %2460 = vmatprep.subr.mxu0 0.0
    %2461 = vmatpush2.msra.mxu0 %v1481
    %2462 = vmatprep.subr.mxu0 0.0
    %2463 = vmatpush2.msra.mxu0 %v1480
    %2464 = vmatprep.subr.mxu0 0.0
    %2465 = vmatpush2.msra.mxu0 %v1479
    %2466 = vmatprep.subr.mxu0 0.0
    %2467 = vmatpush2.msra.mxu0 %v1478
    %2468 = vmatprep.subr.mxu0 0.0
    %2469 = vmatpush2.msra.mxu0 %v1477
    %2470 = vmatprep.subr.mxu0 0.0
    %2471 = vmatpush2.msra.mxu0 %v1476
    %2472 = vmatprep.subr.mxu0 0.0
    %2473 = vmatpush2.msra.mxu0 %v1475
    %2474 = vmatprep.subr.mxu0 0.0
    %2475 = vmatpush2.msra.mxu0 %v1474
    %2476 = vmatprep.subr.mxu0 0.0
    %2477 = vmatpush2.msra.mxu0 %v1473
    %2478 = vmatprep.subr.mxu0 0.0
    %2479 = vmatpush2.msra.mxu0 %v1472
    %2480 = vmatprep.subr.mxu0 0.0
    %2481 = vmatpush2.msra.mxu0 %v1471
    %2482 = vmatprep.mubr.f32.mxu0 %v1494
    %2483 = vmatmul.mubr.f32.gmra.mxu0 %v1493
    %v2484 = vpop.f32.mrf.mxu0
    %v2485 = vadd.f32 %v2260, %v2484
    %v2486 = vpop.f32.mrf.mxu0
    %2487 = vmatprep.mubr.f32.mxu0 %v1502
    %2488 = vmatmul.mubr.f32.gmra.mxu0 %v1501
    %v2489 = vpop.f32.mrf.mxu0
    %v2490 = vadd.f32 %v2265, %v2489
    %v2491 = vpop.f32.mrf.mxu0
    %2492 = vmatprep.mubr.f32.mxu0 %v1510
    %2493 = vmatmul.mubr.f32.gmra.mxu0 %v1509
    %v2494 = vpop.f32.mrf.mxu0
    %v2495 = vadd.f32 %v2270, %v2494
    %v2496 = vpop.f32.mrf.mxu0
    %2497 = vmatprep.mubr.f32.mxu0 %v1518
    %2498 = vmatmul.mubr.f32.gmra.mxu0 %v1517
    %v2499 = vpop.f32.mrf.mxu0
    %v2500 = vadd.f32 %v2275, %v2499
    %v2501 = vpop.f32.mrf.mxu0
    %2502 = vmatprep.mubr.f32.mxu0 %v1526
    %2503 = vmatmul.mubr.f32.gmra.mxu0 %v1525
    %v2504 = vpop.f32.mrf.mxu0
    %v2505 = vadd.f32 %v2280, %v2504
    %v2506 = vpop.f32.mrf.mxu0
    %2507 = vmatprep.mubr.f32.mxu0 %v1534
    %2508 = vmatmul.mubr.f32.gmra.mxu0 %v1533
    %v2509 = vpop.f32.mrf.mxu0
    %v2510 = vadd.f32 %v2285, %v2509
    %v2511 = vpop.f32.mrf.mxu0
    %2512 = vmatprep.mubr.f32.mxu0 %v1542
    %2513 = vmatmul.mubr.f32.gmra.mxu0 %v1541
    %v2514 = vpop.f32.mrf.mxu0
    %v2515 = vadd.f32 %v2290, %v2514
    %v2516 = vpop.f32.mrf.mxu0
    %2517 = vmatprep.mubr.f32.mxu0 %v1550
    %2518 = vmatmul.mubr.f32.gmra.mxu0 %v1549
    %v2519 = vpop.f32.mrf.mxu0
    %v2520 = vadd.f32 %v2295, %v2519
    %v2521 = vpop.f32.mrf.mxu0
    %2522 = vmatprep.mubr.f32.mxu0 %v1558
    %2523 = vmatmul.mubr.f32.gmra.mxu0 %v1557
    %v2524 = vpop.f32.mrf.mxu0
    %v2525 = vadd.f32 %v2300, %v2524
    %v2526 = vpop.f32.mrf.mxu0
    %2527 = vmatprep.mubr.f32.mxu0 %v1566
    %2528 = vmatmul.mubr.f32.gmra.mxu0 %v1565
    %v2529 = vpop.f32.mrf.mxu0
    %v2530 = vadd.f32 %v2305, %v2529
    %v2531 = vpop.f32.mrf.mxu0
    %2532 = vmatprep.mubr.f32.mxu0 %v1574
    %2533 = vmatmul.mubr.f32.gmra.mxu0 %v1573
    %v2534 = vpop.f32.mrf.mxu0
    %v2535 = vadd.f32 %v2310, %v2534
    %v2536 = vpop.f32.mrf.mxu0
    %2537 = vmatprep.mubr.f32.mxu0 %v1582
    %2538 = vmatmul.mubr.f32.gmra.mxu0 %v1581
    %v2539 = vpop.f32.mrf.mxu0
    %v2540 = vadd.f32 %v2315, %v2539
    %v2541 = vpop.f32.mrf.mxu0
    %2542 = vmatprep.mubr.f32.mxu0 %v1590
    %2543 = vmatmul.mubr.f32.gmra.mxu0 %v1589
    %v2544 = vpop.f32.mrf.mxu0
    %v2545 = vadd.f32 %v2320, %v2544
    %v2546 = vpop.f32.mrf.mxu0
    %2547 = vmatprep.mubr.f32.mxu0 %v1598
    %2548 = vmatmul.mubr.f32.gmra.mxu0 %v1597
    %v2549 = vpop.f32.mrf.mxu0
    %v2550 = vadd.f32 %v2325, %v2549
    %v2551 = vpop.f32.mrf.mxu0
    %2552 = vmatprep.mubr.f32.mxu0 %v1606
    %2553 = vmatmul.mubr.f32.gmra.mxu0 %v1605
    %v2554 = vpop.f32.mrf.mxu0
    %v2555 = vadd.f32 %v2330, %v2554
    %v2556 = vpop.f32.mrf.mxu0
    %2557 = vmatprep.mubr.f32.mxu0 %v1614
    %2558 = vmatmul.mubr.f32.gmra.mxu0 %v1613
    %v2559 = vpop.f32.mrf.mxu0
    %v2560 = vadd.f32 %v2335, %v2559
    %v2561 = vpop.f32.mrf.mxu0
    %2562 = vmatprep.mubr.f32.mxu0 %v1622
    %2563 = vmatmul.mubr.f32.gmra.mxu0 %v1621
    %v2564 = vpop.f32.mrf.mxu0
    %v2565 = vadd.f32 %v2340, %v2564
    %v2566 = vpop.f32.mrf.mxu0
    %2567 = vmatprep.mubr.f32.mxu0 %v1630
    %2568 = vmatmul.mubr.f32.gmra.mxu0 %v1629
    %v2569 = vpop.f32.mrf.mxu0
    %v2570 = vadd.f32 %v2345, %v2569
    %v2571 = vpop.f32.mrf.mxu0
    %2572 = vmatprep.mubr.f32.mxu0 %v1638
    %2573 = vmatmul.mubr.f32.gmra.mxu0 %v1637
    %v2574 = vpop.f32.mrf.mxu0
    %v2575 = vadd.f32 %v2350, %v2574
    %v2576 = vpop.f32.mrf.mxu0
    %2577 = vmatprep.mubr.f32.mxu0 %v1646
    %2578 = vmatmul.mubr.f32.gmra.mxu0 %v1645
    %v2579 = vpop.f32.mrf.mxu0
    %v2580 = vadd.f32 %v2355, %v2579
    %v2581 = vpop.f32.mrf.mxu0
    %2582 = vmatprep.mubr.f32.mxu0 %v1654
    %2583 = vmatmul.mubr.f32.gmra.mxu0 %v1653
    %v2584 = vpop.f32.mrf.mxu0
    %v2585 = vadd.f32 %v2360, %v2584
    %v2586 = vpop.f32.mrf.mxu0
    %2587 = vmatprep.mubr.f32.mxu0 %v1662
    %2588 = vmatmul.mubr.f32.gmra.mxu0 %v1661
    %v2589 = vpop.f32.mrf.mxu0
    %v2590 = vadd.f32 %v2365, %v2589
    %v2591 = vpop.f32.mrf.mxu0
    %2592 = vmatprep.mubr.f32.mxu0 %v1670
    %2593 = vmatmul.mubr.f32.gmra.mxu0 %v1669
    %v2594 = vpop.f32.mrf.mxu0
    %v2595 = vadd.f32 %v2370, %v2594
    %v2596 = vpop.f32.mrf.mxu0
    %2597 = vmatprep.mubr.f32.mxu0 %v1678
    %2598 = vmatmul.mubr.f32.gmra.mxu0 %v1677
    %v2599 = vpop.f32.mrf.mxu0
    %v2600 = vadd.f32 %v2375, %v2599
    %v2601 = vpop.f32.mrf.mxu0
    %2602 = vmatprep.mubr.f32.mxu0 %v1686
    %2603 = vmatmul.mubr.f32.gmra.mxu0 %v1685
    %v2604 = vpop.f32.mrf.mxu0
    %v2605 = vadd.f32 %v2380, %v2604
    %v2606 = vpop.f32.mrf.mxu0
    %2607 = vmatprep.mubr.f32.mxu0 %v1694
    %2608 = vmatmul.mubr.f32.gmra.mxu0 %v1693
    %v2609 = vpop.f32.mrf.mxu0
    %v2610 = vadd.f32 %v2385, %v2609
    %v2611 = vpop.f32.mrf.mxu0
    %2612 = vmatprep.mubr.f32.mxu0 %v1702
    %2613 = vmatmul.mubr.f32.gmra.mxu0 %v1701
    %v2614 = vpop.f32.mrf.mxu0
    %v2615 = vadd.f32 %v2390, %v2614
    %v2616 = vpop.f32.mrf.mxu0
    %2617 = vmatprep.mubr.f32.mxu0 %v1710
    %2618 = vmatmul.mubr.f32.gmra.mxu0 %v1709
    %v2619 = vpop.f32.mrf.mxu0
    %v2620 = vadd.f32 %v2395, %v2619
    %v2621 = vpop.f32.mrf.mxu0
    %2622 = vmatprep.mubr.f32.mxu0 %v1718
    %2623 = vmatmul.mubr.f32.gmra.mxu0 %v1717
    %v2624 = vpop.f32.mrf.mxu0
    %v2625 = vadd.f32 %v2400, %v2624
    %v2626 = vpop.f32.mrf.mxu0
    %2627 = vmatprep.mubr.f32.mxu0 %v1726
    %2628 = vmatmul.mubr.f32.gmra.mxu0 %v1725
    %v2629 = vpop.f32.mrf.mxu0
    %v2630 = vadd.f32 %v2405, %v2629
    %v2631 = vpop.f32.mrf.mxu0
    %2632 = vmatprep.mubr.f32.mxu0 %v1734
    %2633 = vmatmul.mubr.f32.gmra.mxu0 %v1733
    %v2634 = vpop.f32.mrf.mxu0
    %v2635 = vadd.f32 %v2410, %v2634
    %v2636 = vpop.f32.mrf.mxu0
    %2637 = vmatprep.mubr.f32.mxu0 %v1742
    %2638 = vmatmul.mubr.f32.gmra.mxu0 %v1741
    %v2639 = vpop.f32.mrf.mxu0
    %v2640 = vadd.f32 %v2415, %v2639
    %v2641 = vpop.f32.mrf.mxu0
    %2642 = vdwg.mxu0
    %v2643 = vld [vmem:[%s13] sm:$0xff]
    %v2644 = vld [vmem:[%s13 + $0x8] sm:$0xff]
    %v2645 = vld [vmem:[%s13 + $0x10] sm:$0xff]
    %v2646 = vld [vmem:[%s15] sm:$0x1]
    %v2648 = vlaneseq
    %v2649 = vshrl.u32 %v2648, 7
    %v2650 = vsub.s32 0, %v2649
    %v2651 = vrot.slane %v2646, %v2650
    %vm2653 = vcmask 195584
    %v2655 = vsel %vm2653, %v2485, 0
    %v2658 = vsel %vm2653, %v2490, 0
    %v2661 = vsel %vm2653, %v2495, 0
    %v2664 = vsel %vm2653, %v2500, 0
    %v2667 = vsel %vm2653, %v2505, 0
    %v2670 = vsel %vm2653, %v2510, 0
    %v2673 = vsel %vm2653, %v2515, 0
    %v2676 = vsel %vm2653, %v2520, 0
    %v2679 = vsel %vm2653, %v2525, 0
    %v2682 = vsel %vm2653, %v2530, 0
    %v2685 = vsel %vm2653, %v2535, 0
    %v2688 = vsel %vm2653, %v2540, 0
    %v2691 = vsel %vm2653, %v2545, 0
    %v2694 = vsel %vm2653, %v2550, 0
    %v2697 = vsel %vm2653, %v2555, 0
    %v2700 = vsel %vm2653, %v2560, 0
    %v2703 = vsel %vm2653, %v2565, 0
    %v2706 = vsel %vm2653, %v2570, 0
    %v2709 = vsel %vm2653, %v2575, 0
    %v2712 = vsel %vm2653, %v2580, 0
    %v2715 = vsel %vm2653, %v2585, 0
    %v2718 = vsel %vm2653, %v2590, 0
    %v2721 = vsel %vm2653, %v2595, 0
    %v2724 = vsel %vm2653, %v2600, 0
    %v2727 = vsel %vm2653, %v2605, 0
    %v2730 = vsel %vm2653, %v2610, 0
    %v2733 = vsel %vm2653, %v2615, 0
    %v2736 = vsel %vm2653, %v2620, 0
    %v2739 = vsel %vm2653, %v2625, 0
    %v2742 = vsel %vm2653, %v2630, 0
    %v2745 = vsel %vm2653, %v2635, 0
    %v2748 = vsel %vm2653, %v2640, 0
    %2750 = vmatprep.subr.mxu0 0.0
    %2751 = vmatpush1.msra.mxu0 0.0
    %2752 = vmatprep.subr.mxu0 0.0
    %2753 = vmatpush1.msra.mxu0 0.0
    %2754 = vmatprep.subr.mxu0 0.0
    %2755 = vmatpush1.msra.mxu0 0.0
    %2756 = vmatprep.subr.mxu0 0.0
    %2757 = vmatpush1.msra.mxu0 0.0
    %2758 = vmatprep.subr.mxu0 0.0
    %2759 = vmatpush1.msra.mxu0 0.0
    %2760 = vmatprep.subr.mxu0 0.0
    %2761 = vmatpush1.msra.mxu0 0.0
    %2762 = vmatprep.subr.mxu0 0.0
    %2763 = vmatpush1.msra.mxu0 0.0
    %2764 = vmatprep.subr.mxu0 0.0
    %2765 = vmatpush1.msra.mxu0 0.0
    %2766 = vmatprep.subr.mxu0 0.0
    %2767 = vmatpush1.msra.mxu0 0.0
    %2768 = vmatprep.subr.mxu0 0.0
    %2769 = vmatpush1.msra.mxu0 0.0
    %2770 = vmatprep.subr.mxu0 0.0
    %2771 = vmatpush1.msra.mxu0 0.0
    %2772 = vmatprep.subr.mxu0 0.0
    %2773 = vmatpush1.msra.mxu0 0.0
    %2774 = vmatprep.subr.mxu0 0.0
    %2775 = vmatpush1.msra.mxu0 0.0
    %2776 = vmatprep.subr.mxu0 0.0
    %2777 = vmatpush1.msra.mxu0 %v2645
    %2778 = vmatprep.subr.mxu0 0.0
    %2779 = vmatpush1.msra.mxu0 %v2644
    %2780 = vmatprep.subr.mxu0 0.0
    %2781 = vmatpush1.msra.mxu0 %v2643
    %2782 = vmatprep.subr.mxu0 0.0
    %2783 = vmatpush2.msra.mxu0 0.0
    %2784 = vmatprep.subr.mxu0 0.0
    %2785 = vmatpush2.msra.mxu0 0.0
    %2786 = vmatprep.subr.mxu0 0.0
    %2787 = vmatpush2.msra.mxu0 0.0
    %2788 = vmatprep.subr.mxu0 0.0
    %2789 = vmatpush2.msra.mxu0 0.0
    %2790 = vmatprep.subr.mxu0 0.0
    %2791 = vmatpush2.msra.mxu0 0.0
    %2792 = vmatprep.subr.mxu0 0.0
    %2793 = vmatpush2.msra.mxu0 0.0
    %2794 = vmatprep.subr.mxu0 0.0
    %2795 = vmatpush2.msra.mxu0 0.0
    %2796 = vmatprep.subr.mxu0 0.0
    %2797 = vmatpush2.msra.mxu0 0.0
    %2798 = vmatprep.subr.mxu0 0.0
    %2799 = vmatpush2.msra.mxu0 0.0
    %2800 = vmatprep.subr.mxu0 0.0
    %2801 = vmatpush2.msra.mxu0 0.0
    %2802 = vmatprep.subr.mxu0 0.0
    %2803 = vmatpush2.msra.mxu0 0.0
    %2804 = vmatprep.subr.mxu0 0.0
    %2805 = vmatpush2.msra.mxu0 0.0
    %2806 = vmatprep.subr.mxu0 0.0
    %2807 = vmatpush2.msra.mxu0 0.0
    %2808 = vmatprep.subr.mxu0 0.0
    %2809 = vmatpush2.msra.mxu0 0.0
    %2810 = vmatprep.subr.mxu0 0.0
    %2811 = vmatpush2.msra.mxu0 0.0
    %2812 = vmatprep.subr.mxu0 0.0
    %2813 = vmatpush2.msra.mxu0 0.0
    %2814 = vmatprep.mubr.f32.mxu0 0.0
    %2815 = vmatmul.mubr.f32.gmra.mxu0 %v2655
    %v2816 = vpop.f32.mrf.mxu0
    %v2817 = vadd.f32 %v2651, %v2816
    %v2818 = vpop.f32.mrf.mxu0
    %2819 = vmatprep.mubr.f32.mxu0 0.0
    %2820 = vmatmul.mubr.f32.gmra.mxu0 %v2658
    %v2821 = vpop.f32.mrf.mxu0
    %v2822 = vadd.f32 %v2651, %v2821
    %v2823 = vpop.f32.mrf.mxu0
    %2824 = vmatprep.mubr.f32.mxu0 0.0
    %2825 = vmatmul.mubr.f32.gmra.mxu0 %v2661
    %v2826 = vpop.f32.mrf.mxu0
    %v2827 = vadd.f32 %v2651, %v2826
    %v2828 = vpop.f32.mrf.mxu0
    %2829 = vmatprep.mubr.f32.mxu0 0.0
    %2830 = vmatmul.mubr.f32.gmra.mxu0 %v2664
    %v2831 = vpop.f32.mrf.mxu0
    %v2832 = vadd.f32 %v2651, %v2831
    %v2833 = vpop.f32.mrf.mxu0
    %2834 = vmatprep.mubr.f32.mxu0 0.0
    %2835 = vmatmul.mubr.f32.gmra.mxu0 %v2667
    %v2836 = vpop.f32.mrf.mxu0
    %v2837 = vadd.f32 %v2651, %v2836
    %v2838 = vpop.f32.mrf.mxu0
    %2839 = vmatprep.mubr.f32.mxu0 0.0
    %2840 = vmatmul.mubr.f32.gmra.mxu0 %v2670
    %v2841 = vpop.f32.mrf.mxu0
    %v2842 = vadd.f32 %v2651, %v2841
    %v2843 = vpop.f32.mrf.mxu0
    %2844 = vmatprep.mubr.f32.mxu0 0.0
    %2845 = vmatmul.mubr.f32.gmra.mxu0 %v2673
    %v2846 = vpop.f32.mrf.mxu0
    %v2847 = vadd.f32 %v2651, %v2846
    %v2848 = vpop.f32.mrf.mxu0
    %2849 = vmatprep.mubr.f32.mxu0 0.0
    %2850 = vmatmul.mubr.f32.gmra.mxu0 %v2676
    %v2851 = vpop.f32.mrf.mxu0
    %v2852 = vadd.f32 %v2651, %v2851
    %v2853 = vpop.f32.mrf.mxu0
    %2854 = vmatprep.mubr.f32.mxu0 0.0
    %2855 = vmatmul.mubr.f32.gmra.mxu0 %v2679
    %v2856 = vpop.f32.mrf.mxu0
    %v2857 = vadd.f32 %v2651, %v2856
    %v2858 = vpop.f32.mrf.mxu0
    %2859 = vmatprep.mubr.f32.mxu0 0.0
    %2860 = vmatmul.mubr.f32.gmra.mxu0 %v2682
    %v2861 = vpop.f32.mrf.mxu0
    %v2862 = vadd.f32 %v2651, %v2861
    %v2863 = vpop.f32.mrf.mxu0
    %2864 = vmatprep.mubr.f32.mxu0 0.0
    %2865 = vmatmul.mubr.f32.gmra.mxu0 %v2685
    %v2866 = vpop.f32.mrf.mxu0
    %v2867 = vadd.f32 %v2651, %v2866
    %v2868 = vpop.f32.mrf.mxu0
    %2869 = vmatprep.mubr.f32.mxu0 0.0
    %2870 = vmatmul.mubr.f32.gmra.mxu0 %v2688
    %v2871 = vpop.f32.mrf.mxu0
    %v2872 = vadd.f32 %v2651, %v2871
    %v2873 = vpop.f32.mrf.mxu0
    %2874 = vmatprep.mubr.f32.mxu0 0.0
    %2875 = vmatmul.mubr.f32.gmra.mxu0 %v2691
    %v2876 = vpop.f32.mrf.mxu0
    %v2877 = vadd.f32 %v2651, %v2876
    %v2878 = vpop.f32.mrf.mxu0
    %2879 = vmatprep.mubr.f32.mxu0 0.0
    %2880 = vmatmul.mubr.f32.gmra.mxu0 %v2694
    %v2881 = vpop.f32.mrf.mxu0
    %v2882 = vadd.f32 %v2651, %v2881
    %v2883 = vpop.f32.mrf.mxu0
    %2884 = vmatprep.mubr.f32.mxu0 0.0
    %2885 = vmatmul.mubr.f32.gmra.mxu0 %v2697
    %v2886 = vpop.f32.mrf.mxu0
    %v2887 = vadd.f32 %v2651, %v2886
    %v2888 = vpop.f32.mrf.mxu0
    %2889 = vmatprep.mubr.f32.mxu0 0.0
    %2890 = vmatmul.mubr.f32.gmra.mxu0 %v2700
    %v2891 = vpop.f32.mrf.mxu0
    %v2892 = vadd.f32 %v2651, %v2891
    %v2893 = vpop.f32.mrf.mxu0
    %2894 = vmatprep.mubr.f32.mxu0 0.0
    %2895 = vmatmul.mubr.f32.gmra.mxu0 %v2703
    %v2896 = vpop.f32.mrf.mxu0
    %v2897 = vadd.f32 %v2651, %v2896
    %v2898 = vpop.f32.mrf.mxu0
    %2899 = vmatprep.mubr.f32.mxu0 0.0
    %2900 = vmatmul.mubr.f32.gmra.mxu0 %v2706
    %v2901 = vpop.f32.mrf.mxu0
    %v2902 = vadd.f32 %v2651, %v2901
    %v2903 = vpop.f32.mrf.mxu0
    %2904 = vmatprep.mubr.f32.mxu0 0.0
    %2905 = vmatmul.mubr.f32.gmra.mxu0 %v2709
    %v2906 = vpop.f32.mrf.mxu0
    %v2907 = vadd.f32 %v2651, %v2906
    %v2908 = vpop.f32.mrf.mxu0
    %2909 = vmatprep.mubr.f32.mxu0 0.0
    %2910 = vmatmul.mubr.f32.gmra.mxu0 %v2712
    %v2911 = vpop.f32.mrf.mxu0
    %v2912 = vadd.f32 %v2651, %v2911
    %v2913 = vpop.f32.mrf.mxu0
    %2914 = vmatprep.mubr.f32.mxu0 0.0
    %2915 = vmatmul.mubr.f32.gmra.mxu0 %v2715
    %v2916 = vpop.f32.mrf.mxu0
    %v2917 = vadd.f32 %v2651, %v2916
    %v2918 = vpop.f32.mrf.mxu0
    %2919 = vmatprep.mubr.f32.mxu0 0.0
    %2920 = vmatmul.mubr.f32.gmra.mxu0 %v2718
    %v2921 = vpop.f32.mrf.mxu0
    %v2922 = vadd.f32 %v2651, %v2921
    %v2923 = vpop.f32.mrf.mxu0
    %2924 = vmatprep.mubr.f32.mxu0 0.0
    %2925 = vmatmul.mubr.f32.gmra.mxu0 %v2721
    %v2926 = vpop.f32.mrf.mxu0
    %v2927 = vadd.f32 %v2651, %v2926
    %v2928 = vpop.f32.mrf.mxu0
    %2929 = vmatprep.mubr.f32.mxu0 0.0
    %2930 = vmatmul.mubr.f32.gmra.mxu0 %v2724
    %v2931 = vpop.f32.mrf.mxu0
    %v2932 = vadd.f32 %v2651, %v2931
    %v2933 = vpop.f32.mrf.mxu0
    %2934 = vmatprep.mubr.f32.mxu0 0.0
    %2935 = vmatmul.mubr.f32.gmra.mxu0 %v2727
    %v2936 = vpop.f32.mrf.mxu0
    %v2937 = vadd.f32 %v2651, %v2936
    %v2938 = vpop.f32.mrf.mxu0
    %2939 = vmatprep.mubr.f32.mxu0 0.0
    %2940 = vmatmul.mubr.f32.gmra.mxu0 %v2730
    %v2941 = vpop.f32.mrf.mxu0
    %v2942 = vadd.f32 %v2651, %v2941
    %v2943 = vpop.f32.mrf.mxu0
    %2944 = vmatprep.mubr.f32.mxu0 0.0
    %2945 = vmatmul.mubr.f32.gmra.mxu0 %v2733
    %v2946 = vpop.f32.mrf.mxu0
    %v2947 = vadd.f32 %v2651, %v2946
    %v2948 = vpop.f32.mrf.mxu0
    %2949 = vmatprep.mubr.f32.mxu0 0.0
    %2950 = vmatmul.mubr.f32.gmra.mxu0 %v2736
    %v2951 = vpop.f32.mrf.mxu0
    %v2952 = vadd.f32 %v2651, %v2951
    %v2953 = vpop.f32.mrf.mxu0
    %2954 = vmatprep.mubr.f32.mxu0 0.0
    %2955 = vmatmul.mubr.f32.gmra.mxu0 %v2739
    %v2956 = vpop.f32.mrf.mxu0
    %v2957 = vadd.f32 %v2651, %v2956
    %v2958 = vpop.f32.mrf.mxu0
    %2959 = vmatprep.mubr.f32.mxu0 0.0
    %2960 = vmatmul.mubr.f32.gmra.mxu0 %v2742
    %v2961 = vpop.f32.mrf.mxu0
    %v2962 = vadd.f32 %v2651, %v2961
    %v2963 = vpop.f32.mrf.mxu0
    %2964 = vmatprep.mubr.f32.mxu0 0.0
    %2965 = vmatmul.mubr.f32.gmra.mxu0 %v2745
    %v2966 = vpop.f32.mrf.mxu0
    %v2967 = vadd.f32 %v2651, %v2966
    %v2968 = vpop.f32.mrf.mxu0
    %2969 = vmatprep.mubr.f32.mxu0 0.0
    %2970 = vmatmul.mubr.f32.gmra.mxu0 %v2748
    %v2971 = vpop.f32.mrf.mxu0
    %v2972 = vadd.f32 %v2651, %v2971
    %v2973 = vpop.f32.mrf.mxu0
    %2974 = vdwg.mxu0
    %v2975 = vmax.f32 %v2817, 0.0
    %v2976 = vmax.f32 %v2822, 0.0
    %v2977 = vmax.f32 %v2827, 0.0
    %v2978 = vmax.f32 %v2832, 0.0
    %v2979 = vmax.f32 %v2837, 0.0
    %v2980 = vmax.f32 %v2842, 0.0
    %v2981 = vmax.f32 %v2847, 0.0
    %v2982 = vmax.f32 %v2852, 0.0
    %v2983 = vmax.f32 %v2857, 0.0
    %v2984 = vmax.f32 %v2862, 0.0
    %v2985 = vmax.f32 %v2867, 0.0
    %v2986 = vmax.f32 %v2872, 0.0
    %v2987 = vmax.f32 %v2877, 0.0
    %v2988 = vmax.f32 %v2882, 0.0
    %v2989 = vmax.f32 %v2887, 0.0
    %v2990 = vmax.f32 %v2892, 0.0
    %v2991 = vmax.f32 %v2897, 0.0
    %v2992 = vmax.f32 %v2902, 0.0
    %v2993 = vmax.f32 %v2907, 0.0
    %v2994 = vmax.f32 %v2912, 0.0
    %v2995 = vmax.f32 %v2917, 0.0
    %v2996 = vmax.f32 %v2922, 0.0
    %v2997 = vmax.f32 %v2927, 0.0
    %v2998 = vmax.f32 %v2932, 0.0
    %v2999 = vmax.f32 %v2937, 0.0
    %v3000 = vmax.f32 %v2942, 0.0
    %v3001 = vmax.f32 %v2947, 0.0
    %v3002 = vmax.f32 %v2952, 0.0
    %v3003 = vmax.f32 %v2957, 0.0
    %v3004 = vmax.f32 %v2962, 0.0
    %v3005 = vmax.f32 %v2967, 0.0
    %v3006 = vmax.f32 %v2972, 0.0
    %v3007 = vld [vmem:[%s5] sm:$0xff]
    %v3008 = vld [vmem:[%s5 + $0x8] sm:$0xff]
    %v3009 = vld [vmem:[%s5 + $0x10] sm:$0xff]
    %v3010 = vld [vmem:[%s5 + $0x18] sm:$0xff]
    %v3011 = vld [vmem:[%s5 + $0x20] sm:$0xff]
    %v3012 = vld [vmem:[%s5 + $0x28] sm:$0xff]
    %v3013 = vld [vmem:[%s5 + $0x30] sm:$0xff]
    %v3014 = vld [vmem:[%s5 + $0x38] sm:$0xff]
    %v3015 = vld [vmem:[%s5 + $0x40] sm:$0xff]
    %v3016 = vld [vmem:[%s5 + $0x48] sm:$0xff]
    %v3017 = vld [vmem:[%s5 + $0x50] sm:$0xff]
    %v3018 = vld [vmem:[%s5 + $0x58] sm:$0xff]
    %v3019 = vld [vmem:[%s5 + $0x60] sm:$0xff]
    %v3020 = vld [vmem:[%s5 + $0x68] sm:$0xff]
    %v3021 = vld [vmem:[%s5 + $0x70] sm:$0xff]
    %v3022 = vld [vmem:[%s5 + $0x78] sm:$0xff]
    %3023 = vmatprep.subr.mxu0 0.0
    %3024 = vmatpush1.msra.mxu0 %v2990
    %3025 = vmatprep.subr.mxu0 0.0
    %3026 = vmatpush1.msra.mxu0 %v2989
    %3027 = vmatprep.subr.mxu0 0.0
    %3028 = vmatpush1.msra.mxu0 %v2988
    %3029 = vmatprep.subr.mxu0 0.0
    %3030 = vmatpush1.msra.mxu0 %v2987
    %3031 = vmatprep.subr.mxu0 0.0
    %3032 = vmatpush1.msra.mxu0 %v2986
    %3033 = vmatprep.subr.mxu0 0.0
    %3034 = vmatpush1.msra.mxu0 %v2985
    %3035 = vmatprep.subr.mxu0 0.0
    %3036 = vmatpush1.msra.mxu0 %v2984
    %3037 = vmatprep.subr.mxu0 0.0
    %3038 = vmatpush1.msra.mxu0 %v2983
    %3039 = vmatprep.subr.mxu0 0.0
    %3040 = vmatpush1.msra.mxu0 %v2982
    %3041 = vmatprep.subr.mxu0 0.0
    %3042 = vmatpush1.msra.mxu0 %v2981
    %3043 = vmatprep.subr.mxu0 0.0
    %3044 = vmatpush1.msra.mxu0 %v2980
    %3045 = vmatprep.subr.mxu0 0.0
    %3046 = vmatpush1.msra.mxu0 %v2979
    %3047 = vmatprep.subr.mxu0 0.0
    %3048 = vmatpush1.msra.mxu0 %v2978
    %3049 = vmatprep.subr.mxu0 0.0
    %3050 = vmatpush1.msra.mxu0 %v2977
    %3051 = vmatprep.subr.mxu0 0.0
    %3052 = vmatpush1.msra.mxu0 %v2976
    %3053 = vmatprep.subr.mxu0 0.0
    %3054 = vmatpush1.msra.mxu0 %v2975
    %3055 = vmatprep.subr.mxu0 0.0
    %3056 = vmatpush2.msra.mxu0 %v3006
    %3057 = vmatprep.subr.mxu0 0.0
    %3058 = vmatpush2.msra.mxu0 %v3005
    %3059 = vmatprep.subr.mxu0 0.0
    %3060 = vmatpush2.msra.mxu0 %v3004
    %3061 = vmatprep.subr.mxu0 0.0
    %3062 = vmatpush2.msra.mxu0 %v3003
    %3063 = vmatprep.subr.mxu0 0.0
    %3064 = vmatpush2.msra.mxu0 %v3002
    %3065 = vmatprep.subr.mxu0 0.0
    %3066 = vmatpush2.msra.mxu0 %v3001
    %3067 = vmatprep.subr.mxu0 0.0
    %3068 = vmatpush2.msra.mxu0 %v3000
    %3069 = vmatprep.subr.mxu0 0.0
    %3070 = vmatpush2.msra.mxu0 %v2999
    %3071 = vmatprep.subr.mxu0 0.0
    %3072 = vmatpush2.msra.mxu0 %v2998
    %3073 = vmatprep.subr.mxu0 0.0
    %3074 = vmatpush2.msra.mxu0 %v2997
    %3075 = vmatprep.subr.mxu0 0.0
    %3076 = vmatpush2.msra.mxu0 %v2996
    %3077 = vmatprep.subr.mxu0 0.0
    %3078 = vmatpush2.msra.mxu0 %v2995
    %3079 = vmatprep.subr.mxu0 0.0
    %3080 = vmatpush2.msra.mxu0 %v2994
    %3081 = vmatprep.subr.mxu0 0.0
    %3082 = vmatpush2.msra.mxu0 %v2993
    %3083 = vmatprep.subr.mxu0 0.0
    %3084 = vmatpush2.msra.mxu0 %v2992
    %3085 = vmatprep.subr.mxu0 0.0
    %3086 = vmatpush2.msra.mxu0 %v2991
    %3087 = vmatprep.mubr.f32.mxu0 %v3008
    %3088 = vmatmul.mubr.f32.gmra.mxu0 %v3007
    %v3089 = vpop.f32.mrf.mxu0
    %v3090 = vadd.f32 0.0, %v3089
    %v3091 = vpop.f32.mrf.mxu0
    %3092 = vmatprep.mubr.f32.mxu0 %v3010
    %3093 = vmatmul.mubr.f32.gmra.mxu0 %v3009
    %v3094 = vpop.f32.mrf.mxu0
    %v3095 = vadd.f32 0.0, %v3094
    %v3096 = vpop.f32.mrf.mxu0
    %3097 = vmatprep.mubr.f32.mxu0 %v3012
    %3098 = vmatmul.mubr.f32.gmra.mxu0 %v3011
    %v3099 = vpop.f32.mrf.mxu0
    %v3100 = vadd.f32 0.0, %v3099
    %v3101 = vpop.f32.mrf.mxu0
    %3102 = vmatprep.mubr.f32.mxu0 %v3014
    %3103 = vmatmul.mubr.f32.gmra.mxu0 %v3013
    %v3104 = vpop.f32.mrf.mxu0
    %v3105 = vadd.f32 0.0, %v3104
    %v3106 = vpop.f32.mrf.mxu0
    %3107 = vmatprep.mubr.f32.mxu0 %v3016
    %3108 = vmatmul.mubr.f32.gmra.mxu0 %v3015
    %v3109 = vpop.f32.mrf.mxu0
    %v3110 = vadd.f32 0.0, %v3109
    %v3111 = vpop.f32.mrf.mxu0
    %3112 = vmatprep.mubr.f32.mxu0 %v3018
    %3113 = vmatmul.mubr.f32.gmra.mxu0 %v3017
    %v3114 = vpop.f32.mrf.mxu0
    %v3115 = vadd.f32 0.0, %v3114
    %v3116 = vpop.f32.mrf.mxu0
    %3117 = vmatprep.mubr.f32.mxu0 %v3020
    %3118 = vmatmul.mubr.f32.gmra.mxu0 %v3019
    %v3119 = vpop.f32.mrf.mxu0
    %v3120 = vadd.f32 0.0, %v3119
    %v3121 = vpop.f32.mrf.mxu0
    %3122 = vmatprep.mubr.f32.mxu0 %v3022
    %3123 = vmatmul.mubr.f32.gmra.mxu0 %v3021
    %v3124 = vpop.f32.mrf.mxu0
    %v3125 = vadd.f32 0.0, %v3124
    %v3126 = vpop.f32.mrf.mxu0
    %3127 = vdwg.mxu0
    %v3128 = vld [vmem:[%s17] sm:$0xff]
    %v3129 = vld [vmem:[%s17 + $0x8] sm:$0xff]
    %v3130 = vld [vmem:[%s17 + $0x10] sm:$0xff]
    %v3131 = vld [vmem:[%s17 + $0x18] sm:$0xff]
    %v3132 = vld [vmem:[%s17 + $0x20] sm:$0xff]
    %v3133 = vld [vmem:[%s17 + $0x28] sm:$0xff]
    %v3134 = vld [vmem:[%s19] sm:$0x1]
    %v3136 = vlaneseq
    %v3137 = vshrl.u32 %v3136, 7
    %v3138 = vsub.s32 0, %v3137
    %v3139 = vrot.slane %v3134, %v3138
    %vm3141 = vcmask 392192
    %v3143 = vsel %vm3141, %v3090, 0
    %v3146 = vsel %vm3141, %v3095, 0
    %v3149 = vsel %vm3141, %v3100, 0
    %v3152 = vsel %vm3141, %v3105, 0
    %v3155 = vsel %vm3141, %v3110, 0
    %v3158 = vsel %vm3141, %v3115, 0
    %v3161 = vsel %vm3141, %v3120, 0
    %v3164 = vsel %vm3141, %v3125, 0
    %3166 = vmatprep.subr.mxu0 0.0
    %3167 = vmatpush1.msra.mxu0 0.0
    %3168 = vmatprep.subr.mxu0 0.0
    %3169 = vmatpush1.msra.mxu0 0.0
    %3170 = vmatprep.subr.mxu0 0.0
    %3171 = vmatpush1.msra.mxu0 0.0
    %3172 = vmatprep.subr.mxu0 0.0
    %3173 = vmatpush1.msra.mxu0 0.0
    %3174 = vmatprep.subr.mxu0 0.0
    %3175 = vmatpush1.msra.mxu0 0.0
    %3176 = vmatprep.subr.mxu0 0.0
    %3177 = vmatpush1.msra.mxu0 0.0
    %3178 = vmatprep.subr.mxu0 0.0
    %3179 = vmatpush1.msra.mxu0 0.0
    %3180 = vmatprep.subr.mxu0 0.0
    %3181 = vmatpush1.msra.mxu0 0.0
    %3182 = vmatprep.subr.mxu0 0.0
    %3183 = vmatpush1.msra.mxu0 0.0
    %3184 = vmatprep.subr.mxu0 0.0
    %3185 = vmatpush1.msra.mxu0 0.0
    %3186 = vmatprep.subr.mxu0 0.0
    %3187 = vmatpush1.msra.mxu0 %v3133
    %3188 = vmatprep.subr.mxu0 0.0
    %3189 = vmatpush1.msra.mxu0 %v3132
    %3190 = vmatprep.subr.mxu0 0.0
    %3191 = vmatpush1.msra.mxu0 %v3131
    %3192 = vmatprep.subr.mxu0 0.0
    %3193 = vmatpush1.msra.mxu0 %v3130
    %3194 = vmatprep.subr.mxu0 0.0
    %3195 = vmatpush1.msra.mxu0 %v3129
    %3196 = vmatprep.subr.mxu0 0.0
    %3197 = vmatpush1.msra.mxu0 %v3128
    %3198 = vmatprep.subr.mxu0 0.0
    %3199 = vmatpush2.msra.mxu0 0.0
    %3200 = vmatprep.subr.mxu0 0.0
    %3201 = vmatpush2.msra.mxu0 0.0
    %3202 = vmatprep.subr.mxu0 0.0
    %3203 = vmatpush2.msra.mxu0 0.0
    %3204 = vmatprep.subr.mxu0 0.0
    %3205 = vmatpush2.msra.mxu0 0.0
    %3206 = vmatprep.subr.mxu0 0.0
    %3207 = vmatpush2.msra.mxu0 0.0
    %3208 = vmatprep.subr.mxu0 0.0
    %3209 = vmatpush2.msra.mxu0 0.0
    %3210 = vmatprep.subr.mxu0 0.0
    %3211 = vmatpush2.msra.mxu0 0.0
    %3212 = vmatprep.subr.mxu0 0.0
    %3213 = vmatpush2.msra.mxu0 0.0
    %3214 = vmatprep.subr.mxu0 0.0
    %3215 = vmatpush2.msra.mxu0 0.0
    %3216 = vmatprep.subr.mxu0 0.0
    %3217 = vmatpush2.msra.mxu0 0.0
    %3218 = vmatprep.subr.mxu0 0.0
    %3219 = vmatpush2.msra.mxu0 0.0
    %3220 = vmatprep.subr.mxu0 0.0
    %3221 = vmatpush2.msra.mxu0 0.0
    %3222 = vmatprep.subr.mxu0 0.0
    %3223 = vmatpush2.msra.mxu0 0.0
    %3224 = vmatprep.subr.mxu0 0.0
    %3225 = vmatpush2.msra.mxu0 0.0
    %3226 = vmatprep.subr.mxu0 0.0
    %3227 = vmatpush2.msra.mxu0 0.0
    %3228 = vmatprep.subr.mxu0 0.0
    %3229 = vmatpush2.msra.mxu0 0.0
    %3230 = vmatprep.mubr.f32.mxu0 0.0
    %3231 = vmatmul.mubr.f32.gmra.mxu0 %v3143
    %v3232 = vpop.f32.mrf.mxu0
    %v3233 = vadd.f32 %v3139, %v3232
    %v3234 = vpop.f32.mrf.mxu0
    %3235 = vmatprep.mubr.f32.mxu0 0.0
    %3236 = vmatmul.mubr.f32.gmra.mxu0 %v3146
    %v3237 = vpop.f32.mrf.mxu0
    %v3238 = vadd.f32 %v3139, %v3237
    %v3239 = vpop.f32.mrf.mxu0
    %3240 = vmatprep.mubr.f32.mxu0 0.0
    %3241 = vmatmul.mubr.f32.gmra.mxu0 %v3149
    %v3242 = vpop.f32.mrf.mxu0
    %v3243 = vadd.f32 %v3139, %v3242
    %v3244 = vpop.f32.mrf.mxu0
    %3245 = vmatprep.mubr.f32.mxu0 0.0
    %3246 = vmatmul.mubr.f32.gmra.mxu0 %v3152
    %v3247 = vpop.f32.mrf.mxu0
    %v3248 = vadd.f32 %v3139, %v3247
    %v3249 = vpop.f32.mrf.mxu0
    %3250 = vmatprep.mubr.f32.mxu0 0.0
    %3251 = vmatmul.mubr.f32.gmra.mxu0 %v3155
    %v3252 = vpop.f32.mrf.mxu0
    %v3253 = vadd.f32 %v3139, %v3252
    %v3254 = vpop.f32.mrf.mxu0
    %3255 = vmatprep.mubr.f32.mxu0 0.0
    %3256 = vmatmul.mubr.f32.gmra.mxu0 %v3158
    %v3257 = vpop.f32.mrf.mxu0
    %v3258 = vadd.f32 %v3139, %v3257
    %v3259 = vpop.f32.mrf.mxu0
    %3260 = vmatprep.mubr.f32.mxu0 0.0
    %3261 = vmatmul.mubr.f32.gmra.mxu0 %v3161
    %v3262 = vpop.f32.mrf.mxu0
    %v3263 = vadd.f32 %v3139, %v3262
    %v3264 = vpop.f32.mrf.mxu0
    %3265 = vmatprep.mubr.f32.mxu0 0.0
    %3266 = vmatmul.mubr.f32.gmra.mxu0 %v3164
    %v3267 = vpop.f32.mrf.mxu0
    %v3268 = vadd.f32 %v3139, %v3267
    %v3269 = vpop.f32.mrf.mxu0
    %3270 = vdwg.mxu0
    %v3271 = vmax.f32 %v3233, 0.0
    %v3272 = vmax.f32 %v3238, 0.0
    %v3273 = vmax.f32 %v3243, 0.0
    %v3274 = vmax.f32 %v3248, 0.0
    %v3275 = vmax.f32 %v3253, 0.0
    %v3276 = vmax.f32 %v3258, 0.0
    %v3277 = vmax.f32 %v3263, 0.0
    %v3278 = vmax.f32 %v3268, 0.0
    %v3279 = vld [vmem:[%s7] sm:$0xff]
    %v3280 = vld [vmem:[%s7 + $0x8] sm:$0xff]
    %vm3281 = vcmask 523264
    %v3283 = vsel %vm3281, %v3279, 0
    %v3286 = vsel %vm3281, %v3280, 0
    %3288 = vmatprep.subr.mxu0 0.0
    %3289 = vmatpush1.msra.mxu0 0.0
    %3290 = vmatprep.subr.mxu0 0.0
    %3291 = vmatpush1.msra.mxu0 0.0
    %3292 = vmatprep.subr.mxu0 0.0
    %3293 = vmatpush1.msra.mxu0 0.0
    %3294 = vmatprep.subr.mxu0 0.0
    %3295 = vmatpush1.msra.mxu0 0.0
    %3296 = vmatprep.subr.mxu0 0.0
    %3297 = vmatpush1.msra.mxu0 0.0
    %3298 = vmatprep.subr.mxu0 0.0
    %3299 = vmatpush1.msra.mxu0 0.0
    %3300 = vmatprep.subr.mxu0 0.0
    %3301 = vmatpush1.msra.mxu0 0.0
    %3302 = vmatprep.subr.mxu0 0.0
    %3303 = vmatpush1.msra.mxu0 0.0
    %3304 = vmatprep.subr.mxu0 0.0
    %3305 = vmatpush1.msra.mxu0 %v3278
    %3306 = vmatprep.subr.mxu0 0.0
    %3307 = vmatpush1.msra.mxu0 %v3277
    %3308 = vmatprep.subr.mxu0 0.0
    %3309 = vmatpush1.msra.mxu0 %v3276
    %3310 = vmatprep.subr.mxu0 0.0
    %3311 = vmatpush1.msra.mxu0 %v3275
    %3312 = vmatprep.subr.mxu0 0.0
    %3313 = vmatpush1.msra.mxu0 %v3274
    %3314 = vmatprep.subr.mxu0 0.0
    %3315 = vmatpush1.msra.mxu0 %v3273
    %3316 = vmatprep.subr.mxu0 0.0
    %3317 = vmatpush1.msra.mxu0 %v3272
    %3318 = vmatprep.subr.mxu0 0.0
    %3319 = vmatpush1.msra.mxu0 %v3271
    %3320 = vmatprep.subr.mxu0 0.0
    %3321 = vmatpush2.msra.mxu0 0.0
    %3322 = vmatprep.subr.mxu0 0.0
    %3323 = vmatpush2.msra.mxu0 0.0
    %3324 = vmatprep.subr.mxu0 0.0
    %3325 = vmatpush2.msra.mxu0 0.0
    %3326 = vmatprep.subr.mxu0 0.0
    %3327 = vmatpush2.msra.mxu0 0.0
    %3328 = vmatprep.subr.mxu0 0.0
    %3329 = vmatpush2.msra.mxu0 0.0
    %3330 = vmatprep.subr.mxu0 0.0
    %3331 = vmatpush2.msra.mxu0 0.0
    %3332 = vmatprep.subr.mxu0 0.0
    %3333 = vmatpush2.msra.mxu0 0.0
    %3334 = vmatprep.subr.mxu0 0.0
    %3335 = vmatpush2.msra.mxu0 0.0
    %3336 = vmatprep.subr.mxu0 0.0
    %3337 = vmatpush2.msra.mxu0 0.0
    %3338 = vmatprep.subr.mxu0 0.0
    %3339 = vmatpush2.msra.mxu0 0.0
    %3340 = vmatprep.subr.mxu0 0.0
    %3341 = vmatpush2.msra.mxu0 0.0
    %3342 = vmatprep.subr.mxu0 0.0
    %3343 = vmatpush2.msra.mxu0 0.0
    %3344 = vmatprep.subr.mxu0 0.0
    %3345 = vmatpush2.msra.mxu0 0.0
    %3346 = vmatprep.subr.mxu0 0.0
    %3347 = vmatpush2.msra.mxu0 0.0
    %3348 = vmatprep.subr.mxu0 0.0
    %3349 = vmatpush2.msra.mxu0 0.0
    %3350 = vmatprep.subr.mxu0 0.0
    %3351 = vmatpush2.msra.mxu0 0.0
    %3352 = vmatprep.mubr.f32.mxu0 0.0
    %3353 = vmatmul.mubr.f32.gmra.mxu0 %v3283
    %v3354 = vpop.f32.mrf.mxu0
    %v3355 = vadd.f32 0.0, %v3354
    %v3356 = vpop.f32.mrf.mxu0
    %3357 = vmatprep.mubr.f32.mxu0 0.0
    %3358 = vmatmul.mubr.f32.gmra.mxu0 %v3286
    %v3359 = vpop.f32.mrf.mxu0
    %v3360 = vadd.f32 0.0, %v3359
    %v3361 = vpop.f32.mrf.mxu0
    %3362 = vdwg.mxu0
    %v3363 = vld [vmem:[%s21] sm:$0xff]
    %v3364 = vld [vmem:[%s21 + $0x8] sm:$0xff]
    %v3365 = vld [vmem:[%s21 + $0x10] sm:$0xff]
    %v3366 = vld [vmem:[%s21 + $0x18] sm:$0xff]
    %v3367 = vld [vmem:[%s21 + $0x20] sm:$0xff]
    %v3368 = vld [vmem:[%s21 + $0x28] sm:$0xff]
    %v3369 = vld [vmem:[%s21 + $0x30] sm:$0xff]
    %v3370 = vld [vmem:[%s21 + $0x38] sm:$0xff]
    %v3371 = vld [vmem:[%s21 + $0x40] sm:$0xff]
    %v3372 = vld [vmem:[%s21 + $0x48] sm:$0xff]
    %v3373 = vld [vmem:[%s21 + $0x50] sm:$0xff]
    %v3374 = vld [vmem:[%s21 + $0x58] sm:$0xff]
    %v3375 = vld [vmem:[%s21 + $0x60] sm:$0xff]
    %v3376 = vld [vmem:[%s21 + $0x68] sm:$0xff]
    %v3377 = vld [vmem:[%s21 + $0x70] sm:$0xff]
    %v3378 = vld [vmem:[%s21 + $0x78] sm:$0xff]
    %v3379 = vld [vmem:[%s21 + $0x80] sm:$0xff]
    %v3380 = vld [vmem:[%s21 + $0x88] sm:$0xff]
    %v3381 = vld [vmem:[%s21 + $0x90] sm:$0xff]
    %v3382 = vld [vmem:[%s21 + $0x98] sm:$0xff]
    %v3383 = vld [vmem:[%s21 + $0xa0] sm:$0xff]
    %v3384 = vld [vmem:[%s21 + $0xa8] sm:$0xff]
    %v3385 = vld [vmem:[%s21 + $0xb0] sm:$0xff]
    %v3386 = vld [vmem:[%s21 + $0xb8] sm:$0xff]
    %v3387 = vld [vmem:[%s23] sm:$0x3]
    %v3389 = vlaneseq
    %v3390 = vshrl.u32 %v3389, 7
    %v3391 = vsub.s32 0, %v3390
    %v3392 = vrot.slane %v3387, %v3391
    %v3393 = vlaneseq
    %v3394 = vshrl.u32 %v3393, 7
    %v3395 = vsub.s32 1, %v3394
    %v3396 = vrot.slane %v3387, %v3395
    %vm3399 = vcmask 785408
    %v3401 = vsel %vm3399, %v3355, 0
    %v3404 = vsel %vm3399, %v3360, 0
    %3406 = vmatprep.subr.mxu0 0.0
    %3407 = vmatpush1.msra.mxu0 0.0
    %3408 = vmatprep.subr.mxu0 0.0
    %3409 = vmatpush1.msra.mxu0 0.0
    %3410 = vmatprep.subr.mxu0 0.0
    %3411 = vmatpush1.msra.mxu0 0.0
    %3412 = vmatprep.subr.mxu0 0.0
    %3413 = vmatpush1.msra.mxu0 0.0
    %3414 = vmatprep.subr.mxu0 %v3386
    %3415 = vmatpush1.msra.mxu0 %v3385
    %3416 = vmatprep.subr.mxu0 %v3384
    %3417 = vmatpush1.msra.mxu0 %v3383
    %3418 = vmatprep.subr.mxu0 %v3382
    %3419 = vmatpush1.msra.mxu0 %v3381
    %3420 = vmatprep.subr.mxu0 %v3380
    %3421 = vmatpush1.msra.mxu0 %v3379
    %3422 = vmatprep.subr.mxu0 %v3378
    %3423 = vmatpush1.msra.mxu0 %v3377
    %3424 = vmatprep.subr.mxu0 %v3376
    %3425 = vmatpush1.msra.mxu0 %v3375
    %3426 = vmatprep.subr.mxu0 %v3374
    %3427 = vmatpush1.msra.mxu0 %v3373
    %3428 = vmatprep.subr.mxu0 %v3372
    %3429 = vmatpush1.msra.mxu0 %v3371
    %3430 = vmatprep.subr.mxu0 %v3370
    %3431 = vmatpush1.msra.mxu0 %v3369
    %3432 = vmatprep.subr.mxu0 %v3368
    %3433 = vmatpush1.msra.mxu0 %v3367
    %3434 = vmatprep.subr.mxu0 %v3366
    %3435 = vmatpush1.msra.mxu0 %v3365
    %3436 = vmatprep.subr.mxu0 %v3364
    %3437 = vmatpush1.msra.mxu0 %v3363
    %3438 = vmatprep.subr.mxu0 0.0
    %3439 = vmatpush2.msra.mxu0 0.0
    %3440 = vmatprep.subr.mxu0 0.0
    %3441 = vmatpush2.msra.mxu0 0.0
    %3442 = vmatprep.subr.mxu0 0.0
    %3443 = vmatpush2.msra.mxu0 0.0
    %3444 = vmatprep.subr.mxu0 0.0
    %3445 = vmatpush2.msra.mxu0 0.0
    %3446 = vmatprep.subr.mxu0 0.0
    %3447 = vmatpush2.msra.mxu0 0.0
    %3448 = vmatprep.subr.mxu0 0.0
    %3449 = vmatpush2.msra.mxu0 0.0
    %3450 = vmatprep.subr.mxu0 0.0
    %3451 = vmatpush2.msra.mxu0 0.0
    %3452 = vmatprep.subr.mxu0 0.0
    %3453 = vmatpush2.msra.mxu0 0.0
    %3454 = vmatprep.subr.mxu0 0.0
    %3455 = vmatpush2.msra.mxu0 0.0
    %3456 = vmatprep.subr.mxu0 0.0
    %3457 = vmatpush2.msra.mxu0 0.0
    %3458 = vmatprep.subr.mxu0 0.0
    %3459 = vmatpush2.msra.mxu0 0.0
    %3460 = vmatprep.subr.mxu0 0.0
    %3461 = vmatpush2.msra.mxu0 0.0
    %3462 = vmatprep.subr.mxu0 0.0
    %3463 = vmatpush2.msra.mxu0 0.0
    %3464 = vmatprep.subr.mxu0 0.0
    %3465 = vmatpush2.msra.mxu0 0.0
    %3466 = vmatprep.subr.mxu0 0.0
    %3467 = vmatpush2.msra.mxu0 0.0
    %3468 = vmatprep.subr.mxu0 0.0
    %3469 = vmatpush2.msra.mxu0 0.0
    %3470 = vmatprep.mubr.f32.mxu0 0.0
    %3471 = vmatmul.mubr.f32.gmra.mxu0 %v3401
    %v3472 = vpop.f32.mrf.mxu0
    %v3473 = vadd.f32 %v3392, %v3472
    %v3474 = vpop.f32.mrf.mxu0
    %v3475 = vadd.f32 %v3396, %v3474
    %3476 = vmatprep.mubr.f32.mxu0 0.0
    %3477 = vmatmul.mubr.f32.gmra.mxu0 %v3404
    %v3478 = vpop.f32.mrf.mxu0
    %v3479 = vadd.f32 %v3392, %v3478
    %v3480 = vpop.f32.mrf.mxu0
    %v3481 = vadd.f32 %v3396, %v3480
    %3482 = vdwg.mxu0
    %v3483 = vmax.f32 %v3473, 0.0
    %v3484 = vmax.f32 %v3475, 0.0
    %v3485 = vmax.f32 %v3479, 0.0
    %v3486 = vmax.f32 %v3481, 0.0
    %v3487 = vpack.c.bf16 %v3485, %v3483
    %v3488 = vpack.c.bf16 %v3486, %v3484
    %v3489 = vld [vmem:[%s25] sm:$0xff]
    %v3490 = vld [vmem:[%s25 + $0x8] sm:$0xff]
    %v3491 = vld [vmem:[%s25 + $0x10] sm:$0xff]
    %v3492 = vld [vmem:[%s25 + $0x18] sm:$0xff]
    %v3493 = vld [vmem:[%s25 + $0x20] sm:$0xff]
    %v3494 = vld [vmem:[%s25 + $0x28] sm:$0xff]
    %v3495 = vld [vmem:[%s25 + $0x30] sm:$0xff]
    %v3496 = vld [vmem:[%s25 + $0x38] sm:$0xff]
    %v3497 = vld [vmem:[%s25 + $0x40] sm:$0xff]
    %v3498 = vld [vmem:[%s25 + $0x48] sm:$0xff]
    %v3499 = vld [vmem:[%s25 + $0x50] sm:$0xff]
    %v3500 = vld [vmem:[%s25 + $0x58] sm:$0xff]
    %v3501 = vld [vmem:[%s25 + $0x60] sm:$0xff]
    %v3502 = vld [vmem:[%s25 + $0x68] sm:$0xff]
    %v3503 = vld [vmem:[%s25 + $0x70] sm:$0xff]
    %v3504 = vld [vmem:[%s25 + $0x78] sm:$0xff]
    %v3505 = vld [vmem:[%s25 + $0x80] sm:$0xff]
    %v3506 = vld [vmem:[%s25 + $0x88] sm:$0xff]
    %v3507 = vld [vmem:[%s25 + $0x90] sm:$0xff]
    %v3508 = vld [vmem:[%s25 + $0x98] sm:$0xff]
    %v3509 = vld [vmem:[%s25 + $0xa0] sm:$0xff]
    %v3510 = vld [vmem:[%s25 + $0xa8] sm:$0xff]
    %v3511 = vld [vmem:[%s25 + $0xb0] sm:$0xff]
    %v3512 = vld [vmem:[%s25 + $0xb8] sm:$0xff]
    %v3513 = vld [vmem:[%s25 + $0xc0] sm:$0xff]
    %v3514 = vld [vmem:[%s25 + $0xc8] sm:$0xff]
    %v3515 = vld [vmem:[%s25 + $0xd0] sm:$0xff]
    %v3516 = vld [vmem:[%s25 + $0xd8] sm:$0xff]
    %v3517 = vld [vmem:[%s25 + $0xe0] sm:$0xff]
    %v3518 = vld [vmem:[%s25 + $0xe8] sm:$0xff]
    %v3519 = vld [vmem:[%s25 + $0xf0] sm:$0xff]
    %v3520 = vld [vmem:[%s25 + $0xf8] sm:$0xff]
    %v3521 = vld [vmem:[%s25 + $0x100] sm:$0xff]
    %v3522 = vld [vmem:[%s25 + $0x108] sm:$0xff]
    %v3523 = vld [vmem:[%s25 + $0x110] sm:$0xff]
    %v3524 = vld [vmem:[%s25 + $0x118] sm:$0xff]
    %v3525 = vld [vmem:[%s25 + $0x120] sm:$0xff]
    %v3526 = vld [vmem:[%s25 + $0x128] sm:$0xff]
    %v3527 = vld [vmem:[%s25 + $0x130] sm:$0xff]
    %v3528 = vld [vmem:[%s25 + $0x138] sm:$0xff]
    %v3529 = vld [vmem:[%s25 + $0x140] sm:$0xff]
    %v3530 = vld [vmem:[%s25 + $0x148] sm:$0xff]
    %v3531 = vld [vmem:[%s25 + $0x150] sm:$0xff]
    %v3532 = vld [vmem:[%s25 + $0x158] sm:$0xff]
    %v3533 = vld [vmem:[%s25 + $0x160] sm:$0xff]
    %v3534 = vld [vmem:[%s25 + $0x168] sm:$0xff]
    %v3535 = vld [vmem:[%s25 + $0x170] sm:$0xff]
    %v3536 = vld [vmem:[%s25 + $0x178] sm:$0xff]
    %v3537 = vld [vmem:[%s25 + $0x180] sm:$0xff]
    %v3538 = vld [vmem:[%s25 + $0x188] sm:$0xff]
    %v3539 = vld [vmem:[%s25 + $0x190] sm:$0xff]
    %v3540 = vld [vmem:[%s25 + $0x198] sm:$0xff]
    %v3541 = vld [vmem:[%s25 + $0x1a0] sm:$0xff]
    %v3542 = vld [vmem:[%s25 + $0x1a8] sm:$0xff]
    %v3543 = vld [vmem:[%s25 + $0x1b0] sm:$0xff]
    %v3544 = vld [vmem:[%s25 + $0x1b8] sm:$0xff]
    %v3545 = vld [vmem:[%s25 + $0x1c0] sm:$0xff]
    %v3546 = vld [vmem:[%s25 + $0x1c8] sm:$0xff]
    %v3547 = vld [vmem:[%s25 + $0x1d0] sm:$0xff]
    %v3548 = vld [vmem:[%s25 + $0x1d8] sm:$0xff]
    %v3549 = vld [vmem:[%s25 + $0x1e0] sm:$0xff]
    %v3550 = vld [vmem:[%s25 + $0x1e8] sm:$0xff]
    %v3551 = vld [vmem:[%s25 + $0x1f0] sm:$0xff]
    %v3552 = vld [vmem:[%s25 + $0x1f8] sm:$0xff]
    %v3553 = vld [vmem:[%s25 + $0x200] sm:$0xff]
    %v3554 = vld [vmem:[%s25 + $0x208] sm:$0xff]
    %v3555 = vld [vmem:[%s25 + $0x210] sm:$0xff]
    %v3556 = vld [vmem:[%s25 + $0x218] sm:$0xff]
    %v3557 = vld [vmem:[%s25 + $0x220] sm:$0xff]
    %v3558 = vld [vmem:[%s25 + $0x228] sm:$0xff]
    %v3559 = vld [vmem:[%s25 + $0x230] sm:$0xff]
    %v3560 = vld [vmem:[%s25 + $0x238] sm:$0xff]
    %v3561 = vld [vmem:[%s25 + $0x240] sm:$0xff]
    %v3562 = vld [vmem:[%s25 + $0x248] sm:$0xff]
    %v3563 = vld [vmem:[%s25 + $0x250] sm:$0xff]
    %v3564 = vld [vmem:[%s25 + $0x258] sm:$0xff]
    %v3565 = vld [vmem:[%s25 + $0x260] sm:$0xff]
    %v3566 = vld [vmem:[%s25 + $0x268] sm:$0xff]
    %v3567 = vld [vmem:[%s25 + $0x270] sm:$0xff]
    %v3568 = vld [vmem:[%s25 + $0x278] sm:$0xff]
    %v3569 = vld [vmem:[%s25 + $0x280] sm:$0xff]
    %v3570 = vld [vmem:[%s25 + $0x288] sm:$0xff]
    %v3571 = vld [vmem:[%s25 + $0x290] sm:$0xff]
    %v3572 = vld [vmem:[%s25 + $0x298] sm:$0xff]
    %v3573 = vld [vmem:[%s25 + $0x2a0] sm:$0xff]
    %v3574 = vld [vmem:[%s25 + $0x2a8] sm:$0xff]
    %v3575 = vld [vmem:[%s25 + $0x2b0] sm:$0xff]
    %v3576 = vld [vmem:[%s25 + $0x2b8] sm:$0xff]
    %v3577 = vld [vmem:[%s25 + $0x2c0] sm:$0xff]
    %v3578 = vld [vmem:[%s25 + $0x2c8] sm:$0xff]
    %v3579 = vld [vmem:[%s25 + $0x2d0] sm:$0xff]
    %v3580 = vld [vmem:[%s25 + $0x2d8] sm:$0xff]
    %v3581 = vld [vmem:[%s25 + $0x2e0] sm:$0xff]
    %v3582 = vld [vmem:[%s25 + $0x2e8] sm:$0xff]
    %v3583 = vld [vmem:[%s25 + $0x2f0] sm:$0xff]
    %v3584 = vld [vmem:[%s25 + $0x2f8] sm:$0xff]
    %v3585 = vld [vmem:[%s27] sm:$0xff]
    %v3587 = vlaneseq
    %v3588 = vshrl.u32 %v3587, 7
    %v3589 = vsub.s32 0, %v3588
    %v3590 = vrot.slane %v3585, %v3589
    %v3591 = vlaneseq
    %v3592 = vshrl.u32 %v3591, 7
    %v3593 = vsub.s32 1, %v3592
    %v3594 = vrot.slane %v3585, %v3593
    %v3595 = vlaneseq
    %v3596 = vshrl.u32 %v3595, 7
    %v3597 = vsub.s32 2, %v3596
    %v3598 = vrot.slane %v3585, %v3597
    %v3599 = vlaneseq
    %v3600 = vshrl.u32 %v3599, 7
    %v3601 = vsub.s32 3, %v3600
    %v3602 = vrot.slane %v3585, %v3601
    %v3603 = vlaneseq
    %v3604 = vshrl.u32 %v3603, 7
    %v3605 = vsub.s32 4, %v3604
    %v3606 = vrot.slane %v3585, %v3605
    %v3607 = vlaneseq
    %v3608 = vshrl.u32 %v3607, 7
    %v3609 = vsub.s32 5, %v3608
    %v3610 = vrot.slane %v3585, %v3609
    %v3611 = vlaneseq
    %v3612 = vshrl.u32 %v3611, 7
    %v3613 = vsub.s32 6, %v3612
    %v3614 = vrot.slane %v3585, %v3613
    %v3615 = vlaneseq
    %v3616 = vshrl.u32 %v3615, 7
    %v3617 = vsub.s32 7, %v3616
    %v3618 = vrot.slane %v3585, %v3617
    %v3723 = vunpack.c.l.b16 %v3489
    %v3724 = vunpack.c.h.b16 %v3489
    %v3725 = vunpack.c.l.b16 %v3490
    %v3726 = vunpack.c.h.b16 %v3490
    %v3727 = vunpack.c.l.b16 %v3491
    %v3728 = vunpack.c.h.b16 %v3491
    %v3729 = vunpack.c.l.b16 %v3492
    %v3730 = vunpack.c.h.b16 %v3492
    %v3731 = vunpack.c.l.b16 %v3493
    %v3732 = vunpack.c.h.b16 %v3493
    %v3733 = vunpack.c.l.b16 %v3494
    %v3734 = vunpack.c.h.b16 %v3494
    %v3735 = vunpack.c.l.b16 %v3495
    %v3736 = vunpack.c.h.b16 %v3495
    %v3737 = vunpack.c.l.b16 %v3496
    %v3738 = vunpack.c.h.b16 %v3496
    %v3739 = vunpack.c.l.b16 %v3497
    %v3740 = vunpack.c.h.b16 %v3497
    %v3741 = vunpack.c.l.b16 %v3498
    %v3742 = vunpack.c.h.b16 %v3498
    %v3743 = vunpack.c.l.b16 %v3499
    %v3744 = vunpack.c.h.b16 %v3499
    %v3745 = vunpack.c.l.b16 %v3500
    %v3746 = vunpack.c.h.b16 %v3500
    %v3747 = vunpack.c.l.b16 %v3501
    %v3748 = vunpack.c.h.b16 %v3501
    %v3749 = vunpack.c.l.b16 %v3502
    %v3750 = vunpack.c.h.b16 %v3502
    %v3751 = vunpack.c.l.b16 %v3503
    %v3752 = vunpack.c.h.b16 %v3503
    %v3753 = vunpack.c.l.b16 %v3504
    %v3754 = vunpack.c.h.b16 %v3504
    %v3755 = vunpack.c.l.b16 %v3505
    %v3756 = vunpack.c.h.b16 %v3505
    %v3757 = vunpack.c.l.b16 %v3506
    %v3758 = vunpack.c.h.b16 %v3506
    %v3759 = vunpack.c.l.b16 %v3507
    %v3760 = vunpack.c.h.b16 %v3507
    %v3761 = vunpack.c.l.b16 %v3508
    %v3762 = vunpack.c.h.b16 %v3508
    %v3763 = vunpack.c.l.b16 %v3509
    %v3764 = vunpack.c.h.b16 %v3509
    %v3765 = vunpack.c.l.b16 %v3510
    %v3766 = vunpack.c.h.b16 %v3510
    %v3767 = vunpack.c.l.b16 %v3511
    %v3768 = vunpack.c.h.b16 %v3511
    %v3769 = vunpack.c.l.b16 %v3512
    %v3770 = vunpack.c.h.b16 %v3512
    %v3771 = vunpack.c.l.b16 %v3513
    %v3772 = vunpack.c.h.b16 %v3513
    %v3773 = vunpack.c.l.b16 %v3514
    %v3774 = vunpack.c.h.b16 %v3514
    %v3775 = vunpack.c.l.b16 %v3515
    %v3776 = vunpack.c.h.b16 %v3515
    %v3777 = vunpack.c.l.b16 %v3516
    %v3778 = vunpack.c.h.b16 %v3516
    %v3779 = vunpack.c.l.b16 %v3517
    %v3780 = vunpack.c.h.b16 %v3517
    %v3781 = vunpack.c.l.b16 %v3518
    %v3782 = vunpack.c.h.b16 %v3518
    %v3783 = vunpack.c.l.b16 %v3519
    %v3784 = vunpack.c.h.b16 %v3519
    %v3785 = vunpack.c.l.b16 %v3520
    %v3786 = vunpack.c.h.b16 %v3520
    %v3787 = vunpack.c.l.b16 %v3521
    %v3788 = vunpack.c.h.b16 %v3521
    %v3789 = vunpack.c.l.b16 %v3522
    %v3790 = vunpack.c.h.b16 %v3522
    %v3791 = vunpack.c.l.b16 %v3523
    %v3792 = vunpack.c.h.b16 %v3523
    %v3793 = vunpack.c.l.b16 %v3524
    %v3794 = vunpack.c.h.b16 %v3524
    %v3795 = vunpack.c.l.b16 %v3525
    %v3796 = vunpack.c.h.b16 %v3525
    %v3797 = vunpack.c.l.b16 %v3526
    %v3798 = vunpack.c.h.b16 %v3526
    %v3799 = vunpack.c.l.b16 %v3527
    %v3800 = vunpack.c.h.b16 %v3527
    %v3801 = vunpack.c.l.b16 %v3528
    %v3802 = vunpack.c.h.b16 %v3528
    %v3803 = vunpack.c.l.b16 %v3529
    %v3804 = vunpack.c.h.b16 %v3529
    %v3805 = vunpack.c.l.b16 %v3530
    %v3806 = vunpack.c.h.b16 %v3530
    %v3807 = vunpack.c.l.b16 %v3531
    %v3808 = vunpack.c.h.b16 %v3531
    %v3809 = vunpack.c.l.b16 %v3532
    %v3810 = vunpack.c.h.b16 %v3532
    %v3811 = vunpack.c.l.b16 %v3533
    %v3812 = vunpack.c.h.b16 %v3533
    %v3813 = vunpack.c.l.b16 %v3534
    %v3814 = vunpack.c.h.b16 %v3534
    %v3815 = vunpack.c.l.b16 %v3535
    %v3816 = vunpack.c.h.b16 %v3535
    %v3817 = vunpack.c.l.b16 %v3536
    %v3818 = vunpack.c.h.b16 %v3536
    %v3819 = vunpack.c.l.b16 %v3537
    %v3820 = vunpack.c.h.b16 %v3537
    %v3821 = vunpack.c.l.b16 %v3538
    %v3822 = vunpack.c.h.b16 %v3538
    %v3823 = vunpack.c.l.b16 %v3539
    %v3824 = vunpack.c.h.b16 %v3539
    %v3825 = vunpack.c.l.b16 %v3540
    %v3826 = vunpack.c.h.b16 %v3540
    %v3827 = vunpack.c.l.b16 %v3541
    %v3828 = vunpack.c.h.b16 %v3541
    %v3829 = vunpack.c.l.b16 %v3542
    %v3830 = vunpack.c.h.b16 %v3542
    %v3831 = vunpack.c.l.b16 %v3543
    %v3832 = vunpack.c.h.b16 %v3543
    %v3833 = vunpack.c.l.b16 %v3544
    %v3834 = vunpack.c.h.b16 %v3544
    %v3835 = vunpack.c.l.b16 %v3545
    %v3836 = vunpack.c.h.b16 %v3545
    %v3837 = vunpack.c.l.b16 %v3546
    %v3838 = vunpack.c.h.b16 %v3546
    %v3839 = vunpack.c.l.b16 %v3547
    %v3840 = vunpack.c.h.b16 %v3547
    %v3841 = vunpack.c.l.b16 %v3548
    %v3842 = vunpack.c.h.b16 %v3548
    %v3843 = vunpack.c.l.b16 %v3549
    %v3844 = vunpack.c.h.b16 %v3549
    %v3845 = vunpack.c.l.b16 %v3550
    %v3846 = vunpack.c.h.b16 %v3550
    %v3847 = vunpack.c.l.b16 %v3551
    %v3848 = vunpack.c.h.b16 %v3551
    %v3849 = vunpack.c.l.b16 %v3552
    %v3850 = vunpack.c.h.b16 %v3552
    %v3851 = vunpack.c.l.b16 %v3553
    %v3852 = vunpack.c.h.b16 %v3553
    %v3853 = vunpack.c.l.b16 %v3554
    %v3854 = vunpack.c.h.b16 %v3554
    %v3855 = vunpack.c.l.b16 %v3555
    %v3856 = vunpack.c.h.b16 %v3555
    %v3857 = vunpack.c.l.b16 %v3556
    %v3858 = vunpack.c.h.b16 %v3556
    %v3859 = vunpack.c.l.b16 %v3557
    %v3860 = vunpack.c.h.b16 %v3557
    %v3861 = vunpack.c.l.b16 %v3558
    %v3862 = vunpack.c.h.b16 %v3558
    %v3863 = vunpack.c.l.b16 %v3559
    %v3864 = vunpack.c.h.b16 %v3559
    %v3865 = vunpack.c.l.b16 %v3560
    %v3866 = vunpack.c.h.b16 %v3560
    %v3867 = vunpack.c.l.b16 %v3561
    %v3868 = vunpack.c.h.b16 %v3561
    %v3869 = vunpack.c.l.b16 %v3562
    %v3870 = vunpack.c.h.b16 %v3562
    %v3871 = vunpack.c.l.b16 %v3563
    %v3872 = vunpack.c.h.b16 %v3563
    %v3873 = vunpack.c.l.b16 %v3564
    %v3874 = vunpack.c.h.b16 %v3564
    %v3875 = vunpack.c.l.b16 %v3565
    %v3876 = vunpack.c.h.b16 %v3565
    %v3877 = vunpack.c.l.b16 %v3566
    %v3878 = vunpack.c.h.b16 %v3566
    %v3879 = vunpack.c.l.b16 %v3567
    %v3880 = vunpack.c.h.b16 %v3567
    %v3881 = vunpack.c.l.b16 %v3568
    %v3882 = vunpack.c.h.b16 %v3568
    %v3883 = vunpack.c.l.b16 %v3569
    %v3884 = vunpack.c.h.b16 %v3569
    %v3885 = vunpack.c.l.b16 %v3570
    %v3886 = vunpack.c.h.b16 %v3570
    %v3887 = vunpack.c.l.b16 %v3571
    %v3888 = vunpack.c.h.b16 %v3571
    %v3889 = vunpack.c.l.b16 %v3572
    %v3890 = vunpack.c.h.b16 %v3572
    %v3891 = vunpack.c.l.b16 %v3573
    %v3892 = vunpack.c.h.b16 %v3573
    %v3893 = vunpack.c.l.b16 %v3574
    %v3894 = vunpack.c.h.b16 %v3574
    %v3895 = vunpack.c.l.b16 %v3575
    %v3896 = vunpack.c.h.b16 %v3575
    %v3897 = vunpack.c.l.b16 %v3576
    %v3898 = vunpack.c.h.b16 %v3576
    %v3899 = vunpack.c.l.b16 %v3577
    %v3900 = vunpack.c.h.b16 %v3577
    %v3901 = vunpack.c.l.b16 %v3578
    %v3902 = vunpack.c.h.b16 %v3578
    %v3903 = vunpack.c.l.b16 %v3579
    %v3904 = vunpack.c.h.b16 %v3579
    %v3905 = vunpack.c.l.b16 %v3580
    %v3906 = vunpack.c.h.b16 %v3580
    %v3907 = vunpack.c.l.b16 %v3581
    %v3908 = vunpack.c.h.b16 %v3581
    %v3909 = vunpack.c.l.b16 %v3582
    %v3910 = vunpack.c.h.b16 %v3582
    %v3911 = vunpack.c.l.b16 %v3583
    %v3912 = vunpack.c.h.b16 %v3583
    %v3913 = vunpack.c.l.b16 %v3584
    %v3914 = vunpack.c.h.b16 %v3584
    %v3915 = vpack.c.b16 %v3731, %v3723
    %v3916 = vpack.c.b16 %v3732, %v3724
    %v3917 = vpack.c.b16 %v3733, %v3725
    %v3918 = vpack.c.b16 %v3734, %v3726
    %v3919 = vpack.c.b16 %v3735, %v3727
    %v3920 = vpack.c.b16 %v3736, %v3728
    %v3921 = vpack.c.b16 %v3737, %v3729
    %v3922 = vpack.c.b16 %v3738, %v3730
    %v3923 = vpack.c.b16 %v3747, %v3739
    %v3924 = vpack.c.b16 %v3748, %v3740
    %v3925 = vpack.c.b16 %v3749, %v3741
    %v3926 = vpack.c.b16 %v3750, %v3742
    %v3927 = vpack.c.b16 %v3751, %v3743
    %v3928 = vpack.c.b16 %v3752, %v3744
    %v3929 = vpack.c.b16 %v3753, %v3745
    %v3930 = vpack.c.b16 %v3754, %v3746
    %v3931 = vpack.c.b16 %v3763, %v3755
    %v3932 = vpack.c.b16 %v3764, %v3756
    %v3933 = vpack.c.b16 %v3765, %v3757
    %v3934 = vpack.c.b16 %v3766, %v3758
    %v3935 = vpack.c.b16 %v3767, %v3759
    %v3936 = vpack.c.b16 %v3768, %v3760
    %v3937 = vpack.c.b16 %v3769, %v3761
    %v3938 = vpack.c.b16 %v3770, %v3762
    %v3939 = vpack.c.b16 %v3779, %v3771
    %v3940 = vpack.c.b16 %v3780, %v3772
    %v3941 = vpack.c.b16 %v3781, %v3773
    %v3942 = vpack.c.b16 %v3782, %v3774
    %v3943 = vpack.c.b16 %v3783, %v3775
    %v3944 = vpack.c.b16 %v3784, %v3776
    %v3945 = vpack.c.b16 %v3785, %v3777
    %v3946 = vpack.c.b16 %v3786, %v3778
    %v3947 = vpack.c.b16 %v3795, %v3787
    %v3948 = vpack.c.b16 %v3796, %v3788
    %v3949 = vpack.c.b16 %v3797, %v3789
    %v3950 = vpack.c.b16 %v3798, %v3790
    %v3951 = vpack.c.b16 %v3799, %v3791
    %v3952 = vpack.c.b16 %v3800, %v3792
    %v3953 = vpack.c.b16 %v3801, %v3793
    %v3954 = vpack.c.b16 %v3802, %v3794
    %v3955 = vpack.c.b16 %v3811, %v3803
    %v3956 = vpack.c.b16 %v3812, %v3804
    %v3957 = vpack.c.b16 %v3813, %v3805
    %v3958 = vpack.c.b16 %v3814, %v3806
    %v3959 = vpack.c.b16 %v3815, %v3807
    %v3960 = vpack.c.b16 %v3816, %v3808
    %v3961 = vpack.c.b16 %v3817, %v3809
    %v3962 = vpack.c.b16 %v3818, %v3810
    %v3963 = vpack.c.b16 %v3827, %v3819
    %v3964 = vpack.c.b16 %v3828, %v3820
    %v3965 = vpack.c.b16 %v3829, %v3821
    %v3966 = vpack.c.b16 %v3830, %v3822
    %v3967 = vpack.c.b16 %v3831, %v3823
    %v3968 = vpack.c.b16 %v3832, %v3824
    %v3969 = vpack.c.b16 %v3833, %v3825
    %v3970 = vpack.c.b16 %v3834, %v3826
    %v3971 = vpack.c.b16 %v3843, %v3835
    %v3972 = vpack.c.b16 %v3844, %v3836
    %v3973 = vpack.c.b16 %v3845, %v3837
    %v3974 = vpack.c.b16 %v3846, %v3838
    %v3975 = vpack.c.b16 %v3847, %v3839
    %v3976 = vpack.c.b16 %v3848, %v3840
    %v3977 = vpack.c.b16 %v3849, %v3841
    %v3978 = vpack.c.b16 %v3850, %v3842
    %v3979 = vpack.c.b16 %v3859, %v3851
    %v3980 = vpack.c.b16 %v3860, %v3852
    %v3981 = vpack.c.b16 %v3861, %v3853
    %v3982 = vpack.c.b16 %v3862, %v3854
    %v3983 = vpack.c.b16 %v3863, %v3855
    %v3984 = vpack.c.b16 %v3864, %v3856
    %v3985 = vpack.c.b16 %v3865, %v3857
    %v3986 = vpack.c.b16 %v3866, %v3858
    %v3987 = vpack.c.b16 %v3875, %v3867
    %v3988 = vpack.c.b16 %v3876, %v3868
    %v3989 = vpack.c.b16 %v3877, %v3869
    %v3990 = vpack.c.b16 %v3878, %v3870
    %v3991 = vpack.c.b16 %v3879, %v3871
    %v3992 = vpack.c.b16 %v3880, %v3872
    %v3993 = vpack.c.b16 %v3881, %v3873
    %v3994 = vpack.c.b16 %v3882, %v3874
    %v3995 = vpack.c.b16 %v3891, %v3883
    %v3996 = vpack.c.b16 %v3892, %v3884
    %v3997 = vpack.c.b16 %v3893, %v3885
    %v3998 = vpack.c.b16 %v3894, %v3886
    %v3999 = vpack.c.b16 %v3895, %v3887
    %v4000 = vpack.c.b16 %v3896, %v3888
    %v4001 = vpack.c.b16 %v3897, %v3889
    %v4002 = vpack.c.b16 %v3898, %v3890
    %v4003 = vpack.c.b16 %v3907, %v3899
    %v4004 = vpack.c.b16 %v3908, %v3900
    %v4005 = vpack.c.b16 %v3909, %v3901
    %v4006 = vpack.c.b16 %v3910, %v3902
    %v4007 = vpack.c.b16 %v3911, %v3903
    %v4008 = vpack.c.b16 %v3912, %v3904
    %v4009 = vpack.c.b16 %v3913, %v3905
    %v4010 = vpack.c.b16 %v3914, %v3906
    %v4108 = vsel %vm3281, %v3488, 0
    %4110 = vmatprep.subr.bf16.mxu0 %v3972
    %4111 = vmatpush1.bf16.msra.mxu0 %v3971
    %4112 = vmatprep.subr.bf16.mxu0 %v3964
    %4113 = vmatpush1.bf16.msra.mxu0 %v3963
    %4114 = vmatprep.subr.bf16.mxu0 %v3956
    %4115 = vmatpush1.bf16.msra.mxu0 %v3955
    %4116 = vmatprep.subr.bf16.mxu0 %v3948
    %4117 = vmatpush1.bf16.msra.mxu0 %v3947
    %4118 = vmatprep.subr.bf16.mxu0 %v3940
    %4119 = vmatpush1.bf16.msra.mxu0 %v3939
    %4120 = vmatprep.subr.bf16.mxu0 %v3932
    %4121 = vmatpush1.bf16.msra.mxu0 %v3931
    %4122 = vmatprep.subr.bf16.mxu0 %v3924
    %4123 = vmatpush1.bf16.msra.mxu0 %v3923
    %4124 = vmatprep.subr.bf16.mxu0 %v3916
    %4125 = vmatpush1.bf16.msra.mxu0 %v3915
    %4126 = vmatprep.subr.bf16.mxu0 0
    %4127 = vmatpush2.bf16.msra.mxu0 0
    %4128 = vmatprep.subr.bf16.mxu0 0
    %4129 = vmatpush2.bf16.msra.mxu0 0
    %4130 = vmatprep.subr.bf16.mxu0 0
    %4131 = vmatpush2.bf16.msra.mxu0 0
    %4132 = vmatprep.subr.bf16.mxu0 0
    %4133 = vmatpush2.bf16.msra.mxu0 0
    %4134 = vmatprep.subr.bf16.mxu0 %v4004
    %4135 = vmatpush2.bf16.msra.mxu0 %v4003
    %4136 = vmatprep.subr.bf16.mxu0 %v3996
    %4137 = vmatpush2.bf16.msra.mxu0 %v3995
    %4138 = vmatprep.subr.bf16.mxu0 %v3988
    %4139 = vmatpush2.bf16.msra.mxu0 %v3987
    %4140 = vmatprep.subr.bf16.mxu0 %v3980
    %4141 = vmatpush2.bf16.msra.mxu0 %v3979
    %4142 = vmatprep.mubr.bf16.mxu0 %v4108
    %4143 = vmatmul.mubr.bf16.gmra.mxu0 %v3487
    %v4144 = vpop.f32.mrf.mxu0
    %v4145 = vadd.f32 %v3590, %v4144
    %v4146 = vpop.f32.mrf.mxu0
    %v4147 = vadd.f32 %v3594, %v4146
    %v4148 = vpop.f32.mrf.mxu0
    %v4149 = vadd.f32 %v3590, %v4148
    %v4150 = vpop.f32.mrf.mxu0
    %v4151 = vadd.f32 %v3594, %v4150
    %4152 = vdwg.mxu0
    %4153 = vmatprep.subr.bf16.mxu0 %v3974
    %4154 = vmatpush1.bf16.msra.mxu0 %v3973
    %4155 = vmatprep.subr.bf16.mxu0 %v3966
    %4156 = vmatpush1.bf16.msra.mxu0 %v3965
    %4157 = vmatprep.subr.bf16.mxu0 %v3958
    %4158 = vmatpush1.bf16.msra.mxu0 %v3957
    %4159 = vmatprep.subr.bf16.mxu0 %v3950
    %4160 = vmatpush1.bf16.msra.mxu0 %v3949
    %4161 = vmatprep.subr.bf16.mxu0 %v3942
    %4162 = vmatpush1.bf16.msra.mxu0 %v3941
    %4163 = vmatprep.subr.bf16.mxu0 %v3934
    %4164 = vmatpush1.bf16.msra.mxu0 %v3933
    %4165 = vmatprep.subr.bf16.mxu0 %v3926
    %4166 = vmatpush1.bf16.msra.mxu0 %v3925
    %4167 = vmatprep.subr.bf16.mxu0 %v3918
    %4168 = vmatpush1.bf16.msra.mxu0 %v3917
    %4169 = vmatprep.subr.bf16.mxu0 0
    %4170 = vmatpush2.bf16.msra.mxu0 0
    %4171 = vmatprep.subr.bf16.mxu0 0
    %4172 = vmatpush2.bf16.msra.mxu0 0
    %4173 = vmatprep.subr.bf16.mxu0 0
    %4174 = vmatpush2.bf16.msra.mxu0 0
    %4175 = vmatprep.subr.bf16.mxu0 0
    %4176 = vmatpush2.bf16.msra.mxu0 0
    %4177 = vmatprep.subr.bf16.mxu0 %v4006
    %4178 = vmatpush2.bf16.msra.mxu0 %v4005
    %4179 = vmatprep.subr.bf16.mxu0 %v3998
    %4180 = vmatpush2.bf16.msra.mxu0 %v3997
    %4181 = vmatprep.subr.bf16.mxu0 %v3990
    %4182 = vmatpush2.bf16.msra.mxu0 %v3989
    %4183 = vmatprep.subr.bf16.mxu0 %v3982
    %4184 = vmatpush2.bf16.msra.mxu0 %v3981
    %4185 = vmatprep.mubr.bf16.mxu0 %v4108
    %4186 = vmatmul.mubr.bf16.gmra.mxu0 %v3487
    %v4187 = vpop.f32.mrf.mxu0
    %v4188 = vadd.f32 %v3598, %v4187
    %v4189 = vpop.f32.mrf.mxu0
    %v4190 = vadd.f32 %v3602, %v4189
    %v4191 = vpop.f32.mrf.mxu0
    %v4192 = vadd.f32 %v3598, %v4191
    %v4193 = vpop.f32.mrf.mxu0
    %v4194 = vadd.f32 %v3602, %v4193
    %4195 = vdwg.mxu0
    %4196 = vmatprep.subr.bf16.mxu0 %v3976
    %4197 = vmatpush1.bf16.msra.mxu0 %v3975
    %4198 = vmatprep.subr.bf16.mxu0 %v3968
    %4199 = vmatpush1.bf16.msra.mxu0 %v3967
    %4200 = vmatprep.subr.bf16.mxu0 %v3960
    %4201 = vmatpush1.bf16.msra.mxu0 %v3959
    %4202 = vmatprep.subr.bf16.mxu0 %v3952
    %4203 = vmatpush1.bf16.msra.mxu0 %v3951
    %4204 = vmatprep.subr.bf16.mxu0 %v3944
    %4205 = vmatpush1.bf16.msra.mxu0 %v3943
    %4206 = vmatprep.subr.bf16.mxu0 %v3936
    %4207 = vmatpush1.bf16.msra.mxu0 %v3935
    %4208 = vmatprep.subr.bf16.mxu0 %v3928
    %4209 = vmatpush1.bf16.msra.mxu0 %v3927
    %4210 = vmatprep.subr.bf16.mxu0 %v3920
    %4211 = vmatpush1.bf16.msra.mxu0 %v3919
    %4212 = vmatprep.subr.bf16.mxu0 0
    %4213 = vmatpush2.bf16.msra.mxu0 0
    %4214 = vmatprep.subr.bf16.mxu0 0
    %4215 = vmatpush2.bf16.msra.mxu0 0
    %4216 = vmatprep.subr.bf16.mxu0 0
    %4217 = vmatpush2.bf16.msra.mxu0 0
    %4218 = vmatprep.subr.bf16.mxu0 0
    %4219 = vmatpush2.bf16.msra.mxu0 0
    %4220 = vmatprep.subr.bf16.mxu0 %v4008
    %4221 = vmatpush2.bf16.msra.mxu0 %v4007
    %4222 = vmatprep.subr.bf16.mxu0 %v4000
    %4223 = vmatpush2.bf16.msra.mxu0 %v3999
    %4224 = vmatprep.subr.bf16.mxu0 %v3992
    %4225 = vmatpush2.bf16.msra.mxu0 %v3991
    %4226 = vmatprep.subr.bf16.mxu0 %v3984
    %4227 = vmatpush2.bf16.msra.mxu0 %v3983
    %4228 = vmatprep.mubr.bf16.mxu0 %v4108
    %4229 = vmatmul.mubr.bf16.gmra.mxu0 %v3487
    %v4230 = vpop.f32.mrf.mxu0
    %v4231 = vadd.f32 %v3606, %v4230
    %v4232 = vpop.f32.mrf.mxu0
    %v4233 = vadd.f32 %v3610, %v4232
    %v4234 = vpop.f32.mrf.mxu0
    %v4235 = vadd.f32 %v3606, %v4234
    %v4236 = vpop.f32.mrf.mxu0
    %v4237 = vadd.f32 %v3610, %v4236
    %4238 = vdwg.mxu0
    %4239 = vmatprep.subr.bf16.mxu0 %v3978
    %4240 = vmatpush1.bf16.msra.mxu0 %v3977
    %4241 = vmatprep.subr.bf16.mxu0 %v3970
    %4242 = vmatpush1.bf16.msra.mxu0 %v3969
    %4243 = vmatprep.subr.bf16.mxu0 %v3962
    %4244 = vmatpush1.bf16.msra.mxu0 %v3961
    %4245 = vmatprep.subr.bf16.mxu0 %v3954
    %4246 = vmatpush1.bf16.msra.mxu0 %v3953
    %4247 = vmatprep.subr.bf16.mxu0 %v3946
    %4248 = vmatpush1.bf16.msra.mxu0 %v3945
    %4249 = vmatprep.subr.bf16.mxu0 %v3938
    %4250 = vmatpush1.bf16.msra.mxu0 %v3937
    %4251 = vmatprep.subr.bf16.mxu0 %v3930
    %4252 = vmatpush1.bf16.msra.mxu0 %v3929
    %4253 = vmatprep.subr.bf16.mxu0 %v3922
    %4254 = vmatpush1.bf16.msra.mxu0 %v3921
    %4255 = vmatprep.subr.bf16.mxu0 0
    %4256 = vmatpush2.bf16.msra.mxu0 0
    %4257 = vmatprep.subr.bf16.mxu0 0
    %4258 = vmatpush2.bf16.msra.mxu0 0
    %4259 = vmatprep.subr.bf16.mxu0 0
    %4260 = vmatpush2.bf16.msra.mxu0 0
    %4261 = vmatprep.subr.bf16.mxu0 0
    %4262 = vmatpush2.bf16.msra.mxu0 0
    %4263 = vmatprep.subr.bf16.mxu0 %v4010
    %4264 = vmatpush2.bf16.msra.mxu0 %v4009
    %4265 = vmatprep.subr.bf16.mxu0 %v4002
    %4266 = vmatpush2.bf16.msra.mxu0 %v4001
    %4267 = vmatprep.subr.bf16.mxu0 %v3994
    %4268 = vmatpush2.bf16.msra.mxu0 %v3993
    %4269 = vmatprep.subr.bf16.mxu0 %v3986
    %4270 = vmatpush2.bf16.msra.mxu0 %v3985
    %4271 = vmatprep.mubr.bf16.mxu0 %v4108
    %4272 = vmatmul.mubr.bf16.gmra.mxu0 %v3487
    %v4273 = vpop.f32.mrf.mxu0
    %v4274 = vadd.f32 %v3614, %v4273
    %v4275 = vpop.f32.mrf.mxu0
    %v4276 = vadd.f32 %v3618, %v4275
    %v4277 = vpop.f32.mrf.mxu0
    %v4278 = vadd.f32 %v3614, %v4277
    %v4279 = vpop.f32.mrf.mxu0
    %v4280 = vadd.f32 %v3618, %v4279
    %4281 = vdwg.mxu0
    %v4282 = vmax.f32 %v4145, 0.0
    %v4283 = vmax.f32 %v4147, 0.0
    %v4284 = vmax.f32 %v4188, 0.0
    %v4285 = vmax.f32 %v4190, 0.0
    %v4286 = vmax.f32 %v4231, 0.0
    %v4287 = vmax.f32 %v4233, 0.0
    %v4288 = vmax.f32 %v4274, 0.0
    %v4289 = vmax.f32 %v4276, 0.0
    %v4290 = vmax.f32 %v4149, 0.0
    %v4291 = vmax.f32 %v4151, 0.0
    %v4292 = vmax.f32 %v4192, 0.0
    %v4293 = vmax.f32 %v4194, 0.0
    %v4294 = vmax.f32 %v4235, 0.0
    %v4295 = vmax.f32 %v4237, 0.0
    %v4296 = vmax.f32 %v4278, 0.0
    %v4297 = vmax.f32 %v4280, 0.0
    %4298 = vst [vmem:[%s59] sm:$0xff] %v4282
    %4299 = vst [vmem:[%s59 + $0x8] sm:$0xff] %v4283
    %4300 = vst [vmem:[%s59 + $0x10] sm:$0xff] %v4284
    %4301 = vst [vmem:[%s59 + $0x18] sm:$0xff] %v4285
    %4302 = vst [vmem:[%s59 + $0x20] sm:$0xff] %v4286
    %4303 = vst [vmem:[%s59 + $0x28] sm:$0xff] %v4287
    %4304 = vst [vmem:[%s59 + $0x30] sm:$0xff] %v4288
    %4305 = vst [vmem:[%s59 + $0x38] sm:$0xff] %v4289
    %4306 = vst [vmem:[%s59 + $0x40] sm:$0xff] %v4290
    %4307 = vst [vmem:[%s59 + $0x48] sm:$0xff] %v4291
    %4308 = vst [vmem:[%s59 + $0x50] sm:$0xff] %v4292
    %4309 = vst [vmem:[%s59 + $0x58] sm:$0xff] %v4293
    %4310 = vst [vmem:[%s59 + $0x60] sm:$0xff] %v4294
    %4311 = vst [vmem:[%s59 + $0x68] sm:$0xff] %v4295
    %4312 = vst [vmem:[%s59 + $0x70] sm:$0xff] %v4296
    %4313 = vst [vmem:[%s59 + $0x78] sm:$0xff] %v4297
    %v4314 = vsel %vm3141, %v2975, 0.0
    %4315 = vadd.xlane.f32.xlu0 %v4314
    %v4316 = vpop.xlane.xlu0 %4315
    %v4317 = vsel %vm3141, %v2976, 0.0
    %4318 = vadd.xlane.f32.xlu0 %v4317
    %v4319 = vpop.xlane.xlu0 %4318
    %v4320 = vsel %vm3141, %v2977, 0.0
    %4321 = vadd.xlane.f32.xlu0 %v4320
    %v4322 = vpop.xlane.xlu0 %4321
    %v4323 = vsel %vm3141, %v2978, 0.0
    %4324 = vadd.xlane.f32.xlu0 %v4323
    %v4325 = vpop.xlane.xlu0 %4324
    %v4326 = vsel %vm3141, %v2979, 0.0
    %4327 = vadd.xlane.f32.xlu0 %v4326
    %v4328 = vpop.xlane.xlu0 %4327
    %v4329 = vsel %vm3141, %v2980, 0.0
    %4330 = vadd.xlane.f32.xlu0 %v4329
    %v4331 = vpop.xlane.xlu0 %4330
    %v4332 = vsel %vm3141, %v2981, 0.0
    %4333 = vadd.xlane.f32.xlu0 %v4332
    %v4334 = vpop.xlane.xlu0 %4333
    %v4335 = vsel %vm3141, %v2982, 0.0
    %4336 = vadd.xlane.f32.xlu0 %v4335
    %v4337 = vpop.xlane.xlu0 %4336
    %v4338 = vsel %vm3141, %v2983, 0.0
    %4339 = vadd.xlane.f32.xlu0 %v4338
    %v4340 = vpop.xlane.xlu0 %4339
    %v4341 = vsel %vm3141, %v2984, 0.0
    %4342 = vadd.xlane.f32.xlu0 %v4341
    %v4343 = vpop.xlane.xlu0 %4342
    %v4344 = vsel %vm3141, %v2985, 0.0
    %4345 = vadd.xlane.f32.xlu0 %v4344
    %v4346 = vpop.xlane.xlu0 %4345
    %v4347 = vsel %vm3141, %v2986, 0.0
    %4348 = vadd.xlane.f32.xlu0 %v4347
    %v4349 = vpop.xlane.xlu0 %4348
    %v4350 = vsel %vm3141, %v2987, 0.0
    %4351 = vadd.xlane.f32.xlu0 %v4350
    %v4352 = vpop.xlane.xlu0 %4351
    %v4353 = vsel %vm3141, %v2988, 0.0
    %4354 = vadd.xlane.f32.xlu0 %v4353
    %v4355 = vpop.xlane.xlu0 %4354
    %v4356 = vsel %vm3141, %v2989, 0.0
    %4357 = vadd.xlane.f32.xlu0 %v4356
    %v4358 = vpop.xlane.xlu0 %4357
    %v4359 = vsel %vm3141, %v2990, 0.0
    %4360 = vadd.xlane.f32.xlu0 %v4359
    %v4361 = vpop.xlane.xlu0 %4360
    %v4362 = vsel %vm3141, %v2991, 0.0
    %4363 = vadd.xlane.f32.xlu0 %v4362
    %v4364 = vpop.xlane.xlu0 %4363
    %v4365 = vsel %vm3141, %v2992, 0.0
    %4366 = vadd.xlane.f32.xlu0 %v4365
    %v4367 = vpop.xlane.xlu0 %4366
    %v4368 = vsel %vm3141, %v2993, 0.0
    %4369 = vadd.xlane.f32.xlu0 %v4368
    %v4370 = vpop.xlane.xlu0 %4369
    %v4371 = vsel %vm3141, %v2994, 0.0
    %4372 = vadd.xlane.f32.xlu0 %v4371
    %v4373 = vpop.xlane.xlu0 %4372
    %v4374 = vsel %vm3141, %v2995, 0.0
    %4375 = vadd.xlane.f32.xlu0 %v4374
    %v4376 = vpop.xlane.xlu0 %4375
    %v4377 = vsel %vm3141, %v2996, 0.0
    %4378 = vadd.xlane.f32.xlu0 %v4377
    %v4379 = vpop.xlane.xlu0 %4378
    %v4380 = vsel %vm3141, %v2997, 0.0
    %4381 = vadd.xlane.f32.xlu0 %v4380
    %v4382 = vpop.xlane.xlu0 %4381
    %v4383 = vsel %vm3141, %v2998, 0.0
    %4384 = vadd.xlane.f32.xlu0 %v4383
    %v4385 = vpop.xlane.xlu0 %4384
    %v4386 = vsel %vm3141, %v2999, 0.0
    %4387 = vadd.xlane.f32.xlu0 %v4386
    %v4388 = vpop.xlane.xlu0 %4387
    %v4389 = vsel %vm3141, %v3000, 0.0
    %4390 = vadd.xlane.f32.xlu0 %v4389
    %v4391 = vpop.xlane.xlu0 %4390
    %v4392 = vsel %vm3141, %v3001, 0.0
    %4393 = vadd.xlane.f32.xlu0 %v4392
    %v4394 = vpop.xlane.xlu0 %4393
    %v4395 = vsel %vm3141, %v3002, 0.0
    %4396 = vadd.xlane.f32.xlu0 %v4395
    %v4397 = vpop.xlane.xlu0 %4396
    %v4398 = vsel %vm3141, %v3003, 0.0
    %4399 = vadd.xlane.f32.xlu0 %v4398
    %v4400 = vpop.xlane.xlu0 %4399
    %v4401 = vsel %vm3141, %v3004, 0.0
    %4402 = vadd.xlane.f32.xlu0 %v4401
    %v4403 = vpop.xlane.xlu0 %4402
    %v4404 = vsel %vm3141, %v3005, 0.0
    %4405 = vadd.xlane.f32.xlu0 %v4404
    %v4406 = vpop.xlane.xlu0 %4405
    %v4407 = vsel %vm3141, %v3006, 0.0
    %4408 = vadd.xlane.f32.xlu0 %v4407
    %v4409 = vpop.xlane.xlu0 %4408
    %v4410 = vsel %vm3399, %v3271, 0.0
    %4411 = vadd.xlane.f32.xlu0 %v4410
    %v4412 = vpop.xlane.xlu0 %4411
    %v4413 = vsel %vm3399, %v3272, 0.0
    %4414 = vadd.xlane.f32.xlu0 %v4413
    %v4415 = vpop.xlane.xlu0 %4414
    %v4416 = vsel %vm3399, %v3273, 0.0
    %4417 = vadd.xlane.f32.xlu0 %v4416
    %v4418 = vpop.xlane.xlu0 %4417
    %v4419 = vsel %vm3399, %v3274, 0.0
    %4420 = vadd.xlane.f32.xlu0 %v4419
    %v4421 = vpop.xlane.xlu0 %4420
    %v4422 = vsel %vm3399, %v3275, 0.0
    %4423 = vadd.xlane.f32.xlu0 %v4422
    %v4424 = vpop.xlane.xlu0 %4423
    %v4425 = vsel %vm3399, %v3276, 0.0
    %4426 = vadd.xlane.f32.xlu0 %v4425
    %v4427 = vpop.xlane.xlu0 %4426
    %v4428 = vsel %vm3399, %v3277, 0.0
    %4429 = vadd.xlane.f32.xlu0 %v4428
    %v4430 = vpop.xlane.xlu0 %4429
    %v4431 = vsel %vm3399, %v3278, 0.0
    %4432 = vadd.xlane.f32.xlu0 %v4431
    %v4433 = vpop.xlane.xlu0 %4432
    %v4434 = vsel %vm3281, %v3484, 0.0
    %v4435 = vadd.f32 %v3483, %v4434
    %4436 = vadd.xlane.f32.xlu0 %v4435
    %v4437 = vpop.xlane.xlu0 %4436
    %v4438 = vsel %vm3281, %v3486, 0.0
    %v4439 = vadd.f32 %v3485, %v4438
    %4440 = vadd.xlane.f32.xlu0 %v4439
    %v4441 = vpop.xlane.xlu0 %4440
    %v4442 = vld [vmem:[%s35] sm:$0xff]
    %v4443 = vld [vmem:[%s35 + $0x8] sm:$0xff]
    %v4444 = vld [vmem:[%s35 + $0x10] sm:$0xff]
    %v4445 = vld [vmem:[%s35 + $0x18] sm:$0xff]
    %v4446 = vld [vmem:[%s29] sm:$0xff]
    %v4447 = vld [vmem:[%s29 + $0x8] sm:$0xff]
    %v4448 = vld [vmem:[%s29 + $0x10] sm:$0xff]
    %v4449 = vld [vmem:[%s29 + $0x18] sm:$0xff]
    %v4450 = vld [vmem:[%s29 + $0x20] sm:$0xff]
    %v4451 = vld [vmem:[%s29 + $0x28] sm:$0xff]
    %v4452 = vld [vmem:[%s29 + $0x30] sm:$0xff]
    %v4453 = vld [vmem:[%s29 + $0x38] sm:$0xff]
    %v4454 = vld [vmem:[%s29 + $0x40] sm:$0xff]
    %v4455 = vld [vmem:[%s29 + $0x48] sm:$0xff]
    %v4456 = vld [vmem:[%s29 + $0x50] sm:$0xff]
    %v4457 = vld [vmem:[%s29 + $0x58] sm:$0xff]
    %v4458 = vld [vmem:[%s29 + $0x60] sm:$0xff]
    %v4459 = vld [vmem:[%s29 + $0x68] sm:$0xff]
    %v4460 = vld [vmem:[%s29 + $0x70] sm:$0xff]
    %v4461 = vld [vmem:[%s29 + $0x78] sm:$0xff]
    %v4462 = vld [vmem:[%s29 + $0x80] sm:$0xff]
    %v4463 = vld [vmem:[%s29 + $0x88] sm:$0xff]
    %v4464 = vld [vmem:[%s29 + $0x90] sm:$0xff]
    %v4465 = vld [vmem:[%s29 + $0x98] sm:$0xff]
    %v4466 = vld [vmem:[%s29 + $0xa0] sm:$0xff]
    %v4467 = vld [vmem:[%s29 + $0xa8] sm:$0xff]
    %v4468 = vld [vmem:[%s29 + $0xb0] sm:$0xff]
    %v4469 = vld [vmem:[%s29 + $0xb8] sm:$0xff]
    %v4470 = vld [vmem:[%s29 + $0xc0] sm:$0xff]
    %v4471 = vld [vmem:[%s29 + $0xc8] sm:$0xff]
    %v4472 = vld [vmem:[%s29 + $0xd0] sm:$0xff]
    %v4473 = vld [vmem:[%s29 + $0xd8] sm:$0xff]
    %v4474 = vld [vmem:[%s29 + $0xe0] sm:$0xff]
    %v4475 = vld [vmem:[%s29 + $0xe8] sm:$0xff]
    %v4476 = vld [vmem:[%s29 + $0xf0] sm:$0xff]
    %v4477 = vld [vmem:[%s29 + $0xf8] sm:$0xff]
    %v4478 = vld [vmem:[%s29 + $0x100] sm:$0xff]
    %v4479 = vld [vmem:[%s29 + $0x108] sm:$0xff]
    %v4480 = vld [vmem:[%s29 + $0x110] sm:$0xff]
    %v4481 = vld [vmem:[%s29 + $0x118] sm:$0xff]
    %v4482 = vld [vmem:[%s29 + $0x120] sm:$0xff]
    %v4483 = vld [vmem:[%s29 + $0x128] sm:$0xff]
    %v4484 = vld [vmem:[%s29 + $0x130] sm:$0xff]
    %v4485 = vld [vmem:[%s29 + $0x138] sm:$0xff]
    %v4486 = vld [vmem:[%s29 + $0x140] sm:$0xff]
    %v4487 = vld [vmem:[%s29 + $0x148] sm:$0xff]
    %v4488 = vld [vmem:[%s29 + $0x150] sm:$0xff]
    %v4489 = vld [vmem:[%s29 + $0x158] sm:$0xff]
    %v4490 = vld [vmem:[%s29 + $0x160] sm:$0xff]
    %v4491 = vld [vmem:[%s29 + $0x168] sm:$0xff]
    %v4492 = vld [vmem:[%s29 + $0x170] sm:$0xff]
    %v4493 = vld [vmem:[%s29 + $0x178] sm:$0xff]
    %v4494 = vld [vmem:[%s29 + $0x180] sm:$0xff]
    %v4495 = vld [vmem:[%s29 + $0x188] sm:$0xff]
    %v4496 = vld [vmem:[%s29 + $0x190] sm:$0xff]
    %v4497 = vld [vmem:[%s29 + $0x198] sm:$0xff]
    %v4498 = vld [vmem:[%s29 + $0x1a0] sm:$0xff]
    %v4499 = vld [vmem:[%s29 + $0x1a8] sm:$0xff]
    %v4500 = vld [vmem:[%s29 + $0x1b0] sm:$0xff]
    %v4501 = vld [vmem:[%s29 + $0x1b8] sm:$0xff]
    %v4502 = vld [vmem:[%s29 + $0x1c0] sm:$0xff]
    %v4503 = vld [vmem:[%s29 + $0x1c8] sm:$0xff]
    %v4504 = vld [vmem:[%s29 + $0x1d0] sm:$0xff]
    %v4505 = vld [vmem:[%s29 + $0x1d8] sm:$0xff]
    %v4506 = vld [vmem:[%s29 + $0x1e0] sm:$0xff]
    %v4507 = vld [vmem:[%s29 + $0x1e8] sm:$0xff]
    %v4508 = vld [vmem:[%s29 + $0x1f0] sm:$0xff]
    %v4509 = vld [vmem:[%s29 + $0x1f8] sm:$0xff]
    %v4510 = vmul.f32 %v4316, %v4446
    %v4511 = vmul.f32 %v4316, %v4447
    %v4512 = vmul.f32 %v4319, %v4448
    %v4513 = vmul.f32 %v4319, %v4449
    %v4514 = vmul.f32 %v4322, %v4450
    %v4515 = vmul.f32 %v4322, %v4451
    %v4516 = vmul.f32 %v4325, %v4452
    %v4517 = vmul.f32 %v4325, %v4453
    %v4518 = vmul.f32 %v4328, %v4454
    %v4519 = vmul.f32 %v4328, %v4455
    %v4520 = vmul.f32 %v4331, %v4456
    %v4521 = vmul.f32 %v4331, %v4457
    %v4522 = vmul.f32 %v4334, %v4458
    %v4523 = vmul.f32 %v4334, %v4459
    %v4524 = vmul.f32 %v4337, %v4460
    %v4525 = vmul.f32 %v4337, %v4461
    %v4526 = vmul.f32 %v4340, %v4462
    %v4527 = vmul.f32 %v4340, %v4463
    %v4528 = vmul.f32 %v4343, %v4464
    %v4529 = vmul.f32 %v4343, %v4465
    %v4530 = vmul.f32 %v4346, %v4466
    %v4531 = vmul.f32 %v4346, %v4467
    %v4532 = vmul.f32 %v4349, %v4468
    %v4533 = vmul.f32 %v4349, %v4469
    %v4534 = vmul.f32 %v4352, %v4470
    %v4535 = vmul.f32 %v4352, %v4471
    %v4536 = vmul.f32 %v4355, %v4472
    %v4537 = vmul.f32 %v4355, %v4473
    %v4538 = vmul.f32 %v4358, %v4474
    %v4539 = vmul.f32 %v4358, %v4475
    %v4540 = vmul.f32 %v4361, %v4476
    %v4541 = vmul.f32 %v4361, %v4477
    %v4542 = vmul.f32 %v4364, %v4478
    %v4543 = vmul.f32 %v4364, %v4479
    %v4544 = vmul.f32 %v4367, %v4480
    %v4545 = vmul.f32 %v4367, %v4481
    %v4546 = vmul.f32 %v4370, %v4482
    %v4547 = vmul.f32 %v4370, %v4483
    %v4548 = vmul.f32 %v4373, %v4484
    %v4549 = vmul.f32 %v4373, %v4485
    %v4550 = vmul.f32 %v4376, %v4486
    %v4551 = vmul.f32 %v4376, %v4487
    %v4552 = vmul.f32 %v4379, %v4488
    %v4553 = vmul.f32 %v4379, %v4489
    %v4554 = vmul.f32 %v4382, %v4490
    %v4555 = vmul.f32 %v4382, %v4491
    %v4556 = vmul.f32 %v4385, %v4492
    %v4557 = vmul.f32 %v4385, %v4493
    %v4558 = vmul.f32 %v4388, %v4494
    %v4559 = vmul.f32 %v4388, %v4495
    %v4560 = vmul.f32 %v4391, %v4496
    %v4561 = vmul.f32 %v4391, %v4497
    %v4562 = vmul.f32 %v4394, %v4498
    %v4563 = vmul.f32 %v4394, %v4499
    %v4564 = vmul.f32 %v4397, %v4500
    %v4565 = vmul.f32 %v4397, %v4501
    %v4566 = vmul.f32 %v4400, %v4502
    %v4567 = vmul.f32 %v4400, %v4503
    %v4568 = vmul.f32 %v4403, %v4504
    %v4569 = vmul.f32 %v4403, %v4505
    %v4570 = vmul.f32 %v4406, %v4506
    %v4571 = vmul.f32 %v4406, %v4507
    %v4572 = vmul.f32 %v4409, %v4508
    %v4573 = vmul.f32 %v4409, %v4509
    %v4574 = vld [vmem:[%s37] sm:$0xff]
    %v4575 = vld [vmem:[%s37 + $0x8] sm:$0xff]
    %v4576 = vld [vmem:[%s31] sm:$0xff]
    %v4577 = vld [vmem:[%s31 + $0x8] sm:$0xff]
    %v4578 = vld [vmem:[%s31 + $0x10] sm:$0xff]
    %v4579 = vld [vmem:[%s31 + $0x18] sm:$0xff]
    %v4580 = vld [vmem:[%s31 + $0x20] sm:$0xff]
    %v4581 = vld [vmem:[%s31 + $0x28] sm:$0xff]
    %v4582 = vld [vmem:[%s31 + $0x30] sm:$0xff]
    %v4583 = vld [vmem:[%s31 + $0x38] sm:$0xff]
    %v4584 = vld [vmem:[%s31 + $0x40] sm:$0xff]
    %v4585 = vld [vmem:[%s31 + $0x48] sm:$0xff]
    %v4586 = vld [vmem:[%s31 + $0x50] sm:$0xff]
    %v4587 = vld [vmem:[%s31 + $0x58] sm:$0xff]
    %v4588 = vld [vmem:[%s31 + $0x60] sm:$0xff]
    %v4589 = vld [vmem:[%s31 + $0x68] sm:$0xff]
    %v4590 = vld [vmem:[%s31 + $0x70] sm:$0xff]
    %v4591 = vld [vmem:[%s31 + $0x78] sm:$0xff]
    %v4592 = vmul.f32 %v4412, %v4576
    %v4593 = vmul.f32 %v4412, %v4577
    %v4594 = vmul.f32 %v4415, %v4578
    %v4595 = vmul.f32 %v4415, %v4579
    %v4596 = vmul.f32 %v4418, %v4580
    %v4597 = vmul.f32 %v4418, %v4581
    %v4598 = vmul.f32 %v4421, %v4582
    %v4599 = vmul.f32 %v4421, %v4583
    %v4600 = vmul.f32 %v4424, %v4584
    %v4601 = vmul.f32 %v4424, %v4585
    %v4602 = vmul.f32 %v4427, %v4586
    %v4603 = vmul.f32 %v4427, %v4587
    %v4604 = vmul.f32 %v4430, %v4588
    %v4605 = vmul.f32 %v4430, %v4589
    %v4606 = vmul.f32 %v4433, %v4590
    %v4607 = vmul.f32 %v4433, %v4591
    %v4609 = vsel %vm3281, %v4574, 0
    %v4612 = vsel %vm3281, %v4575, 0
    %4614 = vmatprep.subr.mxu0 0.0
    %4615 = vmatpush1.msra.mxu0 0.0
    %4616 = vmatprep.subr.mxu0 0.0
    %4617 = vmatpush1.msra.mxu0 0.0
    %4618 = vmatprep.subr.mxu0 0.0
    %4619 = vmatpush1.msra.mxu0 0.0
    %4620 = vmatprep.subr.mxu0 0.0
    %4621 = vmatpush1.msra.mxu0 0.0
    %4622 = vmatprep.subr.mxu0 0.0
    %4623 = vmatpush1.msra.mxu0 0.0
    %4624 = vmatprep.subr.mxu0 0.0
    %4625 = vmatpush1.msra.mxu0 0.0
    %4626 = vmatprep.subr.mxu0 0.0
    %4627 = vmatpush1.msra.mxu0 0.0
    %4628 = vmatprep.subr.mxu0 0.0
    %4629 = vmatpush1.msra.mxu0 0.0
    %4630 = vmatprep.subr.mxu0 %v4607
    %4631 = vmatpush1.msra.mxu0 %v4606
    %4632 = vmatprep.subr.mxu0 %v4605
    %4633 = vmatpush1.msra.mxu0 %v4604
    %4634 = vmatprep.subr.mxu0 %v4603
    %4635 = vmatpush1.msra.mxu0 %v4602
    %4636 = vmatprep.subr.mxu0 %v4601
    %4637 = vmatpush1.msra.mxu0 %v4600
    %4638 = vmatprep.subr.mxu0 %v4599
    %4639 = vmatpush1.msra.mxu0 %v4598
    %4640 = vmatprep.subr.mxu0 %v4597
    %4641 = vmatpush1.msra.mxu0 %v4596
    %4642 = vmatprep.subr.mxu0 %v4595
    %4643 = vmatpush1.msra.mxu0 %v4594
    %4644 = vmatprep.subr.mxu0 %v4593
    %4645 = vmatpush1.msra.mxu0 %v4592
    %4646 = vmatprep.subr.mxu0 0.0
    %4647 = vmatpush2.msra.mxu0 0.0
    %4648 = vmatprep.subr.mxu0 0.0
    %4649 = vmatpush2.msra.mxu0 0.0
    %4650 = vmatprep.subr.mxu0 0.0
    %4651 = vmatpush2.msra.mxu0 0.0
    %4652 = vmatprep.subr.mxu0 0.0
    %4653 = vmatpush2.msra.mxu0 0.0
    %4654 = vmatprep.subr.mxu0 0.0
    %4655 = vmatpush2.msra.mxu0 0.0
    %4656 = vmatprep.subr.mxu0 0.0
    %4657 = vmatpush2.msra.mxu0 0.0
    %4658 = vmatprep.subr.mxu0 0.0
    %4659 = vmatpush2.msra.mxu0 0.0
    %4660 = vmatprep.subr.mxu0 0.0
    %4661 = vmatpush2.msra.mxu0 0.0
    %4662 = vmatprep.subr.mxu0 0.0
    %4663 = vmatpush2.msra.mxu0 0.0
    %4664 = vmatprep.subr.mxu0 0.0
    %4665 = vmatpush2.msra.mxu0 0.0
    %4666 = vmatprep.subr.mxu0 0.0
    %4667 = vmatpush2.msra.mxu0 0.0
    %4668 = vmatprep.subr.mxu0 0.0
    %4669 = vmatpush2.msra.mxu0 0.0
    %4670 = vmatprep.subr.mxu0 0.0
    %4671 = vmatpush2.msra.mxu0 0.0
    %4672 = vmatprep.subr.mxu0 0.0
    %4673 = vmatpush2.msra.mxu0 0.0
    %4674 = vmatprep.subr.mxu0 0.0
    %4675 = vmatpush2.msra.mxu0 0.0
    %4676 = vmatprep.subr.mxu0 0.0
    %4677 = vmatpush2.msra.mxu0 0.0
    %4678 = vmatprep.mubr.f32.mxu0 0.0
    %4679 = vmatmul.mubr.f32.gmra.mxu0 %v4609
    %v4680 = vpop.f32.mrf.mxu0
    %v4681 = vadd.f32 0.0, %v4680
    %v4682 = vpop.f32.mrf.mxu0
    %v4683 = vadd.f32 0.0, %v4682
    %4684 = vmatprep.mubr.f32.mxu0 0.0
    %4685 = vmatmul.mubr.f32.gmra.mxu0 %v4612
    %v4686 = vpop.f32.mrf.mxu0
    %v4687 = vadd.f32 0.0, %v4686
    %v4688 = vpop.f32.mrf.mxu0
    %v4689 = vadd.f32 0.0, %v4688
    %4690 = vdwg.mxu0
    %4691 = vmatprep.subr.mxu0 %v4541
    %4692 = vmatpush1.msra.mxu0 %v4540
    %4693 = vmatprep.subr.mxu0 %v4539
    %4694 = vmatpush1.msra.mxu0 %v4538
    %4695 = vmatprep.subr.mxu0 %v4537
    %4696 = vmatpush1.msra.mxu0 %v4536
    %4697 = vmatprep.subr.mxu0 %v4535
    %4698 = vmatpush1.msra.mxu0 %v4534
    %4699 = vmatprep.subr.mxu0 %v4533
    %4700 = vmatpush1.msra.mxu0 %v4532
    %4701 = vmatprep.subr.mxu0 %v4531
    %4702 = vmatpush1.msra.mxu0 %v4530
    %4703 = vmatprep.subr.mxu0 %v4529
    %4704 = vmatpush1.msra.mxu0 %v4528
    %4705 = vmatprep.subr.mxu0 %v4527
    %4706 = vmatpush1.msra.mxu0 %v4526
    %4707 = vmatprep.subr.mxu0 %v4525
    %4708 = vmatpush1.msra.mxu0 %v4524
    %4709 = vmatprep.subr.mxu0 %v4523
    %4710 = vmatpush1.msra.mxu0 %v4522
    %4711 = vmatprep.subr.mxu0 %v4521
    %4712 = vmatpush1.msra.mxu0 %v4520
    %4713 = vmatprep.subr.mxu0 %v4519
    %4714 = vmatpush1.msra.mxu0 %v4518
    %4715 = vmatprep.subr.mxu0 %v4517
    %4716 = vmatpush1.msra.mxu0 %v4516
    %4717 = vmatprep.subr.mxu0 %v4515
    %4718 = vmatpush1.msra.mxu0 %v4514
    %4719 = vmatprep.subr.mxu0 %v4513
    %4720 = vmatpush1.msra.mxu0 %v4512
    %4721 = vmatprep.subr.mxu0 %v4511
    %4722 = vmatpush1.msra.mxu0 %v4510
    %4723 = vmatprep.subr.mxu0 %v4573
    %4724 = vmatpush2.msra.mxu0 %v4572
    %4725 = vmatprep.subr.mxu0 %v4571
    %4726 = vmatpush2.msra.mxu0 %v4570
    %4727 = vmatprep.subr.mxu0 %v4569
    %4728 = vmatpush2.msra.mxu0 %v4568
    %4729 = vmatprep.subr.mxu0 %v4567
    %4730 = vmatpush2.msra.mxu0 %v4566
    %4731 = vmatprep.subr.mxu0 %v4565
    %4732 = vmatpush2.msra.mxu0 %v4564
    %4733 = vmatprep.subr.mxu0 %v4563
    %4734 = vmatpush2.msra.mxu0 %v4562
    %4735 = vmatprep.subr.mxu0 %v4561
    %4736 = vmatpush2.msra.mxu0 %v4560
    %4737 = vmatprep.subr.mxu0 %v4559
    %4738 = vmatpush2.msra.mxu0 %v4558
    %4739 = vmatprep.subr.mxu0 %v4557
    %4740 = vmatpush2.msra.mxu0 %v4556
    %4741 = vmatprep.subr.mxu0 %v4555
    %4742 = vmatpush2.msra.mxu0 %v4554
    %4743 = vmatprep.subr.mxu0 %v4553
    %4744 = vmatpush2.msra.mxu0 %v4552
    %4745 = vmatprep.subr.mxu0 %v4551
    %4746 = vmatpush2.msra.mxu0 %v4550
    %4747 = vmatprep.subr.mxu0 %v4549
    %4748 = vmatpush2.msra.mxu0 %v4548
    %4749 = vmatprep.subr.mxu0 %v4547
    %4750 = vmatpush2.msra.mxu0 %v4546
    %4751 = vmatprep.subr.mxu0 %v4545
    %4752 = vmatpush2.msra.mxu0 %v4544
    %4753 = vmatprep.subr.mxu0 %v4543
    %4754 = vmatpush2.msra.mxu0 %v4542
    %4755 = vmatprep.mubr.f32.mxu0 %v4443
    %4756 = vmatmul.mubr.f32.gmra.mxu0 %v4442
    %v4757 = vpop.f32.mrf.mxu0
    %v4758 = vadd.f32 %v4681, %v4757
    %v4759 = vpop.f32.mrf.mxu0
    %v4760 = vadd.f32 %v4683, %v4759
    %4761 = vmatprep.mubr.f32.mxu0 %v4445
    %4762 = vmatmul.mubr.f32.gmra.mxu0 %v4444
    %v4763 = vpop.f32.mrf.mxu0
    %v4764 = vadd.f32 %v4687, %v4763
    %v4765 = vpop.f32.mrf.mxu0
    %v4766 = vadd.f32 %v4689, %v4765
    %4767 = vdwg.mxu0
    %v4768 = vld [vmem:[%s39] sm:$0xff]
    %v4769 = vld [vmem:[%s39 + $0x8] sm:$0xff]
    %v4770 = vld [vmem:[%s33] sm:$0xff]
    %v4771 = vld [vmem:[%s33 + $0x8] sm:$0xff]
    %v4772 = vld [vmem:[%s33 + $0x10] sm:$0xff]
    %v4773 = vld [vmem:[%s33 + $0x18] sm:$0xff]
    %v4774 = vmul.f32 %v4437, %v4770
    %v4775 = vmul.f32 %v4437, %v4771
    %v4776 = vmul.f32 %v4441, %v4772
    %v4777 = vmul.f32 %v4441, %v4773
    %vm4778 = vcmask 130048
    %v4780 = vsel %vm4778, %v4768, 0
    %v4783 = vsel %vm4778, %v4769, 0
    %4785 = vmatprep.subr.mxu0 0.0
    %4786 = vmatpush1.msra.mxu0 0.0
    %4787 = vmatprep.subr.mxu0 0.0
    %4788 = vmatpush1.msra.mxu0 0.0
    %4789 = vmatprep.subr.mxu0 0.0
    %4790 = vmatpush1.msra.mxu0 0.0
    %4791 = vmatprep.subr.mxu0 0.0
    %4792 = vmatpush1.msra.mxu0 0.0
    %4793 = vmatprep.subr.mxu0 0.0
    %4794 = vmatpush1.msra.mxu0 0.0
    %4795 = vmatprep.subr.mxu0 0.0
    %4796 = vmatpush1.msra.mxu0 0.0
    %4797 = vmatprep.subr.mxu0 0.0
    %4798 = vmatpush1.msra.mxu0 0.0
    %4799 = vmatprep.subr.mxu0 0.0
    %4800 = vmatpush1.msra.mxu0 0.0
    %4801 = vmatprep.subr.mxu0 0.0
    %4802 = vmatpush1.msra.mxu0 0.0
    %4803 = vmatprep.subr.mxu0 0.0
    %4804 = vmatpush1.msra.mxu0 0.0
    %4805 = vmatprep.subr.mxu0 0.0
    %4806 = vmatpush1.msra.mxu0 0.0
    %4807 = vmatprep.subr.mxu0 0.0
    %4808 = vmatpush1.msra.mxu0 0.0
    %4809 = vmatprep.subr.mxu0 0.0
    %4810 = vmatpush1.msra.mxu0 0.0
    %4811 = vmatprep.subr.mxu0 0.0
    %4812 = vmatpush1.msra.mxu0 0.0
    %4813 = vmatprep.subr.mxu0 %v4777
    %4814 = vmatpush1.msra.mxu0 %v4776
    %4815 = vmatprep.subr.mxu0 %v4775
    %4816 = vmatpush1.msra.mxu0 %v4774
    %4817 = vmatprep.subr.mxu0 0.0
    %4818 = vmatpush2.msra.mxu0 0.0
    %4819 = vmatprep.subr.mxu0 0.0
    %4820 = vmatpush2.msra.mxu0 0.0
    %4821 = vmatprep.subr.mxu0 0.0
    %4822 = vmatpush2.msra.mxu0 0.0
    %4823 = vmatprep.subr.mxu0 0.0
    %4824 = vmatpush2.msra.mxu0 0.0
    %4825 = vmatprep.subr.mxu0 0.0
    %4826 = vmatpush2.msra.mxu0 0.0
    %4827 = vmatprep.subr.mxu0 0.0
    %4828 = vmatpush2.msra.mxu0 0.0
    %4829 = vmatprep.subr.mxu0 0.0
    %4830 = vmatpush2.msra.mxu0 0.0
    %4831 = vmatprep.subr.mxu0 0.0
    %4832 = vmatpush2.msra.mxu0 0.0
    %4833 = vmatprep.subr.mxu0 0.0
    %4834 = vmatpush2.msra.mxu0 0.0
    %4835 = vmatprep.subr.mxu0 0.0
    %4836 = vmatpush2.msra.mxu0 0.0
    %4837 = vmatprep.subr.mxu0 0.0
    %4838 = vmatpush2.msra.mxu0 0.0
    %4839 = vmatprep.subr.mxu0 0.0
    %4840 = vmatpush2.msra.mxu0 0.0
    %4841 = vmatprep.subr.mxu0 0.0
    %4842 = vmatpush2.msra.mxu0 0.0
    %4843 = vmatprep.subr.mxu0 0.0
    %4844 = vmatpush2.msra.mxu0 0.0
    %4845 = vmatprep.subr.mxu0 0.0
    %4846 = vmatpush2.msra.mxu0 0.0
    %4847 = vmatprep.subr.mxu0 0.0
    %4848 = vmatpush2.msra.mxu0 0.0
    %4849 = vmatprep.mubr.f32.mxu0 0.0
    %4850 = vmatmul.mubr.f32.gmra.mxu0 %v4780
    %v4851 = vpop.f32.mrf.mxu0
    %v4852 = vadd.f32 0.0, %v4851
    %v4853 = vpop.f32.mrf.mxu0
    %v4854 = vadd.f32 0.0, %v4853
    %4855 = vmatprep.mubr.f32.mxu0 0.0
    %4856 = vmatmul.mubr.f32.gmra.mxu0 %v4783
    %v4857 = vpop.f32.mrf.mxu0
    %v4858 = vadd.f32 0.0, %v4857
    %v4859 = vpop.f32.mrf.mxu0
    %v4860 = vadd.f32 0.0, %v4859
    %4861 = vdwg.mxu0
    %v4862 = vadd.f32 %v4758, %v4852
    %v4863 = vadd.f32 %v4760, %v4854
    %v4864 = vadd.f32 %v4764, %v4858
    %v4865 = vadd.f32 %v4766, %v4860
    %v4866 = vmin.f32 %v4862, %v4863
    %4867 = vmin.xlane.f32.xlu0 %v4866
    %v4868 = vpop.xlane.xlu0 %4867
    %v4869 = vmin.f32 %v4864, %v4865
    %4870 = vmin.xlane.f32.xlu0 %v4869
    %v4871 = vpop.xlane.xlu0 %4870
    %v4872 = vmax.f32 %v4862, %v4863
    %4873 = vmax.xlane.f32.xlu0 %v4872
    %v4874 = vpop.xlane.xlu0 %4873
    %v4875 = vmax.f32 %v4864, %v4865
    %4876 = vmax.xlane.f32.xlu0 %v4875
    %v4877 = vpop.xlane.xlu0 %4876
    %v4878 = vsub.f32 %v4862, %v4868
    %v4879 = vsub.f32 %v4863, %v4868
    %v4880 = vsub.f32 %v4864, %v4871
    %v4881 = vsub.f32 %v4865, %v4871
    %v4882 = vsub.f32 %v4874, %v4868
    %v4883 = vsub.f32 %v4877, %v4871
    %v4884 = vadd.f32 %v4882, 0.0001
    %v4885 = vadd.f32 %v4883, 0.0001
    %v4886 = vrcp.pop %v4884
    %v4887 = vmul.f32 %v4878, %v4886
    %v4888 = vmul.f32 %v4879, %v4886
    %v4889 = vrcp.pop %v4885
    %v4890 = vmul.f32 %v4880, %v4889
    %v4891 = vmul.f32 %v4881, %v4889
    %4892 = vst [vmem:[%s63] sm:$0xff] %v4887
    %4893 = vst [vmem:[%s63 + $0x8] sm:$0xff] %v4888
    %4894 = vst [vmem:[%s63 + $0x10] sm:$0xff] %v4890
    %4895 = vst [vmem:[%s63 + $0x18] sm:$0xff] %v4891
    %v4896 = vld [vmem:[%s41] sm:$0xff]
    %v4897 = vld [vmem:[%s41 + $0x8] sm:$0xff]
    %v4899 = vsel %vm4778, %v4896, 0
    %v4902 = vsel %vm4778, %v4897, 0
    %4904 = vmatprep.subr.mxu0 0.0
    %4905 = vmatpush1.msra.mxu0 0.0
    %4906 = vmatprep.subr.mxu0 0.0
    %4907 = vmatpush1.msra.mxu0 0.0
    %4908 = vmatprep.subr.mxu0 0.0
    %4909 = vmatpush1.msra.mxu0 0.0
    %4910 = vmatprep.subr.mxu0 0.0
    %4911 = vmatpush1.msra.mxu0 0.0
    %4912 = vmatprep.subr.mxu0 0.0
    %4913 = vmatpush1.msra.mxu0 0.0
    %4914 = vmatprep.subr.mxu0 0.0
    %4915 = vmatpush1.msra.mxu0 0.0
    %4916 = vmatprep.subr.mxu0 0.0
    %4917 = vmatpush1.msra.mxu0 0.0
    %4918 = vmatprep.subr.mxu0 0.0
    %4919 = vmatpush1.msra.mxu0 0.0
    %4920 = vmatprep.subr.mxu0 0.0
    %4921 = vmatpush1.msra.mxu0 0.0
    %4922 = vmatprep.subr.mxu0 0.0
    %4923 = vmatpush1.msra.mxu0 0.0
    %4924 = vmatprep.subr.mxu0 0.0
    %4925 = vmatpush1.msra.mxu0 0.0
    %4926 = vmatprep.subr.mxu0 0.0
    %4927 = vmatpush1.msra.mxu0 0.0
    %4928 = vmatprep.subr.mxu0 0.0
    %4929 = vmatpush1.msra.mxu0 0.0
    %4930 = vmatprep.subr.mxu0 0.0
    %4931 = vmatpush1.msra.mxu0 0.0
    %4932 = vmatprep.subr.mxu0 %v4291
    %4933 = vmatpush1.msra.mxu0 %v4290
    %4934 = vmatprep.subr.mxu0 %v4283
    %4935 = vmatpush1.msra.mxu0 %v4282
    %4936 = vmatprep.subr.mxu0 0.0
    %4937 = vmatpush2.msra.mxu0 0.0
    %4938 = vmatprep.subr.mxu0 0.0
    %4939 = vmatpush2.msra.mxu0 0.0
    %4940 = vmatprep.subr.mxu0 0.0
    %4941 = vmatpush2.msra.mxu0 0.0
    %4942 = vmatprep.subr.mxu0 0.0
    %4943 = vmatpush2.msra.mxu0 0.0
    %4944 = vmatprep.subr.mxu0 0.0
    %4945 = vmatpush2.msra.mxu0 0.0
    %4946 = vmatprep.subr.mxu0 0.0
    %4947 = vmatpush2.msra.mxu0 0.0
    %4948 = vmatprep.subr.mxu0 0.0
    %4949 = vmatpush2.msra.mxu0 0.0
    %4950 = vmatprep.subr.mxu0 0.0
    %4951 = vmatpush2.msra.mxu0 0.0
    %4952 = vmatprep.subr.mxu0 0.0
    %4953 = vmatpush2.msra.mxu0 0.0
    %4954 = vmatprep.subr.mxu0 0.0
    %4955 = vmatpush2.msra.mxu0 0.0
    %4956 = vmatprep.subr.mxu0 0.0
    %4957 = vmatpush2.msra.mxu0 0.0
    %4958 = vmatprep.subr.mxu0 0.0
    %4959 = vmatpush2.msra.mxu0 0.0
    %4960 = vmatprep.subr.mxu0 0.0
    %4961 = vmatpush2.msra.mxu0 0.0
    %4962 = vmatprep.subr.mxu0 0.0
    %4963 = vmatpush2.msra.mxu0 0.0
    %4964 = vmatprep.subr.mxu0 0.0
    %4965 = vmatpush2.msra.mxu0 0.0
    %4966 = vmatprep.subr.mxu0 0.0
    %4967 = vmatpush2.msra.mxu0 0.0
    %4968 = vmatprep.mubr.f32.mxu0 0.0
    %4969 = vmatmul.mubr.f32.gmra.mxu0 %v4899
    %v4970 = vpop.f32.mrf.mxu0
    %v4971 = vadd.f32 0.0, %v4970
    %v4972 = vpop.f32.mrf.mxu0
    %v4973 = vadd.f32 0.0, %v4972
    %4974 = vmatprep.mubr.f32.mxu0 0.0
    %4975 = vmatmul.mubr.f32.gmra.mxu0 %v4902
    %v4976 = vpop.f32.mrf.mxu0
    %v4977 = vadd.f32 0.0, %v4976
    %v4978 = vpop.f32.mrf.mxu0
    %v4979 = vadd.f32 0.0, %v4978
    %4980 = vdwg.mxu0
    %4981 = vmatprep.subr.mxu0 0.0
    %4982 = vmatpush1.msra.mxu0 0.0
    %4983 = vmatprep.subr.mxu0 0.0
    %4984 = vmatpush1.msra.mxu0 0.0
    %4985 = vmatprep.subr.mxu0 0.0
    %4986 = vmatpush1.msra.mxu0 0.0
    %4987 = vmatprep.subr.mxu0 0.0
    %4988 = vmatpush1.msra.mxu0 0.0
    %4989 = vmatprep.subr.mxu0 0.0
    %4990 = vmatpush1.msra.mxu0 0.0
    %4991 = vmatprep.subr.mxu0 0.0
    %4992 = vmatpush1.msra.mxu0 0.0
    %4993 = vmatprep.subr.mxu0 0.0
    %4994 = vmatpush1.msra.mxu0 0.0
    %4995 = vmatprep.subr.mxu0 0.0
    %4996 = vmatpush1.msra.mxu0 0.0
    %4997 = vmatprep.subr.mxu0 0.0
    %4998 = vmatpush1.msra.mxu0 0.0
    %4999 = vmatprep.subr.mxu0 0.0
    %5000 = vmatpush1.msra.mxu0 0.0
    %5001 = vmatprep.subr.mxu0 0.0
    %5002 = vmatpush1.msra.mxu0 0.0
    %5003 = vmatprep.subr.mxu0 0.0
    %5004 = vmatpush1.msra.mxu0 0.0
    %5005 = vmatprep.subr.mxu0 0.0
    %5006 = vmatpush1.msra.mxu0 0.0
    %5007 = vmatprep.subr.mxu0 0.0
    %5008 = vmatpush1.msra.mxu0 0.0
    %5009 = vmatprep.subr.mxu0 %v4293
    %5010 = vmatpush1.msra.mxu0 %v4292
    %5011 = vmatprep.subr.mxu0 %v4285
    %5012 = vmatpush1.msra.mxu0 %v4284
    %5013 = vmatprep.subr.mxu0 0.0
    %5014 = vmatpush2.msra.mxu0 0.0
    %5015 = vmatprep.subr.mxu0 0.0
    %5016 = vmatpush2.msra.mxu0 0.0
    %5017 = vmatprep.subr.mxu0 0.0
    %5018 = vmatpush2.msra.mxu0 0.0
    %5019 = vmatprep.subr.mxu0 0.0
    %5020 = vmatpush2.msra.mxu0 0.0
    %5021 = vmatprep.subr.mxu0 0.0
    %5022 = vmatpush2.msra.mxu0 0.0
    %5023 = vmatprep.subr.mxu0 0.0
    %5024 = vmatpush2.msra.mxu0 0.0
    %5025 = vmatprep.subr.mxu0 0.0
    %5026 = vmatpush2.msra.mxu0 0.0
    %5027 = vmatprep.subr.mxu0 0.0
    %5028 = vmatpush2.msra.mxu0 0.0
    %5029 = vmatprep.subr.mxu0 0.0
    %5030 = vmatpush2.msra.mxu0 0.0
    %5031 = vmatprep.subr.mxu0 0.0
    %5032 = vmatpush2.msra.mxu0 0.0
    %5033 = vmatprep.subr.mxu0 0.0
    %5034 = vmatpush2.msra.mxu0 0.0
    %5035 = vmatprep.subr.mxu0 0.0
    %5036 = vmatpush2.msra.mxu0 0.0
    %5037 = vmatprep.subr.mxu0 0.0
    %5038 = vmatpush2.msra.mxu0 0.0
    %5039 = vmatprep.subr.mxu0 0.0
    %5040 = vmatpush2.msra.mxu0 0.0
    %5041 = vmatprep.subr.mxu0 0.0
    %5042 = vmatpush2.msra.mxu0 0.0
    %5043 = vmatprep.subr.mxu0 0.0
    %5044 = vmatpush2.msra.mxu0 0.0
    %5045 = vmatprep.mubr.f32.mxu0 0.0
    %5046 = vmatmul.mubr.f32.gmra.mxu0 %v4899
    %v5047 = vpop.f32.mrf.mxu0
    %v5048 = vadd.f32 0.0, %v5047
    %v5049 = vpop.f32.mrf.mxu0
    %v5050 = vadd.f32 0.0, %v5049
    %5051 = vmatprep.mubr.f32.mxu0 0.0
    %5052 = vmatmul.mubr.f32.gmra.mxu0 %v4902
    %v5053 = vpop.f32.mrf.mxu0
    %v5054 = vadd.f32 0.0, %v5053
    %v5055 = vpop.f32.mrf.mxu0
    %v5056 = vadd.f32 0.0, %v5055
    %5057 = vdwg.mxu0
    %5058 = vmatprep.subr.mxu0 0.0
    %5059 = vmatpush1.msra.mxu0 0.0
    %5060 = vmatprep.subr.mxu0 0.0
    %5061 = vmatpush1.msra.mxu0 0.0
    %5062 = vmatprep.subr.mxu0 0.0
    %5063 = vmatpush1.msra.mxu0 0.0
    %5064 = vmatprep.subr.mxu0 0.0
    %5065 = vmatpush1.msra.mxu0 0.0
    %5066 = vmatprep.subr.mxu0 0.0
    %5067 = vmatpush1.msra.mxu0 0.0
    %5068 = vmatprep.subr.mxu0 0.0
    %5069 = vmatpush1.msra.mxu0 0.0
    %5070 = vmatprep.subr.mxu0 0.0
    %5071 = vmatpush1.msra.mxu0 0.0
    %5072 = vmatprep.subr.mxu0 0.0
    %5073 = vmatpush1.msra.mxu0 0.0
    %5074 = vmatprep.subr.mxu0 0.0
    %5075 = vmatpush1.msra.mxu0 0.0
    %5076 = vmatprep.subr.mxu0 0.0
    %5077 = vmatpush1.msra.mxu0 0.0
    %5078 = vmatprep.subr.mxu0 0.0
    %5079 = vmatpush1.msra.mxu0 0.0
    %5080 = vmatprep.subr.mxu0 0.0
    %5081 = vmatpush1.msra.mxu0 0.0
    %5082 = vmatprep.subr.mxu0 0.0
    %5083 = vmatpush1.msra.mxu0 0.0
    %5084 = vmatprep.subr.mxu0 0.0
    %5085 = vmatpush1.msra.mxu0 0.0
    %5086 = vmatprep.subr.mxu0 %v4295
    %5087 = vmatpush1.msra.mxu0 %v4294
    %5088 = vmatprep.subr.mxu0 %v4287
    %5089 = vmatpush1.msra.mxu0 %v4286
    %5090 = vmatprep.subr.mxu0 0.0
    %5091 = vmatpush2.msra.mxu0 0.0
    %5092 = vmatprep.subr.mxu0 0.0
    %5093 = vmatpush2.msra.mxu0 0.0
    %5094 = vmatprep.subr.mxu0 0.0
    %5095 = vmatpush2.msra.mxu0 0.0
    %5096 = vmatprep.subr.mxu0 0.0
    %5097 = vmatpush2.msra.mxu0 0.0
    %5098 = vmatprep.subr.mxu0 0.0
    %5099 = vmatpush2.msra.mxu0 0.0
    %5100 = vmatprep.subr.mxu0 0.0
    %5101 = vmatpush2.msra.mxu0 0.0
    %5102 = vmatprep.subr.mxu0 0.0
    %5103 = vmatpush2.msra.mxu0 0.0
    %5104 = vmatprep.subr.mxu0 0.0
    %5105 = vmatpush2.msra.mxu0 0.0
    %5106 = vmatprep.subr.mxu0 0.0
    %5107 = vmatpush2.msra.mxu0 0.0
    %5108 = vmatprep.subr.mxu0 0.0
    %5109 = vmatpush2.msra.mxu0 0.0
    %5110 = vmatprep.subr.mxu0 0.0
    %5111 = vmatpush2.msra.mxu0 0.0
    %5112 = vmatprep.subr.mxu0 0.0
    %5113 = vmatpush2.msra.mxu0 0.0
    %5114 = vmatprep.subr.mxu0 0.0
    %5115 = vmatpush2.msra.mxu0 0.0
    %5116 = vmatprep.subr.mxu0 0.0
    %5117 = vmatpush2.msra.mxu0 0.0
    %5118 = vmatprep.subr.mxu0 0.0
    %5119 = vmatpush2.msra.mxu0 0.0
    %5120 = vmatprep.subr.mxu0 0.0
    %5121 = vmatpush2.msra.mxu0 0.0
    %5122 = vmatprep.mubr.f32.mxu0 0.0
    %5123 = vmatmul.mubr.f32.gmra.mxu0 %v4899
    %v5124 = vpop.f32.mrf.mxu0
    %v5125 = vadd.f32 0.0, %v5124
    %v5126 = vpop.f32.mrf.mxu0
    %v5127 = vadd.f32 0.0, %v5126
    %5128 = vmatprep.mubr.f32.mxu0 0.0
    %5129 = vmatmul.mubr.f32.gmra.mxu0 %v4902
    %v5130 = vpop.f32.mrf.mxu0
    %v5131 = vadd.f32 0.0, %v5130
    %v5132 = vpop.f32.mrf.mxu0
    %v5133 = vadd.f32 0.0, %v5132
    %5134 = vdwg.mxu0
    %5135 = vmatprep.subr.mxu0 0.0
    %5136 = vmatpush1.msra.mxu0 0.0
    %5137 = vmatprep.subr.mxu0 0.0
    %5138 = vmatpush1.msra.mxu0 0.0
    %5139 = vmatprep.subr.mxu0 0.0
    %5140 = vmatpush1.msra.mxu0 0.0
    %5141 = vmatprep.subr.mxu0 0.0
    %5142 = vmatpush1.msra.mxu0 0.0
    %5143 = vmatprep.subr.mxu0 0.0
    %5144 = vmatpush1.msra.mxu0 0.0
    %5145 = vmatprep.subr.mxu0 0.0
    %5146 = vmatpush1.msra.mxu0 0.0
    %5147 = vmatprep.subr.mxu0 0.0
    %5148 = vmatpush1.msra.mxu0 0.0
    %5149 = vmatprep.subr.mxu0 0.0
    %5150 = vmatpush1.msra.mxu0 0.0
    %5151 = vmatprep.subr.mxu0 0.0
    %5152 = vmatpush1.msra.mxu0 0.0
    %5153 = vmatprep.subr.mxu0 0.0
    %5154 = vmatpush1.msra.mxu0 0.0
    %5155 = vmatprep.subr.mxu0 0.0
    %5156 = vmatpush1.msra.mxu0 0.0
    %5157 = vmatprep.subr.mxu0 0.0
    %5158 = vmatpush1.msra.mxu0 0.0
    %5159 = vmatprep.subr.mxu0 0.0
    %5160 = vmatpush1.msra.mxu0 0.0
    %5161 = vmatprep.subr.mxu0 0.0
    %5162 = vmatpush1.msra.mxu0 0.0
    %5163 = vmatprep.subr.mxu0 %v4297
    %5164 = vmatpush1.msra.mxu0 %v4296
    %5165 = vmatprep.subr.mxu0 %v4289
    %5166 = vmatpush1.msra.mxu0 %v4288
    %5167 = vmatprep.subr.mxu0 0.0
    %5168 = vmatpush2.msra.mxu0 0.0
    %5169 = vmatprep.subr.mxu0 0.0
    %5170 = vmatpush2.msra.mxu0 0.0
    %5171 = vmatprep.subr.mxu0 0.0
    %5172 = vmatpush2.msra.mxu0 0.0
    %5173 = vmatprep.subr.mxu0 0.0
    %5174 = vmatpush2.msra.mxu0 0.0
    %5175 = vmatprep.subr.mxu0 0.0
    %5176 = vmatpush2.msra.mxu0 0.0
    %5177 = vmatprep.subr.mxu0 0.0
    %5178 = vmatpush2.msra.mxu0 0.0
    %5179 = vmatprep.subr.mxu0 0.0
    %5180 = vmatpush2.msra.mxu0 0.0
    %5181 = vmatprep.subr.mxu0 0.0
    %5182 = vmatpush2.msra.mxu0 0.0
    %5183 = vmatprep.subr.mxu0 0.0
    %5184 = vmatpush2.msra.mxu0 0.0
    %5185 = vmatprep.subr.mxu0 0.0
    %5186 = vmatpush2.msra.mxu0 0.0
    %5187 = vmatprep.subr.mxu0 0.0
    %5188 = vmatpush2.msra.mxu0 0.0
    %5189 = vmatprep.subr.mxu0 0.0
    %5190 = vmatpush2.msra.mxu0 0.0
    %5191 = vmatprep.subr.mxu0 0.0
    %5192 = vmatpush2.msra.mxu0 0.0
    %5193 = vmatprep.subr.mxu0 0.0
    %5194 = vmatpush2.msra.mxu0 0.0
    %5195 = vmatprep.subr.mxu0 0.0
    %5196 = vmatpush2.msra.mxu0 0.0
    %5197 = vmatprep.subr.mxu0 0.0
    %5198 = vmatpush2.msra.mxu0 0.0
    %5199 = vmatprep.mubr.f32.mxu0 0.0
    %5200 = vmatmul.mubr.f32.gmra.mxu0 %v4899
    %v5201 = vpop.f32.mrf.mxu0
    %v5202 = vadd.f32 0.0, %v5201
    %v5203 = vpop.f32.mrf.mxu0
    %v5204 = vadd.f32 0.0, %v5203
    %5205 = vmatprep.mubr.f32.mxu0 0.0
    %5206 = vmatmul.mubr.f32.gmra.mxu0 %v4902
    %v5207 = vpop.f32.mrf.mxu0
    %v5208 = vadd.f32 0.0, %v5207
    %v5209 = vpop.f32.mrf.mxu0
    %v5210 = vadd.f32 0.0, %v5209
    %5211 = vdwg.mxu0
    %5212 = vst [vmem:[#allocation3] sm:$0xff] %v4971
    %5213 = vst [vmem:[#allocation3 + $0x8] sm:$0xff] %v4973
    %5214 = vst [vmem:[#allocation3 + $0x10] sm:$0xff] %v5048
    %5215 = vst [vmem:[#allocation3 + $0x18] sm:$0xff] %v5050
    %5216 = vst [vmem:[#allocation3 + $0x20] sm:$0xff] %v5125
    %5217 = vst [vmem:[#allocation3 + $0x28] sm:$0xff] %v5127
    %5218 = vst [vmem:[#allocation3 + $0x30] sm:$0xff] %v5202
    %5219 = vst [vmem:[#allocation3 + $0x38] sm:$0xff] %v5204
    %5220 = vst [vmem:[#allocation3 + $0x40] sm:$0xff] %v4977
    %5221 = vst [vmem:[#allocation3 + $0x48] sm:$0xff] %v4979
    %5222 = vst [vmem:[#allocation3 + $0x50] sm:$0xff] %v5054
    %5223 = vst [vmem:[#allocation3 + $0x58] sm:$0xff] %v5056
    %5224 = vst [vmem:[#allocation3 + $0x60] sm:$0xff] %v5131
    %5225 = vst [vmem:[#allocation3 + $0x68] sm:$0xff] %v5133
    %5226 = vst [vmem:[#allocation3 + $0x70] sm:$0xff] %v5208
    %5227 = vst [vmem:[#allocation3 + $0x78] sm:$0xff] %v5210
    %v5228 = vld [vmem:[%s43] sm:$0xff]
    %v5229 = vld [vmem:[%s43 + $0x8] sm:$0xff]
    %v5230 = vld [vmem:[%s45] sm:$0xff]
    %v5231 = vld [vmem:[%s45 + $0x8] sm:$0xff]
    %v5232 = vld [vmem:[%s45 + $0x10] sm:$0xff]
    %v5233 = vld [vmem:[%s45 + $0x18] sm:$0xff]
    %v5234 = vld [vmem:[%s45 + $0x20] sm:$0xff]
    %v5235 = vld [vmem:[%s45 + $0x28] sm:$0xff]
    %v5236 = vld [vmem:[%s45 + $0x30] sm:$0xff]
    %v5237 = vld [vmem:[%s45 + $0x38] sm:$0xff]
    %v5239 = vsel %vm269, %v5228, 0
    %v5242 = vsel %vm269, %v5229, 0
    %5244 = vmatprep.subr.mxu0 0.0
    %5245 = vmatpush1.msra.mxu0 0.0
    %5246 = vmatprep.subr.mxu0 0.0
    %5247 = vmatpush1.msra.mxu0 0.0
    %5248 = vmatprep.subr.mxu0 0.0
    %5249 = vmatpush1.msra.mxu0 0.0
    %5250 = vmatprep.subr.mxu0 0.0
    %5251 = vmatpush1.msra.mxu0 0.0
    %5252 = vmatprep.subr.mxu0 0.0
    %5253 = vmatpush1.msra.mxu0 0.0
    %5254 = vmatprep.subr.mxu0 0.0
    %5255 = vmatpush1.msra.mxu0 0.0
    %5256 = vmatprep.subr.mxu0 0.0
    %5257 = vmatpush1.msra.mxu0 0.0
    %5258 = vmatprep.subr.mxu0 0.0
    %5259 = vmatpush1.msra.mxu0 0.0
    %5260 = vmatprep.subr.mxu0 0.0
    %5261 = vmatpush1.msra.mxu0 0.0
    %5262 = vmatprep.subr.mxu0 0.0
    %5263 = vmatpush1.msra.mxu0 0.0
    %5264 = vmatprep.subr.mxu0 0.0
    %5265 = vmatpush1.msra.mxu0 0.0
    %5266 = vmatprep.subr.mxu0 0.0
    %5267 = vmatpush1.msra.mxu0 0.0
    %5268 = vmatprep.subr.mxu0 0.0
    %5269 = vmatpush1.msra.mxu0 0.0
    %5270 = vmatprep.subr.mxu0 0.0
    %5271 = vmatpush1.msra.mxu0 0.0
    %5272 = vmatprep.subr.mxu0 0.0
    %5273 = vmatpush1.msra.mxu0 0.0
    %5274 = vmatprep.subr.mxu0 %v5231
    %5275 = vmatpush1.msra.mxu0 %v5230
    %5276 = vmatprep.subr.mxu0 0.0
    %5277 = vmatpush2.msra.mxu0 0.0
    %5278 = vmatprep.subr.mxu0 0.0
    %5279 = vmatpush2.msra.mxu0 0.0
    %5280 = vmatprep.subr.mxu0 0.0
    %5281 = vmatpush2.msra.mxu0 0.0
    %5282 = vmatprep.subr.mxu0 0.0
    %5283 = vmatpush2.msra.mxu0 0.0
    %5284 = vmatprep.subr.mxu0 0.0
    %5285 = vmatpush2.msra.mxu0 0.0
    %5286 = vmatprep.subr.mxu0 0.0
    %5287 = vmatpush2.msra.mxu0 0.0
    %5288 = vmatprep.subr.mxu0 0.0
    %5289 = vmatpush2.msra.mxu0 0.0
    %5290 = vmatprep.subr.mxu0 0.0
    %5291 = vmatpush2.msra.mxu0 0.0
    %5292 = vmatprep.subr.mxu0 0.0
    %5293 = vmatpush2.msra.mxu0 0.0
    %5294 = vmatprep.subr.mxu0 0.0
    %5295 = vmatpush2.msra.mxu0 0.0
    %5296 = vmatprep.subr.mxu0 0.0
    %5297 = vmatpush2.msra.mxu0 0.0
    %5298 = vmatprep.subr.mxu0 0.0
    %5299 = vmatpush2.msra.mxu0 0.0
    %5300 = vmatprep.subr.mxu0 0.0
    %5301 = vmatpush2.msra.mxu0 0.0
    %5302 = vmatprep.subr.mxu0 0.0
    %5303 = vmatpush2.msra.mxu0 0.0
    %5304 = vmatprep.subr.mxu0 0.0
    %5305 = vmatpush2.msra.mxu0 0.0
    %5306 = vmatprep.subr.mxu0 0.0
    %5307 = vmatpush2.msra.mxu0 0.0
    %5308 = vmatprep.mubr.f32.mxu0 0.0
    %5309 = vmatmul.mubr.f32.gmra.mxu0 %v5239
    %v5310 = vpop.f32.mrf.mxu0
    %v5311 = vadd.f32 0.0, %v5310
    %v5312 = vpop.f32.mrf.mxu0
    %v5313 = vadd.f32 0.0, %v5312
    %5314 = vmatprep.mubr.f32.mxu0 0.0
    %5315 = vmatmul.mubr.f32.gmra.mxu0 %v5242
    %v5316 = vpop.f32.mrf.mxu0
    %v5317 = vadd.f32 0.0, %v5316
    %v5318 = vpop.f32.mrf.mxu0
    %v5319 = vadd.f32 0.0, %v5318
    %5320 = vdwg.mxu0
    %5321 = vmatprep.subr.mxu0 0.0
    %5322 = vmatpush1.msra.mxu0 0.0
    %5323 = vmatprep.subr.mxu0 0.0
    %5324 = vmatpush1.msra.mxu0 0.0
    %5325 = vmatprep.subr.mxu0 0.0
    %5326 = vmatpush1.msra.mxu0 0.0
    %5327 = vmatprep.subr.mxu0 0.0
    %5328 = vmatpush1.msra.mxu0 0.0
    %5329 = vmatprep.subr.mxu0 0.0
    %5330 = vmatpush1.msra.mxu0 0.0
    %5331 = vmatprep.subr.mxu0 0.0
    %5332 = vmatpush1.msra.mxu0 0.0
    %5333 = vmatprep.subr.mxu0 0.0
    %5334 = vmatpush1.msra.mxu0 0.0
    %5335 = vmatprep.subr.mxu0 0.0
    %5336 = vmatpush1.msra.mxu0 0.0
    %5337 = vmatprep.subr.mxu0 0.0
    %5338 = vmatpush1.msra.mxu0 0.0
    %5339 = vmatprep.subr.mxu0 0.0
    %5340 = vmatpush1.msra.mxu0 0.0
    %5341 = vmatprep.subr.mxu0 0.0
    %5342 = vmatpush1.msra.mxu0 0.0
    %5343 = vmatprep.subr.mxu0 0.0
    %5344 = vmatpush1.msra.mxu0 0.0
    %5345 = vmatprep.subr.mxu0 0.0
    %5346 = vmatpush1.msra.mxu0 0.0
    %5347 = vmatprep.subr.mxu0 0.0
    %5348 = vmatpush1.msra.mxu0 0.0
    %5349 = vmatprep.subr.mxu0 0.0
    %5350 = vmatpush1.msra.mxu0 0.0
    %5351 = vmatprep.subr.mxu0 %v5233
    %5352 = vmatpush1.msra.mxu0 %v5232
    %5353 = vmatprep.subr.mxu0 0.0
    %5354 = vmatpush2.msra.mxu0 0.0
    %5355 = vmatprep.subr.mxu0 0.0
    %5356 = vmatpush2.msra.mxu0 0.0
    %5357 = vmatprep.subr.mxu0 0.0
    %5358 = vmatpush2.msra.mxu0 0.0
    %5359 = vmatprep.subr.mxu0 0.0
    %5360 = vmatpush2.msra.mxu0 0.0
    %5361 = vmatprep.subr.mxu0 0.0
    %5362 = vmatpush2.msra.mxu0 0.0
    %5363 = vmatprep.subr.mxu0 0.0
    %5364 = vmatpush2.msra.mxu0 0.0
    %5365 = vmatprep.subr.mxu0 0.0
    %5366 = vmatpush2.msra.mxu0 0.0
    %5367 = vmatprep.subr.mxu0 0.0
    %5368 = vmatpush2.msra.mxu0 0.0
    %5369 = vmatprep.subr.mxu0 0.0
    %5370 = vmatpush2.msra.mxu0 0.0
    %5371 = vmatprep.subr.mxu0 0.0
    %5372 = vmatpush2.msra.mxu0 0.0
    %5373 = vmatprep.subr.mxu0 0.0
    %5374 = vmatpush2.msra.mxu0 0.0
    %5375 = vmatprep.subr.mxu0 0.0
    %5376 = vmatpush2.msra.mxu0 0.0
    %5377 = vmatprep.subr.mxu0 0.0
    %5378 = vmatpush2.msra.mxu0 0.0
    %5379 = vmatprep.subr.mxu0 0.0
    %5380 = vmatpush2.msra.mxu0 0.0
    %5381 = vmatprep.subr.mxu0 0.0
    %5382 = vmatpush2.msra.mxu0 0.0
    %5383 = vmatprep.subr.mxu0 0.0
    %5384 = vmatpush2.msra.mxu0 0.0
    %5385 = vmatprep.mubr.f32.mxu0 0.0
    %5386 = vmatmul.mubr.f32.gmra.mxu0 %v5239
    %v5387 = vpop.f32.mrf.mxu0
    %v5388 = vadd.f32 0.0, %v5387
    %v5389 = vpop.f32.mrf.mxu0
    %v5390 = vadd.f32 0.0, %v5389
    %5391 = vmatprep.mubr.f32.mxu0 0.0
    %5392 = vmatmul.mubr.f32.gmra.mxu0 %v5242
    %v5393 = vpop.f32.mrf.mxu0
    %v5394 = vadd.f32 0.0, %v5393
    %v5395 = vpop.f32.mrf.mxu0
    %v5396 = vadd.f32 0.0, %v5395
    %5397 = vdwg.mxu0
    %5398 = vmatprep.subr.mxu0 0.0
    %5399 = vmatpush1.msra.mxu0 0.0
    %5400 = vmatprep.subr.mxu0 0.0
    %5401 = vmatpush1.msra.mxu0 0.0
    %5402 = vmatprep.subr.mxu0 0.0
    %5403 = vmatpush1.msra.mxu0 0.0
    %5404 = vmatprep.subr.mxu0 0.0
    %5405 = vmatpush1.msra.mxu0 0.0
    %5406 = vmatprep.subr.mxu0 0.0
    %5407 = vmatpush1.msra.mxu0 0.0
    %5408 = vmatprep.subr.mxu0 0.0
    %5409 = vmatpush1.msra.mxu0 0.0
    %5410 = vmatprep.subr.mxu0 0.0
    %5411 = vmatpush1.msra.mxu0 0.0
    %5412 = vmatprep.subr.mxu0 0.0
    %5413 = vmatpush1.msra.mxu0 0.0
    %5414 = vmatprep.subr.mxu0 0.0
    %5415 = vmatpush1.msra.mxu0 0.0
    %5416 = vmatprep.subr.mxu0 0.0
    %5417 = vmatpush1.msra.mxu0 0.0
    %5418 = vmatprep.subr.mxu0 0.0
    %5419 = vmatpush1.msra.mxu0 0.0
    %5420 = vmatprep.subr.mxu0 0.0
    %5421 = vmatpush1.msra.mxu0 0.0
    %5422 = vmatprep.subr.mxu0 0.0
    %5423 = vmatpush1.msra.mxu0 0.0
    %5424 = vmatprep.subr.mxu0 0.0
    %5425 = vmatpush1.msra.mxu0 0.0
    %5426 = vmatprep.subr.mxu0 0.0
    %5427 = vmatpush1.msra.mxu0 0.0
    %5428 = vmatprep.subr.mxu0 %v5235
    %5429 = vmatpush1.msra.mxu0 %v5234
    %5430 = vmatprep.subr.mxu0 0.0
    %5431 = vmatpush2.msra.mxu0 0.0
    %5432 = vmatprep.subr.mxu0 0.0
    %5433 = vmatpush2.msra.mxu0 0.0
    %5434 = vmatprep.subr.mxu0 0.0
    %5435 = vmatpush2.msra.mxu0 0.0
    %5436 = vmatprep.subr.mxu0 0.0
    %5437 = vmatpush2.msra.mxu0 0.0
    %5438 = vmatprep.subr.mxu0 0.0
    %5439 = vmatpush2.msra.mxu0 0.0
    %5440 = vmatprep.subr.mxu0 0.0
    %5441 = vmatpush2.msra.mxu0 0.0
    %5442 = vmatprep.subr.mxu0 0.0
    %5443 = vmatpush2.msra.mxu0 0.0
    %5444 = vmatprep.subr.mxu0 0.0
    %5445 = vmatpush2.msra.mxu0 0.0
    %5446 = vmatprep.subr.mxu0 0.0
    %5447 = vmatpush2.msra.mxu0 0.0
    %5448 = vmatprep.subr.mxu0 0.0
    %5449 = vmatpush2.msra.mxu0 0.0
    %5450 = vmatprep.subr.mxu0 0.0
    %5451 = vmatpush2.msra.mxu0 0.0
    %5452 = vmatprep.subr.mxu0 0.0
    %5453 = vmatpush2.msra.mxu0 0.0
    %5454 = vmatprep.subr.mxu0 0.0
    %5455 = vmatpush2.msra.mxu0 0.0
    %5456 = vmatprep.subr.mxu0 0.0
    %5457 = vmatpush2.msra.mxu0 0.0
    %5458 = vmatprep.subr.mxu0 0.0
    %5459 = vmatpush2.msra.mxu0 0.0
    %5460 = vmatprep.subr.mxu0 0.0
    %5461 = vmatpush2.msra.mxu0 0.0
    %5462 = vmatprep.mubr.f32.mxu0 0.0
    %5463 = vmatmul.mubr.f32.gmra.mxu0 %v5239
    %v5464 = vpop.f32.mrf.mxu0
    %v5465 = vadd.f32 0.0, %v5464
    %v5466 = vpop.f32.mrf.mxu0
    %v5467 = vadd.f32 0.0, %v5466
    %5468 = vmatprep.mubr.f32.mxu0 0.0
    %5469 = vmatmul.mubr.f32.gmra.mxu0 %v5242
    %v5470 = vpop.f32.mrf.mxu0
    %v5471 = vadd.f32 0.0, %v5470
    %v5472 = vpop.f32.mrf.mxu0
    %v5473 = vadd.f32 0.0, %v5472
    %5474 = vdwg.mxu0
    %5475 = vmatprep.subr.mxu0 0.0
    %5476 = vmatpush1.msra.mxu0 0.0
    %5477 = vmatprep.subr.mxu0 0.0
    %5478 = vmatpush1.msra.mxu0 0.0
    %5479 = vmatprep.subr.mxu0 0.0
    %5480 = vmatpush1.msra.mxu0 0.0
    %5481 = vmatprep.subr.mxu0 0.0
    %5482 = vmatpush1.msra.mxu0 0.0
    %5483 = vmatprep.subr.mxu0 0.0
    %5484 = vmatpush1.msra.mxu0 0.0
    %5485 = vmatprep.subr.mxu0 0.0
    %5486 = vmatpush1.msra.mxu0 0.0
    %5487 = vmatprep.subr.mxu0 0.0
    %5488 = vmatpush1.msra.mxu0 0.0
    %5489 = vmatprep.subr.mxu0 0.0
    %5490 = vmatpush1.msra.mxu0 0.0
    %5491 = vmatprep.subr.mxu0 0.0
    %5492 = vmatpush1.msra.mxu0 0.0
    %5493 = vmatprep.subr.mxu0 0.0
    %5494 = vmatpush1.msra.mxu0 0.0
    %5495 = vmatprep.subr.mxu0 0.0
    %5496 = vmatpush1.msra.mxu0 0.0
    %5497 = vmatprep.subr.mxu0 0.0
    %5498 = vmatpush1.msra.mxu0 0.0
    %5499 = vmatprep.subr.mxu0 0.0
    %5500 = vmatpush1.msra.mxu0 0.0
    %5501 = vmatprep.subr.mxu0 0.0
    %5502 = vmatpush1.msra.mxu0 0.0
    %5503 = vmatprep.subr.mxu0 0.0
    %5504 = vmatpush1.msra.mxu0 0.0
    %5505 = vmatprep.subr.mxu0 %v5237
    %5506 = vmatpush1.msra.mxu0 %v5236
    %5507 = vmatprep.subr.mxu0 0.0
    %5508 = vmatpush2.msra.mxu0 0.0
    %5509 = vmatprep.subr.mxu0 0.0
    %5510 = vmatpush2.msra.mxu0 0.0
    %5511 = vmatprep.subr.mxu0 0.0
    %5512 = vmatpush2.msra.mxu0 0.0
    %5513 = vmatprep.subr.mxu0 0.0
    %5514 = vmatpush2.msra.mxu0 0.0
    %5515 = vmatprep.subr.mxu0 0.0
    %5516 = vmatpush2.msra.mxu0 0.0
    %5517 = vmatprep.subr.mxu0 0.0
    %5518 = vmatpush2.msra.mxu0 0.0
    %5519 = vmatprep.subr.mxu0 0.0
    %5520 = vmatpush2.msra.mxu0 0.0
    %5521 = vmatprep.subr.mxu0 0.0
    %5522 = vmatpush2.msra.mxu0 0.0
    %5523 = vmatprep.subr.mxu0 0.0
    %5524 = vmatpush2.msra.mxu0 0.0
    %5525 = vmatprep.subr.mxu0 0.0
    %5526 = vmatpush2.msra.mxu0 0.0
    %5527 = vmatprep.subr.mxu0 0.0
    %5528 = vmatpush2.msra.mxu0 0.0
    %5529 = vmatprep.subr.mxu0 0.0
    %5530 = vmatpush2.msra.mxu0 0.0
    %5531 = vmatprep.subr.mxu0 0.0
    %5532 = vmatpush2.msra.mxu0 0.0
    %5533 = vmatprep.subr.mxu0 0.0
    %5534 = vmatpush2.msra.mxu0 0.0
    %5535 = vmatprep.subr.mxu0 0.0
    %5536 = vmatpush2.msra.mxu0 0.0
    %5537 = vmatprep.subr.mxu0 0.0
    %5538 = vmatpush2.msra.mxu0 0.0
    %5539 = vmatprep.mubr.f32.mxu0 0.0
    %5540 = vmatmul.mubr.f32.gmra.mxu0 %v5239
    %v5541 = vpop.f32.mrf.mxu0
    %v5542 = vadd.f32 0.0, %v5541
    %v5543 = vpop.f32.mrf.mxu0
    %v5544 = vadd.f32 0.0, %v5543
    %5545 = vmatprep.mubr.f32.mxu0 0.0
    %5546 = vmatmul.mubr.f32.gmra.mxu0 %v5242
    %v5547 = vpop.f32.mrf.mxu0
    %v5548 = vadd.f32 0.0, %v5547
    %v5549 = vpop.f32.mrf.mxu0
    %v5550 = vadd.f32 0.0, %v5549
    %5551 = vdwg.mxu0
    %v5552 = vld [vmem:[%s47] sm:$0xff]
    %v5553 = vld [vmem:[%s47 + $0x8] sm:$0xff]
    %v5554 = vld [vmem:[%s47 + $0x10] sm:$0xff]
    %v5555 = vld [vmem:[%s47 + $0x18] sm:$0xff]
    %v5556 = vld [vmem:[%s47 + $0x20] sm:$0xff]
    %v5557 = vld [vmem:[%s47 + $0x28] sm:$0xff]
    %v5558 = vld [vmem:[%s47 + $0x30] sm:$0xff]
    %v5559 = vld [vmem:[%s47 + $0x38] sm:$0xff]
    %5560 = vmatprep.subr.mxu0 0.0
    %5561 = vmatpush1.msra.mxu0 0.0
    %5562 = vmatprep.subr.mxu0 0.0
    %5563 = vmatpush1.msra.mxu0 0.0
    %5564 = vmatprep.subr.mxu0 0.0
    %5565 = vmatpush1.msra.mxu0 0.0
    %5566 = vmatprep.subr.mxu0 0.0
    %5567 = vmatpush1.msra.mxu0 0.0
    %5568 = vmatprep.subr.mxu0 0.0
    %5569 = vmatpush1.msra.mxu0 0.0
    %5570 = vmatprep.subr.mxu0 0.0
    %5571 = vmatpush1.msra.mxu0 0.0
    %5572 = vmatprep.subr.mxu0 0.0
    %5573 = vmatpush1.msra.mxu0 0.0
    %5574 = vmatprep.subr.mxu0 0.0
    %5575 = vmatpush1.msra.mxu0 0.0
    %5576 = vmatprep.subr.mxu0 0.0
    %5577 = vmatpush1.msra.mxu0 0.0
    %5578 = vmatprep.subr.mxu0 0.0
    %5579 = vmatpush1.msra.mxu0 0.0
    %5580 = vmatprep.subr.mxu0 0.0
    %5581 = vmatpush1.msra.mxu0 0.0
    %5582 = vmatprep.subr.mxu0 0.0
    %5583 = vmatpush1.msra.mxu0 0.0
    %5584 = vmatprep.subr.mxu0 0.0
    %5585 = vmatpush1.msra.mxu0 0.0
    %5586 = vmatprep.subr.mxu0 0.0
    %5587 = vmatpush1.msra.mxu0 0.0
    %5588 = vmatprep.subr.mxu0 0.0
    %5589 = vmatpush1.msra.mxu0 0.0
    %5590 = vmatprep.subr.mxu0 %v5553
    %5591 = vmatpush1.msra.mxu0 %v5552
    %5592 = vmatprep.subr.mxu0 0.0
    %5593 = vmatpush2.msra.mxu0 0.0
    %5594 = vmatprep.subr.mxu0 0.0
    %5595 = vmatpush2.msra.mxu0 0.0
    %5596 = vmatprep.subr.mxu0 0.0
    %5597 = vmatpush2.msra.mxu0 0.0
    %5598 = vmatprep.subr.mxu0 0.0
    %5599 = vmatpush2.msra.mxu0 0.0
    %5600 = vmatprep.subr.mxu0 0.0
    %5601 = vmatpush2.msra.mxu0 0.0
    %5602 = vmatprep.subr.mxu0 0.0
    %5603 = vmatpush2.msra.mxu0 0.0
    %5604 = vmatprep.subr.mxu0 0.0
    %5605 = vmatpush2.msra.mxu0 0.0
    %5606 = vmatprep.subr.mxu0 0.0
    %5607 = vmatpush2.msra.mxu0 0.0
    %5608 = vmatprep.subr.mxu0 0.0
    %5609 = vmatpush2.msra.mxu0 0.0
    %5610 = vmatprep.subr.mxu0 0.0
    %5611 = vmatpush2.msra.mxu0 0.0
    %5612 = vmatprep.subr.mxu0 0.0
    %5613 = vmatpush2.msra.mxu0 0.0
    %5614 = vmatprep.subr.mxu0 0.0
    %5615 = vmatpush2.msra.mxu0 0.0
    %5616 = vmatprep.subr.mxu0 0.0
    %5617 = vmatpush2.msra.mxu0 0.0
    %5618 = vmatprep.subr.mxu0 0.0
    %5619 = vmatpush2.msra.mxu0 0.0
    %5620 = vmatprep.subr.mxu0 0.0
    %5621 = vmatpush2.msra.mxu0 0.0
    %5622 = vmatprep.subr.mxu0 0.0
    %5623 = vmatpush2.msra.mxu0 0.0
    %5624 = vmatprep.mubr.f32.mxu0 0.0
    %5625 = vmatmul.mubr.f32.gmra.mxu0 %v5239
    %v5626 = vpop.f32.mrf.mxu0
    %v5627 = vadd.f32 0.0, %v5626
    %v5628 = vpop.f32.mrf.mxu0
    %v5629 = vadd.f32 0.0, %v5628
    %5630 = vmatprep.mubr.f32.mxu0 0.0
    %5631 = vmatmul.mubr.f32.gmra.mxu0 %v5242
    %v5632 = vpop.f32.mrf.mxu0
    %v5633 = vadd.f32 0.0, %v5632
    %v5634 = vpop.f32.mrf.mxu0
    %v5635 = vadd.f32 0.0, %v5634
    %5636 = vdwg.mxu0
    %5637 = vmatprep.subr.mxu0 0.0
    %5638 = vmatpush1.msra.mxu0 0.0
    %5639 = vmatprep.subr.mxu0 0.0
    %5640 = vmatpush1.msra.mxu0 0.0
    %5641 = vmatprep.subr.mxu0 0.0
    %5642 = vmatpush1.msra.mxu0 0.0
    %5643 = vmatprep.subr.mxu0 0.0
    %5644 = vmatpush1.msra.mxu0 0.0
    %5645 = vmatprep.subr.mxu0 0.0
    %5646 = vmatpush1.msra.mxu0 0.0
    %5647 = vmatprep.subr.mxu0 0.0
    %5648 = vmatpush1.msra.mxu0 0.0
    %5649 = vmatprep.subr.mxu0 0.0
    %5650 = vmatpush1.msra.mxu0 0.0
    %5651 = vmatprep.subr.mxu0 0.0
    %5652 = vmatpush1.msra.mxu0 0.0
    %5653 = vmatprep.subr.mxu0 0.0
    %5654 = vmatpush1.msra.mxu0 0.0
    %5655 = vmatprep.subr.mxu0 0.0
    %5656 = vmatpush1.msra.mxu0 0.0
    %5657 = vmatprep.subr.mxu0 0.0
    %5658 = vmatpush1.msra.mxu0 0.0
    %5659 = vmatprep.subr.mxu0 0.0
    %5660 = vmatpush1.msra.mxu0 0.0
    %5661 = vmatprep.subr.mxu0 0.0
    %5662 = vmatpush1.msra.mxu0 0.0
    %5663 = vmatprep.subr.mxu0 0.0
    %5664 = vmatpush1.msra.mxu0 0.0
    %5665 = vmatprep.subr.mxu0 0.0
    %5666 = vmatpush1.msra.mxu0 0.0
    %5667 = vmatprep.subr.mxu0 %v5555
    %5668 = vmatpush1.msra.mxu0 %v5554
    %5669 = vmatprep.subr.mxu0 0.0
    %5670 = vmatpush2.msra.mxu0 0.0
    %5671 = vmatprep.subr.mxu0 0.0
    %5672 = vmatpush2.msra.mxu0 0.0
    %5673 = vmatprep.subr.mxu0 0.0
    %5674 = vmatpush2.msra.mxu0 0.0
    %5675 = vmatprep.subr.mxu0 0.0
    %5676 = vmatpush2.msra.mxu0 0.0
    %5677 = vmatprep.subr.mxu0 0.0
    %5678 = vmatpush2.msra.mxu0 0.0
    %5679 = vmatprep.subr.mxu0 0.0
    %5680 = vmatpush2.msra.mxu0 0.0
    %5681 = vmatprep.subr.mxu0 0.0
    %5682 = vmatpush2.msra.mxu0 0.0
    %5683 = vmatprep.subr.mxu0 0.0
    %5684 = vmatpush2.msra.mxu0 0.0
    %5685 = vmatprep.subr.mxu0 0.0
    %5686 = vmatpush2.msra.mxu0 0.0
    %5687 = vmatprep.subr.mxu0 0.0
    %5688 = vmatpush2.msra.mxu0 0.0
    %5689 = vmatprep.subr.mxu0 0.0
    %5690 = vmatpush2.msra.mxu0 0.0
    %5691 = vmatprep.subr.mxu0 0.0
    %5692 = vmatpush2.msra.mxu0 0.0
    %5693 = vmatprep.subr.mxu0 0.0
    %5694 = vmatpush2.msra.mxu0 0.0
    %5695 = vmatprep.subr.mxu0 0.0
    %5696 = vmatpush2.msra.mxu0 0.0
    %5697 = vmatprep.subr.mxu0 0.0
    %5698 = vmatpush2.msra.mxu0 0.0
    %5699 = vmatprep.subr.mxu0 0.0
    %5700 = vmatpush2.msra.mxu0 0.0
    %5701 = vmatprep.mubr.f32.mxu0 0.0
    %5702 = vmatmul.mubr.f32.gmra.mxu0 %v5239
    %v5703 = vpop.f32.mrf.mxu0
    %v5704 = vadd.f32 0.0, %v5703
    %v5705 = vpop.f32.mrf.mxu0
    %v5706 = vadd.f32 0.0, %v5705
    %5707 = vmatprep.mubr.f32.mxu0 0.0
    %5708 = vmatmul.mubr.f32.gmra.mxu0 %v5242
    %v5709 = vpop.f32.mrf.mxu0
    %v5710 = vadd.f32 0.0, %v5709
    %v5711 = vpop.f32.mrf.mxu0
    %v5712 = vadd.f32 0.0, %v5711
    %5713 = vdwg.mxu0
    %5714 = vmatprep.subr.mxu0 0.0
    %5715 = vmatpush1.msra.mxu0 0.0
    %5716 = vmatprep.subr.mxu0 0.0
    %5717 = vmatpush1.msra.mxu0 0.0
    %5718 = vmatprep.subr.mxu0 0.0
    %5719 = vmatpush1.msra.mxu0 0.0
    %5720 = vmatprep.subr.mxu0 0.0
    %5721 = vmatpush1.msra.mxu0 0.0
    %5722 = vmatprep.subr.mxu0 0.0
    %5723 = vmatpush1.msra.mxu0 0.0
    %5724 = vmatprep.subr.mxu0 0.0
    %5725 = vmatpush1.msra.mxu0 0.0
    %5726 = vmatprep.subr.mxu0 0.0
    %5727 = vmatpush1.msra.mxu0 0.0
    %5728 = vmatprep.subr.mxu0 0.0
    %5729 = vmatpush1.msra.mxu0 0.0
    %5730 = vmatprep.subr.mxu0 0.0
    %5731 = vmatpush1.msra.mxu0 0.0
    %5732 = vmatprep.subr.mxu0 0.0
    %5733 = vmatpush1.msra.mxu0 0.0
    %5734 = vmatprep.subr.mxu0 0.0
    %5735 = vmatpush1.msra.mxu0 0.0
    %5736 = vmatprep.subr.mxu0 0.0
    %5737 = vmatpush1.msra.mxu0 0.0
    %5738 = vmatprep.subr.mxu0 0.0
    %5739 = vmatpush1.msra.mxu0 0.0
    %5740 = vmatprep.subr.mxu0 0.0
    %5741 = vmatpush1.msra.mxu0 0.0
    %5742 = vmatprep.subr.mxu0 0.0
    %5743 = vmatpush1.msra.mxu0 0.0
    %5744 = vmatprep.subr.mxu0 %v5557
    %5745 = vmatpush1.msra.mxu0 %v5556
    %5746 = vmatprep.subr.mxu0 0.0
    %5747 = vmatpush2.msra.mxu0 0.0
    %5748 = vmatprep.subr.mxu0 0.0
    %5749 = vmatpush2.msra.mxu0 0.0
    %5750 = vmatprep.subr.mxu0 0.0
    %5751 = vmatpush2.msra.mxu0 0.0
    %5752 = vmatprep.subr.mxu0 0.0
    %5753 = vmatpush2.msra.mxu0 0.0
    %5754 = vmatprep.subr.mxu0 0.0
    %5755 = vmatpush2.msra.mxu0 0.0
    %5756 = vmatprep.subr.mxu0 0.0
    %5757 = vmatpush2.msra.mxu0 0.0
    %5758 = vmatprep.subr.mxu0 0.0
    %5759 = vmatpush2.msra.mxu0 0.0
    %5760 = vmatprep.subr.mxu0 0.0
    %5761 = vmatpush2.msra.mxu0 0.0
    %5762 = vmatprep.subr.mxu0 0.0
    %5763 = vmatpush2.msra.mxu0 0.0
    %5764 = vmatprep.subr.mxu0 0.0
    %5765 = vmatpush2.msra.mxu0 0.0
    %5766 = vmatprep.subr.mxu0 0.0
    %5767 = vmatpush2.msra.mxu0 0.0
    %5768 = vmatprep.subr.mxu0 0.0
    %5769 = vmatpush2.msra.mxu0 0.0
    %5770 = vmatprep.subr.mxu0 0.0
    %5771 = vmatpush2.msra.mxu0 0.0
    %5772 = vmatprep.subr.mxu0 0.0
    %5773 = vmatpush2.msra.mxu0 0.0
    %5774 = vmatprep.subr.mxu0 0.0
    %5775 = vmatpush2.msra.mxu0 0.0
    %5776 = vmatprep.subr.mxu0 0.0
    %5777 = vmatpush2.msra.mxu0 0.0
    %5778 = vmatprep.mubr.f32.mxu0 0.0
    %5779 = vmatmul.mubr.f32.gmra.mxu0 %v5239
    %v5780 = vpop.f32.mrf.mxu0
    %v5781 = vadd.f32 0.0, %v5780
    %v5782 = vpop.f32.mrf.mxu0
    %v5783 = vadd.f32 0.0, %v5782
    %5784 = vmatprep.mubr.f32.mxu0 0.0
    %5785 = vmatmul.mubr.f32.gmra.mxu0 %v5242
    %v5786 = vpop.f32.mrf.mxu0
    %v5787 = vadd.f32 0.0, %v5786
    %v5788 = vpop.f32.mrf.mxu0
    %v5789 = vadd.f32 0.0, %v5788
    %5790 = vdwg.mxu0
    %5791 = vmatprep.subr.mxu0 0.0
    %5792 = vmatpush1.msra.mxu0 0.0
    %5793 = vmatprep.subr.mxu0 0.0
    %5794 = vmatpush1.msra.mxu0 0.0
    %5795 = vmatprep.subr.mxu0 0.0
    %5796 = vmatpush1.msra.mxu0 0.0
    %5797 = vmatprep.subr.mxu0 0.0
    %5798 = vmatpush1.msra.mxu0 0.0
    %5799 = vmatprep.subr.mxu0 0.0
    %5800 = vmatpush1.msra.mxu0 0.0
    %5801 = vmatprep.subr.mxu0 0.0
    %5802 = vmatpush1.msra.mxu0 0.0
    %5803 = vmatprep.subr.mxu0 0.0
    %5804 = vmatpush1.msra.mxu0 0.0
    %5805 = vmatprep.subr.mxu0 0.0
    %5806 = vmatpush1.msra.mxu0 0.0
    %5807 = vmatprep.subr.mxu0 0.0
    %5808 = vmatpush1.msra.mxu0 0.0
    %5809 = vmatprep.subr.mxu0 0.0
    %5810 = vmatpush1.msra.mxu0 0.0
    %5811 = vmatprep.subr.mxu0 0.0
    %5812 = vmatpush1.msra.mxu0 0.0
    %5813 = vmatprep.subr.mxu0 0.0
    %5814 = vmatpush1.msra.mxu0 0.0
    %5815 = vmatprep.subr.mxu0 0.0
    %5816 = vmatpush1.msra.mxu0 0.0
    %5817 = vmatprep.subr.mxu0 0.0
    %5818 = vmatpush1.msra.mxu0 0.0
    %5819 = vmatprep.subr.mxu0 0.0
    %5820 = vmatpush1.msra.mxu0 0.0
    %5821 = vmatprep.subr.mxu0 %v5559
    %5822 = vmatpush1.msra.mxu0 %v5558
    %5823 = vmatprep.subr.mxu0 0.0
    %5824 = vmatpush2.msra.mxu0 0.0
    %5825 = vmatprep.subr.mxu0 0.0
    %5826 = vmatpush2.msra.mxu0 0.0
    %5827 = vmatprep.subr.mxu0 0.0
    %5828 = vmatpush2.msra.mxu0 0.0
    %5829 = vmatprep.subr.mxu0 0.0
    %5830 = vmatpush2.msra.mxu0 0.0
    %5831 = vmatprep.subr.mxu0 0.0
    %5832 = vmatpush2.msra.mxu0 0.0
    %5833 = vmatprep.subr.mxu0 0.0
    %5834 = vmatpush2.msra.mxu0 0.0
    %5835 = vmatprep.subr.mxu0 0.0
    %5836 = vmatpush2.msra.mxu0 0.0
    %5837 = vmatprep.subr.mxu0 0.0
    %5838 = vmatpush2.msra.mxu0 0.0
    %5839 = vmatprep.subr.mxu0 0.0
    %5840 = vmatpush2.msra.mxu0 0.0
    %5841 = vmatprep.subr.mxu0 0.0
    %5842 = vmatpush2.msra.mxu0 0.0
    %5843 = vmatprep.subr.mxu0 0.0
    %5844 = vmatpush2.msra.mxu0 0.0
    %5845 = vmatprep.subr.mxu0 0.0
    %5846 = vmatpush2.msra.mxu0 0.0
    %5847 = vmatprep.subr.mxu0 0.0
    %5848 = vmatpush2.msra.mxu0 0.0
    %5849 = vmatprep.subr.mxu0 0.0
    %5850 = vmatpush2.msra.mxu0 0.0
    %5851 = vmatprep.subr.mxu0 0.0
    %5852 = vmatpush2.msra.mxu0 0.0
    %5853 = vmatprep.subr.mxu0 0.0
    %5854 = vmatpush2.msra.mxu0 0.0
    %5855 = vmatprep.mubr.f32.mxu0 0.0
    %5856 = vmatmul.mubr.f32.gmra.mxu0 %v5239
    %v5857 = vpop.f32.mrf.mxu0
    %v5858 = vadd.f32 0.0, %v5857
    %v5859 = vpop.f32.mrf.mxu0
    %v5860 = vadd.f32 0.0, %v5859
    %5861 = vmatprep.mubr.f32.mxu0 0.0
    %5862 = vmatmul.mubr.f32.gmra.mxu0 %v5242
    %v5863 = vpop.f32.mrf.mxu0
    %v5864 = vadd.f32 0.0, %v5863
    %v5865 = vpop.f32.mrf.mxu0
    %v5866 = vadd.f32 0.0, %v5865
    %5867 = vdwg.mxu0
    %v5868 = vadd.f32 %v4282, %v5311
    %v5869 = vadd.f32 %v4283, %v5313
    %v5870 = vadd.f32 %v4284, %v5388
    %v5871 = vadd.f32 %v4285, %v5390
    %v5872 = vadd.f32 %v4286, %v5465
    %v5873 = vadd.f32 %v4287, %v5467
    %v5874 = vadd.f32 %v4288, %v5542
    %v5875 = vadd.f32 %v4289, %v5544
    %v5876 = vadd.f32 %v4290, %v5317
    %v5877 = vadd.f32 %v4291, %v5319
    %v5878 = vadd.f32 %v4292, %v5394
    %v5879 = vadd.f32 %v4293, %v5396
    %v5880 = vadd.f32 %v4294, %v5471
    %v5881 = vadd.f32 %v4295, %v5473
    %v5882 = vadd.f32 %v4296, %v5548
    %v5883 = vadd.f32 %v4297, %v5550
    %v5884 = vpack.c.bf16 %v5876, %v5868
    %v5885 = vpack.c.bf16 %v5877, %v5869
    %v5886 = vpack.c.bf16 %v5878, %v5870
    %v5887 = vpack.c.bf16 %v5879, %v5871
    %v5888 = vpack.c.bf16 %v5880, %v5872
    %v5889 = vpack.c.bf16 %v5881, %v5873
    %v5890 = vpack.c.bf16 %v5882, %v5874
    %v5891 = vpack.c.bf16 %v5883, %v5875
    %v5892 = vld [vmem:[%s49] sm:$0xff]
    %v5893 = vld [vmem:[%s49 + $0x8] sm:$0xff]
    %v5894 = vld [vmem:[%s49 + $0x10] sm:$0xff]
    %v5895 = vld [vmem:[%s49 + $0x18] sm:$0xff]
    %v5896 = vld [vmem:[%s49 + $0x20] sm:$0xff]
    %v5897 = vld [vmem:[%s49 + $0x28] sm:$0xff]
    %v5898 = vld [vmem:[%s49 + $0x30] sm:$0xff]
    %v5899 = vld [vmem:[%s49 + $0x38] sm:$0xff]
    %v5900 = vld [vmem:[%s49 + $0x40] sm:$0xff]
    %v5901 = vld [vmem:[%s49 + $0x48] sm:$0xff]
    %v5902 = vld [vmem:[%s49 + $0x50] sm:$0xff]
    %v5903 = vld [vmem:[%s49 + $0x58] sm:$0xff]
    %v5904 = vld [vmem:[%s49 + $0x60] sm:$0xff]
    %v5905 = vld [vmem:[%s49 + $0x68] sm:$0xff]
    %v5906 = vld [vmem:[%s49 + $0x70] sm:$0xff]
    %v5907 = vld [vmem:[%s49 + $0x78] sm:$0xff]
    %v5908 = vld [vmem:[%s49 + $0x80] sm:$0xff]
    %v5909 = vld [vmem:[%s49 + $0x88] sm:$0xff]
    %v5910 = vld [vmem:[%s49 + $0x90] sm:$0xff]
    %v5911 = vld [vmem:[%s49 + $0x98] sm:$0xff]
    %v5912 = vld [vmem:[%s49 + $0xa0] sm:$0xff]
    %v5913 = vld [vmem:[%s49 + $0xa8] sm:$0xff]
    %v5914 = vld [vmem:[%s49 + $0xb0] sm:$0xff]
    %v5915 = vld [vmem:[%s49 + $0xb8] sm:$0xff]
    %v5916 = vld [vmem:[%s49 + $0xc0] sm:$0xff]
    %v5917 = vld [vmem:[%s49 + $0xc8] sm:$0xff]
    %v5918 = vld [vmem:[%s49 + $0xd0] sm:$0xff]
    %v5919 = vld [vmem:[%s49 + $0xd8] sm:$0xff]
    %v5920 = vld [vmem:[%s49 + $0xe0] sm:$0xff]
    %v5921 = vld [vmem:[%s49 + $0xe8] sm:$0xff]
    %v5922 = vld [vmem:[%s49 + $0xf0] sm:$0xff]
    %v5923 = vld [vmem:[%s49 + $0xf8] sm:$0xff]
    %v5924 = vld [vmem:[%s49 + $0x100] sm:$0xff]
    %v5925 = vld [vmem:[%s49 + $0x108] sm:$0xff]
    %v5926 = vld [vmem:[%s49 + $0x110] sm:$0xff]
    %v5927 = vld [vmem:[%s49 + $0x118] sm:$0xff]
    %v5928 = vld [vmem:[%s49 + $0x120] sm:$0xff]
    %v5929 = vld [vmem:[%s49 + $0x128] sm:$0xff]
    %v5930 = vld [vmem:[%s49 + $0x130] sm:$0xff]
    %v5931 = vld [vmem:[%s49 + $0x138] sm:$0xff]
    %v5932 = vld [vmem:[%s49 + $0x140] sm:$0xff]
    %v5933 = vld [vmem:[%s49 + $0x148] sm:$0xff]
    %v5934 = vld [vmem:[%s49 + $0x150] sm:$0xff]
    %v5935 = vld [vmem:[%s49 + $0x158] sm:$0xff]
    %v5936 = vld [vmem:[%s49 + $0x160] sm:$0xff]
    %v5937 = vld [vmem:[%s49 + $0x168] sm:$0xff]
    %v5938 = vld [vmem:[%s49 + $0x170] sm:$0xff]
    %v5939 = vld [vmem:[%s49 + $0x178] sm:$0xff]
    %v5940 = vld [vmem:[%s49 + $0x180] sm:$0xff]
    %v5941 = vld [vmem:[%s49 + $0x188] sm:$0xff]
    %v5942 = vld [vmem:[%s49 + $0x190] sm:$0xff]
    %v5943 = vld [vmem:[%s49 + $0x198] sm:$0xff]
    %v5944 = vld [vmem:[%s49 + $0x1a0] sm:$0xff]
    %v5945 = vld [vmem:[%s49 + $0x1a8] sm:$0xff]
    %v5946 = vld [vmem:[%s49 + $0x1b0] sm:$0xff]
    %v5947 = vld [vmem:[%s49 + $0x1b8] sm:$0xff]
    %v5948 = vld [vmem:[%s49 + $0x1c0] sm:$0xff]
    %v5949 = vld [vmem:[%s49 + $0x1c8] sm:$0xff]
    %v5950 = vld [vmem:[%s49 + $0x1d0] sm:$0xff]
    %v5951 = vld [vmem:[%s49 + $0x1d8] sm:$0xff]
    %v5952 = vld [vmem:[%s49 + $0x1e0] sm:$0xff]
    %v5953 = vld [vmem:[%s49 + $0x1e8] sm:$0xff]
    %v5954 = vld [vmem:[%s49 + $0x1f0] sm:$0xff]
    %v5955 = vld [vmem:[%s49 + $0x1f8] sm:$0xff]
    %v5956 = vld [vmem:[%s49 + $0x200] sm:$0xff]
    %v5957 = vld [vmem:[%s49 + $0x208] sm:$0xff]
    %v5958 = vld [vmem:[%s49 + $0x210] sm:$0xff]
    %v5959 = vld [vmem:[%s49 + $0x218] sm:$0xff]
    %v5960 = vld [vmem:[%s49 + $0x220] sm:$0xff]
    %v5961 = vld [vmem:[%s49 + $0x228] sm:$0xff]
    %v5962 = vld [vmem:[%s49 + $0x230] sm:$0xff]
    %v5963 = vld [vmem:[%s49 + $0x238] sm:$0xff]
    %v5964 = vld [vmem:[%s49 + $0x240] sm:$0xff]
    %v5965 = vld [vmem:[%s49 + $0x248] sm:$0xff]
    %v5966 = vld [vmem:[%s49 + $0x250] sm:$0xff]
    %v5967 = vld [vmem:[%s49 + $0x258] sm:$0xff]
    %v5968 = vld [vmem:[%s49 + $0x260] sm:$0xff]
    %v5969 = vld [vmem:[%s49 + $0x268] sm:$0xff]
    %v5970 = vld [vmem:[%s49 + $0x270] sm:$0xff]
    %v5971 = vld [vmem:[%s49 + $0x278] sm:$0xff]
    %v5972 = vld [vmem:[%s49 + $0x280] sm:$0xff]
    %v5973 = vld [vmem:[%s49 + $0x288] sm:$0xff]
    %v5974 = vld [vmem:[%s49 + $0x290] sm:$0xff]
    %v5975 = vld [vmem:[%s49 + $0x298] sm:$0xff]
    %v5976 = vld [vmem:[%s49 + $0x2a0] sm:$0xff]
    %v5977 = vld [vmem:[%s49 + $0x2a8] sm:$0xff]
    %v5978 = vld [vmem:[%s49 + $0x2b0] sm:$0xff]
    %v5979 = vld [vmem:[%s49 + $0x2b8] sm:$0xff]
    %v5980 = vld [vmem:[%s49 + $0x2c0] sm:$0xff]
    %v5981 = vld [vmem:[%s49 + $0x2c8] sm:$0xff]
    %v5982 = vld [vmem:[%s49 + $0x2d0] sm:$0xff]
    %v5983 = vld [vmem:[%s49 + $0x2d8] sm:$0xff]
    %v5984 = vld [vmem:[%s49 + $0x2e0] sm:$0xff]
    %v5985 = vld [vmem:[%s49 + $0x2e8] sm:$0xff]
    %v5986 = vld [vmem:[%s49 + $0x2f0] sm:$0xff]
    %v5987 = vld [vmem:[%s49 + $0x2f8] sm:$0xff]
    %v5988 = vld [vmem:[%s49 + $0x300] sm:$0xff]
    %v5989 = vld [vmem:[%s49 + $0x308] sm:$0xff]
    %v5990 = vld [vmem:[%s49 + $0x310] sm:$0xff]
    %v5991 = vld [vmem:[%s49 + $0x318] sm:$0xff]
    %v5992 = vld [vmem:[%s49 + $0x320] sm:$0xff]
    %v5993 = vld [vmem:[%s49 + $0x328] sm:$0xff]
    %v5994 = vld [vmem:[%s49 + $0x330] sm:$0xff]
    %v5995 = vld [vmem:[%s49 + $0x338] sm:$0xff]
    %v5996 = vld [vmem:[%s49 + $0x340] sm:$0xff]
    %v5997 = vld [vmem:[%s49 + $0x348] sm:$0xff]
    %v5998 = vld [vmem:[%s49 + $0x350] sm:$0xff]
    %v5999 = vld [vmem:[%s49 + $0x358] sm:$0xff]
    %v6000 = vld [vmem:[%s49 + $0x360] sm:$0xff]
    %v6001 = vld [vmem:[%s49 + $0x368] sm:$0xff]
    %v6002 = vld [vmem:[%s49 + $0x370] sm:$0xff]
    %v6003 = vld [vmem:[%s49 + $0x378] sm:$0xff]
    %v6004 = vld [vmem:[%s49 + $0x380] sm:$0xff]
    %v6005 = vld [vmem:[%s49 + $0x388] sm:$0xff]
    %v6006 = vld [vmem:[%s49 + $0x390] sm:$0xff]
    %v6007 = vld [vmem:[%s49 + $0x398] sm:$0xff]
    %v6008 = vld [vmem:[%s49 + $0x3a0] sm:$0xff]
    %v6009 = vld [vmem:[%s49 + $0x3a8] sm:$0xff]
    %v6010 = vld [vmem:[%s49 + $0x3b0] sm:$0xff]
    %v6011 = vld [vmem:[%s49 + $0x3b8] sm:$0xff]
    %v6012 = vld [vmem:[%s49 + $0x3c0] sm:$0xff]
    %v6013 = vld [vmem:[%s49 + $0x3c8] sm:$0xff]
    %v6014 = vld [vmem:[%s49 + $0x3d0] sm:$0xff]
    %v6015 = vld [vmem:[%s49 + $0x3d8] sm:$0xff]
    %v6016 = vld [vmem:[%s49 + $0x3e0] sm:$0xff]
    %v6017 = vld [vmem:[%s49 + $0x3e8] sm:$0xff]
    %v6018 = vld [vmem:[%s49 + $0x3f0] sm:$0xff]
    %v6019 = vld [vmem:[%s49 + $0x3f8] sm:$0xff]
    %v6020 = vld [vmem:[%s49 + $0x400] sm:$0xff]
    %v6021 = vld [vmem:[%s49 + $0x408] sm:$0xff]
    %v6022 = vld [vmem:[%s49 + $0x410] sm:$0xff]
    %v6023 = vld [vmem:[%s49 + $0x418] sm:$0xff]
    %v6024 = vld [vmem:[%s49 + $0x420] sm:$0xff]
    %v6025 = vld [vmem:[%s49 + $0x428] sm:$0xff]
    %v6026 = vld [vmem:[%s49 + $0x430] sm:$0xff]
    %v6027 = vld [vmem:[%s49 + $0x438] sm:$0xff]
    %v6028 = vld [vmem:[%s49 + $0x440] sm:$0xff]
    %v6029 = vld [vmem:[%s49 + $0x448] sm:$0xff]
    %v6030 = vld [vmem:[%s49 + $0x450] sm:$0xff]
    %v6031 = vld [vmem:[%s49 + $0x458] sm:$0xff]
    %v6032 = vld [vmem:[%s49 + $0x460] sm:$0xff]
    %v6033 = vld [vmem:[%s49 + $0x468] sm:$0xff]
    %v6034 = vld [vmem:[%s49 + $0x470] sm:$0xff]
    %v6035 = vld [vmem:[%s49 + $0x478] sm:$0xff]
    %v6036 = vld [vmem:[%s49 + $0x480] sm:$0xff]
    %v6037 = vld [vmem:[%s49 + $0x488] sm:$0xff]
    %v6038 = vld [vmem:[%s49 + $0x490] sm:$0xff]
    %v6039 = vld [vmem:[%s49 + $0x498] sm:$0xff]
    %v6040 = vld [vmem:[%s49 + $0x4a0] sm:$0xff]
    %v6041 = vld [vmem:[%s49 + $0x4a8] sm:$0xff]
    %v6042 = vld [vmem:[%s49 + $0x4b0] sm:$0xff]
    %v6043 = vld [vmem:[%s49 + $0x4b8] sm:$0xff]
    %v6044 = vld [vmem:[%s49 + $0x4c0] sm:$0xff]
    %v6045 = vld [vmem:[%s49 + $0x4c8] sm:$0xff]
    %v6046 = vld [vmem:[%s49 + $0x4d0] sm:$0xff]
    %v6047 = vld [vmem:[%s49 + $0x4d8] sm:$0xff]
    %v6048 = vld [vmem:[%s49 + $0x4e0] sm:$0xff]
    %v6049 = vld [vmem:[%s49 + $0x4e8] sm:$0xff]
    %v6050 = vld [vmem:[%s49 + $0x4f0] sm:$0xff]
    %v6051 = vld [vmem:[%s49 + $0x4f8] sm:$0xff]
    %v6052 = vld [vmem:[%s49 + $0x500] sm:$0xff]
    %v6053 = vld [vmem:[%s49 + $0x508] sm:$0xff]
    %v6054 = vld [vmem:[%s49 + $0x510] sm:$0xff]
    %v6055 = vld [vmem:[%s49 + $0x518] sm:$0xff]
    %v6056 = vld [vmem:[%s49 + $0x520] sm:$0xff]
    %v6057 = vld [vmem:[%s49 + $0x528] sm:$0xff]
    %v6058 = vld [vmem:[%s49 + $0x530] sm:$0xff]
    %v6059 = vld [vmem:[%s49 + $0x538] sm:$0xff]
    %v6060 = vld [vmem:[%s49 + $0x540] sm:$0xff]
    %v6061 = vld [vmem:[%s49 + $0x548] sm:$0xff]
    %v6062 = vld [vmem:[%s49 + $0x550] sm:$0xff]
    %v6063 = vld [vmem:[%s49 + $0x558] sm:$0xff]
    %v6064 = vld [vmem:[%s49 + $0x560] sm:$0xff]
    %v6065 = vld [vmem:[%s49 + $0x568] sm:$0xff]
    %v6066 = vld [vmem:[%s49 + $0x570] sm:$0xff]
    %v6067 = vld [vmem:[%s49 + $0x578] sm:$0xff]
    %v6068 = vld [vmem:[%s49 + $0x580] sm:$0xff]
    %v6069 = vld [vmem:[%s49 + $0x588] sm:$0xff]
    %v6070 = vld [vmem:[%s49 + $0x590] sm:$0xff]
    %v6071 = vld [vmem:[%s49 + $0x598] sm:$0xff]
    %v6072 = vld [vmem:[%s49 + $0x5a0] sm:$0xff]
    %v6073 = vld [vmem:[%s49 + $0x5a8] sm:$0xff]
    %v6074 = vld [vmem:[%s49 + $0x5b0] sm:$0xff]
    %v6075 = vld [vmem:[%s49 + $0x5b8] sm:$0xff]
    %v6076 = vld [vmem:[%s49 + $0x5c0] sm:$0xff]
    %v6077 = vld [vmem:[%s49 + $0x5c8] sm:$0xff]
    %v6078 = vld [vmem:[%s49 + $0x5d0] sm:$0xff]
    %v6079 = vld [vmem:[%s49 + $0x5d8] sm:$0xff]
    %v6080 = vld [vmem:[%s49 + $0x5e0] sm:$0xff]
    %v6081 = vld [vmem:[%s49 + $0x5e8] sm:$0xff]
    %v6082 = vld [vmem:[%s49 + $0x5f0] sm:$0xff]
    %v6083 = vld [vmem:[%s49 + $0x5f8] sm:$0xff]
    %v6084 = vld [vmem:[%s49 + $0x600] sm:$0xff]
    %v6085 = vld [vmem:[%s49 + $0x608] sm:$0xff]
    %v6086 = vld [vmem:[%s49 + $0x610] sm:$0xff]
    %v6087 = vld [vmem:[%s49 + $0x618] sm:$0xff]
    %v6088 = vld [vmem:[%s49 + $0x620] sm:$0xff]
    %v6089 = vld [vmem:[%s49 + $0x628] sm:$0xff]
    %v6090 = vld [vmem:[%s49 + $0x630] sm:$0xff]
    %v6091 = vld [vmem:[%s49 + $0x638] sm:$0xff]
    %v6092 = vld [vmem:[%s49 + $0x640] sm:$0xff]
    %v6093 = vld [vmem:[%s49 + $0x648] sm:$0xff]
    %v6094 = vld [vmem:[%s49 + $0x650] sm:$0xff]
    %v6095 = vld [vmem:[%s49 + $0x658] sm:$0xff]
    %v6096 = vld [vmem:[%s49 + $0x660] sm:$0xff]
    %v6097 = vld [vmem:[%s49 + $0x668] sm:$0xff]
    %v6098 = vld [vmem:[%s49 + $0x670] sm:$0xff]
    %v6099 = vld [vmem:[%s49 + $0x678] sm:$0xff]
    %v6100 = vld [vmem:[%s49 + $0x680] sm:$0xff]
    %v6101 = vld [vmem:[%s49 + $0x688] sm:$0xff]
    %v6102 = vld [vmem:[%s49 + $0x690] sm:$0xff]
    %v6103 = vld [vmem:[%s49 + $0x698] sm:$0xff]
    %v6104 = vld [vmem:[%s49 + $0x6a0] sm:$0xff]
    %v6105 = vld [vmem:[%s49 + $0x6a8] sm:$0xff]
    %v6106 = vld [vmem:[%s49 + $0x6b0] sm:$0xff]
    %v6107 = vld [vmem:[%s49 + $0x6b8] sm:$0xff]
    %v6108 = vld [vmem:[%s49 + $0x6c0] sm:$0xff]
    %v6109 = vld [vmem:[%s49 + $0x6c8] sm:$0xff]
    %v6110 = vld [vmem:[%s49 + $0x6d0] sm:$0xff]
    %v6111 = vld [vmem:[%s49 + $0x6d8] sm:$0xff]
    %v6112 = vld [vmem:[%s49 + $0x6e0] sm:$0xff]
    %v6113 = vld [vmem:[%s49 + $0x6e8] sm:$0xff]
    %v6114 = vld [vmem:[%s49 + $0x6f0] sm:$0xff]
    %v6115 = vld [vmem:[%s49 + $0x6f8] sm:$0xff]
    %v6116 = vld [vmem:[%s49 + $0x700] sm:$0xff]
    %v6117 = vld [vmem:[%s49 + $0x708] sm:$0xff]
    %v6118 = vld [vmem:[%s49 + $0x710] sm:$0xff]
    %v6119 = vld [vmem:[%s49 + $0x718] sm:$0xff]
    %v6120 = vld [vmem:[%s49 + $0x720] sm:$0xff]
    %v6121 = vld [vmem:[%s49 + $0x728] sm:$0xff]
    %v6122 = vld [vmem:[%s49 + $0x730] sm:$0xff]
    %v6123 = vld [vmem:[%s49 + $0x738] sm:$0xff]
    %v6124 = vld [vmem:[%s49 + $0x740] sm:$0xff]
    %v6125 = vld [vmem:[%s49 + $0x748] sm:$0xff]
    %v6126 = vld [vmem:[%s49 + $0x750] sm:$0xff]
    %v6127 = vld [vmem:[%s49 + $0x758] sm:$0xff]
    %v6128 = vld [vmem:[%s49 + $0x760] sm:$0xff]
    %v6129 = vld [vmem:[%s49 + $0x768] sm:$0xff]
    %v6130 = vld [vmem:[%s49 + $0x770] sm:$0xff]
    %v6131 = vld [vmem:[%s49 + $0x778] sm:$0xff]
    %v6132 = vld [vmem:[%s49 + $0x780] sm:$0xff]
    %v6133 = vld [vmem:[%s49 + $0x788] sm:$0xff]
    %v6134 = vld [vmem:[%s49 + $0x790] sm:$0xff]
    %v6135 = vld [vmem:[%s49 + $0x798] sm:$0xff]
    %v6136 = vld [vmem:[%s49 + $0x7a0] sm:$0xff]
    %v6137 = vld [vmem:[%s49 + $0x7a8] sm:$0xff]
    %v6138 = vld [vmem:[%s49 + $0x7b0] sm:$0xff]
    %v6139 = vld [vmem:[%s49 + $0x7b8] sm:$0xff]
    %v6140 = vld [vmem:[%s49 + $0x7c0] sm:$0xff]
    %v6141 = vld [vmem:[%s49 + $0x7c8] sm:$0xff]
    %v6142 = vld [vmem:[%s49 + $0x7d0] sm:$0xff]
    %v6143 = vld [vmem:[%s49 + $0x7d8] sm:$0xff]
    %v6144 = vld [vmem:[%s49 + $0x7e0] sm:$0xff]
    %v6145 = vld [vmem:[%s49 + $0x7e8] sm:$0xff]
    %v6146 = vld [vmem:[%s49 + $0x7f0] sm:$0xff]
    %v6147 = vld [vmem:[%s49 + $0x7f8] sm:$0xff]
    %v6148 = vadd.f32 %v4971, %v5627
    %v6149 = vadd.f32 %v4973, %v5629
    %v6150 = vadd.f32 %v5048, %v5704
    %v6151 = vadd.f32 %v5050, %v5706
    %v6152 = vadd.f32 %v5125, %v5781
    %v6153 = vadd.f32 %v5127, %v5783
    %v6154 = vadd.f32 %v5202, %v5858
    %v6155 = vadd.f32 %v5204, %v5860
    %v6156 = vadd.f32 %v4977, %v5633
    %v6157 = vadd.f32 %v4979, %v5635
    %v6158 = vadd.f32 %v5054, %v5710
    %v6159 = vadd.f32 %v5056, %v5712
    %v6160 = vadd.f32 %v5131, %v5787
    %v6161 = vadd.f32 %v5133, %v5789
    %v6162 = vadd.f32 %v5208, %v5864
    %v6163 = vadd.f32 %v5210, %v5866
    %v6164 = vpack.c.bf16 %v6156, %v6148
    %v6165 = vpack.c.bf16 %v6157, %v6149
    %v6166 = vpack.c.bf16 %v6158, %v6150
    %v6167 = vpack.c.bf16 %v6159, %v6151
    %v6168 = vpack.c.bf16 %v6160, %v6152
    %v6169 = vpack.c.bf16 %v6161, %v6153
    %v6170 = vpack.c.bf16 %v6162, %v6154
    %v6171 = vpack.c.bf16 %v6163, %v6155
    %v6172 = vld [vmem:[%s51] sm:$0xff]
    %v6173 = vld [vmem:[%s51 + $0x8] sm:$0xff]
    %v6174 = vld [vmem:[%s51 + $0x10] sm:$0xff]
    %v6175 = vld [vmem:[%s51 + $0x18] sm:$0xff]
    %v6176 = vld [vmem:[%s51 + $0x20] sm:$0xff]
    %v6177 = vld [vmem:[%s51 + $0x28] sm:$0xff]
    %v6178 = vld [vmem:[%s51 + $0x30] sm:$0xff]
    %v6179 = vld [vmem:[%s51 + $0x38] sm:$0xff]
    %v6180 = vld [vmem:[%s51 + $0x40] sm:$0xff]
    %v6181 = vld [vmem:[%s51 + $0x48] sm:$0xff]
    %v6182 = vld [vmem:[%s51 + $0x50] sm:$0xff]
    %v6183 = vld [vmem:[%s51 + $0x58] sm:$0xff]
    %v6184 = vld [vmem:[%s51 + $0x60] sm:$0xff]
    %v6185 = vld [vmem:[%s51 + $0x68] sm:$0xff]
    %v6186 = vld [vmem:[%s51 + $0x70] sm:$0xff]
    %v6187 = vld [vmem:[%s51 + $0x78] sm:$0xff]
    %v6188 = vld [vmem:[%s51 + $0x80] sm:$0xff]
    %v6189 = vld [vmem:[%s51 + $0x88] sm:$0xff]
    %v6190 = vld [vmem:[%s51 + $0x90] sm:$0xff]
    %v6191 = vld [vmem:[%s51 + $0x98] sm:$0xff]
    %v6192 = vld [vmem:[%s51 + $0xa0] sm:$0xff]
    %v6193 = vld [vmem:[%s51 + $0xa8] sm:$0xff]
    %v6194 = vld [vmem:[%s51 + $0xb0] sm:$0xff]
    %v6195 = vld [vmem:[%s51 + $0xb8] sm:$0xff]
    %v6196 = vld [vmem:[%s51 + $0xc0] sm:$0xff]
    %v6197 = vld [vmem:[%s51 + $0xc8] sm:$0xff]
    %v6198 = vld [vmem:[%s51 + $0xd0] sm:$0xff]
    %v6199 = vld [vmem:[%s51 + $0xd8] sm:$0xff]
    %v6200 = vld [vmem:[%s51 + $0xe0] sm:$0xff]
    %v6201 = vld [vmem:[%s51 + $0xe8] sm:$0xff]
    %v6202 = vld [vmem:[%s51 + $0xf0] sm:$0xff]
    %v6203 = vld [vmem:[%s51 + $0xf8] sm:$0xff]
    %v6204 = vld [vmem:[%s51 + $0x100] sm:$0xff]
    %v6205 = vld [vmem:[%s51 + $0x108] sm:$0xff]
    %v6206 = vld [vmem:[%s51 + $0x110] sm:$0xff]
    %v6207 = vld [vmem:[%s51 + $0x118] sm:$0xff]
    %v6208 = vld [vmem:[%s51 + $0x120] sm:$0xff]
    %v6209 = vld [vmem:[%s51 + $0x128] sm:$0xff]
    %v6210 = vld [vmem:[%s51 + $0x130] sm:$0xff]
    %v6211 = vld [vmem:[%s51 + $0x138] sm:$0xff]
    %v6212 = vld [vmem:[%s51 + $0x140] sm:$0xff]
    %v6213 = vld [vmem:[%s51 + $0x148] sm:$0xff]
    %v6214 = vld [vmem:[%s51 + $0x150] sm:$0xff]
    %v6215 = vld [vmem:[%s51 + $0x158] sm:$0xff]
    %v6216 = vld [vmem:[%s51 + $0x160] sm:$0xff]
    %v6217 = vld [vmem:[%s51 + $0x168] sm:$0xff]
    %v6218 = vld [vmem:[%s51 + $0x170] sm:$0xff]
    %v6219 = vld [vmem:[%s51 + $0x178] sm:$0xff]
    %v6220 = vld [vmem:[%s51 + $0x180] sm:$0xff]
    %v6221 = vld [vmem:[%s51 + $0x188] sm:$0xff]
    %v6222 = vld [vmem:[%s51 + $0x190] sm:$0xff]
    %v6223 = vld [vmem:[%s51 + $0x198] sm:$0xff]
    %v6224 = vld [vmem:[%s51 + $0x1a0] sm:$0xff]
    %v6225 = vld [vmem:[%s51 + $0x1a8] sm:$0xff]
    %v6226 = vld [vmem:[%s51 + $0x1b0] sm:$0xff]
    %v6227 = vld [vmem:[%s51 + $0x1b8] sm:$0xff]
    %v6228 = vld [vmem:[%s51 + $0x1c0] sm:$0xff]
    %v6229 = vld [vmem:[%s51 + $0x1c8] sm:$0xff]
    %v6230 = vld [vmem:[%s51 + $0x1d0] sm:$0xff]
    %v6231 = vld [vmem:[%s51 + $0x1d8] sm:$0xff]
    %v6232 = vld [vmem:[%s51 + $0x1e0] sm:$0xff]
    %v6233 = vld [vmem:[%s51 + $0x1e8] sm:$0xff]
    %v6234 = vld [vmem:[%s51 + $0x1f0] sm:$0xff]
    %v6235 = vld [vmem:[%s51 + $0x1f8] sm:$0xff]
    %v6236 = vld [vmem:[%s51 + $0x200] sm:$0xff]
    %v6237 = vld [vmem:[%s51 + $0x208] sm:$0xff]
    %v6238 = vld [vmem:[%s51 + $0x210] sm:$0xff]
    %v6239 = vld [vmem:[%s51 + $0x218] sm:$0xff]
    %v6240 = vld [vmem:[%s51 + $0x220] sm:$0xff]
    %v6241 = vld [vmem:[%s51 + $0x228] sm:$0xff]
    %v6242 = vld [vmem:[%s51 + $0x230] sm:$0xff]
    %v6243 = vld [vmem:[%s51 + $0x238] sm:$0xff]
    %v6244 = vld [vmem:[%s51 + $0x240] sm:$0xff]
    %v6245 = vld [vmem:[%s51 + $0x248] sm:$0xff]
    %v6246 = vld [vmem:[%s51 + $0x250] sm:$0xff]
    %v6247 = vld [vmem:[%s51 + $0x258] sm:$0xff]
    %v6248 = vld [vmem:[%s51 + $0x260] sm:$0xff]
    %v6249 = vld [vmem:[%s51 + $0x268] sm:$0xff]
    %v6250 = vld [vmem:[%s51 + $0x270] sm:$0xff]
    %v6251 = vld [vmem:[%s51 + $0x278] sm:$0xff]
    %v6252 = vld [vmem:[%s51 + $0x280] sm:$0xff]
    %v6253 = vld [vmem:[%s51 + $0x288] sm:$0xff]
    %v6254 = vld [vmem:[%s51 + $0x290] sm:$0xff]
    %v6255 = vld [vmem:[%s51 + $0x298] sm:$0xff]
    %v6256 = vld [vmem:[%s51 + $0x2a0] sm:$0xff]
    %v6257 = vld [vmem:[%s51 + $0x2a8] sm:$0xff]
    %v6258 = vld [vmem:[%s51 + $0x2b0] sm:$0xff]
    %v6259 = vld [vmem:[%s51 + $0x2b8] sm:$0xff]
    %v6260 = vld [vmem:[%s51 + $0x2c0] sm:$0xff]
    %v6261 = vld [vmem:[%s51 + $0x2c8] sm:$0xff]
    %v6262 = vld [vmem:[%s51 + $0x2d0] sm:$0xff]
    %v6263 = vld [vmem:[%s51 + $0x2d8] sm:$0xff]
    %v6264 = vld [vmem:[%s51 + $0x2e0] sm:$0xff]
    %v6265 = vld [vmem:[%s51 + $0x2e8] sm:$0xff]
    %v6266 = vld [vmem:[%s51 + $0x2f0] sm:$0xff]
    %v6267 = vld [vmem:[%s51 + $0x2f8] sm:$0xff]
    %v6268 = vld [vmem:[%s51 + $0x300] sm:$0xff]
    %v6269 = vld [vmem:[%s51 + $0x308] sm:$0xff]
    %v6270 = vld [vmem:[%s51 + $0x310] sm:$0xff]
    %v6271 = vld [vmem:[%s51 + $0x318] sm:$0xff]
    %v6272 = vld [vmem:[%s51 + $0x320] sm:$0xff]
    %v6273 = vld [vmem:[%s51 + $0x328] sm:$0xff]
    %v6274 = vld [vmem:[%s51 + $0x330] sm:$0xff]
    %v6275 = vld [vmem:[%s51 + $0x338] sm:$0xff]
    %v6276 = vld [vmem:[%s51 + $0x340] sm:$0xff]
    %v6277 = vld [vmem:[%s51 + $0x348] sm:$0xff]
    %v6278 = vld [vmem:[%s51 + $0x350] sm:$0xff]
    %v6279 = vld [vmem:[%s51 + $0x358] sm:$0xff]
    %v6280 = vld [vmem:[%s51 + $0x360] sm:$0xff]
    %v6281 = vld [vmem:[%s51 + $0x368] sm:$0xff]
    %v6282 = vld [vmem:[%s51 + $0x370] sm:$0xff]
    %v6283 = vld [vmem:[%s51 + $0x378] sm:$0xff]
    %v6284 = vld [vmem:[%s51 + $0x380] sm:$0xff]
    %v6285 = vld [vmem:[%s51 + $0x388] sm:$0xff]
    %v6286 = vld [vmem:[%s51 + $0x390] sm:$0xff]
    %v6287 = vld [vmem:[%s51 + $0x398] sm:$0xff]
    %v6288 = vld [vmem:[%s51 + $0x3a0] sm:$0xff]
    %v6289 = vld [vmem:[%s51 + $0x3a8] sm:$0xff]
    %v6290 = vld [vmem:[%s51 + $0x3b0] sm:$0xff]
    %v6291 = vld [vmem:[%s51 + $0x3b8] sm:$0xff]
    %v6292 = vld [vmem:[%s51 + $0x3c0] sm:$0xff]
    %v6293 = vld [vmem:[%s51 + $0x3c8] sm:$0xff]
    %v6294 = vld [vmem:[%s51 + $0x3d0] sm:$0xff]
    %v6295 = vld [vmem:[%s51 + $0x3d8] sm:$0xff]
    %v6296 = vld [vmem:[%s51 + $0x3e0] sm:$0xff]
    %v6297 = vld [vmem:[%s51 + $0x3e8] sm:$0xff]
    %v6298 = vld [vmem:[%s51 + $0x3f0] sm:$0xff]
    %v6299 = vld [vmem:[%s51 + $0x3f8] sm:$0xff]
    %v6300 = vld [vmem:[%s51 + $0x400] sm:$0xff]
    %v6301 = vld [vmem:[%s51 + $0x408] sm:$0xff]
    %v6302 = vld [vmem:[%s51 + $0x410] sm:$0xff]
    %v6303 = vld [vmem:[%s51 + $0x418] sm:$0xff]
    %v6304 = vld [vmem:[%s51 + $0x420] sm:$0xff]
    %v6305 = vld [vmem:[%s51 + $0x428] sm:$0xff]
    %v6306 = vld [vmem:[%s51 + $0x430] sm:$0xff]
    %v6307 = vld [vmem:[%s51 + $0x438] sm:$0xff]
    %v6308 = vld [vmem:[%s51 + $0x440] sm:$0xff]
    %v6309 = vld [vmem:[%s51 + $0x448] sm:$0xff]
    %v6310 = vld [vmem:[%s51 + $0x450] sm:$0xff]
    %v6311 = vld [vmem:[%s51 + $0x458] sm:$0xff]
    %v6312 = vld [vmem:[%s51 + $0x460] sm:$0xff]
    %v6313 = vld [vmem:[%s51 + $0x468] sm:$0xff]
    %v6314 = vld [vmem:[%s51 + $0x470] sm:$0xff]
    %v6315 = vld [vmem:[%s51 + $0x478] sm:$0xff]
    %v6316 = vld [vmem:[%s51 + $0x480] sm:$0xff]
    %v6317 = vld [vmem:[%s51 + $0x488] sm:$0xff]
    %v6318 = vld [vmem:[%s51 + $0x490] sm:$0xff]
    %v6319 = vld [vmem:[%s51 + $0x498] sm:$0xff]
    %v6320 = vld [vmem:[%s51 + $0x4a0] sm:$0xff]
    %v6321 = vld [vmem:[%s51 + $0x4a8] sm:$0xff]
    %v6322 = vld [vmem:[%s51 + $0x4b0] sm:$0xff]
    %v6323 = vld [vmem:[%s51 + $0x4b8] sm:$0xff]
    %v6324 = vld [vmem:[%s51 + $0x4c0] sm:$0xff]
    %v6325 = vld [vmem:[%s51 + $0x4c8] sm:$0xff]
    %v6326 = vld [vmem:[%s51 + $0x4d0] sm:$0xff]
    %v6327 = vld [vmem:[%s51 + $0x4d8] sm:$0xff]
    %v6328 = vld [vmem:[%s51 + $0x4e0] sm:$0xff]
    %v6329 = vld [vmem:[%s51 + $0x4e8] sm:$0xff]
    %v6330 = vld [vmem:[%s51 + $0x4f0] sm:$0xff]
    %v6331 = vld [vmem:[%s51 + $0x4f8] sm:$0xff]
    %v6332 = vld [vmem:[%s51 + $0x500] sm:$0xff]
    %v6333 = vld [vmem:[%s51 + $0x508] sm:$0xff]
    %v6334 = vld [vmem:[%s51 + $0x510] sm:$0xff]
    %v6335 = vld [vmem:[%s51 + $0x518] sm:$0xff]
    %v6336 = vld [vmem:[%s51 + $0x520] sm:$0xff]
    %v6337 = vld [vmem:[%s51 + $0x528] sm:$0xff]
    %v6338 = vld [vmem:[%s51 + $0x530] sm:$0xff]
    %v6339 = vld [vmem:[%s51 + $0x538] sm:$0xff]
    %v6340 = vld [vmem:[%s51 + $0x540] sm:$0xff]
    %v6341 = vld [vmem:[%s51 + $0x548] sm:$0xff]
    %v6342 = vld [vmem:[%s51 + $0x550] sm:$0xff]
    %v6343 = vld [vmem:[%s51 + $0x558] sm:$0xff]
    %v6344 = vld [vmem:[%s51 + $0x560] sm:$0xff]
    %v6345 = vld [vmem:[%s51 + $0x568] sm:$0xff]
    %v6346 = vld [vmem:[%s51 + $0x570] sm:$0xff]
    %v6347 = vld [vmem:[%s51 + $0x578] sm:$0xff]
    %v6348 = vld [vmem:[%s51 + $0x580] sm:$0xff]
    %v6349 = vld [vmem:[%s51 + $0x588] sm:$0xff]
    %v6350 = vld [vmem:[%s51 + $0x590] sm:$0xff]
    %v6351 = vld [vmem:[%s51 + $0x598] sm:$0xff]
    %v6352 = vld [vmem:[%s51 + $0x5a0] sm:$0xff]
    %v6353 = vld [vmem:[%s51 + $0x5a8] sm:$0xff]
    %v6354 = vld [vmem:[%s51 + $0x5b0] sm:$0xff]
    %v6355 = vld [vmem:[%s51 + $0x5b8] sm:$0xff]
    %v6356 = vld [vmem:[%s51 + $0x5c0] sm:$0xff]
    %v6357 = vld [vmem:[%s51 + $0x5c8] sm:$0xff]
    %v6358 = vld [vmem:[%s51 + $0x5d0] sm:$0xff]
    %v6359 = vld [vmem:[%s51 + $0x5d8] sm:$0xff]
    %v6360 = vld [vmem:[%s51 + $0x5e0] sm:$0xff]
    %v6361 = vld [vmem:[%s51 + $0x5e8] sm:$0xff]
    %v6362 = vld [vmem:[%s51 + $0x5f0] sm:$0xff]
    %v6363 = vld [vmem:[%s51 + $0x5f8] sm:$0xff]
    %v6364 = vld [vmem:[%s51 + $0x600] sm:$0xff]
    %v6365 = vld [vmem:[%s51 + $0x608] sm:$0xff]
    %v6366 = vld [vmem:[%s51 + $0x610] sm:$0xff]
    %v6367 = vld [vmem:[%s51 + $0x618] sm:$0xff]
    %v6368 = vld [vmem:[%s51 + $0x620] sm:$0xff]
    %v6369 = vld [vmem:[%s51 + $0x628] sm:$0xff]
    %v6370 = vld [vmem:[%s51 + $0x630] sm:$0xff]
    %v6371 = vld [vmem:[%s51 + $0x638] sm:$0xff]
    %v6372 = vld [vmem:[%s51 + $0x640] sm:$0xff]
    %v6373 = vld [vmem:[%s51 + $0x648] sm:$0xff]
    %v6374 = vld [vmem:[%s51 + $0x650] sm:$0xff]
    %v6375 = vld [vmem:[%s51 + $0x658] sm:$0xff]
    %v6376 = vld [vmem:[%s51 + $0x660] sm:$0xff]
    %v6377 = vld [vmem:[%s51 + $0x668] sm:$0xff]
    %v6378 = vld [vmem:[%s51 + $0x670] sm:$0xff]
    %v6379 = vld [vmem:[%s51 + $0x678] sm:$0xff]
    %v6380 = vld [vmem:[%s51 + $0x680] sm:$0xff]
    %v6381 = vld [vmem:[%s51 + $0x688] sm:$0xff]
    %v6382 = vld [vmem:[%s51 + $0x690] sm:$0xff]
    %v6383 = vld [vmem:[%s51 + $0x698] sm:$0xff]
    %v6384 = vld [vmem:[%s51 + $0x6a0] sm:$0xff]
    %v6385 = vld [vmem:[%s51 + $0x6a8] sm:$0xff]
    %v6386 = vld [vmem:[%s51 + $0x6b0] sm:$0xff]
    %v6387 = vld [vmem:[%s51 + $0x6b8] sm:$0xff]
    %v6388 = vld [vmem:[%s51 + $0x6c0] sm:$0xff]
    %v6389 = vld [vmem:[%s51 + $0x6c8] sm:$0xff]
    %v6390 = vld [vmem:[%s51 + $0x6d0] sm:$0xff]
    %v6391 = vld [vmem:[%s51 + $0x6d8] sm:$0xff]
    %v6392 = vld [vmem:[%s51 + $0x6e0] sm:$0xff]
    %v6393 = vld [vmem:[%s51 + $0x6e8] sm:$0xff]
    %v6394 = vld [vmem:[%s51 + $0x6f0] sm:$0xff]
    %v6395 = vld [vmem:[%s51 + $0x6f8] sm:$0xff]
    %v6396 = vld [vmem:[%s51 + $0x700] sm:$0xff]
    %v6397 = vld [vmem:[%s51 + $0x708] sm:$0xff]
    %v6398 = vld [vmem:[%s51 + $0x710] sm:$0xff]
    %v6399 = vld [vmem:[%s51 + $0x718] sm:$0xff]
    %v6400 = vld [vmem:[%s51 + $0x720] sm:$0xff]
    %v6401 = vld [vmem:[%s51 + $0x728] sm:$0xff]
    %v6402 = vld [vmem:[%s51 + $0x730] sm:$0xff]
    %v6403 = vld [vmem:[%s51 + $0x738] sm:$0xff]
    %v6404 = vld [vmem:[%s51 + $0x740] sm:$0xff]
    %v6405 = vld [vmem:[%s51 + $0x748] sm:$0xff]
    %v6406 = vld [vmem:[%s51 + $0x750] sm:$0xff]
    %v6407 = vld [vmem:[%s51 + $0x758] sm:$0xff]
    %v6408 = vld [vmem:[%s51 + $0x760] sm:$0xff]
    %v6409 = vld [vmem:[%s51 + $0x768] sm:$0xff]
    %v6410 = vld [vmem:[%s51 + $0x770] sm:$0xff]
    %v6411 = vld [vmem:[%s51 + $0x778] sm:$0xff]
    %v6412 = vld [vmem:[%s51 + $0x780] sm:$0xff]
    %v6413 = vld [vmem:[%s51 + $0x788] sm:$0xff]
    %v6414 = vld [vmem:[%s51 + $0x790] sm:$0xff]
    %v6415 = vld [vmem:[%s51 + $0x798] sm:$0xff]
    %v6416 = vld [vmem:[%s51 + $0x7a0] sm:$0xff]
    %v6417 = vld [vmem:[%s51 + $0x7a8] sm:$0xff]
    %v6418 = vld [vmem:[%s51 + $0x7b0] sm:$0xff]
    %v6419 = vld [vmem:[%s51 + $0x7b8] sm:$0xff]
    %v6420 = vld [vmem:[%s51 + $0x7c0] sm:$0xff]
    %v6421 = vld [vmem:[%s51 + $0x7c8] sm:$0xff]
    %v6422 = vld [vmem:[%s51 + $0x7d0] sm:$0xff]
    %v6423 = vld [vmem:[%s51 + $0x7d8] sm:$0xff]
    %v6424 = vld [vmem:[%s51 + $0x7e0] sm:$0xff]
    %v6425 = vld [vmem:[%s51 + $0x7e8] sm:$0xff]
    %v6426 = vld [vmem:[%s51 + $0x7f0] sm:$0xff]
    %v6427 = vld [vmem:[%s51 + $0x7f8] sm:$0xff]
    %v6684 = vunpack.c.l.b16 %v6172
    %v6685 = vunpack.c.h.b16 %v6172
    %v6686 = vunpack.c.l.b16 %v6173
    %v6687 = vunpack.c.h.b16 %v6173
    %v6688 = vunpack.c.l.b16 %v6174
    %v6689 = vunpack.c.h.b16 %v6174
    %v6690 = vunpack.c.l.b16 %v6175
    %v6691 = vunpack.c.h.b16 %v6175
    %v6692 = vunpack.c.l.b16 %v6176
    %v6693 = vunpack.c.h.b16 %v6176
    %v6694 = vunpack.c.l.b16 %v6177
    %v6695 = vunpack.c.h.b16 %v6177
    %v6696 = vunpack.c.l.b16 %v6178
    %v6697 = vunpack.c.h.b16 %v6178
    %v6698 = vunpack.c.l.b16 %v6179
    %v6699 = vunpack.c.h.b16 %v6179
    %v6700 = vunpack.c.l.b16 %v6180
    %v6701 = vunpack.c.h.b16 %v6180
    %v6702 = vunpack.c.l.b16 %v6181
    %v6703 = vunpack.c.h.b16 %v6181
    %v6704 = vunpack.c.l.b16 %v6182
    %v6705 = vunpack.c.h.b16 %v6182
    %v6706 = vunpack.c.l.b16 %v6183
    %v6707 = vunpack.c.h.b16 %v6183
    %v6708 = vunpack.c.l.b16 %v6184
    %v6709 = vunpack.c.h.b16 %v6184
    %v6710 = vunpack.c.l.b16 %v6185
    %v6711 = vunpack.c.h.b16 %v6185
    %v6712 = vunpack.c.l.b16 %v6186
    %v6713 = vunpack.c.h.b16 %v6186
    %v6714 = vunpack.c.l.b16 %v6187
    %v6715 = vunpack.c.h.b16 %v6187
    %v6716 = vunpack.c.l.b16 %v6188
    %v6717 = vunpack.c.h.b16 %v6188
    %v6718 = vunpack.c.l.b16 %v6189
    %v6719 = vunpack.c.h.b16 %v6189
    %v6720 = vunpack.c.l.b16 %v6190
    %v6721 = vunpack.c.h.b16 %v6190
    %v6722 = vunpack.c.l.b16 %v6191
    %v6723 = vunpack.c.h.b16 %v6191
    %v6724 = vunpack.c.l.b16 %v6192
    %v6725 = vunpack.c.h.b16 %v6192
    %v6726 = vunpack.c.l.b16 %v6193
    %v6727 = vunpack.c.h.b16 %v6193
    %v6728 = vunpack.c.l.b16 %v6194
    %v6729 = vunpack.c.h.b16 %v6194
    %v6730 = vunpack.c.l.b16 %v6195
    %v6731 = vunpack.c.h.b16 %v6195
    %v6732 = vunpack.c.l.b16 %v6196
    %v6733 = vunpack.c.h.b16 %v6196
    %v6734 = vunpack.c.l.b16 %v6197
    %v6735 = vunpack.c.h.b16 %v6197
    %v6736 = vunpack.c.l.b16 %v6198
    %v6737 = vunpack.c.h.b16 %v6198
    %v6738 = vunpack.c.l.b16 %v6199
    %v6739 = vunpack.c.h.b16 %v6199
    %v6740 = vunpack.c.l.b16 %v6200
    %v6741 = vunpack.c.h.b16 %v6200
    %v6742 = vunpack.c.l.b16 %v6201
    %v6743 = vunpack.c.h.b16 %v6201
    %v6744 = vunpack.c.l.b16 %v6202
    %v6745 = vunpack.c.h.b16 %v6202
    %v6746 = vunpack.c.l.b16 %v6203
    %v6747 = vunpack.c.h.b16 %v6203
    %v6748 = vunpack.c.l.b16 %v6204
    %v6749 = vunpack.c.h.b16 %v6204
    %v6750 = vunpack.c.l.b16 %v6205
    %v6751 = vunpack.c.h.b16 %v6205
    %v6752 = vunpack.c.l.b16 %v6206
    %v6753 = vunpack.c.h.b16 %v6206
    %v6754 = vunpack.c.l.b16 %v6207
    %v6755 = vunpack.c.h.b16 %v6207
    %v6756 = vunpack.c.l.b16 %v6208
    %v6757 = vunpack.c.h.b16 %v6208
    %v6758 = vunpack.c.l.b16 %v6209
    %v6759 = vunpack.c.h.b16 %v6209
    %v6760 = vunpack.c.l.b16 %v6210
    %v6761 = vunpack.c.h.b16 %v6210
    %v6762 = vunpack.c.l.b16 %v6211
    %v6763 = vunpack.c.h.b16 %v6211
    %v6764 = vunpack.c.l.b16 %v6212
    %v6765 = vunpack.c.h.b16 %v6212
    %v6766 = vunpack.c.l.b16 %v6213
    %v6767 = vunpack.c.h.b16 %v6213
    %v6768 = vunpack.c.l.b16 %v6214
    %v6769 = vunpack.c.h.b16 %v6214
    %v6770 = vunpack.c.l.b16 %v6215
    %v6771 = vunpack.c.h.b16 %v6215
    %v6772 = vunpack.c.l.b16 %v6216
    %v6773 = vunpack.c.h.b16 %v6216
    %v6774 = vunpack.c.l.b16 %v6217
    %v6775 = vunpack.c.h.b16 %v6217
    %v6776 = vunpack.c.l.b16 %v6218
    %v6777 = vunpack.c.h.b16 %v6218
    %v6778 = vunpack.c.l.b16 %v6219
    %v6779 = vunpack.c.h.b16 %v6219
    %v6780 = vunpack.c.l.b16 %v6220
    %v6781 = vunpack.c.h.b16 %v6220
    %v6782 = vunpack.c.l.b16 %v6221
    %v6783 = vunpack.c.h.b16 %v6221
    %v6784 = vunpack.c.l.b16 %v6222
    %v6785 = vunpack.c.h.b16 %v6222
    %v6786 = vunpack.c.l.b16 %v6223
    %v6787 = vunpack.c.h.b16 %v6223
    %v6788 = vunpack.c.l.b16 %v6224
    %v6789 = vunpack.c.h.b16 %v6224
    %v6790 = vunpack.c.l.b16 %v6225
    %v6791 = vunpack.c.h.b16 %v6225
    %v6792 = vunpack.c.l.b16 %v6226
    %v6793 = vunpack.c.h.b16 %v6226
    %v6794 = vunpack.c.l.b16 %v6227
    %v6795 = vunpack.c.h.b16 %v6227
    %v6796 = vunpack.c.l.b16 %v6228
    %v6797 = vunpack.c.h.b16 %v6228
    %v6798 = vunpack.c.l.b16 %v6229
    %v6799 = vunpack.c.h.b16 %v6229
    %v6800 = vunpack.c.l.b16 %v6230
    %v6801 = vunpack.c.h.b16 %v6230
    %v6802 = vunpack.c.l.b16 %v6231
    %v6803 = vunpack.c.h.b16 %v6231
    %v6804 = vunpack.c.l.b16 %v6232
    %v6805 = vunpack.c.h.b16 %v6232
    %v6806 = vunpack.c.l.b16 %v6233
    %v6807 = vunpack.c.h.b16 %v6233
    %v6808 = vunpack.c.l.b16 %v6234
    %v6809 = vunpack.c.h.b16 %v6234
    %v6810 = vunpack.c.l.b16 %v6235
    %v6811 = vunpack.c.h.b16 %v6235
    %v6812 = vunpack.c.l.b16 %v6236
    %v6813 = vunpack.c.h.b16 %v6236
    %v6814 = vunpack.c.l.b16 %v6237
    %v6815 = vunpack.c.h.b16 %v6237
    %v6816 = vunpack.c.l.b16 %v6238
    %v6817 = vunpack.c.h.b16 %v6238
    %v6818 = vunpack.c.l.b16 %v6239
    %v6819 = vunpack.c.h.b16 %v6239
    %v6820 = vunpack.c.l.b16 %v6240
    %v6821 = vunpack.c.h.b16 %v6240
    %v6822 = vunpack.c.l.b16 %v6241
    %v6823 = vunpack.c.h.b16 %v6241
    %v6824 = vunpack.c.l.b16 %v6242
    %v6825 = vunpack.c.h.b16 %v6242
    %v6826 = vunpack.c.l.b16 %v6243
    %v6827 = vunpack.c.h.b16 %v6243
    %v6828 = vunpack.c.l.b16 %v6244
    %v6829 = vunpack.c.h.b16 %v6244
    %v6830 = vunpack.c.l.b16 %v6245
    %v6831 = vunpack.c.h.b16 %v6245
    %v6832 = vunpack.c.l.b16 %v6246
    %v6833 = vunpack.c.h.b16 %v6246
    %v6834 = vunpack.c.l.b16 %v6247
    %v6835 = vunpack.c.h.b16 %v6247
    %v6836 = vunpack.c.l.b16 %v6248
    %v6837 = vunpack.c.h.b16 %v6248
    %v6838 = vunpack.c.l.b16 %v6249
    %v6839 = vunpack.c.h.b16 %v6249
    %v6840 = vunpack.c.l.b16 %v6250
    %v6841 = vunpack.c.h.b16 %v6250
    %v6842 = vunpack.c.l.b16 %v6251
    %v6843 = vunpack.c.h.b16 %v6251
    %v6844 = vunpack.c.l.b16 %v6252
    %v6845 = vunpack.c.h.b16 %v6252
    %v6846 = vunpack.c.l.b16 %v6253
    %v6847 = vunpack.c.h.b16 %v6253
    %v6848 = vunpack.c.l.b16 %v6254
    %v6849 = vunpack.c.h.b16 %v6254
    %v6850 = vunpack.c.l.b16 %v6255
    %v6851 = vunpack.c.h.b16 %v6255
    %v6852 = vunpack.c.l.b16 %v6256
    %v6853 = vunpack.c.h.b16 %v6256
    %v6854 = vunpack.c.l.b16 %v6257
    %v6855 = vunpack.c.h.b16 %v6257
    %v6856 = vunpack.c.l.b16 %v6258
    %v6857 = vunpack.c.h.b16 %v6258
    %v6858 = vunpack.c.l.b16 %v6259
    %v6859 = vunpack.c.h.b16 %v6259
    %v6860 = vunpack.c.l.b16 %v6260
    %v6861 = vunpack.c.h.b16 %v6260
    %v6862 = vunpack.c.l.b16 %v6261
    %v6863 = vunpack.c.h.b16 %v6261
    %v6864 = vunpack.c.l.b16 %v6262
    %v6865 = vunpack.c.h.b16 %v6262
    %v6866 = vunpack.c.l.b16 %v6263
    %v6867 = vunpack.c.h.b16 %v6263
    %v6868 = vunpack.c.l.b16 %v6264
    %v6869 = vunpack.c.h.b16 %v6264
    %v6870 = vunpack.c.l.b16 %v6265
    %v6871 = vunpack.c.h.b16 %v6265
    %v6872 = vunpack.c.l.b16 %v6266
    %v6873 = vunpack.c.h.b16 %v6266
    %v6874 = vunpack.c.l.b16 %v6267
    %v6875 = vunpack.c.h.b16 %v6267
    %v6876 = vunpack.c.l.b16 %v6268
    %v6877 = vunpack.c.h.b16 %v6268
    %v6878 = vunpack.c.l.b16 %v6269
    %v6879 = vunpack.c.h.b16 %v6269
    %v6880 = vunpack.c.l.b16 %v6270
    %v6881 = vunpack.c.h.b16 %v6270
    %v6882 = vunpack.c.l.b16 %v6271
    %v6883 = vunpack.c.h.b16 %v6271
    %v6884 = vunpack.c.l.b16 %v6272
    %v6885 = vunpack.c.h.b16 %v6272
    %v6886 = vunpack.c.l.b16 %v6273
    %v6887 = vunpack.c.h.b16 %v6273
    %v6888 = vunpack.c.l.b16 %v6274
    %v6889 = vunpack.c.h.b16 %v6274
    %v6890 = vunpack.c.l.b16 %v6275
    %v6891 = vunpack.c.h.b16 %v6275
    %v6892 = vunpack.c.l.b16 %v6276
    %v6893 = vunpack.c.h.b16 %v6276
    %v6894 = vunpack.c.l.b16 %v6277
    %v6895 = vunpack.c.h.b16 %v6277
    %v6896 = vunpack.c.l.b16 %v6278
    %v6897 = vunpack.c.h.b16 %v6278
    %v6898 = vunpack.c.l.b16 %v6279
    %v6899 = vunpack.c.h.b16 %v6279
    %v6900 = vunpack.c.l.b16 %v6280
    %v6901 = vunpack.c.h.b16 %v6280
    %v6902 = vunpack.c.l.b16 %v6281
    %v6903 = vunpack.c.h.b16 %v6281
    %v6904 = vunpack.c.l.b16 %v6282
    %v6905 = vunpack.c.h.b16 %v6282
    %v6906 = vunpack.c.l.b16 %v6283
    %v6907 = vunpack.c.h.b16 %v6283
    %v6908 = vunpack.c.l.b16 %v6284
    %v6909 = vunpack.c.h.b16 %v6284
    %v6910 = vunpack.c.l.b16 %v6285
    %v6911 = vunpack.c.h.b16 %v6285
    %v6912 = vunpack.c.l.b16 %v6286
    %v6913 = vunpack.c.h.b16 %v6286
    %v6914 = vunpack.c.l.b16 %v6287
    %v6915 = vunpack.c.h.b16 %v6287
    %v6916 = vunpack.c.l.b16 %v6288
    %v6917 = vunpack.c.h.b16 %v6288
    %v6918 = vunpack.c.l.b16 %v6289
    %v6919 = vunpack.c.h.b16 %v6289
    %v6920 = vunpack.c.l.b16 %v6290
    %v6921 = vunpack.c.h.b16 %v6290
    %v6922 = vunpack.c.l.b16 %v6291
    %v6923 = vunpack.c.h.b16 %v6291
    %v6924 = vunpack.c.l.b16 %v6292
    %v6925 = vunpack.c.h.b16 %v6292
    %v6926 = vunpack.c.l.b16 %v6293
    %v6927 = vunpack.c.h.b16 %v6293
    %v6928 = vunpack.c.l.b16 %v6294
    %v6929 = vunpack.c.h.b16 %v6294
    %v6930 = vunpack.c.l.b16 %v6295
    %v6931 = vunpack.c.h.b16 %v6295
    %v6932 = vunpack.c.l.b16 %v6296
    %v6933 = vunpack.c.h.b16 %v6296
    %v6934 = vunpack.c.l.b16 %v6297
    %v6935 = vunpack.c.h.b16 %v6297
    %v6936 = vunpack.c.l.b16 %v6298
    %v6937 = vunpack.c.h.b16 %v6298
    %v6938 = vunpack.c.l.b16 %v6299
    %v6939 = vunpack.c.h.b16 %v6299
    %v6940 = vunpack.c.l.b16 %v6300
    %v6941 = vunpack.c.h.b16 %v6300
    %v6942 = vunpack.c.l.b16 %v6301
    %v6943 = vunpack.c.h.b16 %v6301
    %v6944 = vunpack.c.l.b16 %v6302
    %v6945 = vunpack.c.h.b16 %v6302
    %v6946 = vunpack.c.l.b16 %v6303
    %v6947 = vunpack.c.h.b16 %v6303
    %v6948 = vunpack.c.l.b16 %v6304
    %v6949 = vunpack.c.h.b16 %v6304
    %v6950 = vunpack.c.l.b16 %v6305
    %v6951 = vunpack.c.h.b16 %v6305
    %v6952 = vunpack.c.l.b16 %v6306
    %v6953 = vunpack.c.h.b16 %v6306
    %v6954 = vunpack.c.l.b16 %v6307
    %v6955 = vunpack.c.h.b16 %v6307
    %v6956 = vunpack.c.l.b16 %v6308
    %v6957 = vunpack.c.h.b16 %v6308
    %v6958 = vunpack.c.l.b16 %v6309
    %v6959 = vunpack.c.h.b16 %v6309
    %v6960 = vunpack.c.l.b16 %v6310
    %v6961 = vunpack.c.h.b16 %v6310
    %v6962 = vunpack.c.l.b16 %v6311
    %v6963 = vunpack.c.h.b16 %v6311
    %v6964 = vunpack.c.l.b16 %v6312
    %v6965 = vunpack.c.h.b16 %v6312
    %v6966 = vunpack.c.l.b16 %v6313
    %v6967 = vunpack.c.h.b16 %v6313
    %v6968 = vunpack.c.l.b16 %v6314
    %v6969 = vunpack.c.h.b16 %v6314
    %v6970 = vunpack.c.l.b16 %v6315
    %v6971 = vunpack.c.h.b16 %v6315
    %v6972 = vunpack.c.l.b16 %v6316
    %v6973 = vunpack.c.h.b16 %v6316
    %v6974 = vunpack.c.l.b16 %v6317
    %v6975 = vunpack.c.h.b16 %v6317
    %v6976 = vunpack.c.l.b16 %v6318
    %v6977 = vunpack.c.h.b16 %v6318
    %v6978 = vunpack.c.l.b16 %v6319
    %v6979 = vunpack.c.h.b16 %v6319
    %v6980 = vunpack.c.l.b16 %v6320
    %v6981 = vunpack.c.h.b16 %v6320
    %v6982 = vunpack.c.l.b16 %v6321
    %v6983 = vunpack.c.h.b16 %v6321
    %v6984 = vunpack.c.l.b16 %v6322
    %v6985 = vunpack.c.h.b16 %v6322
    %v6986 = vunpack.c.l.b16 %v6323
    %v6987 = vunpack.c.h.b16 %v6323
    %v6988 = vunpack.c.l.b16 %v6324
    %v6989 = vunpack.c.h.b16 %v6324
    %v6990 = vunpack.c.l.b16 %v6325
    %v6991 = vunpack.c.h.b16 %v6325
    %v6992 = vunpack.c.l.b16 %v6326
    %v6993 = vunpack.c.h.b16 %v6326
    %v6994 = vunpack.c.l.b16 %v6327
    %v6995 = vunpack.c.h.b16 %v6327
    %v6996 = vunpack.c.l.b16 %v6328
    %v6997 = vunpack.c.h.b16 %v6328
    %v6998 = vunpack.c.l.b16 %v6329
    %v6999 = vunpack.c.h.b16 %v6329
    %v7000 = vunpack.c.l.b16 %v6330
    %v7001 = vunpack.c.h.b16 %v6330
    %v7002 = vunpack.c.l.b16 %v6331
    %v7003 = vunpack.c.h.b16 %v6331
    %v7004 = vunpack.c.l.b16 %v6332
    %v7005 = vunpack.c.h.b16 %v6332
    %v7006 = vunpack.c.l.b16 %v6333
    %v7007 = vunpack.c.h.b16 %v6333
    %v7008 = vunpack.c.l.b16 %v6334
    %v7009 = vunpack.c.h.b16 %v6334
    %v7010 = vunpack.c.l.b16 %v6335
    %v7011 = vunpack.c.h.b16 %v6335
    %v7012 = vunpack.c.l.b16 %v6336
    %v7013 = vunpack.c.h.b16 %v6336
    %v7014 = vunpack.c.l.b16 %v6337
    %v7015 = vunpack.c.h.b16 %v6337
    %v7016 = vunpack.c.l.b16 %v6338
    %v7017 = vunpack.c.h.b16 %v6338
    %v7018 = vunpack.c.l.b16 %v6339
    %v7019 = vunpack.c.h.b16 %v6339
    %v7020 = vunpack.c.l.b16 %v6340
    %v7021 = vunpack.c.h.b16 %v6340
    %v7022 = vunpack.c.l.b16 %v6341
    %v7023 = vunpack.c.h.b16 %v6341
    %v7024 = vunpack.c.l.b16 %v6342
    %v7025 = vunpack.c.h.b16 %v6342
    %v7026 = vunpack.c.l.b16 %v6343
    %v7027 = vunpack.c.h.b16 %v6343
    %v7028 = vunpack.c.l.b16 %v6344
    %v7029 = vunpack.c.h.b16 %v6344
    %v7030 = vunpack.c.l.b16 %v6345
    %v7031 = vunpack.c.h.b16 %v6345
    %v7032 = vunpack.c.l.b16 %v6346
    %v7033 = vunpack.c.h.b16 %v6346
    %v7034 = vunpack.c.l.b16 %v6347
    %v7035 = vunpack.c.h.b16 %v6347
    %v7036 = vunpack.c.l.b16 %v6348
    %v7037 = vunpack.c.h.b16 %v6348
    %v7038 = vunpack.c.l.b16 %v6349
    %v7039 = vunpack.c.h.b16 %v6349
    %v7040 = vunpack.c.l.b16 %v6350
    %v7041 = vunpack.c.h.b16 %v6350
    %v7042 = vunpack.c.l.b16 %v6351
    %v7043 = vunpack.c.h.b16 %v6351
    %v7044 = vunpack.c.l.b16 %v6352
    %v7045 = vunpack.c.h.b16 %v6352
    %v7046 = vunpack.c.l.b16 %v6353
    %v7047 = vunpack.c.h.b16 %v6353
    %v7048 = vunpack.c.l.b16 %v6354
    %v7049 = vunpack.c.h.b16 %v6354
    %v7050 = vunpack.c.l.b16 %v6355
    %v7051 = vunpack.c.h.b16 %v6355
    %v7052 = vunpack.c.l.b16 %v6356
    %v7053 = vunpack.c.h.b16 %v6356
    %v7054 = vunpack.c.l.b16 %v6357
    %v7055 = vunpack.c.h.b16 %v6357
    %v7056 = vunpack.c.l.b16 %v6358
    %v7057 = vunpack.c.h.b16 %v6358
    %v7058 = vunpack.c.l.b16 %v6359
    %v7059 = vunpack.c.h.b16 %v6359
    %v7060 = vunpack.c.l.b16 %v6360
    %v7061 = vunpack.c.h.b16 %v6360
    %v7062 = vunpack.c.l.b16 %v6361
    %v7063 = vunpack.c.h.b16 %v6361
    %v7064 = vunpack.c.l.b16 %v6362
    %v7065 = vunpack.c.h.b16 %v6362
    %v7066 = vunpack.c.l.b16 %v6363
    %v7067 = vunpack.c.h.b16 %v6363
    %v7068 = vunpack.c.l.b16 %v6364
    %v7069 = vunpack.c.h.b16 %v6364
    %v7070 = vunpack.c.l.b16 %v6365
    %v7071 = vunpack.c.h.b16 %v6365
    %v7072 = vunpack.c.l.b16 %v6366
    %v7073 = vunpack.c.h.b16 %v6366
    %v7074 = vunpack.c.l.b16 %v6367
    %v7075 = vunpack.c.h.b16 %v6367
    %v7076 = vunpack.c.l.b16 %v6368
    %v7077 = vunpack.c.h.b16 %v6368
    %v7078 = vunpack.c.l.b16 %v6369
    %v7079 = vunpack.c.h.b16 %v6369
    %v7080 = vunpack.c.l.b16 %v6370
    %v7081 = vunpack.c.h.b16 %v6370
    %v7082 = vunpack.c.l.b16 %v6371
    %v7083 = vunpack.c.h.b16 %v6371
    %v7084 = vunpack.c.l.b16 %v6372
    %v7085 = vunpack.c.h.b16 %v6372
    %v7086 = vunpack.c.l.b16 %v6373
    %v7087 = vunpack.c.h.b16 %v6373
    %v7088 = vunpack.c.l.b16 %v6374
    %v7089 = vunpack.c.h.b16 %v6374
    %v7090 = vunpack.c.l.b16 %v6375
    %v7091 = vunpack.c.h.b16 %v6375
    %v7092 = vunpack.c.l.b16 %v6376
    %v7093 = vunpack.c.h.b16 %v6376
    %v7094 = vunpack.c.l.b16 %v6377
    %v7095 = vunpack.c.h.b16 %v6377
    %v7096 = vunpack.c.l.b16 %v6378
    %v7097 = vunpack.c.h.b16 %v6378
    %v7098 = vunpack.c.l.b16 %v6379
    %v7099 = vunpack.c.h.b16 %v6379
    %v7100 = vunpack.c.l.b16 %v6380
    %v7101 = vunpack.c.h.b16 %v6380
    %v7102 = vunpack.c.l.b16 %v6381
    %v7103 = vunpack.c.h.b16 %v6381
    %v7104 = vunpack.c.l.b16 %v6382
    %v7105 = vunpack.c.h.b16 %v6382
    %v7106 = vunpack.c.l.b16 %v6383
    %v7107 = vunpack.c.h.b16 %v6383
    %v7108 = vunpack.c.l.b16 %v6384
    %v7109 = vunpack.c.h.b16 %v6384
    %v7110 = vunpack.c.l.b16 %v6385
    %v7111 = vunpack.c.h.b16 %v6385
    %v7112 = vunpack.c.l.b16 %v6386
    %v7113 = vunpack.c.h.b16 %v6386
    %v7114 = vunpack.c.l.b16 %v6387
    %v7115 = vunpack.c.h.b16 %v6387
    %v7116 = vunpack.c.l.b16 %v6388
    %v7117 = vunpack.c.h.b16 %v6388
    %v7118 = vunpack.c.l.b16 %v6389
    %v7119 = vunpack.c.h.b16 %v6389
    %v7120 = vunpack.c.l.b16 %v6390
    %v7121 = vunpack.c.h.b16 %v6390
    %v7122 = vunpack.c.l.b16 %v6391
    %v7123 = vunpack.c.h.b16 %v6391
    %v7124 = vunpack.c.l.b16 %v6392
    %v7125 = vunpack.c.h.b16 %v6392
    %v7126 = vunpack.c.l.b16 %v6393
    %v7127 = vunpack.c.h.b16 %v6393
    %v7128 = vunpack.c.l.b16 %v6394
    %v7129 = vunpack.c.h.b16 %v6394
    %v7130 = vunpack.c.l.b16 %v6395
    %v7131 = vunpack.c.h.b16 %v6395
    %v7132 = vunpack.c.l.b16 %v6396
    %v7133 = vunpack.c.h.b16 %v6396
    %v7134 = vunpack.c.l.b16 %v6397
    %v7135 = vunpack.c.h.b16 %v6397
    %v7136 = vunpack.c.l.b16 %v6398
    %v7137 = vunpack.c.h.b16 %v6398
    %v7138 = vunpack.c.l.b16 %v6399
    %v7139 = vunpack.c.h.b16 %v6399
    %v7140 = vunpack.c.l.b16 %v6400
    %v7141 = vunpack.c.h.b16 %v6400
    %v7142 = vunpack.c.l.b16 %v6401
    %v7143 = vunpack.c.h.b16 %v6401
    %v7144 = vunpack.c.l.b16 %v6402
    %v7145 = vunpack.c.h.b16 %v6402
    %v7146 = vunpack.c.l.b16 %v6403
    %v7147 = vunpack.c.h.b16 %v6403
    %v7148 = vunpack.c.l.b16 %v6404
    %v7149 = vunpack.c.h.b16 %v6404
    %v7150 = vunpack.c.l.b16 %v6405
    %v7151 = vunpack.c.h.b16 %v6405
    %v7152 = vunpack.c.l.b16 %v6406
    %v7153 = vunpack.c.h.b16 %v6406
    %v7154 = vunpack.c.l.b16 %v6407
    %v7155 = vunpack.c.h.b16 %v6407
    %v7156 = vunpack.c.l.b16 %v6408
    %v7157 = vunpack.c.h.b16 %v6408
    %v7158 = vunpack.c.l.b16 %v6409
    %v7159 = vunpack.c.h.b16 %v6409
    %v7160 = vunpack.c.l.b16 %v6410
    %v7161 = vunpack.c.h.b16 %v6410
    %v7162 = vunpack.c.l.b16 %v6411
    %v7163 = vunpack.c.h.b16 %v6411
    %v7164 = vunpack.c.l.b16 %v6412
    %v7165 = vunpack.c.h.b16 %v6412
    %v7166 = vunpack.c.l.b16 %v6413
    %v7167 = vunpack.c.h.b16 %v6413
    %v7168 = vunpack.c.l.b16 %v6414
    %v7169 = vunpack.c.h.b16 %v6414
    %v7170 = vunpack.c.l.b16 %v6415
    %v7171 = vunpack.c.h.b16 %v6415
    %v7172 = vunpack.c.l.b16 %v6416
    %v7173 = vunpack.c.h.b16 %v6416
    %v7174 = vunpack.c.l.b16 %v6417
    %v7175 = vunpack.c.h.b16 %v6417
    %v7176 = vunpack.c.l.b16 %v6418
    %v7177 = vunpack.c.h.b16 %v6418
    %v7178 = vunpack.c.l.b16 %v6419
    %v7179 = vunpack.c.h.b16 %v6419
    %v7180 = vunpack.c.l.b16 %v6420
    %v7181 = vunpack.c.h.b16 %v6420
    %v7182 = vunpack.c.l.b16 %v6421
    %v7183 = vunpack.c.h.b16 %v6421
    %v7184 = vunpack.c.l.b16 %v6422
    %v7185 = vunpack.c.h.b16 %v6422
    %v7186 = vunpack.c.l.b16 %v6423
    %v7187 = vunpack.c.h.b16 %v6423
    %v7188 = vunpack.c.l.b16 %v6424
    %v7189 = vunpack.c.h.b16 %v6424
    %v7190 = vunpack.c.l.b16 %v6425
    %v7191 = vunpack.c.h.b16 %v6425
    %v7192 = vunpack.c.l.b16 %v6426
    %v7193 = vunpack.c.h.b16 %v6426
    %v7194 = vunpack.c.l.b16 %v6427
    %v7195 = vunpack.c.h.b16 %v6427
    %v7196 = vpack.c.b16 %v6688, %v6684
    %v7197 = vpack.c.b16 %v6689, %v6685
    %v7198 = vpack.c.b16 %v6690, %v6686
    %v7199 = vpack.c.b16 %v6691, %v6687
    %v7200 = vpack.c.b16 %v6696, %v6692
    %v7201 = vpack.c.b16 %v6697, %v6693
    %v7202 = vpack.c.b16 %v6698, %v6694
    %v7203 = vpack.c.b16 %v6699, %v6695
    %v7204 = vpack.c.b16 %v6704, %v6700
    %v7205 = vpack.c.b16 %v6705, %v6701
    %v7206 = vpack.c.b16 %v6706, %v6702
    %v7207 = vpack.c.b16 %v6707, %v6703
    %v7208 = vpack.c.b16 %v6712, %v6708
    %v7209 = vpack.c.b16 %v6713, %v6709
    %v7210 = vpack.c.b16 %v6714, %v6710
    %v7211 = vpack.c.b16 %v6715, %v6711
    %v7212 = vpack.c.b16 %v6720, %v6716
    %v7213 = vpack.c.b16 %v6721, %v6717
    %v7214 = vpack.c.b16 %v6722, %v6718
    %v7215 = vpack.c.b16 %v6723, %v6719
    %v7216 = vpack.c.b16 %v6728, %v6724
    %v7217 = vpack.c.b16 %v6729, %v6725
    %v7218 = vpack.c.b16 %v6730, %v6726
    %v7219 = vpack.c.b16 %v6731, %v6727
    %v7220 = vpack.c.b16 %v6736, %v6732
    %v7221 = vpack.c.b16 %v6737, %v6733
    %v7222 = vpack.c.b16 %v6738, %v6734
    %v7223 = vpack.c.b16 %v6739, %v6735
    %v7224 = vpack.c.b16 %v6744, %v6740
    %v7225 = vpack.c.b16 %v6745, %v6741
    %v7226 = vpack.c.b16 %v6746, %v6742
    %v7227 = vpack.c.b16 %v6747, %v6743
    %v7228 = vpack.c.b16 %v6752, %v6748
    %v7229 = vpack.c.b16 %v6753, %v6749
    %v7230 = vpack.c.b16 %v6754, %v6750
    %v7231 = vpack.c.b16 %v6755, %v6751
    %v7232 = vpack.c.b16 %v6760, %v6756
    %v7233 = vpack.c.b16 %v6761, %v6757
    %v7234 = vpack.c.b16 %v6762, %v6758
    %v7235 = vpack.c.b16 %v6763, %v6759
    %v7236 = vpack.c.b16 %v6768, %v6764
    %v7237 = vpack.c.b16 %v6769, %v6765
    %v7238 = vpack.c.b16 %v6770, %v6766
    %v7239 = vpack.c.b16 %v6771, %v6767
    %v7240 = vpack.c.b16 %v6776, %v6772
    %v7241 = vpack.c.b16 %v6777, %v6773
    %v7242 = vpack.c.b16 %v6778, %v6774
    %v7243 = vpack.c.b16 %v6779, %v6775
    %v7244 = vpack.c.b16 %v6784, %v6780
    %v7245 = vpack.c.b16 %v6785, %v6781
    %v7246 = vpack.c.b16 %v6786, %v6782
    %v7247 = vpack.c.b16 %v6787, %v6783
    %v7248 = vpack.c.b16 %v6792, %v6788
    %v7249 = vpack.c.b16 %v6793, %v6789
    %v7250 = vpack.c.b16 %v6794, %v6790
    %v7251 = vpack.c.b16 %v6795, %v6791
    %v7252 = vpack.c.b16 %v6800, %v6796
    %v7253 = vpack.c.b16 %v6801, %v6797
    %v7254 = vpack.c.b16 %v6802, %v6798
    %v7255 = vpack.c.b16 %v6803, %v6799
    %v7256 = vpack.c.b16 %v6808, %v6804
    %v7257 = vpack.c.b16 %v6809, %v6805
    %v7258 = vpack.c.b16 %v6810, %v6806
    %v7259 = vpack.c.b16 %v6811, %v6807
    %v7260 = vpack.c.b16 %v6816, %v6812
    %v7261 = vpack.c.b16 %v6817, %v6813
    %v7262 = vpack.c.b16 %v6818, %v6814
    %v7263 = vpack.c.b16 %v6819, %v6815
    %v7264 = vpack.c.b16 %v6824, %v6820
    %v7265 = vpack.c.b16 %v6825, %v6821
    %v7266 = vpack.c.b16 %v6826, %v6822
    %v7267 = vpack.c.b16 %v6827, %v6823
    %v7268 = vpack.c.b16 %v6832, %v6828
    %v7269 = vpack.c.b16 %v6833, %v6829
    %v7270 = vpack.c.b16 %v6834, %v6830
    %v7271 = vpack.c.b16 %v6835, %v6831
    %v7272 = vpack.c.b16 %v6840, %v6836
    %v7273 = vpack.c.b16 %v6841, %v6837
    %v7274 = vpack.c.b16 %v6842, %v6838
    %v7275 = vpack.c.b16 %v6843, %v6839
    %v7276 = vpack.c.b16 %v6848, %v6844
    %v7277 = vpack.c.b16 %v6849, %v6845
    %v7278 = vpack.c.b16 %v6850, %v6846
    %v7279 = vpack.c.b16 %v6851, %v6847
    %v7280 = vpack.c.b16 %v6856, %v6852
    %v7281 = vpack.c.b16 %v6857, %v6853
    %v7282 = vpack.c.b16 %v6858, %v6854
    %v7283 = vpack.c.b16 %v6859, %v6855
    %v7284 = vpack.c.b16 %v6864, %v6860
    %v7285 = vpack.c.b16 %v6865, %v6861
    %v7286 = vpack.c.b16 %v6866, %v6862
    %v7287 = vpack.c.b16 %v6867, %v6863
    %v7288 = vpack.c.b16 %v6872, %v6868
    %v7289 = vpack.c.b16 %v6873, %v6869
    %v7290 = vpack.c.b16 %v6874, %v6870
    %v7291 = vpack.c.b16 %v6875, %v6871
    %v7292 = vpack.c.b16 %v6880, %v6876
    %v7293 = vpack.c.b16 %v6881, %v6877
    %v7294 = vpack.c.b16 %v6882, %v6878
    %v7295 = vpack.c.b16 %v6883, %v6879
    %v7296 = vpack.c.b16 %v6888, %v6884
    %v7297 = vpack.c.b16 %v6889, %v6885
    %v7298 = vpack.c.b16 %v6890, %v6886
    %v7299 = vpack.c.b16 %v6891, %v6887
    %v7300 = vpack.c.b16 %v6896, %v6892
    %v7301 = vpack.c.b16 %v6897, %v6893
    %v7302 = vpack.c.b16 %v6898, %v6894
    %v7303 = vpack.c.b16 %v6899, %v6895
    %v7304 = vpack.c.b16 %v6904, %v6900
    %v7305 = vpack.c.b16 %v6905, %v6901
    %v7306 = vpack.c.b16 %v6906, %v6902
    %v7307 = vpack.c.b16 %v6907, %v6903
    %v7308 = vpack.c.b16 %v6912, %v6908
    %v7309 = vpack.c.b16 %v6913, %v6909
    %v7310 = vpack.c.b16 %v6914, %v6910
    %v7311 = vpack.c.b16 %v6915, %v6911
    %v7312 = vpack.c.b16 %v6920, %v6916
    %v7313 = vpack.c.b16 %v6921, %v6917
    %v7314 = vpack.c.b16 %v6922, %v6918
    %v7315 = vpack.c.b16 %v6923, %v6919
    %v7316 = vpack.c.b16 %v6928, %v6924
    %v7317 = vpack.c.b16 %v6929, %v6925
    %v7318 = vpack.c.b16 %v6930, %v6926
    %v7319 = vpack.c.b16 %v6931, %v6927
    %v7320 = vpack.c.b16 %v6936, %v6932
    %v7321 = vpack.c.b16 %v6937, %v6933
    %v7322 = vpack.c.b16 %v6938, %v6934
    %v7323 = vpack.c.b16 %v6939, %v6935
    %v7324 = vpack.c.b16 %v6944, %v6940
    %v7325 = vpack.c.b16 %v6945, %v6941
    %v7326 = vpack.c.b16 %v6946, %v6942
    %v7327 = vpack.c.b16 %v6947, %v6943
    %v7328 = vpack.c.b16 %v6952, %v6948
    %v7329 = vpack.c.b16 %v6953, %v6949
    %v7330 = vpack.c.b16 %v6954, %v6950
    %v7331 = vpack.c.b16 %v6955, %v6951
    %v7332 = vpack.c.b16 %v6960, %v6956
    %v7333 = vpack.c.b16 %v6961, %v6957
    %v7334 = vpack.c.b16 %v6962, %v6958
    %v7335 = vpack.c.b16 %v6963, %v6959
    %v7336 = vpack.c.b16 %v6968, %v6964
    %v7337 = vpack.c.b16 %v6969, %v6965
    %v7338 = vpack.c.b16 %v6970, %v6966
    %v7339 = vpack.c.b16 %v6971, %v6967
    %v7340 = vpack.c.b16 %v6976, %v6972
    %v7341 = vpack.c.b16 %v6977, %v6973
    %v7342 = vpack.c.b16 %v6978, %v6974
    %v7343 = vpack.c.b16 %v6979, %v6975
    %v7344 = vpack.c.b16 %v6984, %v6980
    %v7345 = vpack.c.b16 %v6985, %v6981
    %v7346 = vpack.c.b16 %v6986, %v6982
    %v7347 = vpack.c.b16 %v6987, %v6983
    %v7348 = vpack.c.b16 %v6992, %v6988
    %v7349 = vpack.c.b16 %v6993, %v6989
    %v7350 = vpack.c.b16 %v6994, %v6990
    %v7351 = vpack.c.b16 %v6995, %v6991
    %v7352 = vpack.c.b16 %v7000, %v6996
    %v7353 = vpack.c.b16 %v7001, %v6997
    %v7354 = vpack.c.b16 %v7002, %v6998
    %v7355 = vpack.c.b16 %v7003, %v6999
    %v7356 = vpack.c.b16 %v7008, %v7004
    %v7357 = vpack.c.b16 %v7009, %v7005
    %v7358 = vpack.c.b16 %v7010, %v7006
    %v7359 = vpack.c.b16 %v7011, %v7007
    %v7360 = vpack.c.b16 %v7016, %v7012
    %v7361 = vpack.c.b16 %v7017, %v7013
    %v7362 = vpack.c.b16 %v7018, %v7014
    %v7363 = vpack.c.b16 %v7019, %v7015
    %v7364 = vpack.c.b16 %v7024, %v7020
    %v7365 = vpack.c.b16 %v7025, %v7021
    %v7366 = vpack.c.b16 %v7026, %v7022
    %v7367 = vpack.c.b16 %v7027, %v7023
    %v7368 = vpack.c.b16 %v7032, %v7028
    %v7369 = vpack.c.b16 %v7033, %v7029
    %v7370 = vpack.c.b16 %v7034, %v7030
    %v7371 = vpack.c.b16 %v7035, %v7031
    %v7372 = vpack.c.b16 %v7040, %v7036
    %v7373 = vpack.c.b16 %v7041, %v7037
    %v7374 = vpack.c.b16 %v7042, %v7038
    %v7375 = vpack.c.b16 %v7043, %v7039
    %v7376 = vpack.c.b16 %v7048, %v7044
    %v7377 = vpack.c.b16 %v7049, %v7045
    %v7378 = vpack.c.b16 %v7050, %v7046
    %v7379 = vpack.c.b16 %v7051, %v7047
    %v7380 = vpack.c.b16 %v7056, %v7052
    %v7381 = vpack.c.b16 %v7057, %v7053
    %v7382 = vpack.c.b16 %v7058, %v7054
    %v7383 = vpack.c.b16 %v7059, %v7055
    %v7384 = vpack.c.b16 %v7064, %v7060
    %v7385 = vpack.c.b16 %v7065, %v7061
    %v7386 = vpack.c.b16 %v7066, %v7062
    %v7387 = vpack.c.b16 %v7067, %v7063
    %v7388 = vpack.c.b16 %v7072, %v7068
    %v7389 = vpack.c.b16 %v7073, %v7069
    %v7390 = vpack.c.b16 %v7074, %v7070
    %v7391 = vpack.c.b16 %v7075, %v7071
    %v7392 = vpack.c.b16 %v7080, %v7076
    %v7393 = vpack.c.b16 %v7081, %v7077
    %v7394 = vpack.c.b16 %v7082, %v7078
    %v7395 = vpack.c.b16 %v7083, %v7079
    %v7396 = vpack.c.b16 %v7088, %v7084
    %v7397 = vpack.c.b16 %v7089, %v7085
    %v7398 = vpack.c.b16 %v7090, %v7086
    %v7399 = vpack.c.b16 %v7091, %v7087
    %v7400 = vpack.c.b16 %v7096, %v7092
    %v7401 = vpack.c.b16 %v7097, %v7093
    %v7402 = vpack.c.b16 %v7098, %v7094
    %v7403 = vpack.c.b16 %v7099, %v7095
    %v7404 = vpack.c.b16 %v7104, %v7100
    %v7405 = vpack.c.b16 %v7105, %v7101
    %v7406 = vpack.c.b16 %v7106, %v7102
    %v7407 = vpack.c.b16 %v7107, %v7103
    %v7408 = vpack.c.b16 %v7112, %v7108
    %v7409 = vpack.c.b16 %v7113, %v7109
    %v7410 = vpack.c.b16 %v7114, %v7110
    %v7411 = vpack.c.b16 %v7115, %v7111
    %v7412 = vpack.c.b16 %v7120, %v7116
    %v7413 = vpack.c.b16 %v7121, %v7117
    %v7414 = vpack.c.b16 %v7122, %v7118
    %v7415 = vpack.c.b16 %v7123, %v7119
    %v7416 = vpack.c.b16 %v7128, %v7124
    %v7417 = vpack.c.b16 %v7129, %v7125
    %v7418 = vpack.c.b16 %v7130, %v7126
    %v7419 = vpack.c.b16 %v7131, %v7127
    %v7420 = vpack.c.b16 %v7136, %v7132
    %v7421 = vpack.c.b16 %v7137, %v7133
    %v7422 = vpack.c.b16 %v7138, %v7134
    %v7423 = vpack.c.b16 %v7139, %v7135
    %v7424 = vpack.c.b16 %v7144, %v7140
    %v7425 = vpack.c.b16 %v7145, %v7141
    %v7426 = vpack.c.b16 %v7146, %v7142
    %v7427 = vpack.c.b16 %v7147, %v7143
    %v7428 = vpack.c.b16 %v7152, %v7148
    %v7429 = vpack.c.b16 %v7153, %v7149
    %v7430 = vpack.c.b16 %v7154, %v7150
    %v7431 = vpack.c.b16 %v7155, %v7151
    %v7432 = vpack.c.b16 %v7160, %v7156
    %v7433 = vpack.c.b16 %v7161, %v7157
    %v7434 = vpack.c.b16 %v7162, %v7158
    %v7435 = vpack.c.b16 %v7163, %v7159
    %v7436 = vpack.c.b16 %v7168, %v7164
    %v7437 = vpack.c.b16 %v7169, %v7165
    %v7438 = vpack.c.b16 %v7170, %v7166
    %v7439 = vpack.c.b16 %v7171, %v7167
    %v7440 = vpack.c.b16 %v7176, %v7172
    %v7441 = vpack.c.b16 %v7177, %v7173
    %v7442 = vpack.c.b16 %v7178, %v7174
    %v7443 = vpack.c.b16 %v7179, %v7175
    %v7444 = vpack.c.b16 %v7184, %v7180
    %v7445 = vpack.c.b16 %v7185, %v7181
    %v7446 = vpack.c.b16 %v7186, %v7182
    %v7447 = vpack.c.b16 %v7187, %v7183
    %v7448 = vpack.c.b16 %v7192, %v7188
    %v7449 = vpack.c.b16 %v7193, %v7189
    %v7450 = vpack.c.b16 %v7194, %v7190
    %v7451 = vpack.c.b16 %v7195, %v7191
    %7708 = vmatprep.subr.bf16.mxu0 %v7225
    %7709 = vmatpush1.bf16.msra.mxu0 %v7224
    %7710 = vmatprep.subr.bf16.mxu0 %v7221
    %7711 = vmatpush1.bf16.msra.mxu0 %v7220
    %7712 = vmatprep.subr.bf16.mxu0 %v7217
    %7713 = vmatpush1.bf16.msra.mxu0 %v7216
    %7714 = vmatprep.subr.bf16.mxu0 %v7213
    %7715 = vmatpush1.bf16.msra.mxu0 %v7212
    %7716 = vmatprep.subr.bf16.mxu0 %v7209
    %7717 = vmatpush1.bf16.msra.mxu0 %v7208
    %7718 = vmatprep.subr.bf16.mxu0 %v7205
    %7719 = vmatpush1.bf16.msra.mxu0 %v7204
    %7720 = vmatprep.subr.bf16.mxu0 %v7201
    %7721 = vmatpush1.bf16.msra.mxu0 %v7200
    %7722 = vmatprep.subr.bf16.mxu0 %v7197
    %7723 = vmatpush1.bf16.msra.mxu0 %v7196
    %7724 = vmatprep.subr.bf16.mxu0 %v7257
    %7725 = vmatpush2.bf16.msra.mxu0 %v7256
    %7726 = vmatprep.subr.bf16.mxu0 %v7253
    %7727 = vmatpush2.bf16.msra.mxu0 %v7252
    %7728 = vmatprep.subr.bf16.mxu0 %v7249
    %7729 = vmatpush2.bf16.msra.mxu0 %v7248
    %7730 = vmatprep.subr.bf16.mxu0 %v7245
    %7731 = vmatpush2.bf16.msra.mxu0 %v7244
    %7732 = vmatprep.subr.bf16.mxu0 %v7241
    %7733 = vmatpush2.bf16.msra.mxu0 %v7240
    %7734 = vmatprep.subr.bf16.mxu0 %v7237
    %7735 = vmatpush2.bf16.msra.mxu0 %v7236
    %7736 = vmatprep.subr.bf16.mxu0 %v7233
    %7737 = vmatpush2.bf16.msra.mxu0 %v7232
    %7738 = vmatprep.subr.bf16.mxu0 %v7229
    %7739 = vmatpush2.bf16.msra.mxu0 %v7228
    %7740 = vmatprep.mubr.bf16.mxu0 %v6165
    %7741 = vmatmul.mubr.bf16.gmra.mxu0 %v6164
    %v7742 = vpop.f32.mrf.mxu0
    %v7743 = vadd.f32 0.0, %v7742
    %v7744 = vpop.f32.mrf.mxu0
    %v7745 = vadd.f32 0.0, %v7744
    %v7746 = vpop.f32.mrf.mxu0
    %v7747 = vadd.f32 0.0, %v7746
    %v7748 = vpop.f32.mrf.mxu0
    %v7749 = vadd.f32 0.0, %v7748
    %7750 = vdwg.mxu0
    %7751 = vmatprep.subr.bf16.mxu0 %v7289
    %7752 = vmatpush1.bf16.msra.mxu0 %v7288
    %7753 = vmatprep.subr.bf16.mxu0 %v7285
    %7754 = vmatpush1.bf16.msra.mxu0 %v7284
    %7755 = vmatprep.subr.bf16.mxu0 %v7281
    %7756 = vmatpush1.bf16.msra.mxu0 %v7280
    %7757 = vmatprep.subr.bf16.mxu0 %v7277
    %7758 = vmatpush1.bf16.msra.mxu0 %v7276
    %7759 = vmatprep.subr.bf16.mxu0 %v7273
    %7760 = vmatpush1.bf16.msra.mxu0 %v7272
    %7761 = vmatprep.subr.bf16.mxu0 %v7269
    %7762 = vmatpush1.bf16.msra.mxu0 %v7268
    %7763 = vmatprep.subr.bf16.mxu0 %v7265
    %7764 = vmatpush1.bf16.msra.mxu0 %v7264
    %7765 = vmatprep.subr.bf16.mxu0 %v7261
    %7766 = vmatpush1.bf16.msra.mxu0 %v7260
    %7767 = vmatprep.subr.bf16.mxu0 %v7321
    %7768 = vmatpush2.bf16.msra.mxu0 %v7320
    %7769 = vmatprep.subr.bf16.mxu0 %v7317
    %7770 = vmatpush2.bf16.msra.mxu0 %v7316
    %7771 = vmatprep.subr.bf16.mxu0 %v7313
    %7772 = vmatpush2.bf16.msra.mxu0 %v7312
    %7773 = vmatprep.subr.bf16.mxu0 %v7309
    %7774 = vmatpush2.bf16.msra.mxu0 %v7308
    %7775 = vmatprep.subr.bf16.mxu0 %v7305
    %7776 = vmatpush2.bf16.msra.mxu0 %v7304
    %7777 = vmatprep.subr.bf16.mxu0 %v7301
    %7778 = vmatpush2.bf16.msra.mxu0 %v7300
    %7779 = vmatprep.subr.bf16.mxu0 %v7297
    %7780 = vmatpush2.bf16.msra.mxu0 %v7296
    %7781 = vmatprep.subr.bf16.mxu0 %v7293
    %7782 = vmatpush2.bf16.msra.mxu0 %v7292
    %7783 = vmatprep.mubr.bf16.mxu0 %v6167
    %7784 = vmatmul.mubr.bf16.gmra.mxu0 %v6166
    %v7785 = vpop.f32.mrf.mxu0
    %v7786 = vadd.f32 %v7743, %v7785
    %v7787 = vpop.f32.mrf.mxu0
    %v7788 = vadd.f32 %v7745, %v7787
    %v7789 = vpop.f32.mrf.mxu0
    %v7790 = vadd.f32 %v7747, %v7789
    %v7791 = vpop.f32.mrf.mxu0
    %v7792 = vadd.f32 %v7749, %v7791
    %7793 = vdwg.mxu0
    %7794 = vmatprep.subr.bf16.mxu0 %v7353
    %7795 = vmatpush1.bf16.msra.mxu0 %v7352
    %7796 = vmatprep.subr.bf16.mxu0 %v7349
    %7797 = vmatpush1.bf16.msra.mxu0 %v7348
    %7798 = vmatprep.subr.bf16.mxu0 %v7345
    %7799 = vmatpush1.bf16.msra.mxu0 %v7344
    %7800 = vmatprep.subr.bf16.mxu0 %v7341
    %7801 = vmatpush1.bf16.msra.mxu0 %v7340
    %7802 = vmatprep.subr.bf16.mxu0 %v7337
    %7803 = vmatpush1.bf16.msra.mxu0 %v7336
    %7804 = vmatprep.subr.bf16.mxu0 %v7333
    %7805 = vmatpush1.bf16.msra.mxu0 %v7332
    %7806 = vmatprep.subr.bf16.mxu0 %v7329
    %7807 = vmatpush1.bf16.msra.mxu0 %v7328
    %7808 = vmatprep.subr.bf16.mxu0 %v7325
    %7809 = vmatpush1.bf16.msra.mxu0 %v7324
    %7810 = vmatprep.subr.bf16.mxu0 %v7385
    %7811 = vmatpush2.bf16.msra.mxu0 %v7384
    %7812 = vmatprep.subr.bf16.mxu0 %v7381
    %7813 = vmatpush2.bf16.msra.mxu0 %v7380
    %7814 = vmatprep.subr.bf16.mxu0 %v7377
    %7815 = vmatpush2.bf16.msra.mxu0 %v7376
    %7816 = vmatprep.subr.bf16.mxu0 %v7373
    %7817 = vmatpush2.bf16.msra.mxu0 %v7372
    %7818 = vmatprep.subr.bf16.mxu0 %v7369
    %7819 = vmatpush2.bf16.msra.mxu0 %v7368
    %7820 = vmatprep.subr.bf16.mxu0 %v7365
    %7821 = vmatpush2.bf16.msra.mxu0 %v7364
    %7822 = vmatprep.subr.bf16.mxu0 %v7361
    %7823 = vmatpush2.bf16.msra.mxu0 %v7360
    %7824 = vmatprep.subr.bf16.mxu0 %v7357
    %7825 = vmatpush2.bf16.msra.mxu0 %v7356
    %7826 = vmatprep.mubr.bf16.mxu0 %v6169
    %7827 = vmatmul.mubr.bf16.gmra.mxu0 %v6168
    %v7828 = vpop.f32.mrf.mxu0
    %v7829 = vadd.f32 %v7786, %v7828
    %v7830 = vpop.f32.mrf.mxu0
    %v7831 = vadd.f32 %v7788, %v7830
    %v7832 = vpop.f32.mrf.mxu0
    %v7833 = vadd.f32 %v7790, %v7832
    %v7834 = vpop.f32.mrf.mxu0
    %v7835 = vadd.f32 %v7792, %v7834
    %7836 = vdwg.mxu0
    %7837 = vmatprep.subr.bf16.mxu0 %v7417
    %7838 = vmatpush1.bf16.msra.mxu0 %v7416
    %7839 = vmatprep.subr.bf16.mxu0 %v7413
    %7840 = vmatpush1.bf16.msra.mxu0 %v7412
    %7841 = vmatprep.subr.bf16.mxu0 %v7409
    %7842 = vmatpush1.bf16.msra.mxu0 %v7408
    %7843 = vmatprep.subr.bf16.mxu0 %v7405
    %7844 = vmatpush1.bf16.msra.mxu0 %v7404
    %7845 = vmatprep.subr.bf16.mxu0 %v7401
    %7846 = vmatpush1.bf16.msra.mxu0 %v7400
    %7847 = vmatprep.subr.bf16.mxu0 %v7397
    %7848 = vmatpush1.bf16.msra.mxu0 %v7396
    %7849 = vmatprep.subr.bf16.mxu0 %v7393
    %7850 = vmatpush1.bf16.msra.mxu0 %v7392
    %7851 = vmatprep.subr.bf16.mxu0 %v7389
    %7852 = vmatpush1.bf16.msra.mxu0 %v7388
    %7853 = vmatprep.subr.bf16.mxu0 %v7449
    %7854 = vmatpush2.bf16.msra.mxu0 %v7448
    %7855 = vmatprep.subr.bf16.mxu0 %v7445
    %7856 = vmatpush2.bf16.msra.mxu0 %v7444
    %7857 = vmatprep.subr.bf16.mxu0 %v7441
    %7858 = vmatpush2.bf16.msra.mxu0 %v7440
    %7859 = vmatprep.subr.bf16.mxu0 %v7437
    %7860 = vmatpush2.bf16.msra.mxu0 %v7436
    %7861 = vmatprep.subr.bf16.mxu0 %v7433
    %7862 = vmatpush2.bf16.msra.mxu0 %v7432
    %7863 = vmatprep.subr.bf16.mxu0 %v7429
    %7864 = vmatpush2.bf16.msra.mxu0 %v7428
    %7865 = vmatprep.subr.bf16.mxu0 %v7425
    %7866 = vmatpush2.bf16.msra.mxu0 %v7424
    %7867 = vmatprep.subr.bf16.mxu0 %v7421
    %7868 = vmatpush2.bf16.msra.mxu0 %v7420
    %7869 = vmatprep.mubr.bf16.mxu0 %v6171
    %7870 = vmatmul.mubr.bf16.gmra.mxu0 %v6170
    %v7871 = vpop.f32.mrf.mxu0
    %v7872 = vadd.f32 %v7829, %v7871
    %v7873 = vpop.f32.mrf.mxu0
    %v7874 = vadd.f32 %v7831, %v7873
    %v7875 = vpop.f32.mrf.mxu0
    %v7876 = vadd.f32 %v7833, %v7875
    %v7877 = vpop.f32.mrf.mxu0
    %v7878 = vadd.f32 %v7835, %v7877
    %7879 = vdwg.mxu0
    %7880 = vmatprep.subr.bf16.mxu0 %v7227
    %7881 = vmatpush1.bf16.msra.mxu0 %v7226
    %7882 = vmatprep.subr.bf16.mxu0 %v7223
    %7883 = vmatpush1.bf16.msra.mxu0 %v7222
    %7884 = vmatprep.subr.bf16.mxu0 %v7219
    %7885 = vmatpush1.bf16.msra.mxu0 %v7218
    %7886 = vmatprep.subr.bf16.mxu0 %v7215
    %7887 = vmatpush1.bf16.msra.mxu0 %v7214
    %7888 = vmatprep.subr.bf16.mxu0 %v7211
    %7889 = vmatpush1.bf16.msra.mxu0 %v7210
    %7890 = vmatprep.subr.bf16.mxu0 %v7207
    %7891 = vmatpush1.bf16.msra.mxu0 %v7206
    %7892 = vmatprep.subr.bf16.mxu0 %v7203
    %7893 = vmatpush1.bf16.msra.mxu0 %v7202
    %7894 = vmatprep.subr.bf16.mxu0 %v7199
    %7895 = vmatpush1.bf16.msra.mxu0 %v7198
    %7896 = vmatprep.subr.bf16.mxu0 %v7259
    %7897 = vmatpush2.bf16.msra.mxu0 %v7258
    %7898 = vmatprep.subr.bf16.mxu0 %v7255
    %7899 = vmatpush2.bf16.msra.mxu0 %v7254
    %7900 = vmatprep.subr.bf16.mxu0 %v7251
    %7901 = vmatpush2.bf16.msra.mxu0 %v7250
    %7902 = vmatprep.subr.bf16.mxu0 %v7247
    %7903 = vmatpush2.bf16.msra.mxu0 %v7246
    %7904 = vmatprep.subr.bf16.mxu0 %v7243
    %7905 = vmatpush2.bf16.msra.mxu0 %v7242
    %7906 = vmatprep.subr.bf16.mxu0 %v7239
    %7907 = vmatpush2.bf16.msra.mxu0 %v7238
    %7908 = vmatprep.subr.bf16.mxu0 %v7235
    %7909 = vmatpush2.bf16.msra.mxu0 %v7234
    %7910 = vmatprep.subr.bf16.mxu0 %v7231
    %7911 = vmatpush2.bf16.msra.mxu0 %v7230
    %7912 = vmatprep.mubr.bf16.mxu0 %v6165
    %7913 = vmatmul.mubr.bf16.gmra.mxu0 %v6164
    %v7914 = vpop.f32.mrf.mxu0
    %v7915 = vadd.f32 0.0, %v7914
    %v7916 = vpop.f32.mrf.mxu0
    %v7917 = vadd.f32 0.0, %v7916
    %v7918 = vpop.f32.mrf.mxu0
    %v7919 = vadd.f32 0.0, %v7918
    %v7920 = vpop.f32.mrf.mxu0
    %v7921 = vadd.f32 0.0, %v7920
    %7922 = vdwg.mxu0
    %7923 = vmatprep.subr.bf16.mxu0 %v7291
    %7924 = vmatpush1.bf16.msra.mxu0 %v7290
    %7925 = vmatprep.subr.bf16.mxu0 %v7287
    %7926 = vmatpush1.bf16.msra.mxu0 %v7286
    %7927 = vmatprep.subr.bf16.mxu0 %v7283
    %7928 = vmatpush1.bf16.msra.mxu0 %v7282
    %7929 = vmatprep.subr.bf16.mxu0 %v7279
    %7930 = vmatpush1.bf16.msra.mxu0 %v7278
    %7931 = vmatprep.subr.bf16.mxu0 %v7275
    %7932 = vmatpush1.bf16.msra.mxu0 %v7274
    %7933 = vmatprep.subr.bf16.mxu0 %v7271
    %7934 = vmatpush1.bf16.msra.mxu0 %v7270
    %7935 = vmatprep.subr.bf16.mxu0 %v7267
    %7936 = vmatpush1.bf16.msra.mxu0 %v7266
    %7937 = vmatprep.subr.bf16.mxu0 %v7263
    %7938 = vmatpush1.bf16.msra.mxu0 %v7262
    %7939 = vmatprep.subr.bf16.mxu0 %v7323
    %7940 = vmatpush2.bf16.msra.mxu0 %v7322
    %7941 = vmatprep.subr.bf16.mxu0 %v7319
    %7942 = vmatpush2.bf16.msra.mxu0 %v7318
    %7943 = vmatprep.subr.bf16.mxu0 %v7315
    %7944 = vmatpush2.bf16.msra.mxu0 %v7314
    %7945 = vmatprep.subr.bf16.mxu0 %v7311
    %7946 = vmatpush2.bf16.msra.mxu0 %v7310
    %7947 = vmatprep.subr.bf16.mxu0 %v7307
    %7948 = vmatpush2.bf16.msra.mxu0 %v7306
    %7949 = vmatprep.subr.bf16.mxu0 %v7303
    %7950 = vmatpush2.bf16.msra.mxu0 %v7302
    %7951 = vmatprep.subr.bf16.mxu0 %v7299
    %7952 = vmatpush2.bf16.msra.mxu0 %v7298
    %7953 = vmatprep.subr.bf16.mxu0 %v7295
    %7954 = vmatpush2.bf16.msra.mxu0 %v7294
    %7955 = vmatprep.mubr.bf16.mxu0 %v6167
    %7956 = vmatmul.mubr.bf16.gmra.mxu0 %v6166
    %v7957 = vpop.f32.mrf.mxu0
    %v7958 = vadd.f32 %v7915, %v7957
    %v7959 = vpop.f32.mrf.mxu0
    %v7960 = vadd.f32 %v7917, %v7959
    %v7961 = vpop.f32.mrf.mxu0
    %v7962 = vadd.f32 %v7919, %v7961
    %v7963 = vpop.f32.mrf.mxu0
    %v7964 = vadd.f32 %v7921, %v7963
    %7965 = vdwg.mxu0
    %7966 = vmatprep.subr.bf16.mxu0 %v7355
    %7967 = vmatpush1.bf16.msra.mxu0 %v7354
    %7968 = vmatprep.subr.bf16.mxu0 %v7351
    %7969 = vmatpush1.bf16.msra.mxu0 %v7350
    %7970 = vmatprep.subr.bf16.mxu0 %v7347
    %7971 = vmatpush1.bf16.msra.mxu0 %v7346
    %7972 = vmatprep.subr.bf16.mxu0 %v7343
    %7973 = vmatpush1.bf16.msra.mxu0 %v7342
    %7974 = vmatprep.subr.bf16.mxu0 %v7339
    %7975 = vmatpush1.bf16.msra.mxu0 %v7338
    %7976 = vmatprep.subr.bf16.mxu0 %v7335
    %7977 = vmatpush1.bf16.msra.mxu0 %v7334
    %7978 = vmatprep.subr.bf16.mxu0 %v7331
    %7979 = vmatpush1.bf16.msra.mxu0 %v7330
    %7980 = vmatprep.subr.bf16.mxu0 %v7327
    %7981 = vmatpush1.bf16.msra.mxu0 %v7326
    %7982 = vmatprep.subr.bf16.mxu0 %v7387
    %7983 = vmatpush2.bf16.msra.mxu0 %v7386
    %7984 = vmatprep.subr.bf16.mxu0 %v7383
    %7985 = vmatpush2.bf16.msra.mxu0 %v7382
    %7986 = vmatprep.subr.bf16.mxu0 %v7379
    %7987 = vmatpush2.bf16.msra.mxu0 %v7378
    %7988 = vmatprep.subr.bf16.mxu0 %v7375
    %7989 = vmatpush2.bf16.msra.mxu0 %v7374
    %7990 = vmatprep.subr.bf16.mxu0 %v7371
    %7991 = vmatpush2.bf16.msra.mxu0 %v7370
    %7992 = vmatprep.subr.bf16.mxu0 %v7367
    %7993 = vmatpush2.bf16.msra.mxu0 %v7366
    %7994 = vmatprep.subr.bf16.mxu0 %v7363
    %7995 = vmatpush2.bf16.msra.mxu0 %v7362
    %7996 = vmatprep.subr.bf16.mxu0 %v7359
    %7997 = vmatpush2.bf16.msra.mxu0 %v7358
    %7998 = vmatprep.mubr.bf16.mxu0 %v6169
    %7999 = vmatmul.mubr.bf16.gmra.mxu0 %v6168
    %v8000 = vpop.f32.mrf.mxu0
    %v8001 = vadd.f32 %v7958, %v8000
    %v8002 = vpop.f32.mrf.mxu0
    %v8003 = vadd.f32 %v7960, %v8002
    %v8004 = vpop.f32.mrf.mxu0
    %v8005 = vadd.f32 %v7962, %v8004
    %v8006 = vpop.f32.mrf.mxu0
    %v8007 = vadd.f32 %v7964, %v8006
    %8008 = vdwg.mxu0
    %8009 = vmatprep.subr.bf16.mxu0 %v7419
    %8010 = vmatpush1.bf16.msra.mxu0 %v7418
    %8011 = vmatprep.subr.bf16.mxu0 %v7415
    %8012 = vmatpush1.bf16.msra.mxu0 %v7414
    %8013 = vmatprep.subr.bf16.mxu0 %v7411
    %8014 = vmatpush1.bf16.msra.mxu0 %v7410
    %8015 = vmatprep.subr.bf16.mxu0 %v7407
    %8016 = vmatpush1.bf16.msra.mxu0 %v7406
    %8017 = vmatprep.subr.bf16.mxu0 %v7403
    %8018 = vmatpush1.bf16.msra.mxu0 %v7402
    %8019 = vmatprep.subr.bf16.mxu0 %v7399
    %8020 = vmatpush1.bf16.msra.mxu0 %v7398
    %8021 = vmatprep.subr.bf16.mxu0 %v7395
    %8022 = vmatpush1.bf16.msra.mxu0 %v7394
    %8023 = vmatprep.subr.bf16.mxu0 %v7391
    %8024 = vmatpush1.bf16.msra.mxu0 %v7390
    %8025 = vmatprep.subr.bf16.mxu0 %v7451
    %8026 = vmatpush2.bf16.msra.mxu0 %v7450
    %8027 = vmatprep.subr.bf16.mxu0 %v7447
    %8028 = vmatpush2.bf16.msra.mxu0 %v7446
    %8029 = vmatprep.subr.bf16.mxu0 %v7443
    %8030 = vmatpush2.bf16.msra.mxu0 %v7442
    %8031 = vmatprep.subr.bf16.mxu0 %v7439
    %8032 = vmatpush2.bf16.msra.mxu0 %v7438
    %8033 = vmatprep.subr.bf16.mxu0 %v7435
    %8034 = vmatpush2.bf16.msra.mxu0 %v7434
    %8035 = vmatprep.subr.bf16.mxu0 %v7431
    %8036 = vmatpush2.bf16.msra.mxu0 %v7430
    %8037 = vmatprep.subr.bf16.mxu0 %v7427
    %8038 = vmatpush2.bf16.msra.mxu0 %v7426
    %8039 = vmatprep.subr.bf16.mxu0 %v7423
    %8040 = vmatpush2.bf16.msra.mxu0 %v7422
    %8041 = vmatprep.mubr.bf16.mxu0 %v6171
    %8042 = vmatmul.mubr.bf16.gmra.mxu0 %v6170
    %v8043 = vpop.f32.mrf.mxu0
    %v8044 = vadd.f32 %v8001, %v8043
    %v8045 = vpop.f32.mrf.mxu0
    %v8046 = vadd.f32 %v8003, %v8045
    %v8047 = vpop.f32.mrf.mxu0
    %v8048 = vadd.f32 %v8005, %v8047
    %v8049 = vpop.f32.mrf.mxu0
    %v8050 = vadd.f32 %v8007, %v8049
    %8051 = vdwg.mxu0
    %v8308 = vunpack.c.l.b16 %v5892
    %v8309 = vunpack.c.h.b16 %v5892
    %v8310 = vunpack.c.l.b16 %v5893
    %v8311 = vunpack.c.h.b16 %v5893
    %v8312 = vunpack.c.l.b16 %v5894
    %v8313 = vunpack.c.h.b16 %v5894
    %v8314 = vunpack.c.l.b16 %v5895
    %v8315 = vunpack.c.h.b16 %v5895
    %v8316 = vunpack.c.l.b16 %v5896
    %v8317 = vunpack.c.h.b16 %v5896
    %v8318 = vunpack.c.l.b16 %v5897
    %v8319 = vunpack.c.h.b16 %v5897
    %v8320 = vunpack.c.l.b16 %v5898
    %v8321 = vunpack.c.h.b16 %v5898
    %v8322 = vunpack.c.l.b16 %v5899
    %v8323 = vunpack.c.h.b16 %v5899
    %v8324 = vunpack.c.l.b16 %v5900
    %v8325 = vunpack.c.h.b16 %v5900
    %v8326 = vunpack.c.l.b16 %v5901
    %v8327 = vunpack.c.h.b16 %v5901
    %v8328 = vunpack.c.l.b16 %v5902
    %v8329 = vunpack.c.h.b16 %v5902
    %v8330 = vunpack.c.l.b16 %v5903
    %v8331 = vunpack.c.h.b16 %v5903
    %v8332 = vunpack.c.l.b16 %v5904
    %v8333 = vunpack.c.h.b16 %v5904
    %v8334 = vunpack.c.l.b16 %v5905
    %v8335 = vunpack.c.h.b16 %v5905
    %v8336 = vunpack.c.l.b16 %v5906
    %v8337 = vunpack.c.h.b16 %v5906
    %v8338 = vunpack.c.l.b16 %v5907
    %v8339 = vunpack.c.h.b16 %v5907
    %v8340 = vunpack.c.l.b16 %v5908
    %v8341 = vunpack.c.h.b16 %v5908
    %v8342 = vunpack.c.l.b16 %v5909
    %v8343 = vunpack.c.h.b16 %v5909
    %v8344 = vunpack.c.l.b16 %v5910
    %v8345 = vunpack.c.h.b16 %v5910
    %v8346 = vunpack.c.l.b16 %v5911
    %v8347 = vunpack.c.h.b16 %v5911
    %v8348 = vunpack.c.l.b16 %v5912
    %v8349 = vunpack.c.h.b16 %v5912
    %v8350 = vunpack.c.l.b16 %v5913
    %v8351 = vunpack.c.h.b16 %v5913
    %v8352 = vunpack.c.l.b16 %v5914
    %v8353 = vunpack.c.h.b16 %v5914
    %v8354 = vunpack.c.l.b16 %v5915
    %v8355 = vunpack.c.h.b16 %v5915
    %v8356 = vunpack.c.l.b16 %v5916
    %v8357 = vunpack.c.h.b16 %v5916
    %v8358 = vunpack.c.l.b16 %v5917
    %v8359 = vunpack.c.h.b16 %v5917
    %v8360 = vunpack.c.l.b16 %v5918
    %v8361 = vunpack.c.h.b16 %v5918
    %v8362 = vunpack.c.l.b16 %v5919
    %v8363 = vunpack.c.h.b16 %v5919
    %v8364 = vunpack.c.l.b16 %v5920
    %v8365 = vunpack.c.h.b16 %v5920
    %v8366 = vunpack.c.l.b16 %v5921
    %v8367 = vunpack.c.h.b16 %v5921
    %v8368 = vunpack.c.l.b16 %v5922
    %v8369 = vunpack.c.h.b16 %v5922
    %v8370 = vunpack.c.l.b16 %v5923
    %v8371 = vunpack.c.h.b16 %v5923
    %v8372 = vunpack.c.l.b16 %v5924
    %v8373 = vunpack.c.h.b16 %v5924
    %v8374 = vunpack.c.l.b16 %v5925
    %v8375 = vunpack.c.h.b16 %v5925
    %v8376 = vunpack.c.l.b16 %v5926
    %v8377 = vunpack.c.h.b16 %v5926
    %v8378 = vunpack.c.l.b16 %v5927
    %v8379 = vunpack.c.h.b16 %v5927
    %v8380 = vunpack.c.l.b16 %v5928
    %v8381 = vunpack.c.h.b16 %v5928
    %v8382 = vunpack.c.l.b16 %v5929
    %v8383 = vunpack.c.h.b16 %v5929
    %v8384 = vunpack.c.l.b16 %v5930
    %v8385 = vunpack.c.h.b16 %v5930
    %v8386 = vunpack.c.l.b16 %v5931
    %v8387 = vunpack.c.h.b16 %v5931
    %v8388 = vunpack.c.l.b16 %v5932
    %v8389 = vunpack.c.h.b16 %v5932
    %v8390 = vunpack.c.l.b16 %v5933
    %v8391 = vunpack.c.h.b16 %v5933
    %v8392 = vunpack.c.l.b16 %v5934
    %v8393 = vunpack.c.h.b16 %v5934
    %v8394 = vunpack.c.l.b16 %v5935
    %v8395 = vunpack.c.h.b16 %v5935
    %v8396 = vunpack.c.l.b16 %v5936
    %v8397 = vunpack.c.h.b16 %v5936
    %v8398 = vunpack.c.l.b16 %v5937
    %v8399 = vunpack.c.h.b16 %v5937
    %v8400 = vunpack.c.l.b16 %v5938
    %v8401 = vunpack.c.h.b16 %v5938
    %v8402 = vunpack.c.l.b16 %v5939
    %v8403 = vunpack.c.h.b16 %v5939
    %v8404 = vunpack.c.l.b16 %v5940
    %v8405 = vunpack.c.h.b16 %v5940
    %v8406 = vunpack.c.l.b16 %v5941
    %v8407 = vunpack.c.h.b16 %v5941
    %v8408 = vunpack.c.l.b16 %v5942
    %v8409 = vunpack.c.h.b16 %v5942
    %v8410 = vunpack.c.l.b16 %v5943
    %v8411 = vunpack.c.h.b16 %v5943
    %v8412 = vunpack.c.l.b16 %v5944
    %v8413 = vunpack.c.h.b16 %v5944
    %v8414 = vunpack.c.l.b16 %v5945
    %v8415 = vunpack.c.h.b16 %v5945
    %v8416 = vunpack.c.l.b16 %v5946
    %v8417 = vunpack.c.h.b16 %v5946
    %v8418 = vunpack.c.l.b16 %v5947
    %v8419 = vunpack.c.h.b16 %v5947
    %v8420 = vunpack.c.l.b16 %v5948
    %v8421 = vunpack.c.h.b16 %v5948
    %v8422 = vunpack.c.l.b16 %v5949
    %v8423 = vunpack.c.h.b16 %v5949
    %v8424 = vunpack.c.l.b16 %v5950
    %v8425 = vunpack.c.h.b16 %v5950
    %v8426 = vunpack.c.l.b16 %v5951
    %v8427 = vunpack.c.h.b16 %v5951
    %v8428 = vunpack.c.l.b16 %v5952
    %v8429 = vunpack.c.h.b16 %v5952
    %v8430 = vunpack.c.l.b16 %v5953
    %v8431 = vunpack.c.h.b16 %v5953
    %v8432 = vunpack.c.l.b16 %v5954
    %v8433 = vunpack.c.h.b16 %v5954
    %v8434 = vunpack.c.l.b16 %v5955
    %v8435 = vunpack.c.h.b16 %v5955
    %v8436 = vunpack.c.l.b16 %v5956
    %v8437 = vunpack.c.h.b16 %v5956
    %v8438 = vunpack.c.l.b16 %v5957
    %v8439 = vunpack.c.h.b16 %v5957
    %v8440 = vunpack.c.l.b16 %v5958
    %v8441 = vunpack.c.h.b16 %v5958
    %v8442 = vunpack.c.l.b16 %v5959
    %v8443 = vunpack.c.h.b16 %v5959
    %v8444 = vunpack.c.l.b16 %v5960
    %v8445 = vunpack.c.h.b16 %v5960
    %v8446 = vunpack.c.l.b16 %v5961
    %v8447 = vunpack.c.h.b16 %v5961
    %v8448 = vunpack.c.l.b16 %v5962
    %v8449 = vunpack.c.h.b16 %v5962
    %v8450 = vunpack.c.l.b16 %v5963
    %v8451 = vunpack.c.h.b16 %v5963
    %v8452 = vunpack.c.l.b16 %v5964
    %v8453 = vunpack.c.h.b16 %v5964
    %v8454 = vunpack.c.l.b16 %v5965
    %v8455 = vunpack.c.h.b16 %v5965
    %v8456 = vunpack.c.l.b16 %v5966
    %v8457 = vunpack.c.h.b16 %v5966
    %v8458 = vunpack.c.l.b16 %v5967
    %v8459 = vunpack.c.h.b16 %v5967
    %v8460 = vunpack.c.l.b16 %v5968
    %v8461 = vunpack.c.h.b16 %v5968
    %v8462 = vunpack.c.l.b16 %v5969
    %v8463 = vunpack.c.h.b16 %v5969
    %v8464 = vunpack.c.l.b16 %v5970
    %v8465 = vunpack.c.h.b16 %v5970
    %v8466 = vunpack.c.l.b16 %v5971
    %v8467 = vunpack.c.h.b16 %v5971
    %v8468 = vunpack.c.l.b16 %v5972
    %v8469 = vunpack.c.h.b16 %v5972
    %v8470 = vunpack.c.l.b16 %v5973
    %v8471 = vunpack.c.h.b16 %v5973
    %v8472 = vunpack.c.l.b16 %v5974
    %v8473 = vunpack.c.h.b16 %v5974
    %v8474 = vunpack.c.l.b16 %v5975
    %v8475 = vunpack.c.h.b16 %v5975
    %v8476 = vunpack.c.l.b16 %v5976
    %v8477 = vunpack.c.h.b16 %v5976
    %v8478 = vunpack.c.l.b16 %v5977
    %v8479 = vunpack.c.h.b16 %v5977
    %v8480 = vunpack.c.l.b16 %v5978
    %v8481 = vunpack.c.h.b16 %v5978
    %v8482 = vunpack.c.l.b16 %v5979
    %v8483 = vunpack.c.h.b16 %v5979
    %v8484 = vunpack.c.l.b16 %v5980
    %v8485 = vunpack.c.h.b16 %v5980
    %v8486 = vunpack.c.l.b16 %v5981
    %v8487 = vunpack.c.h.b16 %v5981
    %v8488 = vunpack.c.l.b16 %v5982
    %v8489 = vunpack.c.h.b16 %v5982
    %v8490 = vunpack.c.l.b16 %v5983
    %v8491 = vunpack.c.h.b16 %v5983
    %v8492 = vunpack.c.l.b16 %v5984
    %v8493 = vunpack.c.h.b16 %v5984
    %v8494 = vunpack.c.l.b16 %v5985
    %v8495 = vunpack.c.h.b16 %v5985
    %v8496 = vunpack.c.l.b16 %v5986
    %v8497 = vunpack.c.h.b16 %v5986
    %v8498 = vunpack.c.l.b16 %v5987
    %v8499 = vunpack.c.h.b16 %v5987
    %v8500 = vunpack.c.l.b16 %v5988
    %v8501 = vunpack.c.h.b16 %v5988
    %v8502 = vunpack.c.l.b16 %v5989
    %v8503 = vunpack.c.h.b16 %v5989
    %v8504 = vunpack.c.l.b16 %v5990
    %v8505 = vunpack.c.h.b16 %v5990
    %v8506 = vunpack.c.l.b16 %v5991
    %v8507 = vunpack.c.h.b16 %v5991
    %v8508 = vunpack.c.l.b16 %v5992
    %v8509 = vunpack.c.h.b16 %v5992
    %v8510 = vunpack.c.l.b16 %v5993
    %v8511 = vunpack.c.h.b16 %v5993
    %v8512 = vunpack.c.l.b16 %v5994
    %v8513 = vunpack.c.h.b16 %v5994
    %v8514 = vunpack.c.l.b16 %v5995
    %v8515 = vunpack.c.h.b16 %v5995
    %v8516 = vunpack.c.l.b16 %v5996
    %v8517 = vunpack.c.h.b16 %v5996
    %v8518 = vunpack.c.l.b16 %v5997
    %v8519 = vunpack.c.h.b16 %v5997
    %v8520 = vunpack.c.l.b16 %v5998
    %v8521 = vunpack.c.h.b16 %v5998
    %v8522 = vunpack.c.l.b16 %v5999
    %v8523 = vunpack.c.h.b16 %v5999
    %v8524 = vunpack.c.l.b16 %v6000
    %v8525 = vunpack.c.h.b16 %v6000
    %v8526 = vunpack.c.l.b16 %v6001
    %v8527 = vunpack.c.h.b16 %v6001
    %v8528 = vunpack.c.l.b16 %v6002
    %v8529 = vunpack.c.h.b16 %v6002
    %v8530 = vunpack.c.l.b16 %v6003
    %v8531 = vunpack.c.h.b16 %v6003
    %v8532 = vunpack.c.l.b16 %v6004
    %v8533 = vunpack.c.h.b16 %v6004
    %v8534 = vunpack.c.l.b16 %v6005
    %v8535 = vunpack.c.h.b16 %v6005
    %v8536 = vunpack.c.l.b16 %v6006
    %v8537 = vunpack.c.h.b16 %v6006
    %v8538 = vunpack.c.l.b16 %v6007
    %v8539 = vunpack.c.h.b16 %v6007
    %v8540 = vunpack.c.l.b16 %v6008
    %v8541 = vunpack.c.h.b16 %v6008
    %v8542 = vunpack.c.l.b16 %v6009
    %v8543 = vunpack.c.h.b16 %v6009
    %v8544 = vunpack.c.l.b16 %v6010
    %v8545 = vunpack.c.h.b16 %v6010
    %v8546 = vunpack.c.l.b16 %v6011
    %v8547 = vunpack.c.h.b16 %v6011
    %v8548 = vunpack.c.l.b16 %v6012
    %v8549 = vunpack.c.h.b16 %v6012
    %v8550 = vunpack.c.l.b16 %v6013
    %v8551 = vunpack.c.h.b16 %v6013
    %v8552 = vunpack.c.l.b16 %v6014
    %v8553 = vunpack.c.h.b16 %v6014
    %v8554 = vunpack.c.l.b16 %v6015
    %v8555 = vunpack.c.h.b16 %v6015
    %v8556 = vunpack.c.l.b16 %v6016
    %v8557 = vunpack.c.h.b16 %v6016
    %v8558 = vunpack.c.l.b16 %v6017
    %v8559 = vunpack.c.h.b16 %v6017
    %v8560 = vunpack.c.l.b16 %v6018
    %v8561 = vunpack.c.h.b16 %v6018
    %v8562 = vunpack.c.l.b16 %v6019
    %v8563 = vunpack.c.h.b16 %v6019
    %v8564 = vunpack.c.l.b16 %v6020
    %v8565 = vunpack.c.h.b16 %v6020
    %v8566 = vunpack.c.l.b16 %v6021
    %v8567 = vunpack.c.h.b16 %v6021
    %v8568 = vunpack.c.l.b16 %v6022
    %v8569 = vunpack.c.h.b16 %v6022
    %v8570 = vunpack.c.l.b16 %v6023
    %v8571 = vunpack.c.h.b16 %v6023
    %v8572 = vunpack.c.l.b16 %v6024
    %v8573 = vunpack.c.h.b16 %v6024
    %v8574 = vunpack.c.l.b16 %v6025
    %v8575 = vunpack.c.h.b16 %v6025
    %v8576 = vunpack.c.l.b16 %v6026
    %v8577 = vunpack.c.h.b16 %v6026
    %v8578 = vunpack.c.l.b16 %v6027
    %v8579 = vunpack.c.h.b16 %v6027
    %v8580 = vunpack.c.l.b16 %v6028
    %v8581 = vunpack.c.h.b16 %v6028
    %v8582 = vunpack.c.l.b16 %v6029
    %v8583 = vunpack.c.h.b16 %v6029
    %v8584 = vunpack.c.l.b16 %v6030
    %v8585 = vunpack.c.h.b16 %v6030
    %v8586 = vunpack.c.l.b16 %v6031
    %v8587 = vunpack.c.h.b16 %v6031
    %v8588 = vunpack.c.l.b16 %v6032
    %v8589 = vunpack.c.h.b16 %v6032
    %v8590 = vunpack.c.l.b16 %v6033
    %v8591 = vunpack.c.h.b16 %v6033
    %v8592 = vunpack.c.l.b16 %v6034
    %v8593 = vunpack.c.h.b16 %v6034
    %v8594 = vunpack.c.l.b16 %v6035
    %v8595 = vunpack.c.h.b16 %v6035
    %v8596 = vunpack.c.l.b16 %v6036
    %v8597 = vunpack.c.h.b16 %v6036
    %v8598 = vunpack.c.l.b16 %v6037
    %v8599 = vunpack.c.h.b16 %v6037
    %v8600 = vunpack.c.l.b16 %v6038
    %v8601 = vunpack.c.h.b16 %v6038
    %v8602 = vunpack.c.l.b16 %v6039
    %v8603 = vunpack.c.h.b16 %v6039
    %v8604 = vunpack.c.l.b16 %v6040
    %v8605 = vunpack.c.h.b16 %v6040
    %v8606 = vunpack.c.l.b16 %v6041
    %v8607 = vunpack.c.h.b16 %v6041
    %v8608 = vunpack.c.l.b16 %v6042
    %v8609 = vunpack.c.h.b16 %v6042
    %v8610 = vunpack.c.l.b16 %v6043
    %v8611 = vunpack.c.h.b16 %v6043
    %v8612 = vunpack.c.l.b16 %v6044
    %v8613 = vunpack.c.h.b16 %v6044
    %v8614 = vunpack.c.l.b16 %v6045
    %v8615 = vunpack.c.h.b16 %v6045
    %v8616 = vunpack.c.l.b16 %v6046
    %v8617 = vunpack.c.h.b16 %v6046
    %v8618 = vunpack.c.l.b16 %v6047
    %v8619 = vunpack.c.h.b16 %v6047
    %v8620 = vunpack.c.l.b16 %v6048
    %v8621 = vunpack.c.h.b16 %v6048
    %v8622 = vunpack.c.l.b16 %v6049
    %v8623 = vunpack.c.h.b16 %v6049
    %v8624 = vunpack.c.l.b16 %v6050
    %v8625 = vunpack.c.h.b16 %v6050
    %v8626 = vunpack.c.l.b16 %v6051
    %v8627 = vunpack.c.h.b16 %v6051
    %v8628 = vunpack.c.l.b16 %v6052
    %v8629 = vunpack.c.h.b16 %v6052
    %v8630 = vunpack.c.l.b16 %v6053
    %v8631 = vunpack.c.h.b16 %v6053
    %v8632 = vunpack.c.l.b16 %v6054
    %v8633 = vunpack.c.h.b16 %v6054
    %v8634 = vunpack.c.l.b16 %v6055
    %v8635 = vunpack.c.h.b16 %v6055
    %v8636 = vunpack.c.l.b16 %v6056
    %v8637 = vunpack.c.h.b16 %v6056
    %v8638 = vunpack.c.l.b16 %v6057
    %v8639 = vunpack.c.h.b16 %v6057
    %v8640 = vunpack.c.l.b16 %v6058
    %v8641 = vunpack.c.h.b16 %v6058
    %v8642 = vunpack.c.l.b16 %v6059
    %v8643 = vunpack.c.h.b16 %v6059
    %v8644 = vunpack.c.l.b16 %v6060
    %v8645 = vunpack.c.h.b16 %v6060
    %v8646 = vunpack.c.l.b16 %v6061
    %v8647 = vunpack.c.h.b16 %v6061
    %v8648 = vunpack.c.l.b16 %v6062
    %v8649 = vunpack.c.h.b16 %v6062
    %v8650 = vunpack.c.l.b16 %v6063
    %v8651 = vunpack.c.h.b16 %v6063
    %v8652 = vunpack.c.l.b16 %v6064
    %v8653 = vunpack.c.h.b16 %v6064
    %v8654 = vunpack.c.l.b16 %v6065
    %v8655 = vunpack.c.h.b16 %v6065
    %v8656 = vunpack.c.l.b16 %v6066
    %v8657 = vunpack.c.h.b16 %v6066
    %v8658 = vunpack.c.l.b16 %v6067
    %v8659 = vunpack.c.h.b16 %v6067
    %v8660 = vunpack.c.l.b16 %v6068
    %v8661 = vunpack.c.h.b16 %v6068
    %v8662 = vunpack.c.l.b16 %v6069
    %v8663 = vunpack.c.h.b16 %v6069
    %v8664 = vunpack.c.l.b16 %v6070
    %v8665 = vunpack.c.h.b16 %v6070
    %v8666 = vunpack.c.l.b16 %v6071
    %v8667 = vunpack.c.h.b16 %v6071
    %v8668 = vunpack.c.l.b16 %v6072
    %v8669 = vunpack.c.h.b16 %v6072
    %v8670 = vunpack.c.l.b16 %v6073
    %v8671 = vunpack.c.h.b16 %v6073
    %v8672 = vunpack.c.l.b16 %v6074
    %v8673 = vunpack.c.h.b16 %v6074
    %v8674 = vunpack.c.l.b16 %v6075
    %v8675 = vunpack.c.h.b16 %v6075
    %v8676 = vunpack.c.l.b16 %v6076
    %v8677 = vunpack.c.h.b16 %v6076
    %v8678 = vunpack.c.l.b16 %v6077
    %v8679 = vunpack.c.h.b16 %v6077
    %v8680 = vunpack.c.l.b16 %v6078
    %v8681 = vunpack.c.h.b16 %v6078
    %v8682 = vunpack.c.l.b16 %v6079
    %v8683 = vunpack.c.h.b16 %v6079
    %v8684 = vunpack.c.l.b16 %v6080
    %v8685 = vunpack.c.h.b16 %v6080
    %v8686 = vunpack.c.l.b16 %v6081
    %v8687 = vunpack.c.h.b16 %v6081
    %v8688 = vunpack.c.l.b16 %v6082
    %v8689 = vunpack.c.h.b16 %v6082
    %v8690 = vunpack.c.l.b16 %v6083
    %v8691 = vunpack.c.h.b16 %v6083
    %v8692 = vunpack.c.l.b16 %v6084
    %v8693 = vunpack.c.h.b16 %v6084
    %v8694 = vunpack.c.l.b16 %v6085
    %v8695 = vunpack.c.h.b16 %v6085
    %v8696 = vunpack.c.l.b16 %v6086
    %v8697 = vunpack.c.h.b16 %v6086
    %v8698 = vunpack.c.l.b16 %v6087
    %v8699 = vunpack.c.h.b16 %v6087
    %v8700 = vunpack.c.l.b16 %v6088
    %v8701 = vunpack.c.h.b16 %v6088
    %v8702 = vunpack.c.l.b16 %v6089
    %v8703 = vunpack.c.h.b16 %v6089
    %v8704 = vunpack.c.l.b16 %v6090
    %v8705 = vunpack.c.h.b16 %v6090
    %v8706 = vunpack.c.l.b16 %v6091
    %v8707 = vunpack.c.h.b16 %v6091
    %v8708 = vunpack.c.l.b16 %v6092
    %v8709 = vunpack.c.h.b16 %v6092
    %v8710 = vunpack.c.l.b16 %v6093
    %v8711 = vunpack.c.h.b16 %v6093
    %v8712 = vunpack.c.l.b16 %v6094
    %v8713 = vunpack.c.h.b16 %v6094
    %v8714 = vunpack.c.l.b16 %v6095
    %v8715 = vunpack.c.h.b16 %v6095
    %v8716 = vunpack.c.l.b16 %v6096
    %v8717 = vunpack.c.h.b16 %v6096
    %v8718 = vunpack.c.l.b16 %v6097
    %v8719 = vunpack.c.h.b16 %v6097
    %v8720 = vunpack.c.l.b16 %v6098
    %v8721 = vunpack.c.h.b16 %v6098
    %v8722 = vunpack.c.l.b16 %v6099
    %v8723 = vunpack.c.h.b16 %v6099
    %v8724 = vunpack.c.l.b16 %v6100
    %v8725 = vunpack.c.h.b16 %v6100
    %v8726 = vunpack.c.l.b16 %v6101
    %v8727 = vunpack.c.h.b16 %v6101
    %v8728 = vunpack.c.l.b16 %v6102
    %v8729 = vunpack.c.h.b16 %v6102
    %v8730 = vunpack.c.l.b16 %v6103
    %v8731 = vunpack.c.h.b16 %v6103
    %v8732 = vunpack.c.l.b16 %v6104
    %v8733 = vunpack.c.h.b16 %v6104
    %v8734 = vunpack.c.l.b16 %v6105
    %v8735 = vunpack.c.h.b16 %v6105
    %v8736 = vunpack.c.l.b16 %v6106
    %v8737 = vunpack.c.h.b16 %v6106
    %v8738 = vunpack.c.l.b16 %v6107
    %v8739 = vunpack.c.h.b16 %v6107
    %v8740 = vunpack.c.l.b16 %v6108
    %v8741 = vunpack.c.h.b16 %v6108
    %v8742 = vunpack.c.l.b16 %v6109
    %v8743 = vunpack.c.h.b16 %v6109
    %v8744 = vunpack.c.l.b16 %v6110
    %v8745 = vunpack.c.h.b16 %v6110
    %v8746 = vunpack.c.l.b16 %v6111
    %v8747 = vunpack.c.h.b16 %v6111
    %v8748 = vunpack.c.l.b16 %v6112
    %v8749 = vunpack.c.h.b16 %v6112
    %v8750 = vunpack.c.l.b16 %v6113
    %v8751 = vunpack.c.h.b16 %v6113
    %v8752 = vunpack.c.l.b16 %v6114
    %v8753 = vunpack.c.h.b16 %v6114
    %v8754 = vunpack.c.l.b16 %v6115
    %v8755 = vunpack.c.h.b16 %v6115
    %v8756 = vunpack.c.l.b16 %v6116
    %v8757 = vunpack.c.h.b16 %v6116
    %v8758 = vunpack.c.l.b16 %v6117
    %v8759 = vunpack.c.h.b16 %v6117
    %v8760 = vunpack.c.l.b16 %v6118
    %v8761 = vunpack.c.h.b16 %v6118
    %v8762 = vunpack.c.l.b16 %v6119
    %v8763 = vunpack.c.h.b16 %v6119
    %v8764 = vunpack.c.l.b16 %v6120
    %v8765 = vunpack.c.h.b16 %v6120
    %v8766 = vunpack.c.l.b16 %v6121
    %v8767 = vunpack.c.h.b16 %v6121
    %v8768 = vunpack.c.l.b16 %v6122
    %v8769 = vunpack.c.h.b16 %v6122
    %v8770 = vunpack.c.l.b16 %v6123
    %v8771 = vunpack.c.h.b16 %v6123
    %v8772 = vunpack.c.l.b16 %v6124
    %v8773 = vunpack.c.h.b16 %v6124
    %v8774 = vunpack.c.l.b16 %v6125
    %v8775 = vunpack.c.h.b16 %v6125
    %v8776 = vunpack.c.l.b16 %v6126
    %v8777 = vunpack.c.h.b16 %v6126
    %v8778 = vunpack.c.l.b16 %v6127
    %v8779 = vunpack.c.h.b16 %v6127
    %v8780 = vunpack.c.l.b16 %v6128
    %v8781 = vunpack.c.h.b16 %v6128
    %v8782 = vunpack.c.l.b16 %v6129
    %v8783 = vunpack.c.h.b16 %v6129
    %v8784 = vunpack.c.l.b16 %v6130
    %v8785 = vunpack.c.h.b16 %v6130
    %v8786 = vunpack.c.l.b16 %v6131
    %v8787 = vunpack.c.h.b16 %v6131
    %v8788 = vunpack.c.l.b16 %v6132
    %v8789 = vunpack.c.h.b16 %v6132
    %v8790 = vunpack.c.l.b16 %v6133
    %v8791 = vunpack.c.h.b16 %v6133
    %v8792 = vunpack.c.l.b16 %v6134
    %v8793 = vunpack.c.h.b16 %v6134
    %v8794 = vunpack.c.l.b16 %v6135
    %v8795 = vunpack.c.h.b16 %v6135
    %v8796 = vunpack.c.l.b16 %v6136
    %v8797 = vunpack.c.h.b16 %v6136
    %v8798 = vunpack.c.l.b16 %v6137
    %v8799 = vunpack.c.h.b16 %v6137
    %v8800 = vunpack.c.l.b16 %v6138
    %v8801 = vunpack.c.h.b16 %v6138
    %v8802 = vunpack.c.l.b16 %v6139
    %v8803 = vunpack.c.h.b16 %v6139
    %v8804 = vunpack.c.l.b16 %v6140
    %v8805 = vunpack.c.h.b16 %v6140
    %v8806 = vunpack.c.l.b16 %v6141
    %v8807 = vunpack.c.h.b16 %v6141
    %v8808 = vunpack.c.l.b16 %v6142
    %v8809 = vunpack.c.h.b16 %v6142
    %v8810 = vunpack.c.l.b16 %v6143
    %v8811 = vunpack.c.h.b16 %v6143
    %v8812 = vunpack.c.l.b16 %v6144
    %v8813 = vunpack.c.h.b16 %v6144
    %v8814 = vunpack.c.l.b16 %v6145
    %v8815 = vunpack.c.h.b16 %v6145
    %v8816 = vunpack.c.l.b16 %v6146
    %v8817 = vunpack.c.h.b16 %v6146
    %v8818 = vunpack.c.l.b16 %v6147
    %v8819 = vunpack.c.h.b16 %v6147
    %v8820 = vpack.c.b16 %v8312, %v8308
    %v8821 = vpack.c.b16 %v8313, %v8309
    %v8822 = vpack.c.b16 %v8314, %v8310
    %v8823 = vpack.c.b16 %v8315, %v8311
    %v8824 = vpack.c.b16 %v8320, %v8316
    %v8825 = vpack.c.b16 %v8321, %v8317
    %v8826 = vpack.c.b16 %v8322, %v8318
    %v8827 = vpack.c.b16 %v8323, %v8319
    %v8828 = vpack.c.b16 %v8328, %v8324
    %v8829 = vpack.c.b16 %v8329, %v8325
    %v8830 = vpack.c.b16 %v8330, %v8326
    %v8831 = vpack.c.b16 %v8331, %v8327
    %v8832 = vpack.c.b16 %v8336, %v8332
    %v8833 = vpack.c.b16 %v8337, %v8333
    %v8834 = vpack.c.b16 %v8338, %v8334
    %v8835 = vpack.c.b16 %v8339, %v8335
    %v8836 = vpack.c.b16 %v8344, %v8340
    %v8837 = vpack.c.b16 %v8345, %v8341
    %v8838 = vpack.c.b16 %v8346, %v8342
    %v8839 = vpack.c.b16 %v8347, %v8343
    %v8840 = vpack.c.b16 %v8352, %v8348
    %v8841 = vpack.c.b16 %v8353, %v8349
    %v8842 = vpack.c.b16 %v8354, %v8350
    %v8843 = vpack.c.b16 %v8355, %v8351
    %v8844 = vpack.c.b16 %v8360, %v8356
    %v8845 = vpack.c.b16 %v8361, %v8357
    %v8846 = vpack.c.b16 %v8362, %v8358
    %v8847 = vpack.c.b16 %v8363, %v8359
    %v8848 = vpack.c.b16 %v8368, %v8364
    %v8849 = vpack.c.b16 %v8369, %v8365
    %v8850 = vpack.c.b16 %v8370, %v8366
    %v8851 = vpack.c.b16 %v8371, %v8367
    %v8852 = vpack.c.b16 %v8376, %v8372
    %v8853 = vpack.c.b16 %v8377, %v8373
    %v8854 = vpack.c.b16 %v8378, %v8374
    %v8855 = vpack.c.b16 %v8379, %v8375
    %v8856 = vpack.c.b16 %v8384, %v8380
    %v8857 = vpack.c.b16 %v8385, %v8381
    %v8858 = vpack.c.b16 %v8386, %v8382
    %v8859 = vpack.c.b16 %v8387, %v8383
    %v8860 = vpack.c.b16 %v8392, %v8388
    %v8861 = vpack.c.b16 %v8393, %v8389
    %v8862 = vpack.c.b16 %v8394, %v8390
    %v8863 = vpack.c.b16 %v8395, %v8391
    %v8864 = vpack.c.b16 %v8400, %v8396
    %v8865 = vpack.c.b16 %v8401, %v8397
    %v8866 = vpack.c.b16 %v8402, %v8398
    %v8867 = vpack.c.b16 %v8403, %v8399
    %v8868 = vpack.c.b16 %v8408, %v8404
    %v8869 = vpack.c.b16 %v8409, %v8405
    %v8870 = vpack.c.b16 %v8410, %v8406
    %v8871 = vpack.c.b16 %v8411, %v8407
    %v8872 = vpack.c.b16 %v8416, %v8412
    %v8873 = vpack.c.b16 %v8417, %v8413
    %v8874 = vpack.c.b16 %v8418, %v8414
    %v8875 = vpack.c.b16 %v8419, %v8415
    %v8876 = vpack.c.b16 %v8424, %v8420
    %v8877 = vpack.c.b16 %v8425, %v8421
    %v8878 = vpack.c.b16 %v8426, %v8422
    %v8879 = vpack.c.b16 %v8427, %v8423
    %v8880 = vpack.c.b16 %v8432, %v8428
    %v8881 = vpack.c.b16 %v8433, %v8429
    %v8882 = vpack.c.b16 %v8434, %v8430
    %v8883 = vpack.c.b16 %v8435, %v8431
    %v8884 = vpack.c.b16 %v8440, %v8436
    %v8885 = vpack.c.b16 %v8441, %v8437
    %v8886 = vpack.c.b16 %v8442, %v8438
    %v8887 = vpack.c.b16 %v8443, %v8439
    %v8888 = vpack.c.b16 %v8448, %v8444
    %v8889 = vpack.c.b16 %v8449, %v8445
    %v8890 = vpack.c.b16 %v8450, %v8446
    %v8891 = vpack.c.b16 %v8451, %v8447
    %v8892 = vpack.c.b16 %v8456, %v8452
    %v8893 = vpack.c.b16 %v8457, %v8453
    %v8894 = vpack.c.b16 %v8458, %v8454
    %v8895 = vpack.c.b16 %v8459, %v8455
    %v8896 = vpack.c.b16 %v8464, %v8460
    %v8897 = vpack.c.b16 %v8465, %v8461
    %v8898 = vpack.c.b16 %v8466, %v8462
    %v8899 = vpack.c.b16 %v8467, %v8463
    %v8900 = vpack.c.b16 %v8472, %v8468
    %v8901 = vpack.c.b16 %v8473, %v8469
    %v8902 = vpack.c.b16 %v8474, %v8470
    %v8903 = vpack.c.b16 %v8475, %v8471
    %v8904 = vpack.c.b16 %v8480, %v8476
    %v8905 = vpack.c.b16 %v8481, %v8477
    %v8906 = vpack.c.b16 %v8482, %v8478
    %v8907 = vpack.c.b16 %v8483, %v8479
    %v8908 = vpack.c.b16 %v8488, %v8484
    %v8909 = vpack.c.b16 %v8489, %v8485
    %v8910 = vpack.c.b16 %v8490, %v8486
    %v8911 = vpack.c.b16 %v8491, %v8487
    %v8912 = vpack.c.b16 %v8496, %v8492
    %v8913 = vpack.c.b16 %v8497, %v8493
    %v8914 = vpack.c.b16 %v8498, %v8494
    %v8915 = vpack.c.b16 %v8499, %v8495
    %v8916 = vpack.c.b16 %v8504, %v8500
    %v8917 = vpack.c.b16 %v8505, %v8501
    %v8918 = vpack.c.b16 %v8506, %v8502
    %v8919 = vpack.c.b16 %v8507, %v8503
    %v8920 = vpack.c.b16 %v8512, %v8508
    %v8921 = vpack.c.b16 %v8513, %v8509
    %v8922 = vpack.c.b16 %v8514, %v8510
    %v8923 = vpack.c.b16 %v8515, %v8511
    %v8924 = vpack.c.b16 %v8520, %v8516
    %v8925 = vpack.c.b16 %v8521, %v8517
    %v8926 = vpack.c.b16 %v8522, %v8518
    %v8927 = vpack.c.b16 %v8523, %v8519
    %v8928 = vpack.c.b16 %v8528, %v8524
    %v8929 = vpack.c.b16 %v8529, %v8525
    %v8930 = vpack.c.b16 %v8530, %v8526
    %v8931 = vpack.c.b16 %v8531, %v8527
    %v8932 = vpack.c.b16 %v8536, %v8532
    %v8933 = vpack.c.b16 %v8537, %v8533
    %v8934 = vpack.c.b16 %v8538, %v8534
    %v8935 = vpack.c.b16 %v8539, %v8535
    %v8936 = vpack.c.b16 %v8544, %v8540
    %v8937 = vpack.c.b16 %v8545, %v8541
    %v8938 = vpack.c.b16 %v8546, %v8542
    %v8939 = vpack.c.b16 %v8547, %v8543
    %v8940 = vpack.c.b16 %v8552, %v8548
    %v8941 = vpack.c.b16 %v8553, %v8549
    %v8942 = vpack.c.b16 %v8554, %v8550
    %v8943 = vpack.c.b16 %v8555, %v8551
    %v8944 = vpack.c.b16 %v8560, %v8556
    %v8945 = vpack.c.b16 %v8561, %v8557
    %v8946 = vpack.c.b16 %v8562, %v8558
    %v8947 = vpack.c.b16 %v8563, %v8559
    %v8948 = vpack.c.b16 %v8568, %v8564
    %v8949 = vpack.c.b16 %v8569, %v8565
    %v8950 = vpack.c.b16 %v8570, %v8566
    %v8951 = vpack.c.b16 %v8571, %v8567
    %v8952 = vpack.c.b16 %v8576, %v8572
    %v8953 = vpack.c.b16 %v8577, %v8573
    %v8954 = vpack.c.b16 %v8578, %v8574
    %v8955 = vpack.c.b16 %v8579, %v8575
    %v8956 = vpack.c.b16 %v8584, %v8580
    %v8957 = vpack.c.b16 %v8585, %v8581
    %v8958 = vpack.c.b16 %v8586, %v8582
    %v8959 = vpack.c.b16 %v8587, %v8583
    %v8960 = vpack.c.b16 %v8592, %v8588
    %v8961 = vpack.c.b16 %v8593, %v8589
    %v8962 = vpack.c.b16 %v8594, %v8590
    %v8963 = vpack.c.b16 %v8595, %v8591
    %v8964 = vpack.c.b16 %v8600, %v8596
    %v8965 = vpack.c.b16 %v8601, %v8597
    %v8966 = vpack.c.b16 %v8602, %v8598
    %v8967 = vpack.c.b16 %v8603, %v8599
    %v8968 = vpack.c.b16 %v8608, %v8604
    %v8969 = vpack.c.b16 %v8609, %v8605
    %v8970 = vpack.c.b16 %v8610, %v8606
    %v8971 = vpack.c.b16 %v8611, %v8607
    %v8972 = vpack.c.b16 %v8616, %v8612
    %v8973 = vpack.c.b16 %v8617, %v8613
    %v8974 = vpack.c.b16 %v8618, %v8614
    %v8975 = vpack.c.b16 %v8619, %v8615
    %v8976 = vpack.c.b16 %v8624, %v8620
    %v8977 = vpack.c.b16 %v8625, %v8621
    %v8978 = vpack.c.b16 %v8626, %v8622
    %v8979 = vpack.c.b16 %v8627, %v8623
    %v8980 = vpack.c.b16 %v8632, %v8628
    %v8981 = vpack.c.b16 %v8633, %v8629
    %v8982 = vpack.c.b16 %v8634, %v8630
    %v8983 = vpack.c.b16 %v8635, %v8631
    %v8984 = vpack.c.b16 %v8640, %v8636
    %v8985 = vpack.c.b16 %v8641, %v8637
    %v8986 = vpack.c.b16 %v8642, %v8638
    %v8987 = vpack.c.b16 %v8643, %v8639
    %v8988 = vpack.c.b16 %v8648, %v8644
    %v8989 = vpack.c.b16 %v8649, %v8645
    %v8990 = vpack.c.b16 %v8650, %v8646
    %v8991 = vpack.c.b16 %v8651, %v8647
    %v8992 = vpack.c.b16 %v8656, %v8652
    %v8993 = vpack.c.b16 %v8657, %v8653
    %v8994 = vpack.c.b16 %v8658, %v8654
    %v8995 = vpack.c.b16 %v8659, %v8655
    %v8996 = vpack.c.b16 %v8664, %v8660
    %v8997 = vpack.c.b16 %v8665, %v8661
    %v8998 = vpack.c.b16 %v8666, %v8662
    %v8999 = vpack.c.b16 %v8667, %v8663
    %v9000 = vpack.c.b16 %v8672, %v8668
    %v9001 = vpack.c.b16 %v8673, %v8669
    %v9002 = vpack.c.b16 %v8674, %v8670
    %v9003 = vpack.c.b16 %v8675, %v8671
    %v9004 = vpack.c.b16 %v8680, %v8676
    %v9005 = vpack.c.b16 %v8681, %v8677
    %v9006 = vpack.c.b16 %v8682, %v8678
    %v9007 = vpack.c.b16 %v8683, %v8679
    %v9008 = vpack.c.b16 %v8688, %v8684
    %v9009 = vpack.c.b16 %v8689, %v8685
    %v9010 = vpack.c.b16 %v8690, %v8686
    %v9011 = vpack.c.b16 %v8691, %v8687
    %v9012 = vpack.c.b16 %v8696, %v8692
    %v9013 = vpack.c.b16 %v8697, %v8693
    %v9014 = vpack.c.b16 %v8698, %v8694
    %v9015 = vpack.c.b16 %v8699, %v8695
    %v9016 = vpack.c.b16 %v8704, %v8700
    %v9017 = vpack.c.b16 %v8705, %v8701
    %v9018 = vpack.c.b16 %v8706, %v8702
    %v9019 = vpack.c.b16 %v8707, %v8703
    %v9020 = vpack.c.b16 %v8712, %v8708
    %v9021 = vpack.c.b16 %v8713, %v8709
    %v9022 = vpack.c.b16 %v8714, %v8710
    %v9023 = vpack.c.b16 %v8715, %v8711
    %v9024 = vpack.c.b16 %v8720, %v8716
    %v9025 = vpack.c.b16 %v8721, %v8717
    %v9026 = vpack.c.b16 %v8722, %v8718
    %v9027 = vpack.c.b16 %v8723, %v8719
    %v9028 = vpack.c.b16 %v8728, %v8724
    %v9029 = vpack.c.b16 %v8729, %v8725
    %v9030 = vpack.c.b16 %v8730, %v8726
    %v9031 = vpack.c.b16 %v8731, %v8727
    %v9032 = vpack.c.b16 %v8736, %v8732
    %v9033 = vpack.c.b16 %v8737, %v8733
    %v9034 = vpack.c.b16 %v8738, %v8734
    %v9035 = vpack.c.b16 %v8739, %v8735
    %v9036 = vpack.c.b16 %v8744, %v8740
    %v9037 = vpack.c.b16 %v8745, %v8741
    %v9038 = vpack.c.b16 %v8746, %v8742
    %v9039 = vpack.c.b16 %v8747, %v8743
    %v9040 = vpack.c.b16 %v8752, %v8748
    %v9041 = vpack.c.b16 %v8753, %v8749
    %v9042 = vpack.c.b16 %v8754, %v8750
    %v9043 = vpack.c.b16 %v8755, %v8751
    %v9044 = vpack.c.b16 %v8760, %v8756
    %v9045 = vpack.c.b16 %v8761, %v8757
    %v9046 = vpack.c.b16 %v8762, %v8758
    %v9047 = vpack.c.b16 %v8763, %v8759
    %v9048 = vpack.c.b16 %v8768, %v8764
    %v9049 = vpack.c.b16 %v8769, %v8765
    %v9050 = vpack.c.b16 %v8770, %v8766
    %v9051 = vpack.c.b16 %v8771, %v8767
    %v9052 = vpack.c.b16 %v8776, %v8772
    %v9053 = vpack.c.b16 %v8777, %v8773
    %v9054 = vpack.c.b16 %v8778, %v8774
    %v9055 = vpack.c.b16 %v8779, %v8775
    %v9056 = vpack.c.b16 %v8784, %v8780
    %v9057 = vpack.c.b16 %v8785, %v8781
    %v9058 = vpack.c.b16 %v8786, %v8782
    %v9059 = vpack.c.b16 %v8787, %v8783
    %v9060 = vpack.c.b16 %v8792, %v8788
    %v9061 = vpack.c.b16 %v8793, %v8789
    %v9062 = vpack.c.b16 %v8794, %v8790
    %v9063 = vpack.c.b16 %v8795, %v8791
    %v9064 = vpack.c.b16 %v8800, %v8796
    %v9065 = vpack.c.b16 %v8801, %v8797
    %v9066 = vpack.c.b16 %v8802, %v8798
    %v9067 = vpack.c.b16 %v8803, %v8799
    %v9068 = vpack.c.b16 %v8808, %v8804
    %v9069 = vpack.c.b16 %v8809, %v8805
    %v9070 = vpack.c.b16 %v8810, %v8806
    %v9071 = vpack.c.b16 %v8811, %v8807
    %v9072 = vpack.c.b16 %v8816, %v8812
    %v9073 = vpack.c.b16 %v8817, %v8813
    %v9074 = vpack.c.b16 %v8818, %v8814
    %v9075 = vpack.c.b16 %v8819, %v8815
    %9332 = vmatprep.subr.bf16.mxu0 %v8849
    %9333 = vmatpush1.bf16.msra.mxu0 %v8848
    %9334 = vmatprep.subr.bf16.mxu0 %v8845
    %9335 = vmatpush1.bf16.msra.mxu0 %v8844
    %9336 = vmatprep.subr.bf16.mxu0 %v8841
    %9337 = vmatpush1.bf16.msra.mxu0 %v8840
    %9338 = vmatprep.subr.bf16.mxu0 %v8837
    %9339 = vmatpush1.bf16.msra.mxu0 %v8836
    %9340 = vmatprep.subr.bf16.mxu0 %v8833
    %9341 = vmatpush1.bf16.msra.mxu0 %v8832
    %9342 = vmatprep.subr.bf16.mxu0 %v8829
    %9343 = vmatpush1.bf16.msra.mxu0 %v8828
    %9344 = vmatprep.subr.bf16.mxu0 %v8825
    %9345 = vmatpush1.bf16.msra.mxu0 %v8824
    %9346 = vmatprep.subr.bf16.mxu0 %v8821
    %9347 = vmatpush1.bf16.msra.mxu0 %v8820
    %9348 = vmatprep.subr.bf16.mxu0 %v8881
    %9349 = vmatpush2.bf16.msra.mxu0 %v8880
    %9350 = vmatprep.subr.bf16.mxu0 %v8877
    %9351 = vmatpush2.bf16.msra.mxu0 %v8876
    %9352 = vmatprep.subr.bf16.mxu0 %v8873
    %9353 = vmatpush2.bf16.msra.mxu0 %v8872
    %9354 = vmatprep.subr.bf16.mxu0 %v8869
    %9355 = vmatpush2.bf16.msra.mxu0 %v8868
    %9356 = vmatprep.subr.bf16.mxu0 %v8865
    %9357 = vmatpush2.bf16.msra.mxu0 %v8864
    %9358 = vmatprep.subr.bf16.mxu0 %v8861
    %9359 = vmatpush2.bf16.msra.mxu0 %v8860
    %9360 = vmatprep.subr.bf16.mxu0 %v8857
    %9361 = vmatpush2.bf16.msra.mxu0 %v8856
    %9362 = vmatprep.subr.bf16.mxu0 %v8853
    %9363 = vmatpush2.bf16.msra.mxu0 %v8852
    %9364 = vmatprep.mubr.bf16.mxu0 %v5885
    %9365 = vmatmul.mubr.bf16.gmra.mxu0 %v5884
    %v9366 = vpop.f32.mrf.mxu0
    %v9367 = vadd.f32 %v7872, %v9366
    %v9368 = vpop.f32.mrf.mxu0
    %v9369 = vadd.f32 %v7874, %v9368
    %v9370 = vpop.f32.mrf.mxu0
    %v9371 = vadd.f32 %v7876, %v9370
    %v9372 = vpop.f32.mrf.mxu0
    %v9373 = vadd.f32 %v7878, %v9372
    %9374 = vdwg.mxu0
    %9375 = vmatprep.subr.bf16.mxu0 %v8913
    %9376 = vmatpush1.bf16.msra.mxu0 %v8912
    %9377 = vmatprep.subr.bf16.mxu0 %v8909
    %9378 = vmatpush1.bf16.msra.mxu0 %v8908
    %9379 = vmatprep.subr.bf16.mxu0 %v8905
    %9380 = vmatpush1.bf16.msra.mxu0 %v8904
    %9381 = vmatprep.subr.bf16.mxu0 %v8901
    %9382 = vmatpush1.bf16.msra.mxu0 %v8900
    %9383 = vmatprep.subr.bf16.mxu0 %v8897
    %9384 = vmatpush1.bf16.msra.mxu0 %v8896
    %9385 = vmatprep.subr.bf16.mxu0 %v8893
    %9386 = vmatpush1.bf16.msra.mxu0 %v8892
    %9387 = vmatprep.subr.bf16.mxu0 %v8889
    %9388 = vmatpush1.bf16.msra.mxu0 %v8888
    %9389 = vmatprep.subr.bf16.mxu0 %v8885
    %9390 = vmatpush1.bf16.msra.mxu0 %v8884
    %9391 = vmatprep.subr.bf16.mxu0 %v8945
    %9392 = vmatpush2.bf16.msra.mxu0 %v8944
    %9393 = vmatprep.subr.bf16.mxu0 %v8941
    %9394 = vmatpush2.bf16.msra.mxu0 %v8940
    %9395 = vmatprep.subr.bf16.mxu0 %v8937
    %9396 = vmatpush2.bf16.msra.mxu0 %v8936
    %9397 = vmatprep.subr.bf16.mxu0 %v8933
    %9398 = vmatpush2.bf16.msra.mxu0 %v8932
    %9399 = vmatprep.subr.bf16.mxu0 %v8929
    %9400 = vmatpush2.bf16.msra.mxu0 %v8928
    %9401 = vmatprep.subr.bf16.mxu0 %v8925
    %9402 = vmatpush2.bf16.msra.mxu0 %v8924
    %9403 = vmatprep.subr.bf16.mxu0 %v8921
    %9404 = vmatpush2.bf16.msra.mxu0 %v8920
    %9405 = vmatprep.subr.bf16.mxu0 %v8917
    %9406 = vmatpush2.bf16.msra.mxu0 %v8916
    %9407 = vmatprep.mubr.bf16.mxu0 %v5887
    %9408 = vmatmul.mubr.bf16.gmra.mxu0 %v5886
    %v9409 = vpop.f32.mrf.mxu0
    %v9410 = vadd.f32 %v9367, %v9409
    %v9411 = vpop.f32.mrf.mxu0
    %v9412 = vadd.f32 %v9369, %v9411
    %v9413 = vpop.f32.mrf.mxu0
    %v9414 = vadd.f32 %v9371, %v9413
    %v9415 = vpop.f32.mrf.mxu0
    %v9416 = vadd.f32 %v9373, %v9415
    %9417 = vdwg.mxu0
    %9418 = vmatprep.subr.bf16.mxu0 %v8977
    %9419 = vmatpush1.bf16.msra.mxu0 %v8976
    %9420 = vmatprep.subr.bf16.mxu0 %v8973
    %9421 = vmatpush1.bf16.msra.mxu0 %v8972
    %9422 = vmatprep.subr.bf16.mxu0 %v8969
    %9423 = vmatpush1.bf16.msra.mxu0 %v8968
    %9424 = vmatprep.subr.bf16.mxu0 %v8965
    %9425 = vmatpush1.bf16.msra.mxu0 %v8964
    %9426 = vmatprep.subr.bf16.mxu0 %v8961
    %9427 = vmatpush1.bf16.msra.mxu0 %v8960
    %9428 = vmatprep.subr.bf16.mxu0 %v8957
    %9429 = vmatpush1.bf16.msra.mxu0 %v8956
    %9430 = vmatprep.subr.bf16.mxu0 %v8953
    %9431 = vmatpush1.bf16.msra.mxu0 %v8952
    %9432 = vmatprep.subr.bf16.mxu0 %v8949
    %9433 = vmatpush1.bf16.msra.mxu0 %v8948
    %9434 = vmatprep.subr.bf16.mxu0 %v9009
    %9435 = vmatpush2.bf16.msra.mxu0 %v9008
    %9436 = vmatprep.subr.bf16.mxu0 %v9005
    %9437 = vmatpush2.bf16.msra.mxu0 %v9004
    %9438 = vmatprep.subr.bf16.mxu0 %v9001
    %9439 = vmatpush2.bf16.msra.mxu0 %v9000
    %9440 = vmatprep.subr.bf16.mxu0 %v8997
    %9441 = vmatpush2.bf16.msra.mxu0 %v8996
    %9442 = vmatprep.subr.bf16.mxu0 %v8993
    %9443 = vmatpush2.bf16.msra.mxu0 %v8992
    %9444 = vmatprep.subr.bf16.mxu0 %v8989
    %9445 = vmatpush2.bf16.msra.mxu0 %v8988
    %9446 = vmatprep.subr.bf16.mxu0 %v8985
    %9447 = vmatpush2.bf16.msra.mxu0 %v8984
    %9448 = vmatprep.subr.bf16.mxu0 %v8981
    %9449 = vmatpush2.bf16.msra.mxu0 %v8980
    %9450 = vmatprep.mubr.bf16.mxu0 %v5889
    %9451 = vmatmul.mubr.bf16.gmra.mxu0 %v5888
    %v9452 = vpop.f32.mrf.mxu0
    %v9453 = vadd.f32 %v9410, %v9452
    %v9454 = vpop.f32.mrf.mxu0
    %v9455 = vadd.f32 %v9412, %v9454
    %v9456 = vpop.f32.mrf.mxu0
    %v9457 = vadd.f32 %v9414, %v9456
    %v9458 = vpop.f32.mrf.mxu0
    %v9459 = vadd.f32 %v9416, %v9458
    %9460 = vdwg.mxu0
    %9461 = vmatprep.subr.bf16.mxu0 %v9041
    %9462 = vmatpush1.bf16.msra.mxu0 %v9040
    %9463 = vmatprep.subr.bf16.mxu0 %v9037
    %9464 = vmatpush1.bf16.msra.mxu0 %v9036
    %9465 = vmatprep.subr.bf16.mxu0 %v9033
    %9466 = vmatpush1.bf16.msra.mxu0 %v9032
    %9467 = vmatprep.subr.bf16.mxu0 %v9029
    %9468 = vmatpush1.bf16.msra.mxu0 %v9028
    %9469 = vmatprep.subr.bf16.mxu0 %v9025
    %9470 = vmatpush1.bf16.msra.mxu0 %v9024
    %9471 = vmatprep.subr.bf16.mxu0 %v9021
    %9472 = vmatpush1.bf16.msra.mxu0 %v9020
    %9473 = vmatprep.subr.bf16.mxu0 %v9017
    %9474 = vmatpush1.bf16.msra.mxu0 %v9016
    %9475 = vmatprep.subr.bf16.mxu0 %v9013
    %9476 = vmatpush1.bf16.msra.mxu0 %v9012
    %9477 = vmatprep.subr.bf16.mxu0 %v9073
    %9478 = vmatpush2.bf16.msra.mxu0 %v9072
    %9479 = vmatprep.subr.bf16.mxu0 %v9069
    %9480 = vmatpush2.bf16.msra.mxu0 %v9068
    %9481 = vmatprep.subr.bf16.mxu0 %v9065
    %9482 = vmatpush2.bf16.msra.mxu0 %v9064
    %9483 = vmatprep.subr.bf16.mxu0 %v9061
    %9484 = vmatpush2.bf16.msra.mxu0 %v9060
    %9485 = vmatprep.subr.bf16.mxu0 %v9057
    %9486 = vmatpush2.bf16.msra.mxu0 %v9056
    %9487 = vmatprep.subr.bf16.mxu0 %v9053
    %9488 = vmatpush2.bf16.msra.mxu0 %v9052
    %9489 = vmatprep.subr.bf16.mxu0 %v9049
    %9490 = vmatpush2.bf16.msra.mxu0 %v9048
    %9491 = vmatprep.subr.bf16.mxu0 %v9045
    %9492 = vmatpush2.bf16.msra.mxu0 %v9044
    %9493 = vmatprep.mubr.bf16.mxu0 %v5891
    %9494 = vmatmul.mubr.bf16.gmra.mxu0 %v5890
    %v9495 = vpop.f32.mrf.mxu0
    %v9496 = vadd.f32 %v9453, %v9495
    %v9497 = vpop.f32.mrf.mxu0
    %v9498 = vadd.f32 %v9455, %v9497
    %v9499 = vpop.f32.mrf.mxu0
    %v9500 = vadd.f32 %v9457, %v9499
    %v9501 = vpop.f32.mrf.mxu0
    %v9502 = vadd.f32 %v9459, %v9501
    %9503 = vdwg.mxu0
    %9504 = vmatprep.subr.bf16.mxu0 %v8851
    %9505 = vmatpush1.bf16.msra.mxu0 %v8850
    %9506 = vmatprep.subr.bf16.mxu0 %v8847
    %9507 = vmatpush1.bf16.msra.mxu0 %v8846
    %9508 = vmatprep.subr.bf16.mxu0 %v8843
    %9509 = vmatpush1.bf16.msra.mxu0 %v8842
    %9510 = vmatprep.subr.bf16.mxu0 %v8839
    %9511 = vmatpush1.bf16.msra.mxu0 %v8838
    %9512 = vmatprep.subr.bf16.mxu0 %v8835
    %9513 = vmatpush1.bf16.msra.mxu0 %v8834
    %9514 = vmatprep.subr.bf16.mxu0 %v8831
    %9515 = vmatpush1.bf16.msra.mxu0 %v8830
    %9516 = vmatprep.subr.bf16.mxu0 %v8827
    %9517 = vmatpush1.bf16.msra.mxu0 %v8826
    %9518 = vmatprep.subr.bf16.mxu0 %v8823
    %9519 = vmatpush1.bf16.msra.mxu0 %v8822
    %9520 = vmatprep.subr.bf16.mxu0 %v8883
    %9521 = vmatpush2.bf16.msra.mxu0 %v8882
    %9522 = vmatprep.subr.bf16.mxu0 %v8879
    %9523 = vmatpush2.bf16.msra.mxu0 %v8878
    %9524 = vmatprep.subr.bf16.mxu0 %v8875
    %9525 = vmatpush2.bf16.msra.mxu0 %v8874
    %9526 = vmatprep.subr.bf16.mxu0 %v8871
    %9527 = vmatpush2.bf16.msra.mxu0 %v8870
    %9528 = vmatprep.subr.bf16.mxu0 %v8867
    %9529 = vmatpush2.bf16.msra.mxu0 %v8866
    %9530 = vmatprep.subr.bf16.mxu0 %v8863
    %9531 = vmatpush2.bf16.msra.mxu0 %v8862
    %9532 = vmatprep.subr.bf16.mxu0 %v8859
    %9533 = vmatpush2.bf16.msra.mxu0 %v8858
    %9534 = vmatprep.subr.bf16.mxu0 %v8855
    %9535 = vmatpush2.bf16.msra.mxu0 %v8854
    %9536 = vmatprep.mubr.bf16.mxu0 %v5885
    %9537 = vmatmul.mubr.bf16.gmra.mxu0 %v5884
    %v9538 = vpop.f32.mrf.mxu0
    %v9539 = vadd.f32 %v8044, %v9538
    %v9540 = vpop.f32.mrf.mxu0
    %v9541 = vadd.f32 %v8046, %v9540
    %v9542 = vpop.f32.mrf.mxu0
    %v9543 = vadd.f32 %v8048, %v9542
    %v9544 = vpop.f32.mrf.mxu0
    %v9545 = vadd.f32 %v8050, %v9544
    %9546 = vdwg.mxu0
    %9547 = vmatprep.subr.bf16.mxu0 %v8915
    %9548 = vmatpush1.bf16.msra.mxu0 %v8914
    %9549 = vmatprep.subr.bf16.mxu0 %v8911
    %9550 = vmatpush1.bf16.msra.mxu0 %v8910
    %9551 = vmatprep.subr.bf16.mxu0 %v8907
    %9552 = vmatpush1.bf16.msra.mxu0 %v8906
    %9553 = vmatprep.subr.bf16.mxu0 %v8903
    %9554 = vmatpush1.bf16.msra.mxu0 %v8902
    %9555 = vmatprep.subr.bf16.mxu0 %v8899
    %9556 = vmatpush1.bf16.msra.mxu0 %v8898
    %9557 = vmatprep.subr.bf16.mxu0 %v8895
    %9558 = vmatpush1.bf16.msra.mxu0 %v8894
    %9559 = vmatprep.subr.bf16.mxu0 %v8891
    %9560 = vmatpush1.bf16.msra.mxu0 %v8890
    %9561 = vmatprep.subr.bf16.mxu0 %v8887
    %9562 = vmatpush1.bf16.msra.mxu0 %v8886
    %9563 = vmatprep.subr.bf16.mxu0 %v8947
    %9564 = vmatpush2.bf16.msra.mxu0 %v8946
    %9565 = vmatprep.subr.bf16.mxu0 %v8943
    %9566 = vmatpush2.bf16.msra.mxu0 %v8942
    %9567 = vmatprep.subr.bf16.mxu0 %v8939
    %9568 = vmatpush2.bf16.msra.mxu0 %v8938
    %9569 = vmatprep.subr.bf16.mxu0 %v8935
    %9570 = vmatpush2.bf16.msra.mxu0 %v8934
    %9571 = vmatprep.subr.bf16.mxu0 %v8931
    %9572 = vmatpush2.bf16.msra.mxu0 %v8930
    %9573 = vmatprep.subr.bf16.mxu0 %v8927
    %9574 = vmatpush2.bf16.msra.mxu0 %v8926
    %9575 = vmatprep.subr.bf16.mxu0 %v8923
    %9576 = vmatpush2.bf16.msra.mxu0 %v8922
    %9577 = vmatprep.subr.bf16.mxu0 %v8919
    %9578 = vmatpush2.bf16.msra.mxu0 %v8918
    %9579 = vmatprep.mubr.bf16.mxu0 %v5887
    %9580 = vmatmul.mubr.bf16.gmra.mxu0 %v5886
    %v9581 = vpop.f32.mrf.mxu0
    %v9582 = vadd.f32 %v9539, %v9581
    %v9583 = vpop.f32.mrf.mxu0
    %v9584 = vadd.f32 %v9541, %v9583
    %v9585 = vpop.f32.mrf.mxu0
    %v9586 = vadd.f32 %v9543, %v9585
    %v9587 = vpop.f32.mrf.mxu0
    %v9588 = vadd.f32 %v9545, %v9587
    %9589 = vdwg.mxu0
    %9590 = vmatprep.subr.bf16.mxu0 %v8979
    %9591 = vmatpush1.bf16.msra.mxu0 %v8978
    %9592 = vmatprep.subr.bf16.mxu0 %v8975
    %9593 = vmatpush1.bf16.msra.mxu0 %v8974
    %9594 = vmatprep.subr.bf16.mxu0 %v8971
    %9595 = vmatpush1.bf16.msra.mxu0 %v8970
    %9596 = vmatprep.subr.bf16.mxu0 %v8967
    %9597 = vmatpush1.bf16.msra.mxu0 %v8966
    %9598 = vmatprep.subr.bf16.mxu0 %v8963
    %9599 = vmatpush1.bf16.msra.mxu0 %v8962
    %9600 = vmatprep.subr.bf16.mxu0 %v8959
    %9601 = vmatpush1.bf16.msra.mxu0 %v8958
    %9602 = vmatprep.subr.bf16.mxu0 %v8955
    %9603 = vmatpush1.bf16.msra.mxu0 %v8954
    %9604 = vmatprep.subr.bf16.mxu0 %v8951
    %9605 = vmatpush1.bf16.msra.mxu0 %v8950
    %9606 = vmatprep.subr.bf16.mxu0 %v9011
    %9607 = vmatpush2.bf16.msra.mxu0 %v9010
    %9608 = vmatprep.subr.bf16.mxu0 %v9007
    %9609 = vmatpush2.bf16.msra.mxu0 %v9006
    %9610 = vmatprep.subr.bf16.mxu0 %v9003
    %9611 = vmatpush2.bf16.msra.mxu0 %v9002
    %9612 = vmatprep.subr.bf16.mxu0 %v8999
    %9613 = vmatpush2.bf16.msra.mxu0 %v8998
    %9614 = vmatprep.subr.bf16.mxu0 %v8995
    %9615 = vmatpush2.bf16.msra.mxu0 %v8994
    %9616 = vmatprep.subr.bf16.mxu0 %v8991
    %9617 = vmatpush2.bf16.msra.mxu0 %v8990
    %9618 = vmatprep.subr.bf16.mxu0 %v8987
    %9619 = vmatpush2.bf16.msra.mxu0 %v8986
    %9620 = vmatprep.subr.bf16.mxu0 %v8983
    %9621 = vmatpush2.bf16.msra.mxu0 %v8982
    %9622 = vmatprep.mubr.bf16.mxu0 %v5889
    %9623 = vmatmul.mubr.bf16.gmra.mxu0 %v5888
    %v9624 = vpop.f32.mrf.mxu0
    %v9625 = vadd.f32 %v9582, %v9624
    %v9626 = vpop.f32.mrf.mxu0
    %v9627 = vadd.f32 %v9584, %v9626
    %v9628 = vpop.f32.mrf.mxu0
    %v9629 = vadd.f32 %v9586, %v9628
    %v9630 = vpop.f32.mrf.mxu0
    %v9631 = vadd.f32 %v9588, %v9630
    %9632 = vdwg.mxu0
    %9633 = vmatprep.subr.bf16.mxu0 %v9043
    %9634 = vmatpush1.bf16.msra.mxu0 %v9042
    %9635 = vmatprep.subr.bf16.mxu0 %v9039
    %9636 = vmatpush1.bf16.msra.mxu0 %v9038
    %9637 = vmatprep.subr.bf16.mxu0 %v9035
    %9638 = vmatpush1.bf16.msra.mxu0 %v9034
    %9639 = vmatprep.subr.bf16.mxu0 %v9031
    %9640 = vmatpush1.bf16.msra.mxu0 %v9030
    %9641 = vmatprep.subr.bf16.mxu0 %v9027
    %9642 = vmatpush1.bf16.msra.mxu0 %v9026
    %9643 = vmatprep.subr.bf16.mxu0 %v9023
    %9644 = vmatpush1.bf16.msra.mxu0 %v9022
    %9645 = vmatprep.subr.bf16.mxu0 %v9019
    %9646 = vmatpush1.bf16.msra.mxu0 %v9018
    %9647 = vmatprep.subr.bf16.mxu0 %v9015
    %9648 = vmatpush1.bf16.msra.mxu0 %v9014
    %9649 = vmatprep.subr.bf16.mxu0 %v9075
    %9650 = vmatpush2.bf16.msra.mxu0 %v9074
    %9651 = vmatprep.subr.bf16.mxu0 %v9071
    %9652 = vmatpush2.bf16.msra.mxu0 %v9070
    %9653 = vmatprep.subr.bf16.mxu0 %v9067
    %9654 = vmatpush2.bf16.msra.mxu0 %v9066
    %9655 = vmatprep.subr.bf16.mxu0 %v9063
    %9656 = vmatpush2.bf16.msra.mxu0 %v9062
    %9657 = vmatprep.subr.bf16.mxu0 %v9059
    %9658 = vmatpush2.bf16.msra.mxu0 %v9058
    %9659 = vmatprep.subr.bf16.mxu0 %v9055
    %9660 = vmatpush2.bf16.msra.mxu0 %v9054
    %9661 = vmatprep.subr.bf16.mxu0 %v9051
    %9662 = vmatpush2.bf16.msra.mxu0 %v9050
    %9663 = vmatprep.subr.bf16.mxu0 %v9047
    %9664 = vmatpush2.bf16.msra.mxu0 %v9046
    %9665 = vmatprep.mubr.bf16.mxu0 %v5891
    %9666 = vmatmul.mubr.bf16.gmra.mxu0 %v5890
    %v9667 = vpop.f32.mrf.mxu0
    %v9668 = vadd.f32 %v9625, %v9667
    %v9669 = vpop.f32.mrf.mxu0
    %v9670 = vadd.f32 %v9627, %v9669
    %v9671 = vpop.f32.mrf.mxu0
    %v9672 = vadd.f32 %v9629, %v9671
    %v9673 = vpop.f32.mrf.mxu0
    %v9674 = vadd.f32 %v9631, %v9673
    %9675 = vdwg.mxu0
    %v9676 = vld [vmem:[%s53] sm:$0xf]
    %v9678 = vlaneseq
    %v9679 = vshrl.u32 %v9678, 7
    %v9680 = vsub.s32 0, %v9679
    %v9681 = vrot.slane %v9676, %v9680
    %v9682 = vlaneseq
    %v9683 = vshrl.u32 %v9682, 7
    %v9684 = vsub.s32 1, %v9683
    %v9685 = vrot.slane %v9676, %v9684
    %v9686 = vlaneseq
    %v9687 = vshrl.u32 %v9686, 7
    %v9688 = vsub.s32 2, %v9687
    %v9689 = vrot.slane %v9676, %v9688
    %v9690 = vlaneseq
    %v9691 = vshrl.u32 %v9690, 7
    %v9692 = vsub.s32 3, %v9691
    %v9693 = vrot.slane %v9676, %v9692
    %v9698 = vadd.f32 %v9496, %v9681
    %v9699 = vadd.f32 %v9498, %v9685
    %v9700 = vadd.f32 %v9668, %v9689
    %v9701 = vadd.f32 %v9670, %v9693
    %v9702 = vadd.f32 %v9500, %v9681
    %v9703 = vadd.f32 %v9502, %v9685
    %v9704 = vadd.f32 %v9672, %v9689
    %v9705 = vadd.f32 %v9674, %v9693
    %v9706 = vmax.f32 %v9698, 0.0
    %v9707 = vmax.f32 %v9699, 0.0
    %v9708 = vmax.f32 %v9700, 0.0
    %v9709 = vmax.f32 %v9701, 0.0
    %v9710 = vmax.f32 %v9702, 0.0
    %v9711 = vmax.f32 %v9703, 0.0
    %v9712 = vmax.f32 %v9704, 0.0
    %v9713 = vmax.f32 %v9705, 0.0
    %v9714 = vld [vmem:[%s55] sm:$0xff]
    %v9715 = vld [vmem:[%s55 + $0x8] sm:$0xff]
    %v9716 = vld [vmem:[%s55 + $0x10] sm:$0xff]
    %v9717 = vld [vmem:[%s55 + $0x18] sm:$0xff]
    %v9718 = vld [vmem:[%s55 + $0x20] sm:$0xff]
    %v9719 = vld [vmem:[%s55 + $0x28] sm:$0xff]
    %v9720 = vld [vmem:[%s55 + $0x30] sm:$0xff]
    %v9721 = vld [vmem:[%s55 + $0x38] sm:$0xff]
    %v9722 = vld [vmem:[%s55 + $0x40] sm:$0xff]
    %v9723 = vld [vmem:[%s55 + $0x48] sm:$0xff]
    %v9724 = vld [vmem:[%s55 + $0x50] sm:$0xff]
    %v9725 = vld [vmem:[%s55 + $0x58] sm:$0xff]
    %v9726 = vld [vmem:[%s55 + $0x60] sm:$0xff]
    %v9727 = vld [vmem:[%s55 + $0x68] sm:$0xff]
    %v9728 = vld [vmem:[%s55 + $0x70] sm:$0xff]
    %v9729 = vld [vmem:[%s55 + $0x78] sm:$0xff]
    %v9730 = vld [vmem:[%s55 + $0x80] sm:$0xff]
    %v9731 = vld [vmem:[%s55 + $0x88] sm:$0xff]
    %v9732 = vld [vmem:[%s55 + $0x90] sm:$0xff]
    %v9733 = vld [vmem:[%s55 + $0x98] sm:$0xff]
    %v9734 = vld [vmem:[%s55 + $0xa0] sm:$0xff]
    %v9735 = vld [vmem:[%s55 + $0xa8] sm:$0xff]
    %v9736 = vld [vmem:[%s55 + $0xb0] sm:$0xff]
    %v9737 = vld [vmem:[%s55 + $0xb8] sm:$0xff]
    %v9738 = vld [vmem:[%s55 + $0xc0] sm:$0xff]
    %v9739 = vld [vmem:[%s55 + $0xc8] sm:$0xff]
    %v9740 = vld [vmem:[%s55 + $0xd0] sm:$0xff]
    %v9741 = vld [vmem:[%s55 + $0xd8] sm:$0xff]
    %v9742 = vld [vmem:[%s55 + $0xe0] sm:$0xff]
    %v9743 = vld [vmem:[%s55 + $0xe8] sm:$0xff]
    %v9744 = vld [vmem:[%s55 + $0xf0] sm:$0xff]
    %v9745 = vld [vmem:[%s55 + $0xf8] sm:$0xff]
    %v9746 = vld [vmem:[%s55 + $0x100] sm:$0xff]
    %v9747 = vld [vmem:[%s55 + $0x108] sm:$0xff]
    %v9748 = vld [vmem:[%s55 + $0x110] sm:$0xff]
    %v9749 = vld [vmem:[%s55 + $0x118] sm:$0xff]
    %v9750 = vld [vmem:[%s55 + $0x120] sm:$0xff]
    %v9751 = vld [vmem:[%s55 + $0x128] sm:$0xff]
    %v9752 = vld [vmem:[%s55 + $0x130] sm:$0xff]
    %v9753 = vld [vmem:[%s55 + $0x138] sm:$0xff]
    %v9754 = vld [vmem:[%s55 + $0x140] sm:$0xff]
    %v9755 = vld [vmem:[%s55 + $0x148] sm:$0xff]
    %v9756 = vld [vmem:[%s55 + $0x150] sm:$0xff]
    %v9757 = vld [vmem:[%s55 + $0x158] sm:$0xff]
    %v9758 = vld [vmem:[%s55 + $0x160] sm:$0xff]
    %v9759 = vld [vmem:[%s55 + $0x168] sm:$0xff]
    %v9760 = vld [vmem:[%s55 + $0x170] sm:$0xff]
    %v9761 = vld [vmem:[%s55 + $0x178] sm:$0xff]
    %v9762 = vld [vmem:[%s55 + $0x180] sm:$0xff]
    %v9763 = vld [vmem:[%s55 + $0x188] sm:$0xff]
    %v9764 = vld [vmem:[%s55 + $0x190] sm:$0xff]
    %v9765 = vld [vmem:[%s55 + $0x198] sm:$0xff]
    %v9766 = vld [vmem:[%s55 + $0x1a0] sm:$0xff]
    %v9767 = vld [vmem:[%s55 + $0x1a8] sm:$0xff]
    %v9768 = vld [vmem:[%s55 + $0x1b0] sm:$0xff]
    %v9769 = vld [vmem:[%s55 + $0x1b8] sm:$0xff]
    %v9770 = vld [vmem:[%s55 + $0x1c0] sm:$0xff]
    %v9771 = vld [vmem:[%s55 + $0x1c8] sm:$0xff]
    %v9772 = vld [vmem:[%s55 + $0x1d0] sm:$0xff]
    %v9773 = vld [vmem:[%s55 + $0x1d8] sm:$0xff]
    %v9774 = vld [vmem:[%s55 + $0x1e0] sm:$0xff]
    %v9775 = vld [vmem:[%s55 + $0x1e8] sm:$0xff]
    %v9776 = vld [vmem:[%s55 + $0x1f0] sm:$0xff]
    %v9777 = vld [vmem:[%s55 + $0x1f8] sm:$0xff]
    %v9778 = vld [vmem:[#allocation2] sm:$0x1]
    %v9780 = vlaneseq
    %v9781 = vshrl.u32 %v9780, 7
    %v9782 = vsub.s32 0, %v9781
    %v9783 = vrot.slane %v9778, %v9782
    %9785 = vmatprep.subr.mxu0 0.0
    %9786 = vmatpush1.msra.mxu0 %v9729
    %9787 = vmatprep.subr.mxu0 0.0
    %9788 = vmatpush1.msra.mxu0 %v9728
    %9789 = vmatprep.subr.mxu0 0.0
    %9790 = vmatpush1.msra.mxu0 %v9727
    %9791 = vmatprep.subr.mxu0 0.0
    %9792 = vmatpush1.msra.mxu0 %v9726
    %9793 = vmatprep.subr.mxu0 0.0
    %9794 = vmatpush1.msra.mxu0 %v9725
    %9795 = vmatprep.subr.mxu0 0.0
    %9796 = vmatpush1.msra.mxu0 %v9724
    %9797 = vmatprep.subr.mxu0 0.0
    %9798 = vmatpush1.msra.mxu0 %v9723
    %9799 = vmatprep.subr.mxu0 0.0
    %9800 = vmatpush1.msra.mxu0 %v9722
    %9801 = vmatprep.subr.mxu0 0.0
    %9802 = vmatpush1.msra.mxu0 %v9721
    %9803 = vmatprep.subr.mxu0 0.0
    %9804 = vmatpush1.msra.mxu0 %v9720
    %9805 = vmatprep.subr.mxu0 0.0
    %9806 = vmatpush1.msra.mxu0 %v9719
    %9807 = vmatprep.subr.mxu0 0.0
    %9808 = vmatpush1.msra.mxu0 %v9718
    %9809 = vmatprep.subr.mxu0 0.0
    %9810 = vmatpush1.msra.mxu0 %v9717
    %9811 = vmatprep.subr.mxu0 0.0
    %9812 = vmatpush1.msra.mxu0 %v9716
    %9813 = vmatprep.subr.mxu0 0.0
    %9814 = vmatpush1.msra.mxu0 %v9715
    %9815 = vmatprep.subr.mxu0 0.0
    %9816 = vmatpush1.msra.mxu0 %v9714
    %9817 = vmatprep.subr.mxu0 0.0
    %9818 = vmatpush2.msra.mxu0 %v9745
    %9819 = vmatprep.subr.mxu0 0.0
    %9820 = vmatpush2.msra.mxu0 %v9744
    %9821 = vmatprep.subr.mxu0 0.0
    %9822 = vmatpush2.msra.mxu0 %v9743
    %9823 = vmatprep.subr.mxu0 0.0
    %9824 = vmatpush2.msra.mxu0 %v9742
    %9825 = vmatprep.subr.mxu0 0.0
    %9826 = vmatpush2.msra.mxu0 %v9741
    %9827 = vmatprep.subr.mxu0 0.0
    %9828 = vmatpush2.msra.mxu0 %v9740
    %9829 = vmatprep.subr.mxu0 0.0
    %9830 = vmatpush2.msra.mxu0 %v9739
    %9831 = vmatprep.subr.mxu0 0.0
    %9832 = vmatpush2.msra.mxu0 %v9738
    %9833 = vmatprep.subr.mxu0 0.0
    %9834 = vmatpush2.msra.mxu0 %v9737
    %9835 = vmatprep.subr.mxu0 0.0
    %9836 = vmatpush2.msra.mxu0 %v9736
    %9837 = vmatprep.subr.mxu0 0.0
    %9838 = vmatpush2.msra.mxu0 %v9735
    %9839 = vmatprep.subr.mxu0 0.0
    %9840 = vmatpush2.msra.mxu0 %v9734
    %9841 = vmatprep.subr.mxu0 0.0
    %9842 = vmatpush2.msra.mxu0 %v9733
    %9843 = vmatprep.subr.mxu0 0.0
    %9844 = vmatpush2.msra.mxu0 %v9732
    %9845 = vmatprep.subr.mxu0 0.0
    %9846 = vmatpush2.msra.mxu0 %v9731
    %9847 = vmatprep.subr.mxu0 0.0
    %9848 = vmatpush2.msra.mxu0 %v9730
    %9849 = vmatprep.mubr.f32.mxu0 %v9707
    %9850 = vmatmul.mubr.f32.gmra.mxu0 %v9706
    %v9851 = vpop.f32.mrf.mxu0
    %v9852 = vadd.f32 %v9783, %v9851
    %v9853 = vpop.f32.mrf.mxu0
    %9854 = vmatprep.mubr.f32.mxu0 %v9711
    %9855 = vmatmul.mubr.f32.gmra.mxu0 %v9710
    %v9856 = vpop.f32.mrf.mxu0
    %v9857 = vadd.f32 %v9783, %v9856
    %v9858 = vpop.f32.mrf.mxu0
    %9859 = vdwg.mxu0
    %9860 = vmatprep.subr.mxu0 0.0
    %9861 = vmatpush1.msra.mxu0 %v9761
    %9862 = vmatprep.subr.mxu0 0.0
    %9863 = vmatpush1.msra.mxu0 %v9760
    %9864 = vmatprep.subr.mxu0 0.0
    %9865 = vmatpush1.msra.mxu0 %v9759
    %9866 = vmatprep.subr.mxu0 0.0
    %9867 = vmatpush1.msra.mxu0 %v9758
    %9868 = vmatprep.subr.mxu0 0.0
    %9869 = vmatpush1.msra.mxu0 %v9757
    %9870 = vmatprep.subr.mxu0 0.0
    %9871 = vmatpush1.msra.mxu0 %v9756
    %9872 = vmatprep.subr.mxu0 0.0
    %9873 = vmatpush1.msra.mxu0 %v9755
    %9874 = vmatprep.subr.mxu0 0.0
    %9875 = vmatpush1.msra.mxu0 %v9754
    %9876 = vmatprep.subr.mxu0 0.0
    %9877 = vmatpush1.msra.mxu0 %v9753
    %9878 = vmatprep.subr.mxu0 0.0
    %9879 = vmatpush1.msra.mxu0 %v9752
    %9880 = vmatprep.subr.mxu0 0.0
    %9881 = vmatpush1.msra.mxu0 %v9751
    %9882 = vmatprep.subr.mxu0 0.0
    %9883 = vmatpush1.msra.mxu0 %v9750
    %9884 = vmatprep.subr.mxu0 0.0
    %9885 = vmatpush1.msra.mxu0 %v9749
    %9886 = vmatprep.subr.mxu0 0.0
    %9887 = vmatpush1.msra.mxu0 %v9748
    %9888 = vmatprep.subr.mxu0 0.0
    %9889 = vmatpush1.msra.mxu0 %v9747
    %9890 = vmatprep.subr.mxu0 0.0
    %9891 = vmatpush1.msra.mxu0 %v9746
    %9892 = vmatprep.subr.mxu0 0.0
    %9893 = vmatpush2.msra.mxu0 %v9777
    %9894 = vmatprep.subr.mxu0 0.0
    %9895 = vmatpush2.msra.mxu0 %v9776
    %9896 = vmatprep.subr.mxu0 0.0
    %9897 = vmatpush2.msra.mxu0 %v9775
    %9898 = vmatprep.subr.mxu0 0.0
    %9899 = vmatpush2.msra.mxu0 %v9774
    %9900 = vmatprep.subr.mxu0 0.0
    %9901 = vmatpush2.msra.mxu0 %v9773
    %9902 = vmatprep.subr.mxu0 0.0
    %9903 = vmatpush2.msra.mxu0 %v9772
    %9904 = vmatprep.subr.mxu0 0.0
    %9905 = vmatpush2.msra.mxu0 %v9771
    %9906 = vmatprep.subr.mxu0 0.0
    %9907 = vmatpush2.msra.mxu0 %v9770
    %9908 = vmatprep.subr.mxu0 0.0
    %9909 = vmatpush2.msra.mxu0 %v9769
    %9910 = vmatprep.subr.mxu0 0.0
    %9911 = vmatpush2.msra.mxu0 %v9768
    %9912 = vmatprep.subr.mxu0 0.0
    %9913 = vmatpush2.msra.mxu0 %v9767
    %9914 = vmatprep.subr.mxu0 0.0
    %9915 = vmatpush2.msra.mxu0 %v9766
    %9916 = vmatprep.subr.mxu0 0.0
    %9917 = vmatpush2.msra.mxu0 %v9765
    %9918 = vmatprep.subr.mxu0 0.0
    %9919 = vmatpush2.msra.mxu0 %v9764
    %9920 = vmatprep.subr.mxu0 0.0
    %9921 = vmatpush2.msra.mxu0 %v9763
    %9922 = vmatprep.subr.mxu0 0.0
    %9923 = vmatpush2.msra.mxu0 %v9762
    %9924 = vmatprep.mubr.f32.mxu0 %v9709
    %9925 = vmatmul.mubr.f32.gmra.mxu0 %v9708
    %v9926 = vpop.f32.mrf.mxu0
    %v9927 = vadd.f32 %v9852, %v9926
    %v9928 = vpop.f32.mrf.mxu0
    %9929 = vmatprep.mubr.f32.mxu0 %v9713
    %9930 = vmatmul.mubr.f32.gmra.mxu0 %v9712
    %v9931 = vpop.f32.mrf.mxu0
    %v9932 = vadd.f32 %v9857, %v9931
    %v9933 = vpop.f32.mrf.mxu0
    %9934 = vdwg.mxu0
    %vm9935 = vcmask 7168
    %9936 = vst.msk [vmem:[%s65] sm:$0xff] %vm9935, %v9927
    %9937 = vst.msk [vmem:[%s65 + $0x8] sm:$0xff] %vm9935, %v9932
    // Predicated region
    $region118: #{_lambda_.1} parent=1 // pred_check
      _
    $region119: #{_lambda_.1} parent=1 // pred_check_branch
      %9939 = sbr.rel (0) target = $region121
    $region120: #{_lambda_.1} parent=1 // pred_region
      _
    $region121: #{_lambda_.1} parent=1 // pred_fallthru
      _
    // Predicated region
    $region122: #{_lambda_.1} parent=1 // pred_check
      _
    $region123: #{_lambda_.1} parent=1 // pred_check_branch
      %9941 = sbr.rel (0) target = $region125
    $region124: #{_lambda_.1} parent=1 // pred_region
      %s9943 = ssub.s32 2048, 2048
      %9944 = vsyncadd [#allocation4], %s9943
      %s9945 = sshll.u32 [#allocation3], 4
      %s9946 = int_to_ptr.vmem [resolvable:$true] %s9945
      %9951 = dma.vmem_to_hbm [thread:$0]  %s9946, 2048, %s61, [#allocation4], 1024, 1024, 64
    $region125: #{_lambda_.1} parent=1 // pred_fallthru
      _
    // Predicated region
    $region126: #{_lambda_.1} parent=1 // pred_check
      _
    $region127: #{_lambda_.1} parent=1 // pred_check_branch
      %9953 = sbr.rel (0) target = $region129
    $region128: #{_lambda_.1} parent=1 // pred_region
      _
    $region129: #{_lambda_.1} parent=1 // pred_fallthru
      _
    // Predicated region
    $region130: #{_lambda_.1} parent=1 // pred_check
      _
    $region131: #{_lambda_.1} parent=1 // pred_check_branch
      %9955 = sbr.rel (0) target = $region133
    $region132: #{_lambda_.1} parent=1 // pred_region
      _
    $region133: #{_lambda_.1} parent=1 // pred_fallthru
      _
    // Predicated region
    $region134: #{_lambda_.1} parent=1 // pred_check
      _
    $region135: #{_lambda_.1} parent=1 // pred_check_branch
      %9957 = sbr.rel (0) target = $region137
    $region136: #{_lambda_.1} parent=1 // pred_region
      _
    $region137: #{_lambda_.1} parent=1 // pred_fallthru
      _
    // Predicated region
    $region138: #{_lambda_.1} parent=1 // pred_check
      _
    $region139: #{_lambda_.1} parent=1 // pred_check_branch
      %9959 = sbr.rel (0) target = $region141
    $region140: #{_lambda_.1} parent=1 // pred_region
      %9960 = dma.done [#allocation4], 2048
    $region141: #{_lambda_.1} parent=1 // pred_fallthru
      _
    // Predicated region
    $region142: #{_lambda_.1} parent=1 // pred_check
      _
    $region143: #{_lambda_.1} parent=1 // pred_check_branch
      %9962 = sbr.rel (0) target = $region145
    $region144: #{_lambda_.1} parent=1 // pred_region
      _
    $region145: #{_lambda_.1} parent=1 // pred_fallthru
      _
    // Predicated region
    $region146: #{_lambda_.1} parent=1 // pred_check
      _
    $region147: #{_lambda_.1} parent=1 // pred_check_branch
      %9964 = sbr.rel (0) target = $region149
    $region148: #{_lambda_.1} parent=1 // pred_region
      _
    $region149: #{_lambda_.1} parent=1 // pred_fallthru
      _
    %9965 = vsyncpa [#allocation4], 1

</llo_original>
